<compile_context>
chip_gen: v7x
topology: tpu7x:2x2x1
jax: 0.10.0
libtpu: 0.0.40
codegen_flags: <defaults>
</compile_context>

<pallas_src>
import functools

import jax
import jax.numpy as jnp
from jax import lax
from jax.experimental import pallas as pl
from jax.experimental.pallas import tpu as pltpu


def _make_mcunit_kernel(H, W, C, TH):
    Te, We = TH + 4, W + 4  # branch outputs carry a +/-2 halo for the cat 5x5 conv

    def _im2col(src, K, oh, ow):
        """src: (oh+K-1, ow+K-1, Cin) -> (oh*ow, K*K*Cin) patch matrix."""
        cin = src.shape[-1]
        taps = [src[kh:kh + oh, kw:kw + ow, :] for kh in range(K) for kw in range(K)]
        p = taps[0] if K == 1 else jnp.concatenate(taps, axis=-1)
        return p.reshape(oh * ow, K * K * cin)

    def kernel(xp_ref, r_ref, w3_ref, b3_ref, w5_ref, b5_ref,
               wc5_ref, bc5_ref, wc1_ref, bc1_ref, o_ref):
        h = pl.program_id(1)
        row0 = pl.multiple_of(h * TH, TH)

        # Row tile + 4-row halo of the (zero-padded-by-4) image: (TH+8, W+8, C), f32.
        xt = xp_ref[0, pl.ds(row0, TH + 8), :, :]

        # --- branch convs (act='ReLU'), evaluated on the +/-2 extended window --------
        p3 = _im2col(xt[1:TH + 7, 1:W + 7, :], 3, Te, We)              # (Te*We, 9C)
        a = jnp.dot(p3.astype(jnp.bfloat16), w3_ref[...],
                    preferred_element_type=jnp.float32) + b3_ref[...]
        a = jnp.maximum(a, 0.0).reshape(Te, We, C)

        p5 = _im2col(xt, 5, Te, We)                                    # (Te*We, 25C)
        b = jnp.dot(p5.astype(jnp.bfloat16), w5_ref[...],
                    preferred_element_type=jnp.float32) + b5_ref[...]
        b = jnp.maximum(b, 0.0).reshape(Te, We, C)

        # The cat conv zero-pads `cat`, so halo positions outside the image must be 0
        # (not the branch conv evaluated over padded x) -> mask them.
        grow = lax.broadcasted_iota(jnp.int32, (Te, We, 1), 0) + (row0 - 2)
        gcol = lax.broadcasted_iota(jnp.int32, (Te, We, 1), 1) - 2
        keep = ((grow >= 0) & (grow < H) & (gcol >= 0) & (gcol < W)).astype(jnp.float32)

        # cat Sequential: ReLU (no-op here: a, b >= 0 already) -> 5x5 (2C->2C) -> 1x1.
        ab = jnp.concatenate([a * keep, b * keep], axis=-1)            # (Te, We, 2C)
        pc = _im2col(ab, 5, TH, W)                                     # (TH*W, 50C)
        y = jnp.dot(pc.astype(jnp.bfloat16), wc5_ref[...],
                    preferred_element_type=jnp.float32) + bc5_ref[...]
        y = jnp.dot(y.astype(jnp.bfloat16), wc1_ref[...],
                    preferred_element_type=jnp.float32) + bc1_ref[...]  # (TH*W, C)

        # RMC residual add + store.
        out = y + r_ref[0].reshape(TH * W, C)
        o_ref[0, :, :, :] = out.reshape(TH, W, C).astype(o_ref.dtype)

    return kernel


def mcunit_pallas(x, res, wp, *, tile_h):
    """One fused MCUnit + RMC residual.  x, res: (N, H, W, C) NHWC, f32."""
    N, H, W, C = x.shape
    TH = tile_h

    # One zero-pad per MCUnit; halo 4 = branch-5x5 (2) + cat-5x5 (2) receptive field.
    xp = jnp.pad(x, ((0, 0), (4, 4), (4, 4), (0, 0)))

    kernel = _make_mcunit_kernel(H, W, C, TH)
    w_res = lambda n, h: (0, 0)  # weights/biases: constant block -> resident in VMEM

    return pl.pallas_call(
        kernel,
        out_shape=jax.ShapeDtypeStruct((N, H, W, C), x.dtype),
        grid_spec=pltpu.PrefetchScalarGridSpec(
            num_scalar_prefetch=0,
            grid=(N, H // TH),
            in_specs=[
                # Full padded image per n; revisited (no re-DMA) across the row-tile axis.
                pl.BlockSpec((1, H + 8, W + 8, C), lambda n, h: (n, 0, 0, 0)),
                # RMC residual (original network input), row-tiled.
                pl.BlockSpec((1, TH, W, C), lambda n, h: (n, h, 0, 0)),
                pl.BlockSpec(wp["w3"].shape, w_res),
                pl.BlockSpec(wp["b3"].shape, w_res),
                pl.BlockSpec(wp["w5"].shape, w_res),
                pl.BlockSpec(wp["b5"].shape, w_res),
                pl.BlockSpec(wp["wc5"].shape, w_res),
                pl.BlockSpec(wp["bc5"].shape, w_res),
                pl.BlockSpec(wp["wc1"].shape, w_res),
                pl.BlockSpec(wp["bc1"].shape, w_res),
            ],
            out_specs=pl.BlockSpec((1, TH, W, C), lambda n, h: (n, h, 0, 0)),
        ),
        compiler_params=pltpu.CompilerParams(
            # Batch axis shards across the 2 TensorCores on v7x; row-tile axis is a
            # plain sequential loop (independent tiles, but it revisits the x block).
            dimension_semantics=("parallel", "arbitrary"),
            # Per-step working set is well under 1 MiB at these shapes; 32 MiB leaves
            # ample headroom on v7x (64 MiB physical) and is explicit for v5e's 16 MiB
            # scoped default.
            vmem_limit_bytes=32 * 1024 * 1024,
        ),
    )(xp, res, wp["w3"], wp["b3"], wp["w5"], wp["b5"],
      wp["wc5"], wp["bc5"], wp["wc1"], wp["bc1"])


def _prep_weights(params):
    """Flatten HWIO conv weights to im2col matrices (bf16 for the MXU, f32 biases)."""
    def wmat(w):  # (K, K, Cin, Cout) -> (K*K*Cin, Cout)
        K, _, cin, cout = w.shape
        return w.reshape(K * K * cin, cout).astype(jnp.bfloat16)

    def brow(b):
        return b.reshape(1, -1).astype(jnp.float32)

    return {"w3": wmat(params["w3"]), "b3": brow(params["b3"]),
            "w5": wmat(params["w5"]), "b5": brow(params["b5"]),
            "wc5": wmat(params["wc5"]), "bc5": brow(params["bc5"]),
            "wc1": wmat(params["wc1"]), "bc1": brow(params["bc1"])}


def init_params(key, num_features):
    """Deterministic synthetic parameters matching MCUnit's layer shapes (HWIO)."""
    c = num_features
    ks = jax.random.split(key, 8)
    scale = 0.1

    def w(k, shape):
        return (scale * jax.random.normal(k, shape)).astype(jnp.float32)

    return {
        # conv_3x3: C -> C, k=3, pad=1, ReLU
        "w3": w(ks[0], (3, 3, c, c)),
        "b3": w(ks[1], (c,)),
        # conv_5x5: C -> C, k=5, pad=2, ReLU
        "w5": w(ks[2], (5, 5, c, c)),
        "b5": w(ks[3], (c,)),
        # cat[1]: 2C -> 2C, k=5, pad=2, no act (preceded by the cat ReLU)
        "wc5": w(ks[4], (5, 5, 2 * c, 2 * c)),
        "bc5": w(ks[5], (2 * c,)),
        # cat[2]: 2C -> C, k=1, pad=0, no act
        "wc1": w(ks[6], (1, 1, 2 * c, c)),
        "bc1": w(ks[7], (c,)),
    }


@functools.partial(jax.jit, static_argnames=("num_blocks", "tile_h"))
def rmc_forward(x_nchw, params, num_blocks, tile_h=8):
    # layout: NCHW (PyTorch) -> NHWC for the TPU kernel, back at the end.
    x = jnp.transpose(x_nchw, (0, 2, 3, 1))
    N, H, W, C = x.shape
    th = tile_h if H % tile_h == 0 else H
    wp = _prep_weights(params)                 # shared `layer` weights, prepped once
    out = x
    for _ in range(num_blocks):                # out = MCUnit(out) + inputs
        out = mcunit_pallas(out, x, wp, tile_h=th)
    return jnp.transpose(out, (0, 3, 1, 2))


if __name__ == "__main__":
    num_features = 4
    num_blocks = 2
    N, H, W = 2, 16, 16

    key = jax.random.PRNGKey(0)
    kx, kp = jax.random.split(key)
    x = jax.random.normal(kx, (N, num_features, H, W), dtype=jnp.float32)
    params = init_params(kp, num_features)

    out = rmc_forward(x, params, num_blocks)
    out = jax.block_until_ready(out)
    assert out.shape == (N, num_features, H, W), out.shape
    print("KERNEL_OK")
</pallas_src>

<mosaic_0001>
module attributes {stable_mosaic.version = 11 : i64} {
  func.func @kernel(%arg0: i32, %arg1: i32, %arg2: memref<1x24x24x4xf32, #tpu.memory_space<vmem>>, %arg3: memref<1x8x16x4xf32, #tpu.memory_space<vmem>>, %arg4: memref<36x4xbf16, #tpu.memory_space<vmem>>, %arg5: memref<1x4xf32, #tpu.memory_space<vmem>>, %arg6: memref<100x4xbf16, #tpu.memory_space<vmem>>, %arg7: memref<1x4xf32, #tpu.memory_space<vmem>>, %arg8: memref<200x8xbf16, #tpu.memory_space<vmem>>, %arg9: memref<1x8xf32, #tpu.memory_space<vmem>>, %arg10: memref<8x4xbf16, #tpu.memory_space<vmem>>, %arg11: memref<1x4xf32, #tpu.memory_space<vmem>>, %arg12: memref<1x8x16x4xf32, #tpu.memory_space<vmem>>) attributes {dimension_semantics = [#tpu.dimension_semantics<parallel>, #tpu.dimension_semantics<arbitrary>], iteration_bounds = array<i64: 2, 2>, scalar_prefetch = 0 : i64, scratch_operands = 0 : i64, tpu.core_type = #tpu.core_type<tc>, window_params = [{transform_indices = @transform_0, window_bounds = array<i64: 1, 24, 24, 4>}, {transform_indices = @transform_1, window_bounds = array<i64: 1, 8, 16, 4>}, {pipeline_mode = #tpu.pipeline_mode<synchronous>, transform_indices = @transform_2, window_bounds = array<i64: 36, 4>}, {pipeline_mode = #tpu.pipeline_mode<synchronous>, transform_indices = @transform_3, window_bounds = array<i64: 1, 4>}, {pipeline_mode = #tpu.pipeline_mode<synchronous>, transform_indices = @transform_4, window_bounds = array<i64: 100, 4>}, {pipeline_mode = #tpu.pipeline_mode<synchronous>, transform_indices = @transform_5, window_bounds = array<i64: 1, 4>}, {pipeline_mode = #tpu.pipeline_mode<synchronous>, transform_indices = @transform_6, window_bounds = array<i64: 200, 8>}, {pipeline_mode = #tpu.pipeline_mode<synchronous>, transform_indices = @transform_7, window_bounds = array<i64: 1, 8>}, {pipeline_mode = #tpu.pipeline_mode<synchronous>, transform_indices = @transform_8, window_bounds = array<i64: 8, 4>}, {pipeline_mode = #tpu.pipeline_mode<synchronous>, transform_indices = @transform_9, window_bounds = array<i64: 1, 4>}, {transform_indices = @transform_10, window_bounds = array<i64: 1, 8, 16, 4>}]} {
    %c8_i32 = arith.constant 8 : i32
    %0 = arith.muli %arg1, %c8_i32 : i32
    %1 = tpu.assume_multiple %0, 8 : i32
    %c0 = arith.constant 0 : index
    %2 = arith.index_cast %1 : i32 to index
    %c0_0 = arith.constant 0 : index
    %c0_1 = arith.constant 0 : index
    %3 = vector.load %arg2[%c0, %2, %c0_0, %c0_1] : memref<1x24x24x4xf32, #tpu.memory_space<vmem>>, vector<1x16x24x4xf32>
    %4 = vector.shape_cast %3 : vector<1x16x24x4xf32> to vector<16x24x4xf32>
    %5 = vector.extract_strided_slice %4 {offsets = [1, 1, 0], sizes = [14, 22, 4], strides = [1, 1, 1]} : vector<16x24x4xf32> to vector<14x22x4xf32>
    %6 = vector.extract_strided_slice %5 {offsets = [0, 0, 0], sizes = [12, 20, 4], strides = [1, 1, 1]} : vector<14x22x4xf32> to vector<12x20x4xf32>
    %7 = vector.extract_strided_slice %5 {offsets = [0, 1, 0], sizes = [12, 20, 4], strides = [1, 1, 1]} : vector<14x22x4xf32> to vector<12x20x4xf32>
    %8 = vector.extract_strided_slice %5 {offsets = [0, 2, 0], sizes = [12, 20, 4], strides = [1, 1, 1]} : vector<14x22x4xf32> to vector<12x20x4xf32>
    %9 = vector.extract_strided_slice %5 {offsets = [1, 0, 0], sizes = [12, 20, 4], strides = [1, 1, 1]} : vector<14x22x4xf32> to vector<12x20x4xf32>
    %10 = vector.extract_strided_slice %5 {offsets = [1, 1, 0], sizes = [12, 20, 4], strides = [1, 1, 1]} : vector<14x22x4xf32> to vector<12x20x4xf32>
    %11 = vector.extract_strided_slice %5 {offsets = [1, 2, 0], sizes = [12, 20, 4], strides = [1, 1, 1]} : vector<14x22x4xf32> to vector<12x20x4xf32>
    %12 = vector.extract_strided_slice %5 {offsets = [2, 0, 0], sizes = [12, 20, 4], strides = [1, 1, 1]} : vector<14x22x4xf32> to vector<12x20x4xf32>
    %13 = vector.extract_strided_slice %5 {offsets = [2, 1, 0], sizes = [12, 20, 4], strides = [1, 1, 1]} : vector<14x22x4xf32> to vector<12x20x4xf32>
    %14 = vector.extract_strided_slice %5 {offsets = [2, 2, 0], sizes = [12, 20, 4], strides = [1, 1, 1]} : vector<14x22x4xf32> to vector<12x20x4xf32>
    %15 = tpu.concatenate %6, %7, %8, %9, %10, %11, %12, %13, %14 in 2 : vector<12x20x4xf32>, vector<12x20x4xf32>, vector<12x20x4xf32>, vector<12x20x4xf32>, vector<12x20x4xf32>, vector<12x20x4xf32>, vector<12x20x4xf32>, vector<12x20x4xf32>, vector<12x20x4xf32> -> vector<12x20x36xf32>
    %16 = vector.shape_cast %15 : vector<12x20x36xf32> to vector<240x36xf32>
    %17 = arith.truncf %16 : vector<240x36xf32> to vector<240x36xbf16>
    %c0_2 = arith.constant 0 : index
    %c0_3 = arith.constant 0 : index
    %18 = vector.load %arg4[%c0_2, %c0_3] : memref<36x4xbf16, #tpu.memory_space<vmem>>, vector<36x4xbf16>
    %cst = arith.constant dense<0.000000e+00> : vector<240x4xf32>
    %19 = tpu.matmul %17, %18, %cst {dimension_numbers = #tpu.dot_dimension_numbers<[1], [0], [0], [1], [0, 0, 1, 1], [], []>} : vector<240x36xbf16>, vector<36x4xbf16>, vector<240x4xf32> -> vector<240x4xf32>
    %c0_4 = arith.constant 0 : index
    %c0_5 = arith.constant 0 : index
    %20 = vector.load %arg5[%c0_4, %c0_5] : memref<1x4xf32, #tpu.memory_space<vmem>>, vector<1x4xf32>
    %21 = vector.broadcast %20 : vector<1x4xf32> to vector<240x4xf32>
    %22 = arith.addf %19, %21 : vector<240x4xf32>
    %cst_6 = arith.constant 0.000000e+00 : f32
    %23 = vector.broadcast %cst_6 : f32 to vector<240x4xf32>
    %24 = arith.maximumf %22, %23 : vector<240x4xf32>
    %25 = vector.shape_cast %24 : vector<240x4xf32> to vector<12x20x4xf32>
    %26 = vector.extract_strided_slice %4 {offsets = [0, 0, 0], sizes = [12, 20, 4], strides = [1, 1, 1]} : vector<16x24x4xf32> to vector<12x20x4xf32>
    %27 = vector.extract_strided_slice %4 {offsets = [0, 1, 0], sizes = [12, 20, 4], strides = [1, 1, 1]} : vector<16x24x4xf32> to vector<12x20x4xf32>
    %28 = vector.extract_strided_slice %4 {offsets = [0, 2, 0], sizes = [12, 20, 4], strides = [1, 1, 1]} : vector<16x24x4xf32> to vector<12x20x4xf32>
    %29 = vector.extract_strided_slice %4 {offsets = [0, 3, 0], sizes = [12, 20, 4], strides = [1, 1, 1]} : vector<16x24x4xf32> to vector<12x20x4xf32>
    %30 = vector.extract_strided_slice %4 {offsets = [0, 4, 0], sizes = [12, 20, 4], strides = [1, 1, 1]} : vector<16x24x4xf32> to vector<12x20x4xf32>
    %31 = vector.extract_strided_slice %4 {offsets = [1, 0, 0], sizes = [12, 20, 4], strides = [1, 1, 1]} : vector<16x24x4xf32> to vector<12x20x4xf32>
    %32 = vector.extract_strided_slice %4 {offsets = [1, 1, 0], sizes = [12, 20, 4], strides = [1, 1, 1]} : vector<16x24x4xf32> to vector<12x20x4xf32>
    %33 = vector.extract_strided_slice %4 {offsets = [1, 2, 0], sizes = [12, 20, 4], strides = [1, 1, 1]} : vector<16x24x4xf32> to vector<12x20x4xf32>
    %34 = vector.extract_strided_slice %4 {offsets = [1, 3, 0], sizes = [12, 20, 4], strides = [1, 1, 1]} : vector<16x24x4xf32> to vector<12x20x4xf32>
    %35 = vector.extract_strided_slice %4 {offsets = [1, 4, 0], sizes = [12, 20, 4], strides = [1, 1, 1]} : vector<16x24x4xf32> to vector<12x20x4xf32>
    %36 = vector.extract_strided_slice %4 {offsets = [2, 0, 0], sizes = [12, 20, 4], strides = [1, 1, 1]} : vector<16x24x4xf32> to vector<12x20x4xf32>
    %37 = vector.extract_strided_slice %4 {offsets = [2, 1, 0], sizes = [12, 20, 4], strides = [1, 1, 1]} : vector<16x24x4xf32> to vector<12x20x4xf32>
    %38 = vector.extract_strided_slice %4 {offsets = [2, 2, 0], sizes = [12, 20, 4], strides = [1, 1, 1]} : vector<16x24x4xf32> to vector<12x20x4xf32>
    %39 = vector.extract_strided_slice %4 {offsets = [2, 3, 0], sizes = [12, 20, 4], strides = [1, 1, 1]} : vector<16x24x4xf32> to vector<12x20x4xf32>
    %40 = vector.extract_strided_slice %4 {offsets = [2, 4, 0], sizes = [12, 20, 4], strides = [1, 1, 1]} : vector<16x24x4xf32> to vector<12x20x4xf32>
    %41 = vector.extract_strided_slice %4 {offsets = [3, 0, 0], sizes = [12, 20, 4], strides = [1, 1, 1]} : vector<16x24x4xf32> to vector<12x20x4xf32>
    %42 = vector.extract_strided_slice %4 {offsets = [3, 1, 0], sizes = [12, 20, 4], strides = [1, 1, 1]} : vector<16x24x4xf32> to vector<12x20x4xf32>
    %43 = vector.extract_strided_slice %4 {offsets = [3, 2, 0], sizes = [12, 20, 4], strides = [1, 1, 1]} : vector<16x24x4xf32> to vector<12x20x4xf32>
    %44 = vector.extract_strided_slice %4 {offsets = [3, 3, 0], sizes = [12, 20, 4], strides = [1, 1, 1]} : vector<16x24x4xf32> to vector<12x20x4xf32>
    %45 = vector.extract_strided_slice %4 {offsets = [3, 4, 0], sizes = [12, 20, 4], strides = [1, 1, 1]} : vector<16x24x4xf32> to vector<12x20x4xf32>
    %46 = vector.extract_strided_slice %4 {offsets = [4, 0, 0], sizes = [12, 20, 4], strides = [1, 1, 1]} : vector<16x24x4xf32> to vector<12x20x4xf32>
    %47 = vector.extract_strided_slice %4 {offsets = [4, 1, 0], sizes = [12, 20, 4], strides = [1, 1, 1]} : vector<16x24x4xf32> to vector<12x20x4xf32>
    %48 = vector.extract_strided_slice %4 {offsets = [4, 2, 0], sizes = [12, 20, 4], strides = [1, 1, 1]} : vector<16x24x4xf32> to vector<12x20x4xf32>
    %49 = vector.extract_strided_slice %4 {offsets = [4, 3, 0], sizes = [12, 20, 4], strides = [1, 1, 1]} : vector<16x24x4xf32> to vector<12x20x4xf32>
    %50 = vector.extract_strided_slice %4 {offsets = [4, 4, 0], sizes = [12, 20, 4], strides = [1, 1, 1]} : vector<16x24x4xf32> to vector<12x20x4xf32>
    %51 = tpu.concatenate %26, %27, %28, %29, %30, %31, %32, %33, %34, %35, %36, %37, %38, %39, %40, %41 in 2 : vector<12x20x4xf32>, vector<12x20x4xf32>, vector<12x20x4xf32>, vector<12x20x4xf32>, vector<12x20x4xf32>, vector<12x20x4xf32>, vector<12x20x4xf32>, vector<12x20x4xf32>, vector<12x20x4xf32>, vector<12x20x4xf32>, vector<12x20x4xf32>, vector<12x20x4xf32>, vector<12x20x4xf32>, vector<12x20x4xf32>, vector<12x20x4xf32>, vector<12x20x4xf32> -> vector<12x20x64xf32>
    %52 = tpu.concatenate %42, %43, %44, %45, %46, %47, %48, %49, %50 in 2 : vector<12x20x4xf32>, vector<12x20x4xf32>, vector<12x20x4xf32>, vector<12x20x4xf32>, vector<12x20x4xf32>, vector<12x20x4xf32>, vector<12x20x4xf32>, vector<12x20x4xf32>, vector<12x20x4xf32> -> vector<12x20x36xf32>
    %53 = tpu.concatenate %51, %52 in 2 : vector<12x20x64xf32>, vector<12x20x36xf32> -> vector<12x20x100xf32>
    %54 = vector.shape_cast %53 : vector<12x20x100xf32> to vector<240x100xf32>
    %55 = arith.truncf %54 : vector<240x100xf32> to vector<240x100xbf16>
    %c0_7 = arith.constant 0 : index
    %c0_8 = arith.constant 0 : index
    %56 = vector.load %arg6[%c0_7, %c0_8] : memref<100x4xbf16, #tpu.memory_space<vmem>>, vector<100x4xbf16>
    %cst_9 = arith.constant dense<0.000000e+00> : vector<240x4xf32>
    %57 = tpu.matmul %55, %56, %cst_9 {dimension_numbers = #tpu.dot_dimension_numbers<[1], [0], [0], [1], [0, 0, 1, 1], [], []>} : vector<240x100xbf16>, vector<100x4xbf16>, vector<240x4xf32> -> vector<240x4xf32>
    %c0_10 = arith.constant 0 : index
    %c0_11 = arith.constant 0 : index
    %58 = vector.load %arg7[%c0_10, %c0_11] : memref<1x4xf32, #tpu.memory_space<vmem>>, vector<1x4xf32>
    %59 = vector.broadcast %58 : vector<1x4xf32> to vector<240x4xf32>
    %60 = arith.addf %57, %59 : vector<240x4xf32>
    %cst_12 = arith.constant 0.000000e+00 : f32
    %61 = vector.broadcast %cst_12 : f32 to vector<240x4xf32>
    %62 = arith.maximumf %60, %61 : vector<240x4xf32>
    %63 = vector.shape_cast %62 : vector<240x4xf32> to vector<12x20x4xf32>
    %64 = tpu.iota {dimensions = array<i32: 0>} : vector<12x20x1xi32>
    %c2_i32 = arith.constant 2 : i32
    %65 = arith.subi %1, %c2_i32 : i32
    %66 = vector.broadcast %65 : i32 to vector<12x20x1xi32>
    %67 = arith.addi %64, %66 : vector<12x20x1xi32>
    %68 = tpu.iota {dimensions = array<i32: 1>} : vector<12x20x1xi32>
    %c2_i32_13 = arith.constant 2 : i32
    %69 = vector.broadcast %c2_i32_13 : i32 to vector<12x20x1xi32>
    %70 = arith.subi %68, %69 : vector<12x20x1xi32>
    %c0_i32 = arith.constant 0 : i32
    %71 = vector.broadcast %c0_i32 : i32 to vector<12x20x1xi32>
    %72 = arith.cmpi sge, %67, %71 : vector<12x20x1xi32>
    %c16_i32 = arith.constant 16 : i32
    %73 = vector.broadcast %c16_i32 : i32 to vector<12x20x1xi32>
    %74 = arith.cmpi slt, %67, %73 : vector<12x20x1xi32>
    %75 = arith.andi %72, %74 : vector<12x20x1xi1>
    %c0_i32_14 = arith.constant 0 : i32
    %76 = vector.broadcast %c0_i32_14 : i32 to vector<12x20x1xi32>
    %77 = arith.cmpi sge, %70, %76 : vector<12x20x1xi32>
    %78 = arith.andi %75, %77 : vector<12x20x1xi1>
    %c16_i32_15 = arith.constant 16 : i32
    %79 = vector.broadcast %c16_i32_15 : i32 to vector<12x20x1xi32>
    %80 = arith.cmpi slt, %70, %79 : vector<12x20x1xi32>
    %81 = arith.andi %78, %80 : vector<12x20x1xi1>
    %82 = arith.extui %81 : vector<12x20x1xi1> to vector<12x20x1xi32>
    %83 = arith.sitofp %82 : vector<12x20x1xi32> to vector<12x20x1xf32>
    %84 = vector.broadcast %83 : vector<12x20x1xf32> to vector<12x20x4xf32>
    %85 = arith.mulf %25, %84 : vector<12x20x4xf32>
    %86 = vector.broadcast %83 : vector<12x20x1xf32> to vector<12x20x4xf32>
    %87 = arith.mulf %63, %86 : vector<12x20x4xf32>
    %88 = tpu.concatenate %85, %87 in 2 : vector<12x20x4xf32>, vector<12x20x4xf32> -> vector<12x20x8xf32>
    %89 = vector.extract_strided_slice %88 {offsets = [0, 0, 0], sizes = [8, 16, 8], strides = [1, 1, 1]} : vector<12x20x8xf32> to vector<8x16x8xf32>
    %90 = vector.extract_strided_slice %88 {offsets = [0, 1, 0], sizes = [8, 16, 8], strides = [1, 1, 1]} : vector<12x20x8xf32> to vector<8x16x8xf32>
    %91 = vector.extract_strided_slice %88 {offsets = [0, 2, 0], sizes = [8, 16, 8], strides = [1, 1, 1]} : vector<12x20x8xf32> to vector<8x16x8xf32>
    %92 = vector.extract_strided_slice %88 {offsets = [0, 3, 0], sizes = [8, 16, 8], strides = [1, 1, 1]} : vector<12x20x8xf32> to vector<8x16x8xf32>
    %93 = vector.extract_strided_slice %88 {offsets = [0, 4, 0], sizes = [8, 16, 8], strides = [1, 1, 1]} : vector<12x20x8xf32> to vector<8x16x8xf32>
    %94 = vector.extract_strided_slice %88 {offsets = [1, 0, 0], sizes = [8, 16, 8], strides = [1, 1, 1]} : vector<12x20x8xf32> to vector<8x16x8xf32>
    %95 = vector.extract_strided_slice %88 {offsets = [1, 1, 0], sizes = [8, 16, 8], strides = [1, 1, 1]} : vector<12x20x8xf32> to vector<8x16x8xf32>
    %96 = vector.extract_strided_slice %88 {offsets = [1, 2, 0], sizes = [8, 16, 8], strides = [1, 1, 1]} : vector<12x20x8xf32> to vector<8x16x8xf32>
    %97 = vector.extract_strided_slice %88 {offsets = [1, 3, 0], sizes = [8, 16, 8], strides = [1, 1, 1]} : vector<12x20x8xf32> to vector<8x16x8xf32>
    %98 = vector.extract_strided_slice %88 {offsets = [1, 4, 0], sizes = [8, 16, 8], strides = [1, 1, 1]} : vector<12x20x8xf32> to vector<8x16x8xf32>
    %99 = vector.extract_strided_slice %88 {offsets = [2, 0, 0], sizes = [8, 16, 8], strides = [1, 1, 1]} : vector<12x20x8xf32> to vector<8x16x8xf32>
    %100 = vector.extract_strided_slice %88 {offsets = [2, 1, 0], sizes = [8, 16, 8], strides = [1, 1, 1]} : vector<12x20x8xf32> to vector<8x16x8xf32>
    %101 = vector.extract_strided_slice %88 {offsets = [2, 2, 0], sizes = [8, 16, 8], strides = [1, 1, 1]} : vector<12x20x8xf32> to vector<8x16x8xf32>
    %102 = vector.extract_strided_slice %88 {offsets = [2, 3, 0], sizes = [8, 16, 8], strides = [1, 1, 1]} : vector<12x20x8xf32> to vector<8x16x8xf32>
    %103 = vector.extract_strided_slice %88 {offsets = [2, 4, 0], sizes = [8, 16, 8], strides = [1, 1, 1]} : vector<12x20x8xf32> to vector<8x16x8xf32>
    %104 = vector.extract_strided_slice %88 {offsets = [3, 0, 0], sizes = [8, 16, 8], strides = [1, 1, 1]} : vector<12x20x8xf32> to vector<8x16x8xf32>
    %105 = vector.extract_strided_slice %88 {offsets = [3, 1, 0], sizes = [8, 16, 8], strides = [1, 1, 1]} : vector<12x20x8xf32> to vector<8x16x8xf32>
    %106 = vector.extract_strided_slice %88 {offsets = [3, 2, 0], sizes = [8, 16, 8], strides = [1, 1, 1]} : vector<12x20x8xf32> to vector<8x16x8xf32>
    %107 = vector.extract_strided_slice %88 {offsets = [3, 3, 0], sizes = [8, 16, 8], strides = [1, 1, 1]} : vector<12x20x8xf32> to vector<8x16x8xf32>
    %108 = vector.extract_strided_slice %88 {offsets = [3, 4, 0], sizes = [8, 16, 8], strides = [1, 1, 1]} : vector<12x20x8xf32> to vector<8x16x8xf32>
    %109 = vector.extract_strided_slice %88 {offsets = [4, 0, 0], sizes = [8, 16, 8], strides = [1, 1, 1]} : vector<12x20x8xf32> to vector<8x16x8xf32>
    %110 = vector.extract_strided_slice %88 {offsets = [4, 1, 0], sizes = [8, 16, 8], strides = [1, 1, 1]} : vector<12x20x8xf32> to vector<8x16x8xf32>
    %111 = vector.extract_strided_slice %88 {offsets = [4, 2, 0], sizes = [8, 16, 8], strides = [1, 1, 1]} : vector<12x20x8xf32> to vector<8x16x8xf32>
    %112 = vector.extract_strided_slice %88 {offsets = [4, 3, 0], sizes = [8, 16, 8], strides = [1, 1, 1]} : vector<12x20x8xf32> to vector<8x16x8xf32>
    %113 = vector.extract_strided_slice %88 {offsets = [4, 4, 0], sizes = [8, 16, 8], strides = [1, 1, 1]} : vector<12x20x8xf32> to vector<8x16x8xf32>
    %114 = tpu.concatenate %89, %90, %91, %92, %93, %94, %95, %96, %97, %98, %99, %100, %101, %102, %103, %104 in 2 : vector<8x16x8xf32>, vector<8x16x8xf32>, vector<8x16x8xf32>, vector<8x16x8xf32>, vector<8x16x8xf32>, vector<8x16x8xf32>, vector<8x16x8xf32>, vector<8x16x8xf32>, vector<8x16x8xf32>, vector<8x16x8xf32>, vector<8x16x8xf32>, vector<8x16x8xf32>, vector<8x16x8xf32>, vector<8x16x8xf32>, vector<8x16x8xf32>, vector<8x16x8xf32> -> vector<8x16x128xf32>
    %115 = tpu.concatenate %105, %106, %107, %108, %109, %110, %111, %112, %113 in 2 : vector<8x16x8xf32>, vector<8x16x8xf32>, vector<8x16x8xf32>, vector<8x16x8xf32>, vector<8x16x8xf32>, vector<8x16x8xf32>, vector<8x16x8xf32>, vector<8x16x8xf32>, vector<8x16x8xf32> -> vector<8x16x72xf32>
    %116 = tpu.concatenate %114, %115 in 2 : vector<8x16x128xf32>, vector<8x16x72xf32> -> vector<8x16x200xf32>
    %117 = vector.shape_cast %116 : vector<8x16x200xf32> to vector<128x200xf32>
    %118 = arith.truncf %117 : vector<128x200xf32> to vector<128x200xbf16>
    %c0_16 = arith.constant 0 : index
    %c0_17 = arith.constant 0 : index
    %119 = vector.load %arg8[%c0_16, %c0_17] : memref<200x8xbf16, #tpu.memory_space<vmem>>, vector<200x8xbf16>
    %cst_18 = arith.constant dense<0.000000e+00> : vector<128x8xf32>
    %120 = tpu.matmul %118, %119, %cst_18 {dimension_numbers = #tpu.dot_dimension_numbers<[1], [0], [0], [1], [0, 0, 1, 1], [], []>} : vector<128x200xbf16>, vector<200x8xbf16>, vector<128x8xf32> -> vector<128x8xf32>
    %c0_19 = arith.constant 0 : index
    %c0_20 = arith.constant 0 : index
    %121 = vector.load %arg9[%c0_19, %c0_20] : memref<1x8xf32, #tpu.memory_space<vmem>>, vector<1x8xf32>
    %122 = vector.broadcast %121 : vector<1x8xf32> to vector<128x8xf32>
    %123 = arith.addf %120, %122 : vector<128x8xf32>
    %124 = arith.truncf %123 : vector<128x8xf32> to vector<128x8xbf16>
    %c0_21 = arith.constant 0 : index
    %c0_22 = arith.constant 0 : index
    %125 = vector.load %arg10[%c0_21, %c0_22] : memref<8x4xbf16, #tpu.memory_space<vmem>>, vector<8x4xbf16>
    %cst_23 = arith.constant dense<0.000000e+00> : vector<128x4xf32>
    %126 = tpu.matmul %124, %125, %cst_23 {dimension_numbers = #tpu.dot_dimension_numbers<[1], [0], [0], [1], [0, 0, 1, 1], [], []>} : vector<128x8xbf16>, vector<8x4xbf16>, vector<128x4xf32> -> vector<128x4xf32>
    %c0_24 = arith.constant 0 : index
    %c0_25 = arith.constant 0 : index
    %127 = vector.load %arg11[%c0_24, %c0_25] : memref<1x4xf32, #tpu.memory_space<vmem>>, vector<1x4xf32>
    %128 = vector.broadcast %127 : vector<1x4xf32> to vector<128x4xf32>
    %129 = arith.addf %126, %128 : vector<128x4xf32>
    %c0_26 = arith.constant 0 : index
    %c0_27 = arith.constant 0 : index
    %c0_28 = arith.constant 0 : index
    %c0_29 = arith.constant 0 : index
    %130 = vector.load %arg3[%c0_26, %c0_27, %c0_28, %c0_29] : memref<1x8x16x4xf32, #tpu.memory_space<vmem>>, vector<1x8x16x4xf32>
    %131 = vector.shape_cast %130 : vector<1x8x16x4xf32> to vector<8x16x4xf32>
    %132 = vector.shape_cast %131 : vector<8x16x4xf32> to vector<128x4xf32>
    %133 = arith.addf %129, %132 : vector<128x4xf32>
    %134 = vector.shape_cast %133 : vector<128x4xf32> to vector<8x16x4xf32>
    %c0_30 = arith.constant 0 : index
    %c0_31 = arith.constant 0 : index
    %c0_32 = arith.constant 0 : index
    %c0_33 = arith.constant 0 : index
    %135 = vector.load %arg12[%c0_30, %c0_31, %c0_32, %c0_33] : memref<1x8x16x4xf32, #tpu.memory_space<vmem>>, vector<1x8x16x4xf32>
    %136 = vector.shape_cast %135 : vector<1x8x16x4xf32> to vector<8x16x4xf32>
    %137 = vector.shape_cast %134 : vector<8x16x4xf32> to vector<1x8x16x4xf32>
    tpu.vector_store %arg12[%c0_30, %c0_31, %c0_32, %c0_33], %137 {strides = array<i32>} : memref<1x8x16x4xf32, #tpu.memory_space<vmem>>, vector<1x8x16x4xf32>,
    return
  }
  func.func @transform_0(%arg0: i32, %arg1: i32) -> (i32, i32, i32, i32) {
    %c0_i32 = arith.constant 0 : i32
    %c0_i32_0 = arith.constant 0 : i32
    %c0_i32_1 = arith.constant 0 : i32
    %c0_i32_2 = arith.constant 0 : i32
    return %arg0, %c0_i32, %c0_i32_0, %c0_i32_1 : i32, i32, i32, i32
  }
  func.func @transform_1(%arg0: i32, %arg1: i32) -> (i32, i32, i32, i32) {
    %c0_i32 = arith.constant 0 : i32
    %c0_i32_0 = arith.constant 0 : i32
    %c0_i32_1 = arith.constant 0 : i32
    return %arg0, %arg1, %c0_i32, %c0_i32_0 : i32, i32, i32, i32
  }
  func.func @transform_2(%arg0: i32, %arg1: i32) -> (i32, i32) {
    %c0_i32 = arith.constant 0 : i32
    %c0_i32_0 = arith.constant 0 : i32
    %c0_i32_1 = arith.constant 0 : i32
    return %c0_i32, %c0_i32_0 : i32, i32
  }
  func.func @transform_3(%arg0: i32, %arg1: i32) -> (i32, i32) {
    %c0_i32 = arith.constant 0 : i32
    %c0_i32_0 = arith.constant 0 : i32
    %c0_i32_1 = arith.constant 0 : i32
    return %c0_i32, %c0_i32_0 : i32, i32
  }
  func.func @transform_4(%arg0: i32, %arg1: i32) -> (i32, i32) {
    %c0_i32 = arith.constant 0 : i32
    %c0_i32_0 = arith.constant 0 : i32
    %c0_i32_1 = arith.constant 0 : i32
    return %c0_i32, %c0_i32_0 : i32, i32
  }
  func.func @transform_5(%arg0: i32, %arg1: i32) -> (i32, i32) {
    %c0_i32 = arith.constant 0 : i32
    %c0_i32_0 = arith.constant 0 : i32
    %c0_i32_1 = arith.constant 0 : i32
    return %c0_i32, %c0_i32_0 : i32, i32
  }
  func.func @transform_6(%arg0: i32, %arg1: i32) -> (i32, i32) {
    %c0_i32 = arith.constant 0 : i32
    %c0_i32_0 = arith.constant 0 : i32
    %c0_i32_1 = arith.constant 0 : i32
    return %c0_i32, %c0_i32_0 : i32, i32
  }
  func.func @transform_7(%arg0: i32, %arg1: i32) -> (i32, i32) {
    %c0_i32 = arith.constant 0 : i32
    %c0_i32_0 = arith.constant 0 : i32
    %c0_i32_1 = arith.constant 0 : i32
    return %c0_i32, %c0_i32_0 : i32, i32
  }
  func.func @transform_8(%arg0: i32, %arg1: i32) -> (i32, i32) {
    %c0_i32 = arith.constant 0 : i32
    %c0_i32_0 = arith.constant 0 : i32
    %c0_i32_1 = arith.constant 0 : i32
    return %c0_i32, %c0_i32_0 : i32, i32
  }
  func.func @transform_9(%arg0: i32, %arg1: i32) -> (i32, i32) {
    %c0_i32 = arith.constant 0 : i32
    %c0_i32_0 = arith.constant 0 : i32
    %c0_i32_1 = arith.constant 0 : i32
    return %c0_i32, %c0_i32_0 : i32, i32
  }
  func.func @transform_10(%arg0: i32, %arg1: i32) -> (i32, i32, i32, i32) {
    %c0_i32 = arith.constant 0 : i32
    %c0_i32_0 = arith.constant 0 : i32
    %c0_i32_1 = arith.constant 0 : i32
    return %arg0, %arg1, %c0_i32, %c0_i32_0 : i32, i32, i32, i32
  }
}

</mosaic_0001>

<llo_original>
// kernel: rmc_forward.2
$region0: #{rmc_forward.2}
  #allocation0 [shape = 'u32[]', space=smem, size = 0x4, offset = 0x4, fixed_abs, tag = 'smem constant byte address 0x4 - core index']
  #allocation1 [shape = 'u32[144,128]{1,0:T(1,128)}', space=vmem, size = 0x12000, scoped, tag = 'internal scratch']
  %s0 = inlined_call_operand.vmem [shape: f32[2,24,24,4], index: 0, kind: input, shape index: {}]
  %s1 = inlined_call_operand.vmem [shape: f32[2,16,16,4], index: 1, kind: input, shape index: {}]
  %s2 = inlined_call_operand.vmem [shape: bf16[36,4], index: 2, kind: input, shape index: {}]
  %s3 = inlined_call_operand.vmem [shape: f32[1,4], index: 3, kind: input, shape index: {}]
  %s4 = inlined_call_operand.vmem [shape: bf16[100,4], index: 4, kind: input, shape index: {}]
  %s5 = inlined_call_operand.vmem [shape: f32[1,4], index: 5, kind: input, shape index: {}]
  %s6 = inlined_call_operand.vmem [shape: bf16[200,8], index: 6, kind: input, shape index: {}]
  %s7 = inlined_call_operand.vmem [shape: f32[1,8], index: 7, kind: input, shape index: {}]
  %s8 = inlined_call_operand.vmem [shape: bf16[8,4], index: 8, kind: input, shape index: {}]
  %s9 = inlined_call_operand.vmem [shape: f32[1,4], index: 9, kind: input, shape index: {}]
  %s10 = inlined_call_operand.vmem [shape: f32[2,16,16,4], index: 10, kind: output, shape index: {}]
  %s11 = sld [smem:[#allocation0]]
  $region73: #{rmc_forward.2} parent=0
    _
  %s13 = ssub.s32 1, %s11
  %s14 = scalar_select 0, %s13, %s11
  loop: start=0, step=1, limit=6
  $region2: #{rmc_forward.2} parent=0 // loop_pre_header
    _
  $region3: #{rmc_forward.2} parent=0 // loop_header
    %s16 = sphi 0, %s20
    %p17 = scmp.ge.s32.totalorder %s16, 6
    %s23 = sphi 0, %s35
    %s24 = sphi 0, %s31
    %s25 = sphi 0, %s23
    %s26 = sphi 0, %s24
    %s27 = sphi 0, %s25
    %s28 = sphi 0, %s26
    %s38 = sphi 0, %s40
    %s41 = sphi 0, %s38
    %s42 = sphi 0, %s41
    %s58 = sphi 0, %s42
    %s66 = sphi 0, %s68
    %s69 = sphi 0, %s66
    %s70 = sphi 0, %s69
    %s86 = sphi 0, %s70
    %s90 = sphi 0, %s90
    %s92 = sphi 0, %s90
    %s93 = sphi 0, %s92
    %s107 = sphi 0, %s93
    %s111 = sphi 0, %s111
    %s113 = sphi 0, %s111
    %s114 = sphi 0, %s113
    %s128 = sphi 0, %s114
    %s132 = sphi 0, %s132
    %s134 = sphi 0, %s132
    %s135 = sphi 0, %s134
    %s149 = sphi 0, %s135
    %s153 = sphi 0, %s153
    %s155 = sphi 0, %s153
    %s156 = sphi 0, %s155
    %s170 = sphi 0, %s156
    %s174 = sphi 0, %s174
    %s176 = sphi 0, %s174
    %s177 = sphi 0, %s176
    %s191 = sphi 0, %s177
    %s195 = sphi 0, %s195
    %s197 = sphi 0, %s195
    %s198 = sphi 0, %s197
    %s212 = sphi 0, %s198
    %s216 = sphi 0, %s216
    %s218 = sphi 0, %s216
    %s219 = sphi 0, %s218
    %s233 = sphi 0, %s219
    %s237 = sphi 0, %s237
    %s239 = sphi 0, %s237
    %s240 = sphi 0, %s239
    %s254 = sphi 0, %s240
    %s262 = sphi 0, %s264
    %s265 = sphi 0, %s262
    %s266 = sphi 0, %s265
    %s282 = sphi 0, %s266
  $region4: #{rmc_forward.2} parent=0 // loop_header_branch
    %19 = sbr.rel (%p17) target = $region8
  $region5: #{rmc_forward.2} parent=0 // loop_body
    %s21 = ssub.s32 %s16, 1
    %s22 = ssub.s32 %s16, 2
    %s29 = sadd.s32 1, %s24
    %p30 = scmp.ge.s32.totalorder %s29, 2
    %s31 = scalar_select %p30, 0, %s29
    %s32 = sadd.s32 1, %s23
    %s33 = scalar_select %p30, %s32, %s23
    %p34 = scmp.ge.s32.totalorder %s33, 2
    %s35 = scalar_select %p34, 0, %s33
    %s36 = ssub.s32 %s23, %s35
    %p37 = scmp.eq.s32.totalorder %s36, 0
    %s39 = sadd.s32 %s38, 1
    %s40 = scalar_select %p37, %s38, %s39
    %p43 = pneg %p37
    %p44 = scmp.eq.s32.totalorder %s16, 3
    %p45 = por %p43, %p44
    %p46 = scmp.ne.s32.totalorder %s38, %s41
    %p47 = scmp.eq.s32.totalorder %s16, 0
    %p48 = por %p46, %p47
    %p49 = scmp.ne.s32.totalorder %s38, %s41
    %p50 = scmp.eq.s32.totalorder %s21, 3
    %p51 = por %p49, %p50
    %p52 = scmp.ne.s32.totalorder %s41, %s42
    %p53 = scmp.eq.s32.totalorder %s21, 0
    %p54 = por %p52, %p53
    %p55 = scmp.ne.s32.totalorder %s41, %s42
    %p56 = scmp.eq.s32.totalorder %s22, 3
    %p57 = por %p55, %p56
    %p59 = scmp.ne.s32.totalorder %s42, %s58
    %p60 = scmp.eq.s32.totalorder %s22, 0
    %p61 = por %p59, %p60
    %s62 = ssub.s32 %s23, %s35
    %s63 = ssub.s32 %s24, %s31
    %s64 = sor.u32 %s62, %s63
    %p65 = scmp.eq.s32.totalorder %s64, 0
    %s67 = sadd.s32 %s66, 1
    %s68 = scalar_select %p65, %s66, %s67
    %p71 = pneg %p65
    %p72 = scmp.eq.s32.totalorder %s16, 3
    %p73 = por %p71, %p72
    %p74 = scmp.ne.s32.totalorder %s66, %s69
    %p75 = scmp.eq.s32.totalorder %s16, 0
    %p76 = por %p74, %p75
    %p77 = scmp.ne.s32.totalorder %s66, %s69
    %p78 = scmp.eq.s32.totalorder %s21, 3
    %p79 = por %p77, %p78
    %p80 = scmp.ne.s32.totalorder %s69, %s70
    %p81 = scmp.eq.s32.totalorder %s21, 0
    %p82 = por %p80, %p81
    %p83 = scmp.ne.s32.totalorder %s69, %s70
    %p84 = scmp.eq.s32.totalorder %s22, 3
    %p85 = por %p83, %p84
    %p87 = scmp.ne.s32.totalorder %s70, %s86
    %p88 = scmp.eq.s32.totalorder %s22, 0
    %p89 = por %p87, %p88
    %s91 = sadd.s32 %s90, 1
    %p94 = scmp.eq.s32.totalorder %s16, 3
    %p95 = scmp.ne.s32.totalorder %s90, %s92
    %p96 = scmp.eq.s32.totalorder %s16, 0
    %p97 = por %p95, %p96
    %p98 = scmp.ne.s32.totalorder %s90, %s92
    %p99 = scmp.eq.s32.totalorder %s21, 3
    %p100 = por %p98, %p99
    %p101 = scmp.ne.s32.totalorder %s92, %s93
    %p102 = scmp.eq.s32.totalorder %s21, 0
    %p103 = por %p101, %p102
    %p104 = scmp.ne.s32.totalorder %s92, %s93
    %p105 = scmp.eq.s32.totalorder %s22, 3
    %p106 = por %p104, %p105
    %p108 = scmp.ne.s32.totalorder %s93, %s107
    %p109 = scmp.eq.s32.totalorder %s22, 0
    %p110 = por %p108, %p109
    %s112 = sadd.s32 %s111, 1
    %p115 = scmp.eq.s32.totalorder %s16, 3
    %p116 = scmp.ne.s32.totalorder %s111, %s113
    %p117 = scmp.eq.s32.totalorder %s16, 0
    %p118 = por %p116, %p117
    %p119 = scmp.ne.s32.totalorder %s111, %s113
    %p120 = scmp.eq.s32.totalorder %s21, 3
    %p121 = por %p119, %p120
    %p122 = scmp.ne.s32.totalorder %s113, %s114
    %p123 = scmp.eq.s32.totalorder %s21, 0
    %p124 = por %p122, %p123
    %p125 = scmp.ne.s32.totalorder %s113, %s114
    %p126 = scmp.eq.s32.totalorder %s22, 3
    %p127 = por %p125, %p126
    %p129 = scmp.ne.s32.totalorder %s114, %s128
    %p130 = scmp.eq.s32.totalorder %s22, 0
    %p131 = por %p129, %p130
    %s133 = sadd.s32 %s132, 1
    %p136 = scmp.eq.s32.totalorder %s16, 3
    %p137 = scmp.ne.s32.totalorder %s132, %s134
    %p138 = scmp.eq.s32.totalorder %s16, 0
    %p139 = por %p137, %p138
    %p140 = scmp.ne.s32.totalorder %s132, %s134
    %p141 = scmp.eq.s32.totalorder %s21, 3
    %p142 = por %p140, %p141
    %p143 = scmp.ne.s32.totalorder %s134, %s135
    %p144 = scmp.eq.s32.totalorder %s21, 0
    %p145 = por %p143, %p144
    %p146 = scmp.ne.s32.totalorder %s134, %s135
    %p147 = scmp.eq.s32.totalorder %s22, 3
    %p148 = por %p146, %p147
    %p150 = scmp.ne.s32.totalorder %s135, %s149
    %p151 = scmp.eq.s32.totalorder %s22, 0
    %p152 = por %p150, %p151
    %s154 = sadd.s32 %s153, 1
    %p157 = scmp.eq.s32.totalorder %s16, 3
    %p158 = scmp.ne.s32.totalorder %s153, %s155
    %p159 = scmp.eq.s32.totalorder %s16, 0
    %p160 = por %p158, %p159
    %p161 = scmp.ne.s32.totalorder %s153, %s155
    %p162 = scmp.eq.s32.totalorder %s21, 3
    %p163 = por %p161, %p162
    %p164 = scmp.ne.s32.totalorder %s155, %s156
    %p165 = scmp.eq.s32.totalorder %s21, 0
    %p166 = por %p164, %p165
    %p167 = scmp.ne.s32.totalorder %s155, %s156
    %p168 = scmp.eq.s32.totalorder %s22, 3
    %p169 = por %p167, %p168
    %p171 = scmp.ne.s32.totalorder %s156, %s170
    %p172 = scmp.eq.s32.totalorder %s22, 0
    %p173 = por %p171, %p172
    %s175 = sadd.s32 %s174, 1
    %p178 = scmp.eq.s32.totalorder %s16, 3
    %p179 = scmp.ne.s32.totalorder %s174, %s176
    %p180 = scmp.eq.s32.totalorder %s16, 0
    %p181 = por %p179, %p180
    %p182 = scmp.ne.s32.totalorder %s174, %s176
    %p183 = scmp.eq.s32.totalorder %s21, 3
    %p184 = por %p182, %p183
    %p185 = scmp.ne.s32.totalorder %s176, %s177
    %p186 = scmp.eq.s32.totalorder %s21, 0
    %p187 = por %p185, %p186
    %p188 = scmp.ne.s32.totalorder %s176, %s177
    %p189 = scmp.eq.s32.totalorder %s22, 3
    %p190 = por %p188, %p189
    %p192 = scmp.ne.s32.totalorder %s177, %s191
    %p193 = scmp.eq.s32.totalorder %s22, 0
    %p194 = por %p192, %p193
    %s196 = sadd.s32 %s195, 1
    %p199 = scmp.eq.s32.totalorder %s16, 3
    %p200 = scmp.ne.s32.totalorder %s195, %s197
    %p201 = scmp.eq.s32.totalorder %s16, 0
    %p202 = por %p200, %p201
    %p203 = scmp.ne.s32.totalorder %s195, %s197
    %p204 = scmp.eq.s32.totalorder %s21, 3
    %p205 = por %p203, %p204
    %p206 = scmp.ne.s32.totalorder %s197, %s198
    %p207 = scmp.eq.s32.totalorder %s21, 0
    %p208 = por %p206, %p207
    %p209 = scmp.ne.s32.totalorder %s197, %s198
    %p210 = scmp.eq.s32.totalorder %s22, 3
    %p211 = por %p209, %p210
    %p213 = scmp.ne.s32.totalorder %s198, %s212
    %p214 = scmp.eq.s32.totalorder %s22, 0
    %p215 = por %p213, %p214
    %s217 = sadd.s32 %s216, 1
    %p220 = scmp.eq.s32.totalorder %s16, 3
    %p221 = scmp.ne.s32.totalorder %s216, %s218
    %p222 = scmp.eq.s32.totalorder %s16, 0
    %p223 = por %p221, %p222
    %p224 = scmp.ne.s32.totalorder %s216, %s218
    %p225 = scmp.eq.s32.totalorder %s21, 3
    %p226 = por %p224, %p225
    %p227 = scmp.ne.s32.totalorder %s218, %s219
    %p228 = scmp.eq.s32.totalorder %s21, 0
    %p229 = por %p227, %p228
    %p230 = scmp.ne.s32.totalorder %s218, %s219
    %p231 = scmp.eq.s32.totalorder %s22, 3
    %p232 = por %p230, %p231
    %p234 = scmp.ne.s32.totalorder %s219, %s233
    %p235 = scmp.eq.s32.totalorder %s22, 0
    %p236 = por %p234, %p235
    %s238 = sadd.s32 %s237, 1
    %p241 = scmp.eq.s32.totalorder %s16, 3
    %p242 = scmp.ne.s32.totalorder %s237, %s239
    %p243 = scmp.eq.s32.totalorder %s16, 0
    %p244 = por %p242, %p243
    %p245 = scmp.ne.s32.totalorder %s237, %s239
    %p246 = scmp.eq.s32.totalorder %s21, 3
    %p247 = por %p245, %p246
    %p248 = scmp.ne.s32.totalorder %s239, %s240
    %p249 = scmp.eq.s32.totalorder %s21, 0
    %p250 = por %p248, %p249
    %p251 = scmp.ne.s32.totalorder %s239, %s240
    %p252 = scmp.eq.s32.totalorder %s22, 3
    %p253 = por %p251, %p252
    %p255 = scmp.ne.s32.totalorder %s240, %s254
    %p256 = scmp.eq.s32.totalorder %s22, 0
    %p257 = por %p255, %p256
    %s258 = ssub.s32 %s23, %s35
    %s259 = ssub.s32 %s24, %s31
    %s260 = sor.u32 %s258, %s259
    %p261 = scmp.eq.s32.totalorder %s260, 0
    %s263 = sadd.s32 %s262, 1
    %s264 = scalar_select %p261, %s262, %s263
    %p267 = pneg %p261
    %p268 = scmp.eq.s32.totalorder %s16, 3
    %p269 = por %p267, %p268
    %p270 = scmp.ne.s32.totalorder %s262, %s265
    %p271 = scmp.eq.s32.totalorder %s16, 0
    %p272 = por %p270, %p271
    %p273 = scmp.ne.s32.totalorder %s262, %s265
    %p274 = scmp.eq.s32.totalorder %s21, 3
    %p275 = por %p273, %p274
    %p276 = scmp.ne.s32.totalorder %s265, %s266
    %p277 = scmp.eq.s32.totalorder %s21, 0
    %p278 = por %p276, %p277
    %p279 = scmp.ne.s32.totalorder %s265, %s266
    %p280 = scmp.eq.s32.totalorder %s22, 3
    %p281 = por %p279, %p280
    %p283 = scmp.ne.s32.totalorder %s266, %s282
    %p284 = scmp.eq.s32.totalorder %s22, 0
    %p285 = por %p283, %p284
    %p286 = scmp.le.s32.totalorder 1, %s16
    %p287 = scmp.lt.s32.totalorder %s16, 5
    %p288 = pnand %p286, %p287
    %p289 = pneg %p288
    // Predicated region
    $region9: #{rmc_forward.2} parent=5 // pred_check
      _
    $region10: #{rmc_forward.2} parent=5 // pred_check_branch
      %291 = sbr.rel (%p288) target = $region12
    $region11: #{rmc_forward.2} parent=5 // pred_region
      %s292 = ssub.s32 %s16, 1
      // Predicated region
      $region13: #{rmc_forward.2} parent=11 // pred_check
        %p293 = pneg %p103
      $region14: #{rmc_forward.2} parent=11 // pred_check_branch
        %295 = sbr.rel (%p293) target = $region16
      $region15: #{rmc_forward.2} parent=11 // pred_region
        _
      $region16: #{rmc_forward.2} parent=11 // pred_fallthru
        _
      // Predicated region
      $region17: #{rmc_forward.2} parent=11 // pred_check
        %p296 = pneg %p124
      $region18: #{rmc_forward.2} parent=11 // pred_check_branch
        %298 = sbr.rel (%p296) target = $region20
      $region19: #{rmc_forward.2} parent=11 // pred_region
        _
      $region20: #{rmc_forward.2} parent=11 // pred_fallthru
        _
      // Predicated region
      $region21: #{rmc_forward.2} parent=11 // pred_check
        %p299 = pneg %p145
      $region22: #{rmc_forward.2} parent=11 // pred_check_branch
        %301 = sbr.rel (%p299) target = $region24
      $region23: #{rmc_forward.2} parent=11 // pred_region
        _
      $region24: #{rmc_forward.2} parent=11 // pred_fallthru
        _
      // Predicated region
      $region25: #{rmc_forward.2} parent=11 // pred_check
        %p302 = pneg %p166
      $region26: #{rmc_forward.2} parent=11 // pred_check_branch
        %304 = sbr.rel (%p302) target = $region28
      $region27: #{rmc_forward.2} parent=11 // pred_region
        _
      $region28: #{rmc_forward.2} parent=11 // pred_fallthru
        _
      // Predicated region
      $region29: #{rmc_forward.2} parent=11 // pred_check
        %p305 = pneg %p187
      $region30: #{rmc_forward.2} parent=11 // pred_check_branch
        %307 = sbr.rel (%p305) target = $region32
      $region31: #{rmc_forward.2} parent=11 // pred_region
        _
      $region32: #{rmc_forward.2} parent=11 // pred_fallthru
        _
      // Predicated region
      $region33: #{rmc_forward.2} parent=11 // pred_check
        %p308 = pneg %p208
      $region34: #{rmc_forward.2} parent=11 // pred_check_branch
        %310 = sbr.rel (%p308) target = $region36
      $region35: #{rmc_forward.2} parent=11 // pred_region
        _
      $region36: #{rmc_forward.2} parent=11 // pred_fallthru
        _
      // Predicated region
      $region37: #{rmc_forward.2} parent=11 // pred_check
        %p311 = pneg %p229
      $region38: #{rmc_forward.2} parent=11 // pred_check_branch
        %313 = sbr.rel (%p311) target = $region40
      $region39: #{rmc_forward.2} parent=11 // pred_region
        _
      $region40: #{rmc_forward.2} parent=11 // pred_fallthru
        _
      // Predicated region
      $region41: #{rmc_forward.2} parent=11 // pred_check
        %p314 = pneg %p250
      $region42: #{rmc_forward.2} parent=11 // pred_check_branch
        %316 = sbr.rel (%p314) target = $region44
      $region43: #{rmc_forward.2} parent=11 // pred_region
        _
      $region44: #{rmc_forward.2} parent=11 // pred_fallthru
        _
    $region12: #{rmc_forward.2} parent=5 // pred_fallthru
      _
    %p317 = scmp.lt.s32.totalorder %s16, 4
    // Predicated region
    $region45: #{rmc_forward.2} parent=5 // pred_check
      %p318 = pneg %p317
    $region46: #{rmc_forward.2} parent=5 // pred_check_branch
      %320 = sbr.rel (%p318) target = $region48
    $region47: #{rmc_forward.2} parent=5 // pred_region
      // Predicated region
      $region49: #{rmc_forward.2} parent=47 // pred_check
        %p321 = pneg %p48
      $region50: #{rmc_forward.2} parent=47 // pred_check_branch
        %323 = sbr.rel (%p321) target = $region52
      $region51: #{rmc_forward.2} parent=47 // pred_region
        %p324 = scmp.lt.s32.totalorder %s23, 1
        %s325 = scalar_select %p324, %s23, 1
        %s326 = smul.addr %s325, 72
        %s327 = smul.addr %s326, 8
        %s328 = scalar_lea.vmem %s0, %s327
      $region52: #{rmc_forward.2} parent=47 // pred_fallthru
        _
      // Predicated region
      $region53: #{rmc_forward.2} parent=47 // pred_check
        %p329 = pneg %p76
      $region54: #{rmc_forward.2} parent=47 // pred_check_branch
        %331 = sbr.rel (%p329) target = $region56
      $region55: #{rmc_forward.2} parent=47 // pred_region
        %s332 = smul.u32 8, %s24
        %p333 = scmp.lt.s32.totalorder %s23, 1
        %s334 = scalar_select %p333, %s23, 1
        %p335 = scmp.lt.s32.totalorder %s332, 15
        %s336 = scalar_select %p335, %s332, 15
        %s337 = smul.addr %s336, 2
        %s338 = smul.addr %s334, 32
        %s339 = sadd.s32 %s337, %s338
        %s340 = smul.addr %s339, 8
        %s341 = scalar_lea.vmem %s1, %s340
        %s342 = smul.u32 8, %s24
      $region56: #{rmc_forward.2} parent=47 // pred_fallthru
        _
    $region48: #{rmc_forward.2} parent=5 // pred_fallthru
      _
    %p343 = scmp.le.s32.totalorder 1, %s16
    %p344 = scmp.lt.s32.totalorder %s16, 5
    %p345 = pnand %p343, %p344
    %p346 = pneg %p345
    // Predicated region
    $region57: #{rmc_forward.2} parent=5 // pred_check
      _
    $region58: #{rmc_forward.2} parent=5 // pred_check_branch
      %348 = sbr.rel (%p345) target = $region60
    $region59: #{rmc_forward.2} parent=5 // pred_region
      %s349 = ssub.s32 %s16, 1
      %p350 = scmp.lt.s32.totalorder %s25, 1
      %s351 = scalar_select %p350, %s25, 1
      %s352 = smul.addr %s351, 72
      %s353 = smul.addr %s352, 8
      %s354 = scalar_lea.vmem %s0, %s353
      %p355 = pneg %p54
      %p356 = pneg %p51
      %s357 = smul.u32 8, %s26
      %p358 = scmp.lt.s32.totalorder %s25, 1
      %s359 = scalar_select %p358, %s25, 1
      %p360 = scmp.lt.s32.totalorder %s357, 15
      %s361 = scalar_select %p360, %s357, 15
      %s362 = smul.addr %s361, 2
      %s363 = smul.addr %s359, 32
      %s364 = sadd.s32 %s362, %s363
      %s365 = smul.addr %s364, 8
      %s366 = scalar_lea.vmem %s1, %s365
      %p367 = pneg %p82
      %p368 = pneg %p79
      %p369 = pneg %p103
      %p370 = pneg %p100
      %p371 = pneg %p124
      %p372 = pneg %p121
      %p373 = pneg %p145
      %p374 = pneg %p142
      %p375 = pneg %p166
      %p376 = pneg %p163
      %p377 = pneg %p187
      %p378 = pneg %p184
      %p379 = pneg %p208
      %p380 = pneg %p205
      %p381 = pneg %p229
      %p382 = pneg %p226
      %p383 = pneg %p250
      %p384 = pneg %p247
      %p385 = pneg %p278
      %p386 = pneg %p275
      %s387 = smul.u32 8, %s26
      %p388 = scmp.lt.s32.totalorder %s25, 1
      %s389 = scalar_select %p388, %s25, 1
      %p390 = scmp.lt.s32.totalorder %s387, 15
      %s391 = scalar_select %p390, %s387, 15
      %s392 = smul.addr %s391, 2
      %s393 = smul.addr %s389, 32
      %s394 = sadd.s32 %s392, %s393
      %s395 = smul.addr %s394, 8
      %s396 = scalar_lea.vmem %s10, %s395
      %p397 = scmp.lt.s32.totalorder %s25, 1
      %s398 = scalar_select %p397, %s25, 1
      %s399 = smul.addr %s398, 72
      %s400 = smul.addr %s399, 8
      %s401 = scalar_lea.vmem %s0, %s400
      %s402 = smul.u32 8, %s26
      %p403 = scmp.lt.s32.totalorder %s25, 1
      %s404 = scalar_select %p403, %s25, 1
      %p405 = scmp.lt.s32.totalorder %s402, 15
      %s406 = scalar_select %p405, %s402, 15
      %s407 = smul.addr %s406, 2
      %s408 = smul.addr %s404, 32
      %s409 = sadd.s32 %s407, %s408
      %s410 = smul.addr %s409, 8
      %s411 = scalar_lea.vmem %s1, %s410
      %s412 = smul.u32 8, %s26
      %s413 = smul.u32 8, %s26
      %p414 = scmp.lt.s32.totalorder %s25, 1
      %s415 = scalar_select %p414, %s25, 1
      %p416 = scmp.lt.s32.totalorder %s413, 15
      %s417 = scalar_select %p416, %s413, 15
      %s418 = smul.addr %s417, 2
      %s419 = smul.addr %s415, 32
      %s420 = sadd.s32 %s418, %s419
      %s421 = smul.addr %s420, 8
      %s422 = scalar_lea.vmem %s10, %s421
      %s423 = smul.u32 8, %s26
      %s425 = smul.u32 %s26, 8
      %s426 = smul.u32 %s425, 24
      %s427 = scalar_lea.vmem %s401, %s426
      %v428 = vld [vmem:[%s427] sm:$0xff]
      %v429 = vld [vmem:[%s427 + $0x8] sm:$0xff]
      %v430 = vld [vmem:[%s427 + $0x10] sm:$0xff]
      %v431 = vld [vmem:[%s427 + $0x18] sm:$0xff]
      %v432 = vld [vmem:[%s427 + $0x20] sm:$0xff]
      %v433 = vld [vmem:[%s427 + $0x28] sm:$0xff]
      %v434 = vld [vmem:[%s427 + $0x30] sm:$0xff]
      %v435 = vld [vmem:[%s427 + $0x38] sm:$0xff]
      %v436 = vld [vmem:[%s427 + $0x40] sm:$0xff]
      %v437 = vld [vmem:[%s427 + $0x48] sm:$0xff]
      %v438 = vld [vmem:[%s427 + $0x50] sm:$0xff]
      %v439 = vld [vmem:[%s427 + $0x58] sm:$0xff]
      %v440 = vld [vmem:[%s427 + $0x60] sm:$0xff]
      %v441 = vld [vmem:[%s427 + $0x68] sm:$0xff]
      %v442 = vld [vmem:[%s427 + $0x70] sm:$0xff]
      %v443 = vld [vmem:[%s427 + $0x78] sm:$0xff]
      %v444 = vld [vmem:[%s427 + $0x80] sm:$0xff]
      %v445 = vld [vmem:[%s427 + $0x88] sm:$0xff]
      %v446 = vld [vmem:[%s427 + $0x90] sm:$0xff]
      %v447 = vld [vmem:[%s427 + $0x98] sm:$0xff]
      %v448 = vld [vmem:[%s427 + $0xa0] sm:$0xff]
      %v449 = vld [vmem:[%s427 + $0xa8] sm:$0xff]
      %v450 = vld [vmem:[%s427 + $0xb0] sm:$0xff]
      %v451 = vld [vmem:[%s427 + $0xb8] sm:$0xff]
      %v452 = vld [vmem:[%s427 + $0xc0] sm:$0xff]
      %v453 = vld [vmem:[%s427 + $0xc8] sm:$0xff]
      %v454 = vld [vmem:[%s427 + $0xd0] sm:$0xff]
      %v455 = vld [vmem:[%s427 + $0xd8] sm:$0xff]
      %v456 = vld [vmem:[%s427 + $0xe0] sm:$0xff]
      %v457 = vld [vmem:[%s427 + $0xe8] sm:$0xff]
      %v458 = vld [vmem:[%s427 + $0xf0] sm:$0xff]
      %v459 = vld [vmem:[%s427 + $0xf8] sm:$0xff]
      %v460 = vld [vmem:[%s427 + $0x100] sm:$0xff]
      %v461 = vld [vmem:[%s427 + $0x108] sm:$0xff]
      %v462 = vld [vmem:[%s427 + $0x110] sm:$0xff]
      %v463 = vld [vmem:[%s427 + $0x118] sm:$0xff]
      %v464 = vld [vmem:[%s427 + $0x120] sm:$0xff]
      %v465 = vld [vmem:[%s427 + $0x128] sm:$0xff]
      %v466 = vld [vmem:[%s427 + $0x130] sm:$0xff]
      %v467 = vld [vmem:[%s427 + $0x138] sm:$0xff]
      %v468 = vld [vmem:[%s427 + $0x140] sm:$0xff]
      %v469 = vld [vmem:[%s427 + $0x148] sm:$0xff]
      %v470 = vld [vmem:[%s427 + $0x150] sm:$0xff]
      %v471 = vld [vmem:[%s427 + $0x158] sm:$0xff]
      %v472 = vld [vmem:[%s427 + $0x160] sm:$0xff]
      %v473 = vld [vmem:[%s427 + $0x168] sm:$0xff]
      %v474 = vld [vmem:[%s427 + $0x170] sm:$0xff]
      %v475 = vld [vmem:[%s427 + $0x178] sm:$0xff]
      %vm512 = vcmask 1046528
      %v513 = vrot.slane %v431, 1
      %v514 = vrot.slane %v432, 1
      %v515 = vsel %vm512, %v513, %v514
      %v516 = vrot.slane %v433, 1
      %v517 = vsel %vm512, %v514, %v516
      %v518 = vrot.slane %v434, 1
      %v519 = vrot.slane %v435, 1
      %v520 = vsel %vm512, %v518, %v519
      %v521 = vrot.slane %v436, 1
      %v522 = vsel %vm512, %v519, %v521
      %v523 = vrot.slane %v437, 1
      %v524 = vrot.slane %v438, 1
      %v525 = vsel %vm512, %v523, %v524
      %v526 = vrot.slane %v439, 1
      %v527 = vsel %vm512, %v524, %v526
      %v528 = vrot.slane %v440, 1
      %v529 = vrot.slane %v441, 1
      %v530 = vsel %vm512, %v528, %v529
      %v531 = vrot.slane %v442, 1
      %v532 = vsel %vm512, %v529, %v531
      %v533 = vrot.slane %v443, 1
      %v534 = vrot.slane %v444, 1
      %v535 = vsel %vm512, %v533, %v534
      %v536 = vrot.slane %v445, 1
      %v537 = vsel %vm512, %v534, %v536
      %v538 = vrot.slane %v446, 1
      %v539 = vrot.slane %v447, 1
      %v540 = vsel %vm512, %v538, %v539
      %v541 = vrot.slane %v448, 1
      %v542 = vsel %vm512, %v539, %v541
      %v543 = vrot.slane %v449, 1
      %v544 = vrot.slane %v450, 1
      %v545 = vsel %vm512, %v543, %v544
      %v546 = vrot.slane %v451, 1
      %v547 = vsel %vm512, %v544, %v546
      %v548 = vrot.slane %v452, 1
      %v549 = vrot.slane %v453, 1
      %v550 = vsel %vm512, %v548, %v549
      %v551 = vrot.slane %v454, 1
      %v552 = vsel %vm512, %v549, %v551
      %v553 = vrot.slane %v455, 1
      %v554 = vrot.slane %v456, 1
      %v555 = vsel %vm512, %v553, %v554
      %v556 = vrot.slane %v457, 1
      %v557 = vsel %vm512, %v554, %v556
      %v558 = vrot.slane %v458, 1
      %v559 = vrot.slane %v459, 1
      %v560 = vsel %vm512, %v558, %v559
      %v561 = vrot.slane %v460, 1
      %v562 = vsel %vm512, %v559, %v561
      %v563 = vrot.slane %v461, 1
      %v564 = vrot.slane %v462, 1
      %v565 = vsel %vm512, %v563, %v564
      %v566 = vrot.slane %v463, 1
      %v567 = vsel %vm512, %v564, %v566
      %v568 = vrot.slane %v464, 1
      %v569 = vrot.slane %v465, 1
      %v570 = vsel %vm512, %v568, %v569
      %v571 = vrot.slane %v466, 1
      %v572 = vsel %vm512, %v569, %v571
      %573 = vrot.lane.b32.xlu0 %v515, 4
      %v574 = vpop.permute.xlu0 %573
      %575 = vrot.lane.b32.xlu0 %v517, 4
      %v576 = vpop.permute.xlu0 %575
      %577 = vrot.lane.b32.xlu0 %v516, 4
      %v578 = vpop.permute.xlu0 %577
      %579 = vrot.lane.b32.xlu0 %v520, 4
      %v580 = vpop.permute.xlu0 %579
      %581 = vrot.lane.b32.xlu0 %v522, 4
      %v582 = vpop.permute.xlu0 %581
      %583 = vrot.lane.b32.xlu0 %v521, 4
      %v584 = vpop.permute.xlu0 %583
      %585 = vrot.lane.b32.xlu0 %v525, 4
      %v586 = vpop.permute.xlu0 %585
      %587 = vrot.lane.b32.xlu0 %v527, 4
      %v588 = vpop.permute.xlu0 %587
      %589 = vrot.lane.b32.xlu0 %v526, 4
      %v590 = vpop.permute.xlu0 %589
      %591 = vrot.lane.b32.xlu0 %v530, 4
      %v592 = vpop.permute.xlu0 %591
      %593 = vrot.lane.b32.xlu0 %v532, 4
      %v594 = vpop.permute.xlu0 %593
      %595 = vrot.lane.b32.xlu0 %v531, 4
      %v596 = vpop.permute.xlu0 %595
      %597 = vrot.lane.b32.xlu0 %v535, 4
      %v598 = vpop.permute.xlu0 %597
      %599 = vrot.lane.b32.xlu0 %v537, 4
      %v600 = vpop.permute.xlu0 %599
      %601 = vrot.lane.b32.xlu0 %v536, 4
      %v602 = vpop.permute.xlu0 %601
      %603 = vrot.lane.b32.xlu0 %v540, 4
      %v604 = vpop.permute.xlu0 %603
      %605 = vrot.lane.b32.xlu0 %v542, 4
      %v606 = vpop.permute.xlu0 %605
      %607 = vrot.lane.b32.xlu0 %v541, 4
      %v608 = vpop.permute.xlu0 %607
      %609 = vrot.lane.b32.xlu0 %v545, 4
      %v610 = vpop.permute.xlu0 %609
      %611 = vrot.lane.b32.xlu0 %v547, 4
      %v612 = vpop.permute.xlu0 %611
      %613 = vrot.lane.b32.xlu0 %v546, 4
      %v614 = vpop.permute.xlu0 %613
      %615 = vrot.lane.b32.xlu0 %v550, 4
      %v616 = vpop.permute.xlu0 %615
      %617 = vrot.lane.b32.xlu0 %v552, 4
      %v618 = vpop.permute.xlu0 %617
      %619 = vrot.lane.b32.xlu0 %v551, 4
      %v620 = vpop.permute.xlu0 %619
      %621 = vrot.lane.b32.xlu0 %v555, 4
      %v622 = vpop.permute.xlu0 %621
      %623 = vrot.lane.b32.xlu0 %v557, 4
      %v624 = vpop.permute.xlu0 %623
      %625 = vrot.lane.b32.xlu0 %v556, 4
      %v626 = vpop.permute.xlu0 %625
      %627 = vrot.lane.b32.xlu0 %v560, 4
      %v628 = vpop.permute.xlu0 %627
      %629 = vrot.lane.b32.xlu0 %v562, 4
      %v630 = vpop.permute.xlu0 %629
      %631 = vrot.lane.b32.xlu0 %v561, 4
      %v632 = vpop.permute.xlu0 %631
      %633 = vrot.lane.b32.xlu0 %v565, 4
      %v634 = vpop.permute.xlu0 %633
      %635 = vrot.lane.b32.xlu0 %v567, 4
      %v636 = vpop.permute.xlu0 %635
      %637 = vrot.lane.b32.xlu0 %v566, 4
      %v638 = vpop.permute.xlu0 %637
      %639 = vrot.lane.b32.xlu0 %v570, 4
      %v640 = vpop.permute.xlu0 %639
      %641 = vrot.lane.b32.xlu0 %v572, 4
      %v642 = vpop.permute.xlu0 %641
      %643 = vrot.lane.b32.xlu0 %v571, 4
      %v644 = vpop.permute.xlu0 %643
      %vm681 = vcmask 1045504
      %v682 = vrot.slane %v431, 2
      %v683 = vrot.slane %v432, 2
      %v684 = vsel %vm681, %v682, %v683
      %v685 = vrot.slane %v433, 2
      %v686 = vsel %vm681, %v683, %v685
      %v687 = vrot.slane %v434, 2
      %v688 = vrot.slane %v435, 2
      %v689 = vsel %vm681, %v687, %v688
      %v690 = vrot.slane %v436, 2
      %v691 = vsel %vm681, %v688, %v690
      %v692 = vrot.slane %v437, 2
      %v693 = vrot.slane %v438, 2
      %v694 = vsel %vm681, %v692, %v693
      %v695 = vrot.slane %v439, 2
      %v696 = vsel %vm681, %v693, %v695
      %v697 = vrot.slane %v440, 2
      %v698 = vrot.slane %v441, 2
      %v699 = vsel %vm681, %v697, %v698
      %v700 = vrot.slane %v442, 2
      %v701 = vsel %vm681, %v698, %v700
      %v702 = vrot.slane %v443, 2
      %v703 = vrot.slane %v444, 2
      %v704 = vsel %vm681, %v702, %v703
      %v705 = vrot.slane %v445, 2
      %v706 = vsel %vm681, %v703, %v705
      %v707 = vrot.slane %v446, 2
      %v708 = vrot.slane %v447, 2
      %v709 = vsel %vm681, %v707, %v708
      %v710 = vrot.slane %v448, 2
      %v711 = vsel %vm681, %v708, %v710
      %v712 = vrot.slane %v449, 2
      %v713 = vrot.slane %v450, 2
      %v714 = vsel %vm681, %v712, %v713
      %v715 = vrot.slane %v451, 2
      %v716 = vsel %vm681, %v713, %v715
      %v717 = vrot.slane %v452, 2
      %v718 = vrot.slane %v453, 2
      %v719 = vsel %vm681, %v717, %v718
      %v720 = vrot.slane %v454, 2
      %v721 = vsel %vm681, %v718, %v720
      %v722 = vrot.slane %v455, 2
      %v723 = vrot.slane %v456, 2
      %v724 = vsel %vm681, %v722, %v723
      %v725 = vrot.slane %v457, 2
      %v726 = vsel %vm681, %v723, %v725
      %v727 = vrot.slane %v458, 2
      %v728 = vrot.slane %v459, 2
      %v729 = vsel %vm681, %v727, %v728
      %v730 = vrot.slane %v460, 2
      %v731 = vsel %vm681, %v728, %v730
      %v732 = vrot.slane %v461, 2
      %v733 = vrot.slane %v462, 2
      %v734 = vsel %vm681, %v732, %v733
      %v735 = vrot.slane %v463, 2
      %v736 = vsel %vm681, %v733, %v735
      %v737 = vrot.slane %v464, 2
      %v738 = vrot.slane %v465, 2
      %v739 = vsel %vm681, %v737, %v738
      %v740 = vrot.slane %v466, 2
      %v741 = vsel %vm681, %v738, %v740
      %742 = vrot.lane.b32.xlu0 %v684, 8
      %v743 = vpop.permute.xlu0 %742
      %744 = vrot.lane.b32.xlu0 %v686, 8
      %v745 = vpop.permute.xlu0 %744
      %746 = vrot.lane.b32.xlu0 %v685, 8
      %v747 = vpop.permute.xlu0 %746
      %748 = vrot.lane.b32.xlu0 %v689, 8
      %v749 = vpop.permute.xlu0 %748
      %750 = vrot.lane.b32.xlu0 %v691, 8
      %v751 = vpop.permute.xlu0 %750
      %752 = vrot.lane.b32.xlu0 %v690, 8
      %v753 = vpop.permute.xlu0 %752
      %754 = vrot.lane.b32.xlu0 %v694, 8
      %v755 = vpop.permute.xlu0 %754
      %756 = vrot.lane.b32.xlu0 %v696, 8
      %v757 = vpop.permute.xlu0 %756
      %758 = vrot.lane.b32.xlu0 %v695, 8
      %v759 = vpop.permute.xlu0 %758
      %760 = vrot.lane.b32.xlu0 %v699, 8
      %v761 = vpop.permute.xlu0 %760
      %762 = vrot.lane.b32.xlu0 %v701, 8
      %v763 = vpop.permute.xlu0 %762
      %764 = vrot.lane.b32.xlu0 %v700, 8
      %v765 = vpop.permute.xlu0 %764
      %766 = vrot.lane.b32.xlu0 %v704, 8
      %v767 = vpop.permute.xlu0 %766
      %768 = vrot.lane.b32.xlu0 %v706, 8
      %v769 = vpop.permute.xlu0 %768
      %770 = vrot.lane.b32.xlu0 %v705, 8
      %v771 = vpop.permute.xlu0 %770
      %772 = vrot.lane.b32.xlu0 %v709, 8
      %v773 = vpop.permute.xlu0 %772
      %774 = vrot.lane.b32.xlu0 %v711, 8
      %v775 = vpop.permute.xlu0 %774
      %776 = vrot.lane.b32.xlu0 %v710, 8
      %v777 = vpop.permute.xlu0 %776
      %778 = vrot.lane.b32.xlu0 %v714, 8
      %v779 = vpop.permute.xlu0 %778
      %780 = vrot.lane.b32.xlu0 %v716, 8
      %v781 = vpop.permute.xlu0 %780
      %782 = vrot.lane.b32.xlu0 %v715, 8
      %v783 = vpop.permute.xlu0 %782
      %784 = vrot.lane.b32.xlu0 %v719, 8
      %v785 = vpop.permute.xlu0 %784
      %786 = vrot.lane.b32.xlu0 %v721, 8
      %v787 = vpop.permute.xlu0 %786
      %788 = vrot.lane.b32.xlu0 %v720, 8
      %v789 = vpop.permute.xlu0 %788
      %790 = vrot.lane.b32.xlu0 %v724, 8
      %v791 = vpop.permute.xlu0 %790
      %792 = vrot.lane.b32.xlu0 %v726, 8
      %v793 = vpop.permute.xlu0 %792
      %794 = vrot.lane.b32.xlu0 %v725, 8
      %v795 = vpop.permute.xlu0 %794
      %796 = vrot.lane.b32.xlu0 %v729, 8
      %v797 = vpop.permute.xlu0 %796
      %798 = vrot.lane.b32.xlu0 %v731, 8
      %v799 = vpop.permute.xlu0 %798
      %800 = vrot.lane.b32.xlu0 %v730, 8
      %v801 = vpop.permute.xlu0 %800
      %802 = vrot.lane.b32.xlu0 %v734, 8
      %v803 = vpop.permute.xlu0 %802
      %804 = vrot.lane.b32.xlu0 %v736, 8
      %v805 = vpop.permute.xlu0 %804
      %806 = vrot.lane.b32.xlu0 %v735, 8
      %v807 = vpop.permute.xlu0 %806
      %808 = vrot.lane.b32.xlu0 %v739, 8
      %v809 = vpop.permute.xlu0 %808
      %810 = vrot.lane.b32.xlu0 %v741, 8
      %v811 = vpop.permute.xlu0 %810
      %812 = vrot.lane.b32.xlu0 %v740, 8
      %v813 = vpop.permute.xlu0 %812
      %853 = vrot.lane.b32.xlu0 %v434, 12
      %v854 = vpop.permute.xlu0 %853
      %855 = vrot.lane.b32.xlu0 %v435, 12
      %v856 = vpop.permute.xlu0 %855
      %857 = vrot.lane.b32.xlu0 %v436, 12
      %v858 = vpop.permute.xlu0 %857
      %859 = vrot.lane.b32.xlu0 %v437, 12
      %v860 = vpop.permute.xlu0 %859
      %861 = vrot.lane.b32.xlu0 %v438, 12
      %v862 = vpop.permute.xlu0 %861
      %863 = vrot.lane.b32.xlu0 %v439, 12
      %v864 = vpop.permute.xlu0 %863
      %865 = vrot.lane.b32.xlu0 %v440, 12
      %v866 = vpop.permute.xlu0 %865
      %867 = vrot.lane.b32.xlu0 %v441, 12
      %v868 = vpop.permute.xlu0 %867
      %869 = vrot.lane.b32.xlu0 %v442, 12
      %v870 = vpop.permute.xlu0 %869
      %871 = vrot.lane.b32.xlu0 %v443, 12
      %v872 = vpop.permute.xlu0 %871
      %873 = vrot.lane.b32.xlu0 %v444, 12
      %v874 = vpop.permute.xlu0 %873
      %875 = vrot.lane.b32.xlu0 %v445, 12
      %v876 = vpop.permute.xlu0 %875
      %877 = vrot.lane.b32.xlu0 %v446, 12
      %v878 = vpop.permute.xlu0 %877
      %879 = vrot.lane.b32.xlu0 %v447, 12
      %v880 = vpop.permute.xlu0 %879
      %881 = vrot.lane.b32.xlu0 %v448, 12
      %v882 = vpop.permute.xlu0 %881
      %883 = vrot.lane.b32.xlu0 %v449, 12
      %v884 = vpop.permute.xlu0 %883
      %885 = vrot.lane.b32.xlu0 %v450, 12
      %v886 = vpop.permute.xlu0 %885
      %887 = vrot.lane.b32.xlu0 %v451, 12
      %v888 = vpop.permute.xlu0 %887
      %889 = vrot.lane.b32.xlu0 %v452, 12
      %v890 = vpop.permute.xlu0 %889
      %891 = vrot.lane.b32.xlu0 %v453, 12
      %v892 = vpop.permute.xlu0 %891
      %893 = vrot.lane.b32.xlu0 %v454, 12
      %v894 = vpop.permute.xlu0 %893
      %895 = vrot.lane.b32.xlu0 %v455, 12
      %v896 = vpop.permute.xlu0 %895
      %897 = vrot.lane.b32.xlu0 %v456, 12
      %v898 = vpop.permute.xlu0 %897
      %899 = vrot.lane.b32.xlu0 %v457, 12
      %v900 = vpop.permute.xlu0 %899
      %901 = vrot.lane.b32.xlu0 %v458, 12
      %v902 = vpop.permute.xlu0 %901
      %903 = vrot.lane.b32.xlu0 %v459, 12
      %v904 = vpop.permute.xlu0 %903
      %905 = vrot.lane.b32.xlu0 %v460, 12
      %v906 = vpop.permute.xlu0 %905
      %907 = vrot.lane.b32.xlu0 %v461, 12
      %v908 = vpop.permute.xlu0 %907
      %909 = vrot.lane.b32.xlu0 %v462, 12
      %v910 = vpop.permute.xlu0 %909
      %911 = vrot.lane.b32.xlu0 %v463, 12
      %v912 = vpop.permute.xlu0 %911
      %913 = vrot.lane.b32.xlu0 %v464, 12
      %v914 = vpop.permute.xlu0 %913
      %915 = vrot.lane.b32.xlu0 %v465, 12
      %v916 = vpop.permute.xlu0 %915
      %917 = vrot.lane.b32.xlu0 %v466, 12
      %v918 = vpop.permute.xlu0 %917
      %919 = vrot.lane.b32.xlu0 %v467, 12
      %v920 = vpop.permute.xlu0 %919
      %921 = vrot.lane.b32.xlu0 %v468, 12
      %v922 = vpop.permute.xlu0 %921
      %923 = vrot.lane.b32.xlu0 %v469, 12
      %v924 = vpop.permute.xlu0 %923
      %v961 = vrot.slane %v467, 1
      %v962 = vrot.slane %v468, 1
      %v963 = vsel %vm512, %v961, %v962
      %v964 = vrot.slane %v469, 1
      %v965 = vsel %vm512, %v962, %v964
      %966 = vrot.lane.b32.xlu0 %v520, 16
      %v967 = vpop.permute.xlu0 %966
      %968 = vrot.lane.b32.xlu0 %v522, 16
      %v969 = vpop.permute.xlu0 %968
      %970 = vrot.lane.b32.xlu0 %v521, 16
      %v971 = vpop.permute.xlu0 %970
      %972 = vrot.lane.b32.xlu0 %v525, 16
      %v973 = vpop.permute.xlu0 %972
      %974 = vrot.lane.b32.xlu0 %v527, 16
      %v975 = vpop.permute.xlu0 %974
      %976 = vrot.lane.b32.xlu0 %v526, 16
      %v977 = vpop.permute.xlu0 %976
      %978 = vrot.lane.b32.xlu0 %v530, 16
      %v979 = vpop.permute.xlu0 %978
      %980 = vrot.lane.b32.xlu0 %v532, 16
      %v981 = vpop.permute.xlu0 %980
      %982 = vrot.lane.b32.xlu0 %v531, 16
      %v983 = vpop.permute.xlu0 %982
      %984 = vrot.lane.b32.xlu0 %v535, 16
      %v985 = vpop.permute.xlu0 %984
      %986 = vrot.lane.b32.xlu0 %v537, 16
      %v987 = vpop.permute.xlu0 %986
      %988 = vrot.lane.b32.xlu0 %v536, 16
      %v989 = vpop.permute.xlu0 %988
      %990 = vrot.lane.b32.xlu0 %v540, 16
      %v991 = vpop.permute.xlu0 %990
      %992 = vrot.lane.b32.xlu0 %v542, 16
      %v993 = vpop.permute.xlu0 %992
      %994 = vrot.lane.b32.xlu0 %v541, 16
      %v995 = vpop.permute.xlu0 %994
      %996 = vrot.lane.b32.xlu0 %v545, 16
      %v997 = vpop.permute.xlu0 %996
      %998 = vrot.lane.b32.xlu0 %v547, 16
      %v999 = vpop.permute.xlu0 %998
      %1000 = vrot.lane.b32.xlu0 %v546, 16
      %v1001 = vpop.permute.xlu0 %1000
      %1002 = vrot.lane.b32.xlu0 %v550, 16
      %v1003 = vpop.permute.xlu0 %1002
      %1004 = vrot.lane.b32.xlu0 %v552, 16
      %v1005 = vpop.permute.xlu0 %1004
      %1006 = vrot.lane.b32.xlu0 %v551, 16
      %v1007 = vpop.permute.xlu0 %1006
      %1008 = vrot.lane.b32.xlu0 %v555, 16
      %v1009 = vpop.permute.xlu0 %1008
      %1010 = vrot.lane.b32.xlu0 %v557, 16
      %v1011 = vpop.permute.xlu0 %1010
      %1012 = vrot.lane.b32.xlu0 %v556, 16
      %v1013 = vpop.permute.xlu0 %1012
      %1014 = vrot.lane.b32.xlu0 %v560, 16
      %v1015 = vpop.permute.xlu0 %1014
      %1016 = vrot.lane.b32.xlu0 %v562, 16
      %v1017 = vpop.permute.xlu0 %1016
      %1018 = vrot.lane.b32.xlu0 %v561, 16
      %v1019 = vpop.permute.xlu0 %1018
      %1020 = vrot.lane.b32.xlu0 %v565, 16
      %v1021 = vpop.permute.xlu0 %1020
      %1022 = vrot.lane.b32.xlu0 %v567, 16
      %v1023 = vpop.permute.xlu0 %1022
      %1024 = vrot.lane.b32.xlu0 %v566, 16
      %v1025 = vpop.permute.xlu0 %1024
      %1026 = vrot.lane.b32.xlu0 %v570, 16
      %v1027 = vpop.permute.xlu0 %1026
      %1028 = vrot.lane.b32.xlu0 %v572, 16
      %v1029 = vpop.permute.xlu0 %1028
      %1030 = vrot.lane.b32.xlu0 %v571, 16
      %v1031 = vpop.permute.xlu0 %1030
      %1032 = vrot.lane.b32.xlu0 %v963, 16
      %v1033 = vpop.permute.xlu0 %1032
      %1034 = vrot.lane.b32.xlu0 %v965, 16
      %v1035 = vpop.permute.xlu0 %1034
      %1036 = vrot.lane.b32.xlu0 %v964, 16
      %v1037 = vpop.permute.xlu0 %1036
      %v1074 = vrot.slane %v467, 2
      %v1075 = vrot.slane %v468, 2
      %v1076 = vsel %vm681, %v1074, %v1075
      %v1077 = vrot.slane %v469, 2
      %v1078 = vsel %vm681, %v1075, %v1077
      %1079 = vrot.lane.b32.xlu0 %v689, 20
      %v1080 = vpop.permute.xlu0 %1079
      %1081 = vrot.lane.b32.xlu0 %v691, 20
      %v1082 = vpop.permute.xlu0 %1081
      %1083 = vrot.lane.b32.xlu0 %v690, 20
      %v1084 = vpop.permute.xlu0 %1083
      %1085 = vrot.lane.b32.xlu0 %v694, 20
      %v1086 = vpop.permute.xlu0 %1085
      %1087 = vrot.lane.b32.xlu0 %v696, 20
      %v1088 = vpop.permute.xlu0 %1087
      %1089 = vrot.lane.b32.xlu0 %v695, 20
      %v1090 = vpop.permute.xlu0 %1089
      %1091 = vrot.lane.b32.xlu0 %v699, 20
      %v1092 = vpop.permute.xlu0 %1091
      %1093 = vrot.lane.b32.xlu0 %v701, 20
      %v1094 = vpop.permute.xlu0 %1093
      %1095 = vrot.lane.b32.xlu0 %v700, 20
      %v1096 = vpop.permute.xlu0 %1095
      %1097 = vrot.lane.b32.xlu0 %v704, 20
      %v1098 = vpop.permute.xlu0 %1097
      %1099 = vrot.lane.b32.xlu0 %v706, 20
      %v1100 = vpop.permute.xlu0 %1099
      %1101 = vrot.lane.b32.xlu0 %v705, 20
      %v1102 = vpop.permute.xlu0 %1101
      %1103 = vrot.lane.b32.xlu0 %v709, 20
      %v1104 = vpop.permute.xlu0 %1103
      %1105 = vrot.lane.b32.xlu0 %v711, 20
      %v1106 = vpop.permute.xlu0 %1105
      %1107 = vrot.lane.b32.xlu0 %v710, 20
      %v1108 = vpop.permute.xlu0 %1107
      %1109 = vrot.lane.b32.xlu0 %v714, 20
      %v1110 = vpop.permute.xlu0 %1109
      %1111 = vrot.lane.b32.xlu0 %v716, 20
      %v1112 = vpop.permute.xlu0 %1111
      %1113 = vrot.lane.b32.xlu0 %v715, 20
      %v1114 = vpop.permute.xlu0 %1113
      %1115 = vrot.lane.b32.xlu0 %v719, 20
      %v1116 = vpop.permute.xlu0 %1115
      %1117 = vrot.lane.b32.xlu0 %v721, 20
      %v1118 = vpop.permute.xlu0 %1117
      %1119 = vrot.lane.b32.xlu0 %v720, 20
      %v1120 = vpop.permute.xlu0 %1119
      %1121 = vrot.lane.b32.xlu0 %v724, 20
      %v1122 = vpop.permute.xlu0 %1121
      %1123 = vrot.lane.b32.xlu0 %v726, 20
      %v1124 = vpop.permute.xlu0 %1123
      %1125 = vrot.lane.b32.xlu0 %v725, 20
      %v1126 = vpop.permute.xlu0 %1125
      %1127 = vrot.lane.b32.xlu0 %v729, 20
      %v1128 = vpop.permute.xlu0 %1127
      %1129 = vrot.lane.b32.xlu0 %v731, 20
      %v1130 = vpop.permute.xlu0 %1129
      %1131 = vrot.lane.b32.xlu0 %v730, 20
      %v1132 = vpop.permute.xlu0 %1131
      %1133 = vrot.lane.b32.xlu0 %v734, 20
      %v1134 = vpop.permute.xlu0 %1133
      %1135 = vrot.lane.b32.xlu0 %v736, 20
      %v1136 = vpop.permute.xlu0 %1135
      %1137 = vrot.lane.b32.xlu0 %v735, 20
      %v1138 = vpop.permute.xlu0 %1137
      %1139 = vrot.lane.b32.xlu0 %v739, 20
      %v1140 = vpop.permute.xlu0 %1139
      %1141 = vrot.lane.b32.xlu0 %v741, 20
      %v1142 = vpop.permute.xlu0 %1141
      %1143 = vrot.lane.b32.xlu0 %v740, 20
      %v1144 = vpop.permute.xlu0 %1143
      %1145 = vrot.lane.b32.xlu0 %v1076, 20
      %v1146 = vpop.permute.xlu0 %1145
      %1147 = vrot.lane.b32.xlu0 %v1078, 20
      %v1148 = vpop.permute.xlu0 %1147
      %1149 = vrot.lane.b32.xlu0 %v1077, 20
      %v1150 = vpop.permute.xlu0 %1149
      %1190 = vrot.lane.b32.xlu0 %v437, 24
      %v1191 = vpop.permute.xlu0 %1190
      %1192 = vrot.lane.b32.xlu0 %v438, 24
      %v1193 = vpop.permute.xlu0 %1192
      %1194 = vrot.lane.b32.xlu0 %v439, 24
      %v1195 = vpop.permute.xlu0 %1194
      %1196 = vrot.lane.b32.xlu0 %v440, 24
      %v1197 = vpop.permute.xlu0 %1196
      %1198 = vrot.lane.b32.xlu0 %v441, 24
      %v1199 = vpop.permute.xlu0 %1198
      %1200 = vrot.lane.b32.xlu0 %v442, 24
      %v1201 = vpop.permute.xlu0 %1200
      %1202 = vrot.lane.b32.xlu0 %v443, 24
      %v1203 = vpop.permute.xlu0 %1202
      %1204 = vrot.lane.b32.xlu0 %v444, 24
      %v1205 = vpop.permute.xlu0 %1204
      %1206 = vrot.lane.b32.xlu0 %v445, 24
      %v1207 = vpop.permute.xlu0 %1206
      %1208 = vrot.lane.b32.xlu0 %v446, 24
      %v1209 = vpop.permute.xlu0 %1208
      %1210 = vrot.lane.b32.xlu0 %v447, 24
      %v1211 = vpop.permute.xlu0 %1210
      %1212 = vrot.lane.b32.xlu0 %v448, 24
      %v1213 = vpop.permute.xlu0 %1212
      %1214 = vrot.lane.b32.xlu0 %v449, 24
      %v1215 = vpop.permute.xlu0 %1214
      %1216 = vrot.lane.b32.xlu0 %v450, 24
      %v1217 = vpop.permute.xlu0 %1216
      %1218 = vrot.lane.b32.xlu0 %v451, 24
      %v1219 = vpop.permute.xlu0 %1218
      %1220 = vrot.lane.b32.xlu0 %v452, 24
      %v1221 = vpop.permute.xlu0 %1220
      %1222 = vrot.lane.b32.xlu0 %v453, 24
      %v1223 = vpop.permute.xlu0 %1222
      %1224 = vrot.lane.b32.xlu0 %v454, 24
      %v1225 = vpop.permute.xlu0 %1224
      %1226 = vrot.lane.b32.xlu0 %v455, 24
      %v1227 = vpop.permute.xlu0 %1226
      %1228 = vrot.lane.b32.xlu0 %v456, 24
      %v1229 = vpop.permute.xlu0 %1228
      %1230 = vrot.lane.b32.xlu0 %v457, 24
      %v1231 = vpop.permute.xlu0 %1230
      %1232 = vrot.lane.b32.xlu0 %v458, 24
      %v1233 = vpop.permute.xlu0 %1232
      %1234 = vrot.lane.b32.xlu0 %v459, 24
      %v1235 = vpop.permute.xlu0 %1234
      %1236 = vrot.lane.b32.xlu0 %v460, 24
      %v1237 = vpop.permute.xlu0 %1236
      %1238 = vrot.lane.b32.xlu0 %v461, 24
      %v1239 = vpop.permute.xlu0 %1238
      %1240 = vrot.lane.b32.xlu0 %v462, 24
      %v1241 = vpop.permute.xlu0 %1240
      %1242 = vrot.lane.b32.xlu0 %v463, 24
      %v1243 = vpop.permute.xlu0 %1242
      %1244 = vrot.lane.b32.xlu0 %v464, 24
      %v1245 = vpop.permute.xlu0 %1244
      %1246 = vrot.lane.b32.xlu0 %v465, 24
      %v1247 = vpop.permute.xlu0 %1246
      %1248 = vrot.lane.b32.xlu0 %v466, 24
      %v1249 = vpop.permute.xlu0 %1248
      %1250 = vrot.lane.b32.xlu0 %v467, 24
      %v1251 = vpop.permute.xlu0 %1250
      %1252 = vrot.lane.b32.xlu0 %v468, 24
      %v1253 = vpop.permute.xlu0 %1252
      %1254 = vrot.lane.b32.xlu0 %v469, 24
      %v1255 = vpop.permute.xlu0 %1254
      %1256 = vrot.lane.b32.xlu0 %v470, 24
      %v1257 = vpop.permute.xlu0 %1256
      %1258 = vrot.lane.b32.xlu0 %v471, 24
      %v1259 = vpop.permute.xlu0 %1258
      %1260 = vrot.lane.b32.xlu0 %v472, 24
      %v1261 = vpop.permute.xlu0 %1260
      %v1298 = vrot.slane %v470, 1
      %v1299 = vrot.slane %v471, 1
      %v1300 = vsel %vm512, %v1298, %v1299
      %v1301 = vrot.slane %v472, 1
      %v1302 = vsel %vm512, %v1299, %v1301
      %1303 = vrot.lane.b32.xlu0 %v525, 28
      %v1304 = vpop.permute.xlu0 %1303
      %1305 = vrot.lane.b32.xlu0 %v527, 28
      %v1306 = vpop.permute.xlu0 %1305
      %1307 = vrot.lane.b32.xlu0 %v526, 28
      %v1308 = vpop.permute.xlu0 %1307
      %1309 = vrot.lane.b32.xlu0 %v530, 28
      %v1310 = vpop.permute.xlu0 %1309
      %1311 = vrot.lane.b32.xlu0 %v532, 28
      %v1312 = vpop.permute.xlu0 %1311
      %1313 = vrot.lane.b32.xlu0 %v531, 28
      %v1314 = vpop.permute.xlu0 %1313
      %1315 = vrot.lane.b32.xlu0 %v535, 28
      %v1316 = vpop.permute.xlu0 %1315
      %1317 = vrot.lane.b32.xlu0 %v537, 28
      %v1318 = vpop.permute.xlu0 %1317
      %1319 = vrot.lane.b32.xlu0 %v536, 28
      %v1320 = vpop.permute.xlu0 %1319
      %1321 = vrot.lane.b32.xlu0 %v540, 28
      %v1322 = vpop.permute.xlu0 %1321
      %1323 = vrot.lane.b32.xlu0 %v542, 28
      %v1324 = vpop.permute.xlu0 %1323
      %1325 = vrot.lane.b32.xlu0 %v541, 28
      %v1326 = vpop.permute.xlu0 %1325
      %1327 = vrot.lane.b32.xlu0 %v545, 28
      %v1328 = vpop.permute.xlu0 %1327
      %1329 = vrot.lane.b32.xlu0 %v547, 28
      %v1330 = vpop.permute.xlu0 %1329
      %1331 = vrot.lane.b32.xlu0 %v546, 28
      %v1332 = vpop.permute.xlu0 %1331
      %1333 = vrot.lane.b32.xlu0 %v550, 28
      %v1334 = vpop.permute.xlu0 %1333
      %1335 = vrot.lane.b32.xlu0 %v552, 28
      %v1336 = vpop.permute.xlu0 %1335
      %1337 = vrot.lane.b32.xlu0 %v551, 28
      %v1338 = vpop.permute.xlu0 %1337
      %1339 = vrot.lane.b32.xlu0 %v555, 28
      %v1340 = vpop.permute.xlu0 %1339
      %1341 = vrot.lane.b32.xlu0 %v557, 28
      %v1342 = vpop.permute.xlu0 %1341
      %1343 = vrot.lane.b32.xlu0 %v556, 28
      %v1344 = vpop.permute.xlu0 %1343
      %1345 = vrot.lane.b32.xlu0 %v560, 28
      %v1346 = vpop.permute.xlu0 %1345
      %1347 = vrot.lane.b32.xlu0 %v562, 28
      %v1348 = vpop.permute.xlu0 %1347
      %1349 = vrot.lane.b32.xlu0 %v561, 28
      %v1350 = vpop.permute.xlu0 %1349
      %1351 = vrot.lane.b32.xlu0 %v565, 28
      %v1352 = vpop.permute.xlu0 %1351
      %1353 = vrot.lane.b32.xlu0 %v567, 28
      %v1354 = vpop.permute.xlu0 %1353
      %1355 = vrot.lane.b32.xlu0 %v566, 28
      %v1356 = vpop.permute.xlu0 %1355
      %1357 = vrot.lane.b32.xlu0 %v570, 28
      %v1358 = vpop.permute.xlu0 %1357
      %1359 = vrot.lane.b32.xlu0 %v572, 28
      %v1360 = vpop.permute.xlu0 %1359
      %1361 = vrot.lane.b32.xlu0 %v571, 28
      %v1362 = vpop.permute.xlu0 %1361
      %1363 = vrot.lane.b32.xlu0 %v963, 28
      %v1364 = vpop.permute.xlu0 %1363
      %1365 = vrot.lane.b32.xlu0 %v965, 28
      %v1366 = vpop.permute.xlu0 %1365
      %1367 = vrot.lane.b32.xlu0 %v964, 28
      %v1368 = vpop.permute.xlu0 %1367
      %1369 = vrot.lane.b32.xlu0 %v1300, 28
      %v1370 = vpop.permute.xlu0 %1369
      %1371 = vrot.lane.b32.xlu0 %v1302, 28
      %v1372 = vpop.permute.xlu0 %1371
      %1373 = vrot.lane.b32.xlu0 %v1301, 28
      %v1374 = vpop.permute.xlu0 %1373
      %v1411 = vrot.slane %v470, 2
      %v1412 = vrot.slane %v471, 2
      %v1413 = vsel %vm681, %v1411, %v1412
      %v1414 = vrot.slane %v472, 2
      %v1415 = vsel %vm681, %v1412, %v1414
      %1416 = vrot.lane.b32.xlu0 %v694, 32
      %v1417 = vpop.permute.xlu0 %1416
      %1418 = vrot.lane.b32.xlu0 %v696, 32
      %v1419 = vpop.permute.xlu0 %1418
      %1420 = vrot.lane.b32.xlu0 %v695, 32
      %v1421 = vpop.permute.xlu0 %1420
      %1422 = vrot.lane.b32.xlu0 %v699, 32
      %v1423 = vpop.permute.xlu0 %1422
      %1424 = vrot.lane.b32.xlu0 %v701, 32
      %v1425 = vpop.permute.xlu0 %1424
      %1426 = vrot.lane.b32.xlu0 %v700, 32
      %v1427 = vpop.permute.xlu0 %1426
      %1428 = vrot.lane.b32.xlu0 %v704, 32
      %v1429 = vpop.permute.xlu0 %1428
      %1430 = vrot.lane.b32.xlu0 %v706, 32
      %v1431 = vpop.permute.xlu0 %1430
      %1432 = vrot.lane.b32.xlu0 %v705, 32
      %v1433 = vpop.permute.xlu0 %1432
      %1434 = vrot.lane.b32.xlu0 %v709, 32
      %v1435 = vpop.permute.xlu0 %1434
      %1436 = vrot.lane.b32.xlu0 %v711, 32
      %v1437 = vpop.permute.xlu0 %1436
      %1438 = vrot.lane.b32.xlu0 %v710, 32
      %v1439 = vpop.permute.xlu0 %1438
      %1440 = vrot.lane.b32.xlu0 %v714, 32
      %v1441 = vpop.permute.xlu0 %1440
      %1442 = vrot.lane.b32.xlu0 %v716, 32
      %v1443 = vpop.permute.xlu0 %1442
      %1444 = vrot.lane.b32.xlu0 %v715, 32
      %v1445 = vpop.permute.xlu0 %1444
      %1446 = vrot.lane.b32.xlu0 %v719, 32
      %v1447 = vpop.permute.xlu0 %1446
      %1448 = vrot.lane.b32.xlu0 %v721, 32
      %v1449 = vpop.permute.xlu0 %1448
      %1450 = vrot.lane.b32.xlu0 %v720, 32
      %v1451 = vpop.permute.xlu0 %1450
      %1452 = vrot.lane.b32.xlu0 %v724, 32
      %v1453 = vpop.permute.xlu0 %1452
      %1454 = vrot.lane.b32.xlu0 %v726, 32
      %v1455 = vpop.permute.xlu0 %1454
      %1456 = vrot.lane.b32.xlu0 %v725, 32
      %v1457 = vpop.permute.xlu0 %1456
      %1458 = vrot.lane.b32.xlu0 %v729, 32
      %v1459 = vpop.permute.xlu0 %1458
      %1460 = vrot.lane.b32.xlu0 %v731, 32
      %v1461 = vpop.permute.xlu0 %1460
      %1462 = vrot.lane.b32.xlu0 %v730, 32
      %v1463 = vpop.permute.xlu0 %1462
      %1464 = vrot.lane.b32.xlu0 %v734, 32
      %v1465 = vpop.permute.xlu0 %1464
      %1466 = vrot.lane.b32.xlu0 %v736, 32
      %v1467 = vpop.permute.xlu0 %1466
      %1468 = vrot.lane.b32.xlu0 %v735, 32
      %v1469 = vpop.permute.xlu0 %1468
      %1470 = vrot.lane.b32.xlu0 %v739, 32
      %v1471 = vpop.permute.xlu0 %1470
      %1472 = vrot.lane.b32.xlu0 %v741, 32
      %v1473 = vpop.permute.xlu0 %1472
      %1474 = vrot.lane.b32.xlu0 %v740, 32
      %v1475 = vpop.permute.xlu0 %1474
      %1476 = vrot.lane.b32.xlu0 %v1076, 32
      %v1477 = vpop.permute.xlu0 %1476
      %1478 = vrot.lane.b32.xlu0 %v1078, 32
      %v1479 = vpop.permute.xlu0 %1478
      %1480 = vrot.lane.b32.xlu0 %v1077, 32
      %v1481 = vpop.permute.xlu0 %1480
      %1482 = vrot.lane.b32.xlu0 %v1413, 32
      %v1483 = vpop.permute.xlu0 %1482
      %1484 = vrot.lane.b32.xlu0 %v1415, 32
      %v1485 = vpop.permute.xlu0 %1484
      %1486 = vrot.lane.b32.xlu0 %v1414, 32
      %v1487 = vpop.permute.xlu0 %1486
      %vm1524 = vcmask 31744
      %v1525 = vsel %vm1524, %v431, %v574
      %v1526 = vsel %vm1524, %v432, %v576
      %v1527 = vsel %vm1524, %v433, %v578
      %v1528 = vsel %vm1524, %v434, %v580
      %v1529 = vsel %vm1524, %v435, %v582
      %v1530 = vsel %vm1524, %v436, %v584
      %v1531 = vsel %vm1524, %v437, %v586
      %v1532 = vsel %vm1524, %v438, %v588
      %v1533 = vsel %vm1524, %v439, %v590
      %v1534 = vsel %vm1524, %v440, %v592
      %v1535 = vsel %vm1524, %v441, %v594
      %v1536 = vsel %vm1524, %v442, %v596
      %v1537 = vsel %vm1524, %v443, %v598
      %v1538 = vsel %vm1524, %v444, %v600
      %v1539 = vsel %vm1524, %v445, %v602
      %v1540 = vsel %vm1524, %v446, %v604
      %v1541 = vsel %vm1524, %v447, %v606
      %v1542 = vsel %vm1524, %v448, %v608
      %v1543 = vsel %vm1524, %v449, %v610
      %v1544 = vsel %vm1524, %v450, %v612
      %v1545 = vsel %vm1524, %v451, %v614
      %v1546 = vsel %vm1524, %v452, %v616
      %v1547 = vsel %vm1524, %v453, %v618
      %v1548 = vsel %vm1524, %v454, %v620
      %v1549 = vsel %vm1524, %v455, %v622
      %v1550 = vsel %vm1524, %v456, %v624
      %v1551 = vsel %vm1524, %v457, %v626
      %v1552 = vsel %vm1524, %v458, %v628
      %v1553 = vsel %vm1524, %v459, %v630
      %v1554 = vsel %vm1524, %v460, %v632
      %v1555 = vsel %vm1524, %v461, %v634
      %v1556 = vsel %vm1524, %v462, %v636
      %v1557 = vsel %vm1524, %v463, %v638
      %v1558 = vsel %vm1524, %v464, %v640
      %v1559 = vsel %vm1524, %v465, %v642
      %v1560 = vsel %vm1524, %v466, %v644
      %vm1561 = vcmask 64512
      %v1562 = vsel %vm1561, %v1525, %v743
      %v1563 = vsel %vm1561, %v1526, %v745
      %v1564 = vsel %vm1561, %v1527, %v747
      %v1565 = vsel %vm1561, %v1528, %v749
      %v1566 = vsel %vm1561, %v1529, %v751
      %v1567 = vsel %vm1561, %v1530, %v753
      %v1568 = vsel %vm1561, %v1531, %v755
      %v1569 = vsel %vm1561, %v1532, %v757
      %v1570 = vsel %vm1561, %v1533, %v759
      %v1571 = vsel %vm1561, %v1534, %v761
      %v1572 = vsel %vm1561, %v1535, %v763
      %v1573 = vsel %vm1561, %v1536, %v765
      %v1574 = vsel %vm1561, %v1537, %v767
      %v1575 = vsel %vm1561, %v1538, %v769
      %v1576 = vsel %vm1561, %v1539, %v771
      %v1577 = vsel %vm1561, %v1540, %v773
      %v1578 = vsel %vm1561, %v1541, %v775
      %v1579 = vsel %vm1561, %v1542, %v777
      %v1580 = vsel %vm1561, %v1543, %v779
      %v1581 = vsel %vm1561, %v1544, %v781
      %v1582 = vsel %vm1561, %v1545, %v783
      %v1583 = vsel %vm1561, %v1546, %v785
      %v1584 = vsel %vm1561, %v1547, %v787
      %v1585 = vsel %vm1561, %v1548, %v789
      %v1586 = vsel %vm1561, %v1549, %v791
      %v1587 = vsel %vm1561, %v1550, %v793
      %v1588 = vsel %vm1561, %v1551, %v795
      %v1589 = vsel %vm1561, %v1552, %v797
      %v1590 = vsel %vm1561, %v1553, %v799
      %v1591 = vsel %vm1561, %v1554, %v801
      %v1592 = vsel %vm1561, %v1555, %v803
      %v1593 = vsel %vm1561, %v1556, %v805
      %v1594 = vsel %vm1561, %v1557, %v807
      %v1595 = vsel %vm1561, %v1558, %v809
      %v1596 = vsel %vm1561, %v1559, %v811
      %v1597 = vsel %vm1561, %v1560, %v813
      %vm1598 = vcmask 97280
      %v1599 = vsel %vm1598, %v1562, %v854
      %v1600 = vsel %vm1598, %v1563, %v856
      %v1601 = vsel %vm1598, %v1564, %v858
      %v1602 = vsel %vm1598, %v1565, %v860
      %v1603 = vsel %vm1598, %v1566, %v862
      %v1604 = vsel %vm1598, %v1567, %v864
      %v1605 = vsel %vm1598, %v1568, %v866
      %v1606 = vsel %vm1598, %v1569, %v868
      %v1607 = vsel %vm1598, %v1570, %v870
      %v1608 = vsel %vm1598, %v1571, %v872
      %v1609 = vsel %vm1598, %v1572, %v874
      %v1610 = vsel %vm1598, %v1573, %v876
      %v1611 = vsel %vm1598, %v1574, %v878
      %v1612 = vsel %vm1598, %v1575, %v880
      %v1613 = vsel %vm1598, %v1576, %v882
      %v1614 = vsel %vm1598, %v1577, %v884
      %v1615 = vsel %vm1598, %v1578, %v886
      %v1616 = vsel %vm1598, %v1579, %v888
      %v1617 = vsel %vm1598, %v1580, %v890
      %v1618 = vsel %vm1598, %v1581, %v892
      %v1619 = vsel %vm1598, %v1582, %v894
      %v1620 = vsel %vm1598, %v1583, %v896
      %v1621 = vsel %vm1598, %v1584, %v898
      %v1622 = vsel %vm1598, %v1585, %v900
      %v1623 = vsel %vm1598, %v1586, %v902
      %v1624 = vsel %vm1598, %v1587, %v904
      %v1625 = vsel %vm1598, %v1588, %v906
      %v1626 = vsel %vm1598, %v1589, %v908
      %v1627 = vsel %vm1598, %v1590, %v910
      %v1628 = vsel %vm1598, %v1591, %v912
      %v1629 = vsel %vm1598, %v1592, %v914
      %v1630 = vsel %vm1598, %v1593, %v916
      %v1631 = vsel %vm1598, %v1594, %v918
      %v1632 = vsel %vm1598, %v1595, %v920
      %v1633 = vsel %vm1598, %v1596, %v922
      %v1634 = vsel %vm1598, %v1597, %v924
      %vm1635 = vcmask 130048
      %v1636 = vsel %vm1635, %v1599, %v967
      %v1637 = vsel %vm1635, %v1600, %v969
      %v1638 = vsel %vm1635, %v1601, %v971
      %v1639 = vsel %vm1635, %v1602, %v973
      %v1640 = vsel %vm1635, %v1603, %v975
      %v1641 = vsel %vm1635, %v1604, %v977
      %v1642 = vsel %vm1635, %v1605, %v979
      %v1643 = vsel %vm1635, %v1606, %v981
      %v1644 = vsel %vm1635, %v1607, %v983
      %v1645 = vsel %vm1635, %v1608, %v985
      %v1646 = vsel %vm1635, %v1609, %v987
      %v1647 = vsel %vm1635, %v1610, %v989
      %v1648 = vsel %vm1635, %v1611, %v991
      %v1649 = vsel %vm1635, %v1612, %v993
      %v1650 = vsel %vm1635, %v1613, %v995
      %v1651 = vsel %vm1635, %v1614, %v997
      %v1652 = vsel %vm1635, %v1615, %v999
      %v1653 = vsel %vm1635, %v1616, %v1001
      %v1654 = vsel %vm1635, %v1617, %v1003
      %v1655 = vsel %vm1635, %v1618, %v1005
      %v1656 = vsel %vm1635, %v1619, %v1007
      %v1657 = vsel %vm1635, %v1620, %v1009
      %v1658 = vsel %vm1635, %v1621, %v1011
      %v1659 = vsel %vm1635, %v1622, %v1013
      %v1660 = vsel %vm1635, %v1623, %v1015
      %v1661 = vsel %vm1635, %v1624, %v1017
      %v1662 = vsel %vm1635, %v1625, %v1019
      %v1663 = vsel %vm1635, %v1626, %v1021
      %v1664 = vsel %vm1635, %v1627, %v1023
      %v1665 = vsel %vm1635, %v1628, %v1025
      %v1666 = vsel %vm1635, %v1629, %v1027
      %v1667 = vsel %vm1635, %v1630, %v1029
      %v1668 = vsel %vm1635, %v1631, %v1031
      %v1669 = vsel %vm1635, %v1632, %v1033
      %v1670 = vsel %vm1635, %v1633, %v1035
      %v1671 = vsel %vm1635, %v1634, %v1037
      %vm1672 = vcmask 162816
      %v1673 = vsel %vm1672, %v1636, %v1080
      %v1674 = vsel %vm1672, %v1637, %v1082
      %v1675 = vsel %vm1672, %v1638, %v1084
      %v1676 = vsel %vm1672, %v1639, %v1086
      %v1677 = vsel %vm1672, %v1640, %v1088
      %v1678 = vsel %vm1672, %v1641, %v1090
      %v1679 = vsel %vm1672, %v1642, %v1092
      %v1680 = vsel %vm1672, %v1643, %v1094
      %v1681 = vsel %vm1672, %v1644, %v1096
      %v1682 = vsel %vm1672, %v1645, %v1098
      %v1683 = vsel %vm1672, %v1646, %v1100
      %v1684 = vsel %vm1672, %v1647, %v1102
      %v1685 = vsel %vm1672, %v1648, %v1104
      %v1686 = vsel %vm1672, %v1649, %v1106
      %v1687 = vsel %vm1672, %v1650, %v1108
      %v1688 = vsel %vm1672, %v1651, %v1110
      %v1689 = vsel %vm1672, %v1652, %v1112
      %v1690 = vsel %vm1672, %v1653, %v1114
      %v1691 = vsel %vm1672, %v1654, %v1116
      %v1692 = vsel %vm1672, %v1655, %v1118
      %v1693 = vsel %vm1672, %v1656, %v1120
      %v1694 = vsel %vm1672, %v1657, %v1122
      %v1695 = vsel %vm1672, %v1658, %v1124
      %v1696 = vsel %vm1672, %v1659, %v1126
      %v1697 = vsel %vm1672, %v1660, %v1128
      %v1698 = vsel %vm1672, %v1661, %v1130
      %v1699 = vsel %vm1672, %v1662, %v1132
      %v1700 = vsel %vm1672, %v1663, %v1134
      %v1701 = vsel %vm1672, %v1664, %v1136
      %v1702 = vsel %vm1672, %v1665, %v1138
      %v1703 = vsel %vm1672, %v1666, %v1140
      %v1704 = vsel %vm1672, %v1667, %v1142
      %v1705 = vsel %vm1672, %v1668, %v1144
      %v1706 = vsel %vm1672, %v1669, %v1146
      %v1707 = vsel %vm1672, %v1670, %v1148
      %v1708 = vsel %vm1672, %v1671, %v1150
      %vm1709 = vcmask 195584
      %v1710 = vsel %vm1709, %v1673, %v1191
      %v1711 = vsel %vm1709, %v1674, %v1193
      %v1712 = vsel %vm1709, %v1675, %v1195
      %v1713 = vsel %vm1709, %v1676, %v1197
      %v1714 = vsel %vm1709, %v1677, %v1199
      %v1715 = vsel %vm1709, %v1678, %v1201
      %v1716 = vsel %vm1709, %v1679, %v1203
      %v1717 = vsel %vm1709, %v1680, %v1205
      %v1718 = vsel %vm1709, %v1681, %v1207
      %v1719 = vsel %vm1709, %v1682, %v1209
      %v1720 = vsel %vm1709, %v1683, %v1211
      %v1721 = vsel %vm1709, %v1684, %v1213
      %v1722 = vsel %vm1709, %v1685, %v1215
      %v1723 = vsel %vm1709, %v1686, %v1217
      %v1724 = vsel %vm1709, %v1687, %v1219
      %v1725 = vsel %vm1709, %v1688, %v1221
      %v1726 = vsel %vm1709, %v1689, %v1223
      %v1727 = vsel %vm1709, %v1690, %v1225
      %v1728 = vsel %vm1709, %v1691, %v1227
      %v1729 = vsel %vm1709, %v1692, %v1229
      %v1730 = vsel %vm1709, %v1693, %v1231
      %v1731 = vsel %vm1709, %v1694, %v1233
      %v1732 = vsel %vm1709, %v1695, %v1235
      %v1733 = vsel %vm1709, %v1696, %v1237
      %v1734 = vsel %vm1709, %v1697, %v1239
      %v1735 = vsel %vm1709, %v1698, %v1241
      %v1736 = vsel %vm1709, %v1699, %v1243
      %v1737 = vsel %vm1709, %v1700, %v1245
      %v1738 = vsel %vm1709, %v1701, %v1247
      %v1739 = vsel %vm1709, %v1702, %v1249
      %v1740 = vsel %vm1709, %v1703, %v1251
      %v1741 = vsel %vm1709, %v1704, %v1253
      %v1742 = vsel %vm1709, %v1705, %v1255
      %v1743 = vsel %vm1709, %v1706, %v1257
      %v1744 = vsel %vm1709, %v1707, %v1259
      %v1745 = vsel %vm1709, %v1708, %v1261
      %vm1746 = vcmask 228352
      %v1747 = vsel %vm1746, %v1710, %v1304
      %v1748 = vsel %vm1746, %v1711, %v1306
      %v1749 = vsel %vm1746, %v1712, %v1308
      %v1750 = vsel %vm1746, %v1713, %v1310
      %v1751 = vsel %vm1746, %v1714, %v1312
      %v1752 = vsel %vm1746, %v1715, %v1314
      %v1753 = vsel %vm1746, %v1716, %v1316
      %v1754 = vsel %vm1746, %v1717, %v1318
      %v1755 = vsel %vm1746, %v1718, %v1320
      %v1756 = vsel %vm1746, %v1719, %v1322
      %v1757 = vsel %vm1746, %v1720, %v1324
      %v1758 = vsel %vm1746, %v1721, %v1326
      %v1759 = vsel %vm1746, %v1722, %v1328
      %v1760 = vsel %vm1746, %v1723, %v1330
      %v1761 = vsel %vm1746, %v1724, %v1332
      %v1762 = vsel %vm1746, %v1725, %v1334
      %v1763 = vsel %vm1746, %v1726, %v1336
      %v1764 = vsel %vm1746, %v1727, %v1338
      %v1765 = vsel %vm1746, %v1728, %v1340
      %v1766 = vsel %vm1746, %v1729, %v1342
      %v1767 = vsel %vm1746, %v1730, %v1344
      %v1768 = vsel %vm1746, %v1731, %v1346
      %v1769 = vsel %vm1746, %v1732, %v1348
      %v1770 = vsel %vm1746, %v1733, %v1350
      %v1771 = vsel %vm1746, %v1734, %v1352
      %v1772 = vsel %vm1746, %v1735, %v1354
      %v1773 = vsel %vm1746, %v1736, %v1356
      %v1774 = vsel %vm1746, %v1737, %v1358
      %v1775 = vsel %vm1746, %v1738, %v1360
      %v1776 = vsel %vm1746, %v1739, %v1362
      %v1777 = vsel %vm1746, %v1740, %v1364
      %v1778 = vsel %vm1746, %v1741, %v1366
      %v1779 = vsel %vm1746, %v1742, %v1368
      %v1780 = vsel %vm1746, %v1743, %v1370
      %v1781 = vsel %vm1746, %v1744, %v1372
      %v1782 = vsel %vm1746, %v1745, %v1374
      %vm1783 = vcmask 261120
      %v1784 = vsel %vm1783, %v1747, %v1417
      %v1785 = vsel %vm1783, %v1748, %v1419
      %v1786 = vsel %vm1783, %v1749, %v1421
      %v1787 = vsel %vm1783, %v1750, %v1423
      %v1788 = vsel %vm1783, %v1751, %v1425
      %v1789 = vsel %vm1783, %v1752, %v1427
      %v1790 = vsel %vm1783, %v1753, %v1429
      %v1791 = vsel %vm1783, %v1754, %v1431
      %v1792 = vsel %vm1783, %v1755, %v1433
      %v1793 = vsel %vm1783, %v1756, %v1435
      %v1794 = vsel %vm1783, %v1757, %v1437
      %v1795 = vsel %vm1783, %v1758, %v1439
      %v1796 = vsel %vm1783, %v1759, %v1441
      %v1797 = vsel %vm1783, %v1760, %v1443
      %v1798 = vsel %vm1783, %v1761, %v1445
      %v1799 = vsel %vm1783, %v1762, %v1447
      %v1800 = vsel %vm1783, %v1763, %v1449
      %v1801 = vsel %vm1783, %v1764, %v1451
      %v1802 = vsel %vm1783, %v1765, %v1453
      %v1803 = vsel %vm1783, %v1766, %v1455
      %v1804 = vsel %vm1783, %v1767, %v1457
      %v1805 = vsel %vm1783, %v1768, %v1459
      %v1806 = vsel %vm1783, %v1769, %v1461
      %v1807 = vsel %vm1783, %v1770, %v1463
      %v1808 = vsel %vm1783, %v1771, %v1465
      %v1809 = vsel %vm1783, %v1772, %v1467
      %v1810 = vsel %vm1783, %v1773, %v1469
      %v1811 = vsel %vm1783, %v1774, %v1471
      %v1812 = vsel %vm1783, %v1775, %v1473
      %v1813 = vsel %vm1783, %v1776, %v1475
      %v1814 = vsel %vm1783, %v1777, %v1477
      %v1815 = vsel %vm1783, %v1778, %v1479
      %v1816 = vsel %vm1783, %v1779, %v1481
      %v1817 = vsel %vm1783, %v1780, %v1483
      %v1818 = vsel %vm1783, %v1781, %v1485
      %v1819 = vsel %vm1783, %v1782, %v1487
      %v1856 = vcombine.high %v1784, %v1784
      %v1857 = vcombine.high %v1785, %v1785
      %v1858 = vcombine.high %v1786, %v1786
      %v1859 = vcombine.high %v1787, %v1787
      %v1860 = vcombine.high %v1788, %v1788
      %v1861 = vcombine.high %v1789, %v1789
      %v1862 = vcombine.high %v1790, %v1790
      %v1863 = vcombine.high %v1791, %v1791
      %v1864 = vcombine.high %v1792, %v1792
      %v1865 = vcombine.high %v1793, %v1793
      %v1866 = vcombine.high %v1794, %v1794
      %v1867 = vcombine.high %v1795, %v1795
      %v1868 = vcombine.high %v1796, %v1796
      %v1869 = vcombine.high %v1797, %v1797
      %v1870 = vcombine.high %v1798, %v1798
      %v1871 = vcombine.high %v1799, %v1799
      %v1872 = vcombine.high %v1800, %v1800
      %v1873 = vcombine.high %v1801, %v1801
      %v1874 = vcombine.high %v1802, %v1802
      %v1875 = vcombine.high %v1803, %v1803
      %v1876 = vcombine.high %v1804, %v1804
      %v1877 = vcombine.high %v1805, %v1805
      %v1878 = vcombine.high %v1806, %v1806
      %v1879 = vcombine.high %v1807, %v1807
      %v1880 = vcombine.high %v1808, %v1808
      %v1881 = vcombine.high %v1809, %v1809
      %v1882 = vcombine.high %v1810, %v1810
      %v1883 = vcombine.high %v1811, %v1811
      %v1884 = vcombine.high %v1812, %v1812
      %v1885 = vcombine.high %v1813, %v1813
      %v1886 = vcombine.high %v1814, %v1814
      %v1887 = vcombine.high %v1815, %v1815
      %v1888 = vcombine.high %v1816, %v1816
      %v1889 = vcombine.high %v1817, %v1817
      %v1890 = vcombine.high %v1818, %v1818
      %v1891 = vcombine.high %v1819, %v1819
      %vm1892 = vcmask 1042432
      %vm1893 = vcmask 1046532
      %vm1894 = vmor %vm1892, %vm1893
      %v1895 = vrot.slane %v1784, 5
      %v1896 = vrot.slane %v1895, 4
      %v1897 = vrot.slane %v1856, 5
      %v1898 = vsel %vm1894, %v1896, %v1897
      %v1899 = vrot.slane %v1897, 4
      %v1900 = vrot.slane %v1785, 5
      %v1901 = vsel %vm1894, %v1899, %v1900
      %v1902 = vrot.slane %v1900, 4
      %v1903 = vrot.slane %v1857, 5
      %v1904 = vsel %vm1894, %v1902, %v1903
      %v1905 = vrot.slane %v1903, 4
      %v1906 = vrot.slane %v1786, 5
      %v1907 = vsel %vm1894, %v1905, %v1906
      %v1908 = vrot.slane %v1906, 4
      %v1909 = vrot.slane %v1858, 5
      %v1910 = vsel %vm1894, %v1908, %v1909
      %v1911 = vrot.slane %v1787, 5
      %v1912 = vrot.slane %v1911, 4
      %v1913 = vrot.slane %v1859, 5
      %v1914 = vsel %vm1894, %v1912, %v1913
      %v1915 = vrot.slane %v1913, 4
      %v1916 = vrot.slane %v1788, 5
      %v1917 = vsel %vm1894, %v1915, %v1916
      %v1918 = vrot.slane %v1916, 4
      %v1919 = vrot.slane %v1860, 5
      %v1920 = vsel %vm1894, %v1918, %v1919
      %v1921 = vrot.slane %v1919, 4
      %v1922 = vrot.slane %v1789, 5
      %v1923 = vsel %vm1894, %v1921, %v1922
      %v1924 = vrot.slane %v1922, 4
      %v1925 = vrot.slane %v1861, 5
      %v1926 = vsel %vm1894, %v1924, %v1925
      %v1927 = vrot.slane %v1790, 5
      %v1928 = vrot.slane %v1927, 4
      %v1929 = vrot.slane %v1862, 5
      %v1930 = vsel %vm1894, %v1928, %v1929
      %v1931 = vrot.slane %v1929, 4
      %v1932 = vrot.slane %v1791, 5
      %v1933 = vsel %vm1894, %v1931, %v1932
      %v1934 = vrot.slane %v1932, 4
      %v1935 = vrot.slane %v1863, 5
      %v1936 = vsel %vm1894, %v1934, %v1935
      %v1937 = vrot.slane %v1935, 4
      %v1938 = vrot.slane %v1792, 5
      %v1939 = vsel %vm1894, %v1937, %v1938
      %v1940 = vrot.slane %v1938, 4
      %v1941 = vrot.slane %v1864, 5
      %v1942 = vsel %vm1894, %v1940, %v1941
      %v1943 = vrot.slane %v1793, 5
      %v1944 = vrot.slane %v1943, 4
      %v1945 = vrot.slane %v1865, 5
      %v1946 = vsel %vm1894, %v1944, %v1945
      %v1947 = vrot.slane %v1945, 4
      %v1948 = vrot.slane %v1794, 5
      %v1949 = vsel %vm1894, %v1947, %v1948
      %v1950 = vrot.slane %v1948, 4
      %v1951 = vrot.slane %v1866, 5
      %v1952 = vsel %vm1894, %v1950, %v1951
      %v1953 = vrot.slane %v1951, 4
      %v1954 = vrot.slane %v1795, 5
      %v1955 = vsel %vm1894, %v1953, %v1954
      %v1956 = vrot.slane %v1954, 4
      %v1957 = vrot.slane %v1867, 5
      %v1958 = vsel %vm1894, %v1956, %v1957
      %v1959 = vrot.slane %v1796, 5
      %v1960 = vrot.slane %v1959, 4
      %v1961 = vrot.slane %v1868, 5
      %v1962 = vsel %vm1894, %v1960, %v1961
      %v1963 = vrot.slane %v1961, 4
      %v1964 = vrot.slane %v1797, 5
      %v1965 = vsel %vm1894, %v1963, %v1964
      %v1966 = vrot.slane %v1964, 4
      %v1967 = vrot.slane %v1869, 5
      %v1968 = vsel %vm1894, %v1966, %v1967
      %v1969 = vrot.slane %v1967, 4
      %v1970 = vrot.slane %v1798, 5
      %v1971 = vsel %vm1894, %v1969, %v1970
      %v1972 = vrot.slane %v1970, 4
      %v1973 = vrot.slane %v1870, 5
      %v1974 = vsel %vm1894, %v1972, %v1973
      %v1975 = vrot.slane %v1799, 5
      %v1976 = vrot.slane %v1975, 4
      %v1977 = vrot.slane %v1871, 5
      %v1978 = vsel %vm1894, %v1976, %v1977
      %v1979 = vrot.slane %v1977, 4
      %v1980 = vrot.slane %v1800, 5
      %v1981 = vsel %vm1894, %v1979, %v1980
      %v1982 = vrot.slane %v1980, 4
      %v1983 = vrot.slane %v1872, 5
      %v1984 = vsel %vm1894, %v1982, %v1983
      %v1985 = vrot.slane %v1983, 4
      %v1986 = vrot.slane %v1801, 5
      %v1987 = vsel %vm1894, %v1985, %v1986
      %v1988 = vrot.slane %v1986, 4
      %v1989 = vrot.slane %v1873, 5
      %v1990 = vsel %vm1894, %v1988, %v1989
      %v1991 = vrot.slane %v1802, 5
      %v1992 = vrot.slane %v1991, 4
      %v1993 = vrot.slane %v1874, 5
      %v1994 = vsel %vm1894, %v1992, %v1993
      %v1995 = vrot.slane %v1993, 4
      %v1996 = vrot.slane %v1803, 5
      %v1997 = vsel %vm1894, %v1995, %v1996
      %v1998 = vrot.slane %v1996, 4
      %v1999 = vrot.slane %v1875, 5
      %v2000 = vsel %vm1894, %v1998, %v1999
      %v2001 = vrot.slane %v1999, 4
      %v2002 = vrot.slane %v1804, 5
      %v2003 = vsel %vm1894, %v2001, %v2002
      %v2004 = vrot.slane %v2002, 4
      %v2005 = vrot.slane %v1876, 5
      %v2006 = vsel %vm1894, %v2004, %v2005
      %v2007 = vrot.slane %v1805, 5
      %v2008 = vrot.slane %v2007, 4
      %v2009 = vrot.slane %v1877, 5
      %v2010 = vsel %vm1894, %v2008, %v2009
      %v2011 = vrot.slane %v2009, 4
      %v2012 = vrot.slane %v1806, 5
      %v2013 = vsel %vm1894, %v2011, %v2012
      %v2014 = vrot.slane %v2012, 4
      %v2015 = vrot.slane %v1878, 5
      %v2016 = vsel %vm1894, %v2014, %v2015
      %v2017 = vrot.slane %v2015, 4
      %v2018 = vrot.slane %v1807, 5
      %v2019 = vsel %vm1894, %v2017, %v2018
      %v2020 = vrot.slane %v2018, 4
      %v2021 = vrot.slane %v1879, 5
      %v2022 = vsel %vm1894, %v2020, %v2021
      %v2023 = vrot.slane %v1808, 5
      %v2024 = vrot.slane %v2023, 4
      %v2025 = vrot.slane %v1880, 5
      %v2026 = vsel %vm1894, %v2024, %v2025
      %v2027 = vrot.slane %v2025, 4
      %v2028 = vrot.slane %v1809, 5
      %v2029 = vsel %vm1894, %v2027, %v2028
      %v2030 = vrot.slane %v2028, 4
      %v2031 = vrot.slane %v1881, 5
      %v2032 = vsel %vm1894, %v2030, %v2031
      %v2033 = vrot.slane %v2031, 4
      %v2034 = vrot.slane %v1810, 5
      %v2035 = vsel %vm1894, %v2033, %v2034
      %v2036 = vrot.slane %v2034, 4
      %v2037 = vrot.slane %v1882, 5
      %v2038 = vsel %vm1894, %v2036, %v2037
      %v2039 = vrot.slane %v1811, 5
      %v2040 = vrot.slane %v2039, 4
      %v2041 = vrot.slane %v1883, 5
      %v2042 = vsel %vm1894, %v2040, %v2041
      %v2043 = vrot.slane %v2041, 4
      %v2044 = vrot.slane %v1812, 5
      %v2045 = vsel %vm1894, %v2043, %v2044
      %v2046 = vrot.slane %v2044, 4
      %v2047 = vrot.slane %v1884, 5
      %v2048 = vsel %vm1894, %v2046, %v2047
      %v2049 = vrot.slane %v2047, 4
      %v2050 = vrot.slane %v1813, 5
      %v2051 = vsel %vm1894, %v2049, %v2050
      %v2052 = vrot.slane %v2050, 4
      %v2053 = vrot.slane %v1885, 5
      %v2054 = vsel %vm1894, %v2052, %v2053
      %v2055 = vrot.slane %v1814, 5
      %v2056 = vrot.slane %v2055, 4
      %v2057 = vrot.slane %v1886, 5
      %v2058 = vsel %vm1894, %v2056, %v2057
      %v2059 = vrot.slane %v2057, 4
      %v2060 = vrot.slane %v1815, 5
      %v2061 = vsel %vm1894, %v2059, %v2060
      %v2062 = vrot.slane %v2060, 4
      %v2063 = vrot.slane %v1887, 5
      %v2064 = vsel %vm1894, %v2062, %v2063
      %v2065 = vrot.slane %v2063, 4
      %v2066 = vrot.slane %v1816, 5
      %v2067 = vsel %vm1894, %v2065, %v2066
      %v2068 = vrot.slane %v2066, 4
      %v2069 = vrot.slane %v1888, 5
      %v2070 = vsel %vm1894, %v2068, %v2069
      %v2071 = vrot.slane %v1817, 5
      %v2072 = vrot.slane %v2071, 4
      %v2073 = vrot.slane %v1889, 5
      %v2074 = vsel %vm1894, %v2072, %v2073
      %v2075 = vrot.slane %v2073, 4
      %v2076 = vrot.slane %v1818, 5
      %v2077 = vsel %vm1894, %v2075, %v2076
      %v2078 = vrot.slane %v2076, 4
      %v2079 = vrot.slane %v1890, 5
      %v2080 = vsel %vm1894, %v2078, %v2079
      %v2081 = vrot.slane %v2079, 4
      %v2082 = vrot.slane %v1819, 5
      %v2083 = vsel %vm1894, %v2081, %v2082
      %v2084 = vrot.slane %v2082, 4
      %v2085 = vrot.slane %v1891, 5
      %v2086 = vsel %vm1894, %v2084, %v2085
      %v2087 = vcombine.low %v1898, %v1901
      %v2088 = vcombine.low %v1904, %v1907
      %v2089 = vcombine.low %v1910, %v1914
      %v2090 = vcombine.low %v1917, %v1920
      %v2091 = vcombine.low %v1923, %v1926
      %v2092 = vcombine.low %v1930, %v1933
      %v2093 = vcombine.low %v1936, %v1939
      %v2094 = vcombine.low %v1942, %v1946
      %v2095 = vcombine.low %v1949, %v1952
      %v2096 = vcombine.low %v1955, %v1958
      %v2097 = vcombine.low %v1962, %v1965
      %v2098 = vcombine.low %v1968, %v1971
      %v2099 = vcombine.low %v1974, %v1978
      %v2100 = vcombine.low %v1981, %v1984
      %v2101 = vcombine.low %v1987, %v1990
      %v2102 = vcombine.low %v1994, %v1997
      %v2103 = vcombine.low %v2000, %v2003
      %v2104 = vcombine.low %v2006, %v2010
      %v2105 = vcombine.low %v2013, %v2016
      %v2106 = vcombine.low %v2019, %v2022
      %v2107 = vcombine.low %v2026, %v2029
      %v2108 = vcombine.low %v2032, %v2035
      %v2109 = vcombine.low %v2038, %v2042
      %v2110 = vcombine.low %v2045, %v2048
      %v2111 = vcombine.low %v2051, %v2054
      %v2112 = vcombine.low %v2058, %v2061
      %v2113 = vcombine.low %v2064, %v2067
      %v2114 = vcombine.low %v2070, %v2074
      %v2115 = vcombine.low %v2077, %v2080
      %v2116 = vcombine.low %v2083, %v2086
      %v2147 = vpack.c.bf16 %v2088, %v2087
      %v2148 = vpack.c.bf16 %v2090, %v2089
      %v2149 = vpack.c.bf16 %v2092, %v2091
      %v2150 = vpack.c.bf16 %v2094, %v2093
      %v2151 = vpack.c.bf16 %v2096, %v2095
      %v2152 = vpack.c.bf16 %v2098, %v2097
      %v2153 = vpack.c.bf16 %v2100, %v2099
      %v2154 = vpack.c.bf16 %v2102, %v2101
      %v2155 = vpack.c.bf16 %v2104, %v2103
      %v2156 = vpack.c.bf16 %v2106, %v2105
      %v2157 = vpack.c.bf16 %v2108, %v2107
      %v2158 = vpack.c.bf16 %v2110, %v2109
      %v2159 = vpack.c.bf16 %v2112, %v2111
      %v2160 = vpack.c.bf16 %v2114, %v2113
      %v2161 = vpack.c.bf16 %v2116, %v2115
      %v2162 = vld [vmem:[%s2] sm:$0xf]
      %v2163 = vld [vmem:[%s2 + $0x4] sm:$0xf]
      %v2164 = vld [vmem:[%s2 + $0x8] sm:$0xf]
      %v2165 = vld [vmem:[%s2 + $0xc] sm:$0xf]
      %v2166 = vld [vmem:[%s2 + $0x10] sm:$0x3]
      %v2167 = vld [vmem:[%s3] sm:$0x1]
      %v2169 = vlaneseq
      %v2170 = vshrl.u32 %v2169, 7
      %v2171 = vsub.s32 0, %v2170
      %v2172 = vrot.slane %v2167, %v2171
      %v2179 = vunpack.c.l.b16 %v2162
      %v2180 = vunpack.c.l.b16 %v2163
      %v2181 = vunpack.c.l.b16 %v2164
      %v2182 = vunpack.c.l.b16 %v2165
      %v2183 = vunpack.c.l.b16 %v2166
      %v2184 = vpack.c.b16 %v2180, %v2179
      %v2185 = vpack.c.b16 %v2182, %v2181
      %v2186 = vpack.c.b16 %v2183, %v2183
      %vm2189 = vcmask 293888
      %v2191 = vsel %vm2189, %v2147, 0
      %v2194 = vsel %vm2189, %v2148, 0
      %v2197 = vsel %vm2189, %v2149, 0
      %v2200 = vsel %vm2189, %v2150, 0
      %v2203 = vsel %vm2189, %v2151, 0
      %v2206 = vsel %vm2189, %v2152, 0
      %v2209 = vsel %vm2189, %v2153, 0
      %v2212 = vsel %vm2189, %v2154, 0
      %v2215 = vsel %vm2189, %v2155, 0
      %v2218 = vsel %vm2189, %v2156, 0
      %v2221 = vsel %vm2189, %v2157, 0
      %v2224 = vsel %vm2189, %v2158, 0
      %v2227 = vsel %vm2189, %v2159, 0
      %v2230 = vsel %vm2189, %v2160, 0
      %v2233 = vsel %vm2189, %v2161, 0
      %vm2235 = vcmask 1041408
      %v2237 = vsel %vm2235, %v2186, 0
      %2239 = vmatprep.subr.bf16.mxu0 0
      %2240 = vmatpush1.bf16.msra.mxu0 %v2184
      %2241 = vmatprep.subr.bf16.mxu0 0
      %2242 = vmatpush1.bf16.msra.mxu0 %v2185
      %2243 = vmatprep.subr.bf16.mxu0 0
      %2244 = vmatpush1.bf16.msra.mxu0 %v2237
      %2245 = vmatprep.subr.bf16.mxu0 0
      %2246 = vmatpush1.bf16.msra.mxu0 0
      %2247 = vmatprep.subr.bf16.mxu0 0
      %2248 = vmatpush1.bf16.msra.mxu0 0
      %2249 = vmatprep.subr.bf16.mxu0 0
      %2250 = vmatpush1.bf16.msra.mxu0 0
      %2251 = vmatprep.subr.bf16.mxu0 0
      %2252 = vmatpush1.bf16.msra.mxu0 0
      %2253 = vmatprep.subr.bf16.mxu0 0
      %2254 = vmatpush1.bf16.msra.mxu0 0
      %2255 = vmatprep.subr.bf16.mxu0 0
      %2256 = vmatpush1.bf16.msra.mxu0 0
      %2257 = vmatprep.subr.bf16.mxu0 0
      %2258 = vmatpush1.bf16.msra.mxu0 0
      %2259 = vmatprep.subr.bf16.mxu0 0
      %2260 = vmatpush1.bf16.msra.mxu0 0
      %2261 = vmatprep.subr.bf16.mxu0 0
      %2262 = vmatpush1.bf16.msra.mxu0 0
      %2263 = vmatprep.subr.bf16.mxu0 0
      %2264 = vmatpush1.bf16.msra.mxu0 0
      %2265 = vmatprep.subr.bf16.mxu0 0
      %2266 = vmatpush1.bf16.msra.mxu0 0
      %2267 = vmatprep.subr.bf16.mxu0 0
      %2268 = vmatpush1.bf16.msra.mxu0 0
      %2269 = vmatprep.subr.bf16.mxu0 0
      %2270 = vmatpush1.bf16.msra.mxu0 0
      %2271 = vmatprep.mubr.bf16.mxu0 0
      %2272 = vmatmul.mubr.bf16.gmra.mrb[0].mxu0 %v2191
      %v2273 = vpop.f32.mrb[0].mxu0
      %v2274 = vadd.f32 %v2172, %v2273
      %v2275 = vpop.f32.mrb[0].mxu0
      %v2276 = vpop.f32.mrb[0].mxu0
      %v2277 = vadd.f32 %v2172, %v2276
      %v2278 = vpop.f32.mrb[0].mxu0
      %2279 = vmatprep.mubr.bf16.mxu0 0
      %2280 = vmatmul.mubr.bf16.gmra.mrb[0].mxu0 %v2194
      %v2281 = vpop.f32.mrb[0].mxu0
      %v2282 = vadd.f32 %v2172, %v2281
      %v2283 = vpop.f32.mrb[0].mxu0
      %v2284 = vpop.f32.mrb[0].mxu0
      %v2285 = vadd.f32 %v2172, %v2284
      %v2286 = vpop.f32.mrb[0].mxu0
      %2287 = vmatprep.mubr.bf16.mxu0 0
      %2288 = vmatmul.mubr.bf16.gmra.mrb[0].mxu0 %v2197
      %v2289 = vpop.f32.mrb[0].mxu0
      %v2290 = vadd.f32 %v2172, %v2289
      %v2291 = vpop.f32.mrb[0].mxu0
      %v2292 = vpop.f32.mrb[0].mxu0
      %v2293 = vadd.f32 %v2172, %v2292
      %v2294 = vpop.f32.mrb[0].mxu0
      %2295 = vmatprep.mubr.bf16.mxu0 0
      %2296 = vmatmul.mubr.bf16.gmra.mrb[0].mxu0 %v2200
      %v2297 = vpop.f32.mrb[0].mxu0
      %v2298 = vadd.f32 %v2172, %v2297
      %v2299 = vpop.f32.mrb[0].mxu0
      %v2300 = vpop.f32.mrb[0].mxu0
      %v2301 = vadd.f32 %v2172, %v2300
      %v2302 = vpop.f32.mrb[0].mxu0
      %2303 = vmatprep.mubr.bf16.mxu0 0
      %2304 = vmatmul.mubr.bf16.gmra.mrb[0].mxu0 %v2203
      %v2305 = vpop.f32.mrb[0].mxu0
      %v2306 = vadd.f32 %v2172, %v2305
      %v2307 = vpop.f32.mrb[0].mxu0
      %v2308 = vpop.f32.mrb[0].mxu0
      %v2309 = vadd.f32 %v2172, %v2308
      %v2310 = vpop.f32.mrb[0].mxu0
      %2311 = vmatprep.mubr.bf16.mxu0 0
      %2312 = vmatmul.mubr.bf16.gmra.mrb[0].mxu0 %v2206
      %v2313 = vpop.f32.mrb[0].mxu0
      %v2314 = vadd.f32 %v2172, %v2313
      %v2315 = vpop.f32.mrb[0].mxu0
      %v2316 = vpop.f32.mrb[0].mxu0
      %v2317 = vadd.f32 %v2172, %v2316
      %v2318 = vpop.f32.mrb[0].mxu0
      %2319 = vmatprep.mubr.bf16.mxu0 0
      %2320 = vmatmul.mubr.bf16.gmra.mrb[0].mxu0 %v2209
      %v2321 = vpop.f32.mrb[0].mxu0
      %v2322 = vadd.f32 %v2172, %v2321
      %v2323 = vpop.f32.mrb[0].mxu0
      %v2324 = vpop.f32.mrb[0].mxu0
      %v2325 = vadd.f32 %v2172, %v2324
      %v2326 = vpop.f32.mrb[0].mxu0
      %2327 = vmatprep.mubr.bf16.mxu0 0
      %2328 = vmatmul.mubr.bf16.gmra.mrb[0].mxu0 %v2212
      %v2329 = vpop.f32.mrb[0].mxu0
      %v2330 = vadd.f32 %v2172, %v2329
      %v2331 = vpop.f32.mrb[0].mxu0
      %v2332 = vpop.f32.mrb[0].mxu0
      %v2333 = vadd.f32 %v2172, %v2332
      %v2334 = vpop.f32.mrb[0].mxu0
      %2335 = vmatprep.mubr.bf16.mxu0 0
      %2336 = vmatmul.mubr.bf16.gmra.mrb[0].mxu0 %v2215
      %v2337 = vpop.f32.mrb[0].mxu0
      %v2338 = vadd.f32 %v2172, %v2337
      %v2339 = vpop.f32.mrb[0].mxu0
      %v2340 = vpop.f32.mrb[0].mxu0
      %v2341 = vadd.f32 %v2172, %v2340
      %v2342 = vpop.f32.mrb[0].mxu0
      %2343 = vmatprep.mubr.bf16.mxu0 0
      %2344 = vmatmul.mubr.bf16.gmra.mrb[0].mxu0 %v2218
      %v2345 = vpop.f32.mrb[0].mxu0
      %v2346 = vadd.f32 %v2172, %v2345
      %v2347 = vpop.f32.mrb[0].mxu0
      %v2348 = vpop.f32.mrb[0].mxu0
      %v2349 = vadd.f32 %v2172, %v2348
      %v2350 = vpop.f32.mrb[0].mxu0
      %2351 = vmatprep.mubr.bf16.mxu0 0
      %2352 = vmatmul.mubr.bf16.gmra.mrb[0].mxu0 %v2221
      %v2353 = vpop.f32.mrb[0].mxu0
      %v2354 = vadd.f32 %v2172, %v2353
      %v2355 = vpop.f32.mrb[0].mxu0
      %v2356 = vpop.f32.mrb[0].mxu0
      %v2357 = vadd.f32 %v2172, %v2356
      %v2358 = vpop.f32.mrb[0].mxu0
      %2359 = vmatprep.mubr.bf16.mxu0 0
      %2360 = vmatmul.mubr.bf16.gmra.mrb[0].mxu0 %v2224
      %v2361 = vpop.f32.mrb[0].mxu0
      %v2362 = vadd.f32 %v2172, %v2361
      %v2363 = vpop.f32.mrb[0].mxu0
      %v2364 = vpop.f32.mrb[0].mxu0
      %v2365 = vadd.f32 %v2172, %v2364
      %v2366 = vpop.f32.mrb[0].mxu0
      %2367 = vmatprep.mubr.bf16.mxu0 0
      %2368 = vmatmul.mubr.bf16.gmra.mrb[0].mxu0 %v2227
      %v2369 = vpop.f32.mrb[0].mxu0
      %v2370 = vadd.f32 %v2172, %v2369
      %v2371 = vpop.f32.mrb[0].mxu0
      %v2372 = vpop.f32.mrb[0].mxu0
      %v2373 = vadd.f32 %v2172, %v2372
      %v2374 = vpop.f32.mrb[0].mxu0
      %2375 = vmatprep.mubr.bf16.mxu0 0
      %2376 = vmatmul.mubr.bf16.gmra.mrb[0].mxu0 %v2230
      %v2377 = vpop.f32.mrb[0].mxu0
      %v2378 = vadd.f32 %v2172, %v2377
      %v2379 = vpop.f32.mrb[0].mxu0
      %v2380 = vpop.f32.mrb[0].mxu0
      %v2381 = vadd.f32 %v2172, %v2380
      %v2382 = vpop.f32.mrb[0].mxu0
      %2383 = vmatprep.mubr.bf16.mxu0 0
      %2384 = vmatmul.mubr.bf16.gmra.mrb[0].mxu0 %v2233
      %v2385 = vpop.f32.mrb[0].mxu0
      %v2386 = vadd.f32 %v2172, %v2385
      %v2387 = vpop.f32.mrb[0].mxu0
      %v2388 = vpop.f32.mrb[0].mxu0
      %v2389 = vadd.f32 %v2172, %v2388
      %v2390 = vpop.f32.mrb[0].mxu0
      %2391 = vdwg.mxu0
      %v2392 = vmax.f32 %v2274, 0.0
      %v2393 = vmax.f32 %v2277, 0.0
      %v2394 = vmax.f32 %v2282, 0.0
      %v2395 = vmax.f32 %v2285, 0.0
      %v2396 = vmax.f32 %v2290, 0.0
      %v2397 = vmax.f32 %v2293, 0.0
      %v2398 = vmax.f32 %v2298, 0.0
      %v2399 = vmax.f32 %v2301, 0.0
      %v2400 = vmax.f32 %v2306, 0.0
      %v2401 = vmax.f32 %v2309, 0.0
      %v2402 = vmax.f32 %v2314, 0.0
      %v2403 = vmax.f32 %v2317, 0.0
      %v2404 = vmax.f32 %v2322, 0.0
      %v2405 = vmax.f32 %v2325, 0.0
      %v2406 = vmax.f32 %v2330, 0.0
      %v2407 = vmax.f32 %v2333, 0.0
      %v2408 = vmax.f32 %v2338, 0.0
      %v2409 = vmax.f32 %v2341, 0.0
      %v2410 = vmax.f32 %v2346, 0.0
      %v2411 = vmax.f32 %v2349, 0.0
      %v2412 = vmax.f32 %v2354, 0.0
      %v2413 = vmax.f32 %v2357, 0.0
      %v2414 = vmax.f32 %v2362, 0.0
      %v2415 = vmax.f32 %v2365, 0.0
      %v2416 = vmax.f32 %v2370, 0.0
      %v2417 = vmax.f32 %v2373, 0.0
      %v2418 = vmax.f32 %v2378, 0.0
      %v2419 = vmax.f32 %v2381, 0.0
      %v2420 = vmax.f32 %v2386, 0.0
      %v2421 = vmax.f32 %v2389, 0.0
      %v2452 = vcombine.high %v2392, %v2392
      %v2453 = vcombine.high %v2393, %v2393
      %v2454 = vcombine.high %v2394, %v2394
      %v2455 = vcombine.high %v2395, %v2395
      %v2456 = vcombine.high %v2396, %v2396
      %v2457 = vcombine.high %v2397, %v2397
      %v2458 = vcombine.high %v2398, %v2398
      %v2459 = vcombine.high %v2399, %v2399
      %v2460 = vcombine.high %v2400, %v2400
      %v2461 = vcombine.high %v2401, %v2401
      %v2462 = vcombine.high %v2402, %v2402
      %v2463 = vcombine.high %v2403, %v2403
      %v2464 = vcombine.high %v2404, %v2404
      %v2465 = vcombine.high %v2405, %v2405
      %v2466 = vcombine.high %v2406, %v2406
      %v2467 = vcombine.high %v2407, %v2407
      %v2468 = vcombine.high %v2408, %v2408
      %v2469 = vcombine.high %v2409, %v2409
      %v2470 = vcombine.high %v2410, %v2410
      %v2471 = vcombine.high %v2411, %v2411
      %v2472 = vcombine.high %v2412, %v2412
      %v2473 = vcombine.high %v2413, %v2413
      %v2474 = vcombine.high %v2414, %v2414
      %v2475 = vcombine.high %v2415, %v2415
      %v2476 = vcombine.high %v2416, %v2416
      %v2477 = vcombine.high %v2417, %v2417
      %v2478 = vcombine.high %v2418, %v2418
      %v2479 = vcombine.high %v2419, %v2419
      %v2480 = vcombine.high %v2420, %v2420
      %v2481 = vcombine.high %v2421, %v2421
      %v2515 = vrot.slane %v428, 1
      %v2516 = vrot.slane %v429, 1
      %v2517 = vsel %vm512, %v2515, %v2516
      %v2518 = vrot.slane %v430, 1
      %v2519 = vsel %vm512, %v2516, %v2518
      %2520 = vrot.lane.b32.xlu0 %v2517, 4
      %v2521 = vpop.permute.xlu0 %2520
      %2522 = vrot.lane.b32.xlu0 %v2519, 4
      %v2523 = vpop.permute.xlu0 %2522
      %2524 = vrot.lane.b32.xlu0 %v2518, 4
      %v2525 = vpop.permute.xlu0 %2524
      %v2529 = vrot.slane %v428, 2
      %v2530 = vrot.slane %v429, 2
      %v2531 = vsel %vm681, %v2529, %v2530
      %v2532 = vrot.slane %v430, 2
      %v2533 = vsel %vm681, %v2530, %v2532
      %2534 = vrot.lane.b32.xlu0 %v2531, 8
      %v2535 = vpop.permute.xlu0 %2534
      %2536 = vrot.lane.b32.xlu0 %v2533, 8
      %v2537 = vpop.permute.xlu0 %2536
      %2538 = vrot.lane.b32.xlu0 %v2532, 8
      %v2539 = vpop.permute.xlu0 %2538
      %vm2543 = vcmask 1044480
      %v2544 = vrot.slane %v428, 3
      %v2545 = vrot.slane %v429, 3
      %v2546 = vsel %vm2543, %v2544, %v2545
      %v2547 = vrot.slane %v430, 3
      %v2548 = vsel %vm2543, %v2545, %v2547
      %v2549 = vrot.slane %v431, 3
      %v2550 = vrot.slane %v432, 3
      %v2551 = vsel %vm2543, %v2549, %v2550
      %v2552 = vrot.slane %v433, 3
      %v2553 = vsel %vm2543, %v2550, %v2552
      %v2554 = vrot.slane %v434, 3
      %v2555 = vrot.slane %v435, 3
      %v2556 = vsel %vm2543, %v2554, %v2555
      %v2557 = vrot.slane %v436, 3
      %v2558 = vsel %vm2543, %v2555, %v2557
      %v2559 = vrot.slane %v437, 3
      %v2560 = vrot.slane %v438, 3
      %v2561 = vsel %vm2543, %v2559, %v2560
      %v2562 = vrot.slane %v439, 3
      %v2563 = vsel %vm2543, %v2560, %v2562
      %v2564 = vrot.slane %v440, 3
      %v2565 = vrot.slane %v441, 3
      %v2566 = vsel %vm2543, %v2564, %v2565
      %v2567 = vrot.slane %v442, 3
      %v2568 = vsel %vm2543, %v2565, %v2567
      %v2569 = vrot.slane %v443, 3
      %v2570 = vrot.slane %v444, 3
      %v2571 = vsel %vm2543, %v2569, %v2570
      %v2572 = vrot.slane %v445, 3
      %v2573 = vsel %vm2543, %v2570, %v2572
      %v2574 = vrot.slane %v446, 3
      %v2575 = vrot.slane %v447, 3
      %v2576 = vsel %vm2543, %v2574, %v2575
      %v2577 = vrot.slane %v448, 3
      %v2578 = vsel %vm2543, %v2575, %v2577
      %v2579 = vrot.slane %v449, 3
      %v2580 = vrot.slane %v450, 3
      %v2581 = vsel %vm2543, %v2579, %v2580
      %v2582 = vrot.slane %v451, 3
      %v2583 = vsel %vm2543, %v2580, %v2582
      %v2584 = vrot.slane %v452, 3
      %v2585 = vrot.slane %v453, 3
      %v2586 = vsel %vm2543, %v2584, %v2585
      %v2587 = vrot.slane %v454, 3
      %v2588 = vsel %vm2543, %v2585, %v2587
      %v2589 = vrot.slane %v455, 3
      %v2590 = vrot.slane %v456, 3
      %v2591 = vsel %vm2543, %v2589, %v2590
      %v2592 = vrot.slane %v457, 3
      %v2593 = vsel %vm2543, %v2590, %v2592
      %v2594 = vrot.slane %v458, 3
      %v2595 = vrot.slane %v459, 3
      %v2596 = vsel %vm2543, %v2594, %v2595
      %v2597 = vrot.slane %v460, 3
      %v2598 = vsel %vm2543, %v2595, %v2597
      %v2599 = vrot.slane %v461, 3
      %v2600 = vrot.slane %v462, 3
      %v2601 = vsel %vm2543, %v2599, %v2600
      %v2602 = vrot.slane %v463, 3
      %v2603 = vsel %vm2543, %v2600, %v2602
      %2604 = vrot.lane.b32.xlu0 %v2546, 12
      %v2605 = vpop.permute.xlu0 %2604
      %2606 = vrot.lane.b32.xlu0 %v2548, 12
      %v2607 = vpop.permute.xlu0 %2606
      %2608 = vrot.lane.b32.xlu0 %v2547, 12
      %v2609 = vpop.permute.xlu0 %2608
      %2610 = vrot.lane.b32.xlu0 %v2551, 12
      %v2611 = vpop.permute.xlu0 %2610
      %2612 = vrot.lane.b32.xlu0 %v2553, 12
      %v2613 = vpop.permute.xlu0 %2612
      %2614 = vrot.lane.b32.xlu0 %v2552, 12
      %v2615 = vpop.permute.xlu0 %2614
      %2616 = vrot.lane.b32.xlu0 %v2556, 12
      %v2617 = vpop.permute.xlu0 %2616
      %2618 = vrot.lane.b32.xlu0 %v2558, 12
      %v2619 = vpop.permute.xlu0 %2618
      %2620 = vrot.lane.b32.xlu0 %v2557, 12
      %v2621 = vpop.permute.xlu0 %2620
      %2622 = vrot.lane.b32.xlu0 %v2561, 12
      %v2623 = vpop.permute.xlu0 %2622
      %2624 = vrot.lane.b32.xlu0 %v2563, 12
      %v2625 = vpop.permute.xlu0 %2624
      %2626 = vrot.lane.b32.xlu0 %v2562, 12
      %v2627 = vpop.permute.xlu0 %2626
      %2628 = vrot.lane.b32.xlu0 %v2566, 12
      %v2629 = vpop.permute.xlu0 %2628
      %2630 = vrot.lane.b32.xlu0 %v2568, 12
      %v2631 = vpop.permute.xlu0 %2630
      %2632 = vrot.lane.b32.xlu0 %v2567, 12
      %v2633 = vpop.permute.xlu0 %2632
      %2634 = vrot.lane.b32.xlu0 %v2571, 12
      %v2635 = vpop.permute.xlu0 %2634
      %2636 = vrot.lane.b32.xlu0 %v2573, 12
      %v2637 = vpop.permute.xlu0 %2636
      %2638 = vrot.lane.b32.xlu0 %v2572, 12
      %v2639 = vpop.permute.xlu0 %2638
      %2640 = vrot.lane.b32.xlu0 %v2576, 12
      %v2641 = vpop.permute.xlu0 %2640
      %2642 = vrot.lane.b32.xlu0 %v2578, 12
      %v2643 = vpop.permute.xlu0 %2642
      %2644 = vrot.lane.b32.xlu0 %v2577, 12
      %v2645 = vpop.permute.xlu0 %2644
      %2646 = vrot.lane.b32.xlu0 %v2581, 12
      %v2647 = vpop.permute.xlu0 %2646
      %2648 = vrot.lane.b32.xlu0 %v2583, 12
      %v2649 = vpop.permute.xlu0 %2648
      %2650 = vrot.lane.b32.xlu0 %v2582, 12
      %v2651 = vpop.permute.xlu0 %2650
      %2652 = vrot.lane.b32.xlu0 %v2586, 12
      %v2653 = vpop.permute.xlu0 %2652
      %2654 = vrot.lane.b32.xlu0 %v2588, 12
      %v2655 = vpop.permute.xlu0 %2654
      %2656 = vrot.lane.b32.xlu0 %v2587, 12
      %v2657 = vpop.permute.xlu0 %2656
      %2658 = vrot.lane.b32.xlu0 %v2591, 12
      %v2659 = vpop.permute.xlu0 %2658
      %2660 = vrot.lane.b32.xlu0 %v2593, 12
      %v2661 = vpop.permute.xlu0 %2660
      %2662 = vrot.lane.b32.xlu0 %v2592, 12
      %v2663 = vpop.permute.xlu0 %2662
      %2664 = vrot.lane.b32.xlu0 %v2596, 12
      %v2665 = vpop.permute.xlu0 %2664
      %2666 = vrot.lane.b32.xlu0 %v2598, 12
      %v2667 = vpop.permute.xlu0 %2666
      %2668 = vrot.lane.b32.xlu0 %v2597, 12
      %v2669 = vpop.permute.xlu0 %2668
      %2670 = vrot.lane.b32.xlu0 %v2601, 12
      %v2671 = vpop.permute.xlu0 %2670
      %2672 = vrot.lane.b32.xlu0 %v2603, 12
      %v2673 = vpop.permute.xlu0 %2672
      %2674 = vrot.lane.b32.xlu0 %v2602, 12
      %v2675 = vpop.permute.xlu0 %2674
      %vm2712 = vcmask 1043456
      %v2713 = vrot.slane %v428, 4
      %v2714 = vrot.slane %v429, 4
      %v2715 = vsel %vm2712, %v2713, %v2714
      %v2716 = vrot.slane %v430, 4
      %v2717 = vsel %vm2712, %v2714, %v2716
      %v2718 = vrot.slane %v431, 4
      %v2719 = vrot.slane %v432, 4
      %v2720 = vsel %vm2712, %v2718, %v2719
      %v2721 = vrot.slane %v433, 4
      %v2722 = vsel %vm2712, %v2719, %v2721
      %v2723 = vrot.slane %v434, 4
      %v2724 = vrot.slane %v435, 4
      %v2725 = vsel %vm2712, %v2723, %v2724
      %v2726 = vrot.slane %v436, 4
      %v2727 = vsel %vm2712, %v2724, %v2726
      %v2728 = vrot.slane %v437, 4
      %v2729 = vrot.slane %v438, 4
      %v2730 = vsel %vm2712, %v2728, %v2729
      %v2731 = vrot.slane %v439, 4
      %v2732 = vsel %vm2712, %v2729, %v2731
      %v2733 = vrot.slane %v440, 4
      %v2734 = vrot.slane %v441, 4
      %v2735 = vsel %vm2712, %v2733, %v2734
      %v2736 = vrot.slane %v442, 4
      %v2737 = vsel %vm2712, %v2734, %v2736
      %v2738 = vrot.slane %v443, 4
      %v2739 = vrot.slane %v444, 4
      %v2740 = vsel %vm2712, %v2738, %v2739
      %v2741 = vrot.slane %v445, 4
      %v2742 = vsel %vm2712, %v2739, %v2741
      %v2743 = vrot.slane %v446, 4
      %v2744 = vrot.slane %v447, 4
      %v2745 = vsel %vm2712, %v2743, %v2744
      %v2746 = vrot.slane %v448, 4
      %v2747 = vsel %vm2712, %v2744, %v2746
      %v2748 = vrot.slane %v449, 4
      %v2749 = vrot.slane %v450, 4
      %v2750 = vsel %vm2712, %v2748, %v2749
      %v2751 = vrot.slane %v451, 4
      %v2752 = vsel %vm2712, %v2749, %v2751
      %v2753 = vrot.slane %v452, 4
      %v2754 = vrot.slane %v453, 4
      %v2755 = vsel %vm2712, %v2753, %v2754
      %v2756 = vrot.slane %v454, 4
      %v2757 = vsel %vm2712, %v2754, %v2756
      %v2758 = vrot.slane %v455, 4
      %v2759 = vrot.slane %v456, 4
      %v2760 = vsel %vm2712, %v2758, %v2759
      %v2761 = vrot.slane %v457, 4
      %v2762 = vsel %vm2712, %v2759, %v2761
      %v2763 = vrot.slane %v458, 4
      %v2764 = vrot.slane %v459, 4
      %v2765 = vsel %vm2712, %v2763, %v2764
      %v2766 = vrot.slane %v460, 4
      %v2767 = vsel %vm2712, %v2764, %v2766
      %v2768 = vrot.slane %v461, 4
      %v2769 = vrot.slane %v462, 4
      %v2770 = vsel %vm2712, %v2768, %v2769
      %v2771 = vrot.slane %v463, 4
      %v2772 = vsel %vm2712, %v2769, %v2771
      %2773 = vrot.lane.b32.xlu0 %v2715, 16
      %v2774 = vpop.permute.xlu0 %2773
      %2775 = vrot.lane.b32.xlu0 %v2717, 16
      %v2776 = vpop.permute.xlu0 %2775
      %2777 = vrot.lane.b32.xlu0 %v2716, 16
      %v2778 = vpop.permute.xlu0 %2777
      %2779 = vrot.lane.b32.xlu0 %v2720, 16
      %v2780 = vpop.permute.xlu0 %2779
      %2781 = vrot.lane.b32.xlu0 %v2722, 16
      %v2782 = vpop.permute.xlu0 %2781
      %2783 = vrot.lane.b32.xlu0 %v2721, 16
      %v2784 = vpop.permute.xlu0 %2783
      %2785 = vrot.lane.b32.xlu0 %v2725, 16
      %v2786 = vpop.permute.xlu0 %2785
      %2787 = vrot.lane.b32.xlu0 %v2727, 16
      %v2788 = vpop.permute.xlu0 %2787
      %2789 = vrot.lane.b32.xlu0 %v2726, 16
      %v2790 = vpop.permute.xlu0 %2789
      %2791 = vrot.lane.b32.xlu0 %v2730, 16
      %v2792 = vpop.permute.xlu0 %2791
      %2793 = vrot.lane.b32.xlu0 %v2732, 16
      %v2794 = vpop.permute.xlu0 %2793
      %2795 = vrot.lane.b32.xlu0 %v2731, 16
      %v2796 = vpop.permute.xlu0 %2795
      %2797 = vrot.lane.b32.xlu0 %v2735, 16
      %v2798 = vpop.permute.xlu0 %2797
      %2799 = vrot.lane.b32.xlu0 %v2737, 16
      %v2800 = vpop.permute.xlu0 %2799
      %2801 = vrot.lane.b32.xlu0 %v2736, 16
      %v2802 = vpop.permute.xlu0 %2801
      %2803 = vrot.lane.b32.xlu0 %v2740, 16
      %v2804 = vpop.permute.xlu0 %2803
      %2805 = vrot.lane.b32.xlu0 %v2742, 16
      %v2806 = vpop.permute.xlu0 %2805
      %2807 = vrot.lane.b32.xlu0 %v2741, 16
      %v2808 = vpop.permute.xlu0 %2807
      %2809 = vrot.lane.b32.xlu0 %v2745, 16
      %v2810 = vpop.permute.xlu0 %2809
      %2811 = vrot.lane.b32.xlu0 %v2747, 16
      %v2812 = vpop.permute.xlu0 %2811
      %2813 = vrot.lane.b32.xlu0 %v2746, 16
      %v2814 = vpop.permute.xlu0 %2813
      %2815 = vrot.lane.b32.xlu0 %v2750, 16
      %v2816 = vpop.permute.xlu0 %2815
      %2817 = vrot.lane.b32.xlu0 %v2752, 16
      %v2818 = vpop.permute.xlu0 %2817
      %2819 = vrot.lane.b32.xlu0 %v2751, 16
      %v2820 = vpop.permute.xlu0 %2819
      %2821 = vrot.lane.b32.xlu0 %v2755, 16
      %v2822 = vpop.permute.xlu0 %2821
      %2823 = vrot.lane.b32.xlu0 %v2757, 16
      %v2824 = vpop.permute.xlu0 %2823
      %2825 = vrot.lane.b32.xlu0 %v2756, 16
      %v2826 = vpop.permute.xlu0 %2825
      %2827 = vrot.lane.b32.xlu0 %v2760, 16
      %v2828 = vpop.permute.xlu0 %2827
      %2829 = vrot.lane.b32.xlu0 %v2762, 16
      %v2830 = vpop.permute.xlu0 %2829
      %2831 = vrot.lane.b32.xlu0 %v2761, 16
      %v2832 = vpop.permute.xlu0 %2831
      %2833 = vrot.lane.b32.xlu0 %v2765, 16
      %v2834 = vpop.permute.xlu0 %2833
      %2835 = vrot.lane.b32.xlu0 %v2767, 16
      %v2836 = vpop.permute.xlu0 %2835
      %2837 = vrot.lane.b32.xlu0 %v2766, 16
      %v2838 = vpop.permute.xlu0 %2837
      %2839 = vrot.lane.b32.xlu0 %v2770, 16
      %v2840 = vpop.permute.xlu0 %2839
      %2841 = vrot.lane.b32.xlu0 %v2772, 16
      %v2842 = vpop.permute.xlu0 %2841
      %2843 = vrot.lane.b32.xlu0 %v2771, 16
      %v2844 = vpop.permute.xlu0 %2843
      %2881 = vrot.lane.b32.xlu0 %v431, 20
      %v2882 = vpop.permute.xlu0 %2881
      %2883 = vrot.lane.b32.xlu0 %v432, 20
      %v2884 = vpop.permute.xlu0 %2883
      %2885 = vrot.lane.b32.xlu0 %v433, 20
      %v2886 = vpop.permute.xlu0 %2885
      %2887 = vrot.lane.b32.xlu0 %v434, 20
      %v2888 = vpop.permute.xlu0 %2887
      %2889 = vrot.lane.b32.xlu0 %v435, 20
      %v2890 = vpop.permute.xlu0 %2889
      %2891 = vrot.lane.b32.xlu0 %v436, 20
      %v2892 = vpop.permute.xlu0 %2891
      %2893 = vrot.lane.b32.xlu0 %v437, 20
      %v2894 = vpop.permute.xlu0 %2893
      %2895 = vrot.lane.b32.xlu0 %v438, 20
      %v2896 = vpop.permute.xlu0 %2895
      %2897 = vrot.lane.b32.xlu0 %v439, 20
      %v2898 = vpop.permute.xlu0 %2897
      %2899 = vrot.lane.b32.xlu0 %v440, 20
      %v2900 = vpop.permute.xlu0 %2899
      %2901 = vrot.lane.b32.xlu0 %v441, 20
      %v2902 = vpop.permute.xlu0 %2901
      %2903 = vrot.lane.b32.xlu0 %v442, 20
      %v2904 = vpop.permute.xlu0 %2903
      %2905 = vrot.lane.b32.xlu0 %v443, 20
      %v2906 = vpop.permute.xlu0 %2905
      %2907 = vrot.lane.b32.xlu0 %v444, 20
      %v2908 = vpop.permute.xlu0 %2907
      %2909 = vrot.lane.b32.xlu0 %v445, 20
      %v2910 = vpop.permute.xlu0 %2909
      %2911 = vrot.lane.b32.xlu0 %v446, 20
      %v2912 = vpop.permute.xlu0 %2911
      %2913 = vrot.lane.b32.xlu0 %v447, 20
      %v2914 = vpop.permute.xlu0 %2913
      %2915 = vrot.lane.b32.xlu0 %v448, 20
      %v2916 = vpop.permute.xlu0 %2915
      %2917 = vrot.lane.b32.xlu0 %v449, 20
      %v2918 = vpop.permute.xlu0 %2917
      %2919 = vrot.lane.b32.xlu0 %v450, 20
      %v2920 = vpop.permute.xlu0 %2919
      %2921 = vrot.lane.b32.xlu0 %v451, 20
      %v2922 = vpop.permute.xlu0 %2921
      %2923 = vrot.lane.b32.xlu0 %v452, 20
      %v2924 = vpop.permute.xlu0 %2923
      %2925 = vrot.lane.b32.xlu0 %v453, 20
      %v2926 = vpop.permute.xlu0 %2925
      %2927 = vrot.lane.b32.xlu0 %v454, 20
      %v2928 = vpop.permute.xlu0 %2927
      %2929 = vrot.lane.b32.xlu0 %v455, 20
      %v2930 = vpop.permute.xlu0 %2929
      %2931 = vrot.lane.b32.xlu0 %v456, 20
      %v2932 = vpop.permute.xlu0 %2931
      %2933 = vrot.lane.b32.xlu0 %v457, 20
      %v2934 = vpop.permute.xlu0 %2933
      %2935 = vrot.lane.b32.xlu0 %v458, 20
      %v2936 = vpop.permute.xlu0 %2935
      %2937 = vrot.lane.b32.xlu0 %v459, 20
      %v2938 = vpop.permute.xlu0 %2937
      %2939 = vrot.lane.b32.xlu0 %v460, 20
      %v2940 = vpop.permute.xlu0 %2939
      %2941 = vrot.lane.b32.xlu0 %v461, 20
      %v2942 = vpop.permute.xlu0 %2941
      %2943 = vrot.lane.b32.xlu0 %v462, 20
      %v2944 = vpop.permute.xlu0 %2943
      %2945 = vrot.lane.b32.xlu0 %v463, 20
      %v2946 = vpop.permute.xlu0 %2945
      %2947 = vrot.lane.b32.xlu0 %v464, 20
      %v2948 = vpop.permute.xlu0 %2947
      %2949 = vrot.lane.b32.xlu0 %v465, 20
      %v2950 = vpop.permute.xlu0 %2949
      %2951 = vrot.lane.b32.xlu0 %v466, 20
      %v2952 = vpop.permute.xlu0 %2951
      %2989 = vrot.lane.b32.xlu0 %v515, 24
      %v2990 = vpop.permute.xlu0 %2989
      %2991 = vrot.lane.b32.xlu0 %v517, 24
      %v2992 = vpop.permute.xlu0 %2991
      %2993 = vrot.lane.b32.xlu0 %v516, 24
      %v2994 = vpop.permute.xlu0 %2993
      %2995 = vrot.lane.b32.xlu0 %v520, 24
      %v2996 = vpop.permute.xlu0 %2995
      %2997 = vrot.lane.b32.xlu0 %v522, 24
      %v2998 = vpop.permute.xlu0 %2997
      %2999 = vrot.lane.b32.xlu0 %v521, 24
      %v3000 = vpop.permute.xlu0 %2999
      %3001 = vrot.lane.b32.xlu0 %v525, 24
      %v3002 = vpop.permute.xlu0 %3001
      %3003 = vrot.lane.b32.xlu0 %v527, 24
      %v3004 = vpop.permute.xlu0 %3003
      %3005 = vrot.lane.b32.xlu0 %v526, 24
      %v3006 = vpop.permute.xlu0 %3005
      %3007 = vrot.lane.b32.xlu0 %v530, 24
      %v3008 = vpop.permute.xlu0 %3007
      %3009 = vrot.lane.b32.xlu0 %v532, 24
      %v3010 = vpop.permute.xlu0 %3009
      %3011 = vrot.lane.b32.xlu0 %v531, 24
      %v3012 = vpop.permute.xlu0 %3011
      %3013 = vrot.lane.b32.xlu0 %v535, 24
      %v3014 = vpop.permute.xlu0 %3013
      %3015 = vrot.lane.b32.xlu0 %v537, 24
      %v3016 = vpop.permute.xlu0 %3015
      %3017 = vrot.lane.b32.xlu0 %v536, 24
      %v3018 = vpop.permute.xlu0 %3017
      %3019 = vrot.lane.b32.xlu0 %v540, 24
      %v3020 = vpop.permute.xlu0 %3019
      %3021 = vrot.lane.b32.xlu0 %v542, 24
      %v3022 = vpop.permute.xlu0 %3021
      %3023 = vrot.lane.b32.xlu0 %v541, 24
      %v3024 = vpop.permute.xlu0 %3023
      %3025 = vrot.lane.b32.xlu0 %v545, 24
      %v3026 = vpop.permute.xlu0 %3025
      %3027 = vrot.lane.b32.xlu0 %v547, 24
      %v3028 = vpop.permute.xlu0 %3027
      %3029 = vrot.lane.b32.xlu0 %v546, 24
      %v3030 = vpop.permute.xlu0 %3029
      %3031 = vrot.lane.b32.xlu0 %v550, 24
      %v3032 = vpop.permute.xlu0 %3031
      %3033 = vrot.lane.b32.xlu0 %v552, 24
      %v3034 = vpop.permute.xlu0 %3033
      %3035 = vrot.lane.b32.xlu0 %v551, 24
      %v3036 = vpop.permute.xlu0 %3035
      %3037 = vrot.lane.b32.xlu0 %v555, 24
      %v3038 = vpop.permute.xlu0 %3037
      %3039 = vrot.lane.b32.xlu0 %v557, 24
      %v3040 = vpop.permute.xlu0 %3039
      %3041 = vrot.lane.b32.xlu0 %v556, 24
      %v3042 = vpop.permute.xlu0 %3041
      %3043 = vrot.lane.b32.xlu0 %v560, 24
      %v3044 = vpop.permute.xlu0 %3043
      %3045 = vrot.lane.b32.xlu0 %v562, 24
      %v3046 = vpop.permute.xlu0 %3045
      %3047 = vrot.lane.b32.xlu0 %v561, 24
      %v3048 = vpop.permute.xlu0 %3047
      %3049 = vrot.lane.b32.xlu0 %v565, 24
      %v3050 = vpop.permute.xlu0 %3049
      %3051 = vrot.lane.b32.xlu0 %v567, 24
      %v3052 = vpop.permute.xlu0 %3051
      %3053 = vrot.lane.b32.xlu0 %v566, 24
      %v3054 = vpop.permute.xlu0 %3053
      %3055 = vrot.lane.b32.xlu0 %v570, 24
      %v3056 = vpop.permute.xlu0 %3055
      %3057 = vrot.lane.b32.xlu0 %v572, 24
      %v3058 = vpop.permute.xlu0 %3057
      %3059 = vrot.lane.b32.xlu0 %v571, 24
      %v3060 = vpop.permute.xlu0 %3059
      %3097 = vrot.lane.b32.xlu0 %v684, 28
      %v3098 = vpop.permute.xlu0 %3097
      %3099 = vrot.lane.b32.xlu0 %v686, 28
      %v3100 = vpop.permute.xlu0 %3099
      %3101 = vrot.lane.b32.xlu0 %v685, 28
      %v3102 = vpop.permute.xlu0 %3101
      %3103 = vrot.lane.b32.xlu0 %v689, 28
      %v3104 = vpop.permute.xlu0 %3103
      %3105 = vrot.lane.b32.xlu0 %v691, 28
      %v3106 = vpop.permute.xlu0 %3105
      %3107 = vrot.lane.b32.xlu0 %v690, 28
      %v3108 = vpop.permute.xlu0 %3107
      %3109 = vrot.lane.b32.xlu0 %v694, 28
      %v3110 = vpop.permute.xlu0 %3109
      %3111 = vrot.lane.b32.xlu0 %v696, 28
      %v3112 = vpop.permute.xlu0 %3111
      %3113 = vrot.lane.b32.xlu0 %v695, 28
      %v3114 = vpop.permute.xlu0 %3113
      %3115 = vrot.lane.b32.xlu0 %v699, 28
      %v3116 = vpop.permute.xlu0 %3115
      %3117 = vrot.lane.b32.xlu0 %v701, 28
      %v3118 = vpop.permute.xlu0 %3117
      %3119 = vrot.lane.b32.xlu0 %v700, 28
      %v3120 = vpop.permute.xlu0 %3119
      %3121 = vrot.lane.b32.xlu0 %v704, 28
      %v3122 = vpop.permute.xlu0 %3121
      %3123 = vrot.lane.b32.xlu0 %v706, 28
      %v3124 = vpop.permute.xlu0 %3123
      %3125 = vrot.lane.b32.xlu0 %v705, 28
      %v3126 = vpop.permute.xlu0 %3125
      %3127 = vrot.lane.b32.xlu0 %v709, 28
      %v3128 = vpop.permute.xlu0 %3127
      %3129 = vrot.lane.b32.xlu0 %v711, 28
      %v3130 = vpop.permute.xlu0 %3129
      %3131 = vrot.lane.b32.xlu0 %v710, 28
      %v3132 = vpop.permute.xlu0 %3131
      %3133 = vrot.lane.b32.xlu0 %v714, 28
      %v3134 = vpop.permute.xlu0 %3133
      %3135 = vrot.lane.b32.xlu0 %v716, 28
      %v3136 = vpop.permute.xlu0 %3135
      %3137 = vrot.lane.b32.xlu0 %v715, 28
      %v3138 = vpop.permute.xlu0 %3137
      %3139 = vrot.lane.b32.xlu0 %v719, 28
      %v3140 = vpop.permute.xlu0 %3139
      %3141 = vrot.lane.b32.xlu0 %v721, 28
      %v3142 = vpop.permute.xlu0 %3141
      %3143 = vrot.lane.b32.xlu0 %v720, 28
      %v3144 = vpop.permute.xlu0 %3143
      %3145 = vrot.lane.b32.xlu0 %v724, 28
      %v3146 = vpop.permute.xlu0 %3145
      %3147 = vrot.lane.b32.xlu0 %v726, 28
      %v3148 = vpop.permute.xlu0 %3147
      %3149 = vrot.lane.b32.xlu0 %v725, 28
      %v3150 = vpop.permute.xlu0 %3149
      %3151 = vrot.lane.b32.xlu0 %v729, 28
      %v3152 = vpop.permute.xlu0 %3151
      %3153 = vrot.lane.b32.xlu0 %v731, 28
      %v3154 = vpop.permute.xlu0 %3153
      %3155 = vrot.lane.b32.xlu0 %v730, 28
      %v3156 = vpop.permute.xlu0 %3155
      %3157 = vrot.lane.b32.xlu0 %v734, 28
      %v3158 = vpop.permute.xlu0 %3157
      %3159 = vrot.lane.b32.xlu0 %v736, 28
      %v3160 = vpop.permute.xlu0 %3159
      %3161 = vrot.lane.b32.xlu0 %v735, 28
      %v3162 = vpop.permute.xlu0 %3161
      %3163 = vrot.lane.b32.xlu0 %v739, 28
      %v3164 = vpop.permute.xlu0 %3163
      %3165 = vrot.lane.b32.xlu0 %v741, 28
      %v3166 = vpop.permute.xlu0 %3165
      %3167 = vrot.lane.b32.xlu0 %v740, 28
      %v3168 = vpop.permute.xlu0 %3167
      %v3205 = vrot.slane %v464, 3
      %v3206 = vrot.slane %v465, 3
      %v3207 = vsel %vm2543, %v3205, %v3206
      %v3208 = vrot.slane %v466, 3
      %v3209 = vsel %vm2543, %v3206, %v3208
      %3210 = vrot.lane.b32.xlu0 %v2551, 32
      %v3211 = vpop.permute.xlu0 %3210
      %3212 = vrot.lane.b32.xlu0 %v2553, 32
      %v3213 = vpop.permute.xlu0 %3212
      %3214 = vrot.lane.b32.xlu0 %v2552, 32
      %v3215 = vpop.permute.xlu0 %3214
      %3216 = vrot.lane.b32.xlu0 %v2556, 32
      %v3217 = vpop.permute.xlu0 %3216
      %3218 = vrot.lane.b32.xlu0 %v2558, 32
      %v3219 = vpop.permute.xlu0 %3218
      %3220 = vrot.lane.b32.xlu0 %v2557, 32
      %v3221 = vpop.permute.xlu0 %3220
      %3222 = vrot.lane.b32.xlu0 %v2561, 32
      %v3223 = vpop.permute.xlu0 %3222
      %3224 = vrot.lane.b32.xlu0 %v2563, 32
      %v3225 = vpop.permute.xlu0 %3224
      %3226 = vrot.lane.b32.xlu0 %v2562, 32
      %v3227 = vpop.permute.xlu0 %3226
      %3228 = vrot.lane.b32.xlu0 %v2566, 32
      %v3229 = vpop.permute.xlu0 %3228
      %3230 = vrot.lane.b32.xlu0 %v2568, 32
      %v3231 = vpop.permute.xlu0 %3230
      %3232 = vrot.lane.b32.xlu0 %v2567, 32
      %v3233 = vpop.permute.xlu0 %3232
      %3234 = vrot.lane.b32.xlu0 %v2571, 32
      %v3235 = vpop.permute.xlu0 %3234
      %3236 = vrot.lane.b32.xlu0 %v2573, 32
      %v3237 = vpop.permute.xlu0 %3236
      %3238 = vrot.lane.b32.xlu0 %v2572, 32
      %v3239 = vpop.permute.xlu0 %3238
      %3240 = vrot.lane.b32.xlu0 %v2576, 32
      %v3241 = vpop.permute.xlu0 %3240
      %3242 = vrot.lane.b32.xlu0 %v2578, 32
      %v3243 = vpop.permute.xlu0 %3242
      %3244 = vrot.lane.b32.xlu0 %v2577, 32
      %v3245 = vpop.permute.xlu0 %3244
      %3246 = vrot.lane.b32.xlu0 %v2581, 32
      %v3247 = vpop.permute.xlu0 %3246
      %3248 = vrot.lane.b32.xlu0 %v2583, 32
      %v3249 = vpop.permute.xlu0 %3248
      %3250 = vrot.lane.b32.xlu0 %v2582, 32
      %v3251 = vpop.permute.xlu0 %3250
      %3252 = vrot.lane.b32.xlu0 %v2586, 32
      %v3253 = vpop.permute.xlu0 %3252
      %3254 = vrot.lane.b32.xlu0 %v2588, 32
      %v3255 = vpop.permute.xlu0 %3254
      %3256 = vrot.lane.b32.xlu0 %v2587, 32
      %v3257 = vpop.permute.xlu0 %3256
      %3258 = vrot.lane.b32.xlu0 %v2591, 32
      %v3259 = vpop.permute.xlu0 %3258
      %3260 = vrot.lane.b32.xlu0 %v2593, 32
      %v3261 = vpop.permute.xlu0 %3260
      %3262 = vrot.lane.b32.xlu0 %v2592, 32
      %v3263 = vpop.permute.xlu0 %3262
      %3264 = vrot.lane.b32.xlu0 %v2596, 32
      %v3265 = vpop.permute.xlu0 %3264
      %3266 = vrot.lane.b32.xlu0 %v2598, 32
      %v3267 = vpop.permute.xlu0 %3266
      %3268 = vrot.lane.b32.xlu0 %v2597, 32
      %v3269 = vpop.permute.xlu0 %3268
      %3270 = vrot.lane.b32.xlu0 %v2601, 32
      %v3271 = vpop.permute.xlu0 %3270
      %3272 = vrot.lane.b32.xlu0 %v2603, 32
      %v3273 = vpop.permute.xlu0 %3272
      %3274 = vrot.lane.b32.xlu0 %v2602, 32
      %v3275 = vpop.permute.xlu0 %3274
      %3276 = vrot.lane.b32.xlu0 %v3207, 32
      %v3277 = vpop.permute.xlu0 %3276
      %3278 = vrot.lane.b32.xlu0 %v3209, 32
      %v3279 = vpop.permute.xlu0 %3278
      %3280 = vrot.lane.b32.xlu0 %v3208, 32
      %v3281 = vpop.permute.xlu0 %3280
      %v3318 = vrot.slane %v464, 4
      %v3319 = vrot.slane %v465, 4
      %v3320 = vsel %vm2712, %v3318, %v3319
      %v3321 = vrot.slane %v466, 4
      %v3322 = vsel %vm2712, %v3319, %v3321
      %3323 = vrot.lane.b32.xlu0 %v2720, 36
      %v3324 = vpop.permute.xlu0 %3323
      %3325 = vrot.lane.b32.xlu0 %v2722, 36
      %v3326 = vpop.permute.xlu0 %3325
      %3327 = vrot.lane.b32.xlu0 %v2721, 36
      %v3328 = vpop.permute.xlu0 %3327
      %3329 = vrot.lane.b32.xlu0 %v2725, 36
      %v3330 = vpop.permute.xlu0 %3329
      %3331 = vrot.lane.b32.xlu0 %v2727, 36
      %v3332 = vpop.permute.xlu0 %3331
      %3333 = vrot.lane.b32.xlu0 %v2726, 36
      %v3334 = vpop.permute.xlu0 %3333
      %3335 = vrot.lane.b32.xlu0 %v2730, 36
      %v3336 = vpop.permute.xlu0 %3335
      %3337 = vrot.lane.b32.xlu0 %v2732, 36
      %v3338 = vpop.permute.xlu0 %3337
      %3339 = vrot.lane.b32.xlu0 %v2731, 36
      %v3340 = vpop.permute.xlu0 %3339
      %3341 = vrot.lane.b32.xlu0 %v2735, 36
      %v3342 = vpop.permute.xlu0 %3341
      %3343 = vrot.lane.b32.xlu0 %v2737, 36
      %v3344 = vpop.permute.xlu0 %3343
      %3345 = vrot.lane.b32.xlu0 %v2736, 36
      %v3346 = vpop.permute.xlu0 %3345
      %3347 = vrot.lane.b32.xlu0 %v2740, 36
      %v3348 = vpop.permute.xlu0 %3347
      %3349 = vrot.lane.b32.xlu0 %v2742, 36
      %v3350 = vpop.permute.xlu0 %3349
      %3351 = vrot.lane.b32.xlu0 %v2741, 36
      %v3352 = vpop.permute.xlu0 %3351
      %3353 = vrot.lane.b32.xlu0 %v2745, 36
      %v3354 = vpop.permute.xlu0 %3353
      %3355 = vrot.lane.b32.xlu0 %v2747, 36
      %v3356 = vpop.permute.xlu0 %3355
      %3357 = vrot.lane.b32.xlu0 %v2746, 36
      %v3358 = vpop.permute.xlu0 %3357
      %3359 = vrot.lane.b32.xlu0 %v2750, 36
      %v3360 = vpop.permute.xlu0 %3359
      %3361 = vrot.lane.b32.xlu0 %v2752, 36
      %v3362 = vpop.permute.xlu0 %3361
      %3363 = vrot.lane.b32.xlu0 %v2751, 36
      %v3364 = vpop.permute.xlu0 %3363
      %3365 = vrot.lane.b32.xlu0 %v2755, 36
      %v3366 = vpop.permute.xlu0 %3365
      %3367 = vrot.lane.b32.xlu0 %v2757, 36
      %v3368 = vpop.permute.xlu0 %3367
      %3369 = vrot.lane.b32.xlu0 %v2756, 36
      %v3370 = vpop.permute.xlu0 %3369
      %3371 = vrot.lane.b32.xlu0 %v2760, 36
      %v3372 = vpop.permute.xlu0 %3371
      %3373 = vrot.lane.b32.xlu0 %v2762, 36
      %v3374 = vpop.permute.xlu0 %3373
      %3375 = vrot.lane.b32.xlu0 %v2761, 36
      %v3376 = vpop.permute.xlu0 %3375
      %3377 = vrot.lane.b32.xlu0 %v2765, 36
      %v3378 = vpop.permute.xlu0 %3377
      %3379 = vrot.lane.b32.xlu0 %v2767, 36
      %v3380 = vpop.permute.xlu0 %3379
      %3381 = vrot.lane.b32.xlu0 %v2766, 36
      %v3382 = vpop.permute.xlu0 %3381
      %3383 = vrot.lane.b32.xlu0 %v2770, 36
      %v3384 = vpop.permute.xlu0 %3383
      %3385 = vrot.lane.b32.xlu0 %v2772, 36
      %v3386 = vpop.permute.xlu0 %3385
      %3387 = vrot.lane.b32.xlu0 %v2771, 36
      %v3388 = vpop.permute.xlu0 %3387
      %3389 = vrot.lane.b32.xlu0 %v3320, 36
      %v3390 = vpop.permute.xlu0 %3389
      %3391 = vrot.lane.b32.xlu0 %v3322, 36
      %v3392 = vpop.permute.xlu0 %3391
      %3393 = vrot.lane.b32.xlu0 %v3321, 36
      %v3394 = vpop.permute.xlu0 %3393
      %3431 = vrot.lane.b32.xlu0 %v434, 40
      %v3432 = vpop.permute.xlu0 %3431
      %3433 = vrot.lane.b32.xlu0 %v435, 40
      %v3434 = vpop.permute.xlu0 %3433
      %3435 = vrot.lane.b32.xlu0 %v436, 40
      %v3436 = vpop.permute.xlu0 %3435
      %3437 = vrot.lane.b32.xlu0 %v437, 40
      %v3438 = vpop.permute.xlu0 %3437
      %3439 = vrot.lane.b32.xlu0 %v438, 40
      %v3440 = vpop.permute.xlu0 %3439
      %3441 = vrot.lane.b32.xlu0 %v439, 40
      %v3442 = vpop.permute.xlu0 %3441
      %3443 = vrot.lane.b32.xlu0 %v440, 40
      %v3444 = vpop.permute.xlu0 %3443
      %3445 = vrot.lane.b32.xlu0 %v441, 40
      %v3446 = vpop.permute.xlu0 %3445
      %3447 = vrot.lane.b32.xlu0 %v442, 40
      %v3448 = vpop.permute.xlu0 %3447
      %3449 = vrot.lane.b32.xlu0 %v443, 40
      %v3450 = vpop.permute.xlu0 %3449
      %3451 = vrot.lane.b32.xlu0 %v444, 40
      %v3452 = vpop.permute.xlu0 %3451
      %3453 = vrot.lane.b32.xlu0 %v445, 40
      %v3454 = vpop.permute.xlu0 %3453
      %3455 = vrot.lane.b32.xlu0 %v446, 40
      %v3456 = vpop.permute.xlu0 %3455
      %3457 = vrot.lane.b32.xlu0 %v447, 40
      %v3458 = vpop.permute.xlu0 %3457
      %3459 = vrot.lane.b32.xlu0 %v448, 40
      %v3460 = vpop.permute.xlu0 %3459
      %3461 = vrot.lane.b32.xlu0 %v449, 40
      %v3462 = vpop.permute.xlu0 %3461
      %3463 = vrot.lane.b32.xlu0 %v450, 40
      %v3464 = vpop.permute.xlu0 %3463
      %3465 = vrot.lane.b32.xlu0 %v451, 40
      %v3466 = vpop.permute.xlu0 %3465
      %3467 = vrot.lane.b32.xlu0 %v452, 40
      %v3468 = vpop.permute.xlu0 %3467
      %3469 = vrot.lane.b32.xlu0 %v453, 40
      %v3470 = vpop.permute.xlu0 %3469
      %3471 = vrot.lane.b32.xlu0 %v454, 40
      %v3472 = vpop.permute.xlu0 %3471
      %3473 = vrot.lane.b32.xlu0 %v455, 40
      %v3474 = vpop.permute.xlu0 %3473
      %3475 = vrot.lane.b32.xlu0 %v456, 40
      %v3476 = vpop.permute.xlu0 %3475
      %3477 = vrot.lane.b32.xlu0 %v457, 40
      %v3478 = vpop.permute.xlu0 %3477
      %3479 = vrot.lane.b32.xlu0 %v458, 40
      %v3480 = vpop.permute.xlu0 %3479
      %3481 = vrot.lane.b32.xlu0 %v459, 40
      %v3482 = vpop.permute.xlu0 %3481
      %3483 = vrot.lane.b32.xlu0 %v460, 40
      %v3484 = vpop.permute.xlu0 %3483
      %3485 = vrot.lane.b32.xlu0 %v461, 40
      %v3486 = vpop.permute.xlu0 %3485
      %3487 = vrot.lane.b32.xlu0 %v462, 40
      %v3488 = vpop.permute.xlu0 %3487
      %3489 = vrot.lane.b32.xlu0 %v463, 40
      %v3490 = vpop.permute.xlu0 %3489
      %3491 = vrot.lane.b32.xlu0 %v464, 40
      %v3492 = vpop.permute.xlu0 %3491
      %3493 = vrot.lane.b32.xlu0 %v465, 40
      %v3494 = vpop.permute.xlu0 %3493
      %3495 = vrot.lane.b32.xlu0 %v466, 40
      %v3496 = vpop.permute.xlu0 %3495
      %3497 = vrot.lane.b32.xlu0 %v467, 40
      %v3498 = vpop.permute.xlu0 %3497
      %3499 = vrot.lane.b32.xlu0 %v468, 40
      %v3500 = vpop.permute.xlu0 %3499
      %3501 = vrot.lane.b32.xlu0 %v469, 40
      %v3502 = vpop.permute.xlu0 %3501
      %3539 = vrot.lane.b32.xlu0 %v520, 44
      %v3540 = vpop.permute.xlu0 %3539
      %3541 = vrot.lane.b32.xlu0 %v522, 44
      %v3542 = vpop.permute.xlu0 %3541
      %3543 = vrot.lane.b32.xlu0 %v521, 44
      %v3544 = vpop.permute.xlu0 %3543
      %3545 = vrot.lane.b32.xlu0 %v525, 44
      %v3546 = vpop.permute.xlu0 %3545
      %3547 = vrot.lane.b32.xlu0 %v527, 44
      %v3548 = vpop.permute.xlu0 %3547
      %3549 = vrot.lane.b32.xlu0 %v526, 44
      %v3550 = vpop.permute.xlu0 %3549
      %3551 = vrot.lane.b32.xlu0 %v530, 44
      %v3552 = vpop.permute.xlu0 %3551
      %3553 = vrot.lane.b32.xlu0 %v532, 44
      %v3554 = vpop.permute.xlu0 %3553
      %3555 = vrot.lane.b32.xlu0 %v531, 44
      %v3556 = vpop.permute.xlu0 %3555
      %3557 = vrot.lane.b32.xlu0 %v535, 44
      %v3558 = vpop.permute.xlu0 %3557
      %3559 = vrot.lane.b32.xlu0 %v537, 44
      %v3560 = vpop.permute.xlu0 %3559
      %3561 = vrot.lane.b32.xlu0 %v536, 44
      %v3562 = vpop.permute.xlu0 %3561
      %3563 = vrot.lane.b32.xlu0 %v540, 44
      %v3564 = vpop.permute.xlu0 %3563
      %3565 = vrot.lane.b32.xlu0 %v542, 44
      %v3566 = vpop.permute.xlu0 %3565
      %3567 = vrot.lane.b32.xlu0 %v541, 44
      %v3568 = vpop.permute.xlu0 %3567
      %3569 = vrot.lane.b32.xlu0 %v545, 44
      %v3570 = vpop.permute.xlu0 %3569
      %3571 = vrot.lane.b32.xlu0 %v547, 44
      %v3572 = vpop.permute.xlu0 %3571
      %3573 = vrot.lane.b32.xlu0 %v546, 44
      %v3574 = vpop.permute.xlu0 %3573
      %3575 = vrot.lane.b32.xlu0 %v550, 44
      %v3576 = vpop.permute.xlu0 %3575
      %3577 = vrot.lane.b32.xlu0 %v552, 44
      %v3578 = vpop.permute.xlu0 %3577
      %3579 = vrot.lane.b32.xlu0 %v551, 44
      %v3580 = vpop.permute.xlu0 %3579
      %3581 = vrot.lane.b32.xlu0 %v555, 44
      %v3582 = vpop.permute.xlu0 %3581
      %3583 = vrot.lane.b32.xlu0 %v557, 44
      %v3584 = vpop.permute.xlu0 %3583
      %3585 = vrot.lane.b32.xlu0 %v556, 44
      %v3586 = vpop.permute.xlu0 %3585
      %3587 = vrot.lane.b32.xlu0 %v560, 44
      %v3588 = vpop.permute.xlu0 %3587
      %3589 = vrot.lane.b32.xlu0 %v562, 44
      %v3590 = vpop.permute.xlu0 %3589
      %3591 = vrot.lane.b32.xlu0 %v561, 44
      %v3592 = vpop.permute.xlu0 %3591
      %3593 = vrot.lane.b32.xlu0 %v565, 44
      %v3594 = vpop.permute.xlu0 %3593
      %3595 = vrot.lane.b32.xlu0 %v567, 44
      %v3596 = vpop.permute.xlu0 %3595
      %3597 = vrot.lane.b32.xlu0 %v566, 44
      %v3598 = vpop.permute.xlu0 %3597
      %3599 = vrot.lane.b32.xlu0 %v570, 44
      %v3600 = vpop.permute.xlu0 %3599
      %3601 = vrot.lane.b32.xlu0 %v572, 44
      %v3602 = vpop.permute.xlu0 %3601
      %3603 = vrot.lane.b32.xlu0 %v571, 44
      %v3604 = vpop.permute.xlu0 %3603
      %3605 = vrot.lane.b32.xlu0 %v963, 44
      %v3606 = vpop.permute.xlu0 %3605
      %3607 = vrot.lane.b32.xlu0 %v965, 44
      %v3608 = vpop.permute.xlu0 %3607
      %3609 = vrot.lane.b32.xlu0 %v964, 44
      %v3610 = vpop.permute.xlu0 %3609
      %3647 = vrot.lane.b32.xlu0 %v689, 48
      %v3648 = vpop.permute.xlu0 %3647
      %3649 = vrot.lane.b32.xlu0 %v691, 48
      %v3650 = vpop.permute.xlu0 %3649
      %3651 = vrot.lane.b32.xlu0 %v690, 48
      %v3652 = vpop.permute.xlu0 %3651
      %3653 = vrot.lane.b32.xlu0 %v694, 48
      %v3654 = vpop.permute.xlu0 %3653
      %3655 = vrot.lane.b32.xlu0 %v696, 48
      %v3656 = vpop.permute.xlu0 %3655
      %3657 = vrot.lane.b32.xlu0 %v695, 48
      %v3658 = vpop.permute.xlu0 %3657
      %3659 = vrot.lane.b32.xlu0 %v699, 48
      %v3660 = vpop.permute.xlu0 %3659
      %3661 = vrot.lane.b32.xlu0 %v701, 48
      %v3662 = vpop.permute.xlu0 %3661
      %3663 = vrot.lane.b32.xlu0 %v700, 48
      %v3664 = vpop.permute.xlu0 %3663
      %3665 = vrot.lane.b32.xlu0 %v704, 48
      %v3666 = vpop.permute.xlu0 %3665
      %3667 = vrot.lane.b32.xlu0 %v706, 48
      %v3668 = vpop.permute.xlu0 %3667
      %3669 = vrot.lane.b32.xlu0 %v705, 48
      %v3670 = vpop.permute.xlu0 %3669
      %3671 = vrot.lane.b32.xlu0 %v709, 48
      %v3672 = vpop.permute.xlu0 %3671
      %3673 = vrot.lane.b32.xlu0 %v711, 48
      %v3674 = vpop.permute.xlu0 %3673
      %3675 = vrot.lane.b32.xlu0 %v710, 48
      %v3676 = vpop.permute.xlu0 %3675
      %3677 = vrot.lane.b32.xlu0 %v714, 48
      %v3678 = vpop.permute.xlu0 %3677
      %3679 = vrot.lane.b32.xlu0 %v716, 48
      %v3680 = vpop.permute.xlu0 %3679
      %3681 = vrot.lane.b32.xlu0 %v715, 48
      %v3682 = vpop.permute.xlu0 %3681
      %3683 = vrot.lane.b32.xlu0 %v719, 48
      %v3684 = vpop.permute.xlu0 %3683
      %3685 = vrot.lane.b32.xlu0 %v721, 48
      %v3686 = vpop.permute.xlu0 %3685
      %3687 = vrot.lane.b32.xlu0 %v720, 48
      %v3688 = vpop.permute.xlu0 %3687
      %3689 = vrot.lane.b32.xlu0 %v724, 48
      %v3690 = vpop.permute.xlu0 %3689
      %3691 = vrot.lane.b32.xlu0 %v726, 48
      %v3692 = vpop.permute.xlu0 %3691
      %3693 = vrot.lane.b32.xlu0 %v725, 48
      %v3694 = vpop.permute.xlu0 %3693
      %3695 = vrot.lane.b32.xlu0 %v729, 48
      %v3696 = vpop.permute.xlu0 %3695
      %3697 = vrot.lane.b32.xlu0 %v731, 48
      %v3698 = vpop.permute.xlu0 %3697
      %3699 = vrot.lane.b32.xlu0 %v730, 48
      %v3700 = vpop.permute.xlu0 %3699
      %3701 = vrot.lane.b32.xlu0 %v734, 48
      %v3702 = vpop.permute.xlu0 %3701
      %3703 = vrot.lane.b32.xlu0 %v736, 48
      %v3704 = vpop.permute.xlu0 %3703
      %3705 = vrot.lane.b32.xlu0 %v735, 48
      %v3706 = vpop.permute.xlu0 %3705
      %3707 = vrot.lane.b32.xlu0 %v739, 48
      %v3708 = vpop.permute.xlu0 %3707
      %3709 = vrot.lane.b32.xlu0 %v741, 48
      %v3710 = vpop.permute.xlu0 %3709
      %3711 = vrot.lane.b32.xlu0 %v740, 48
      %v3712 = vpop.permute.xlu0 %3711
      %3713 = vrot.lane.b32.xlu0 %v1076, 48
      %v3714 = vpop.permute.xlu0 %3713
      %3715 = vrot.lane.b32.xlu0 %v1078, 48
      %v3716 = vpop.permute.xlu0 %3715
      %3717 = vrot.lane.b32.xlu0 %v1077, 48
      %v3718 = vpop.permute.xlu0 %3717
      %v3755 = vrot.slane %v467, 3
      %v3756 = vrot.slane %v468, 3
      %v3757 = vsel %vm2543, %v3755, %v3756
      %v3758 = vrot.slane %v469, 3
      %v3759 = vsel %vm2543, %v3756, %v3758
      %3760 = vrot.lane.b32.xlu0 %v2556, 52
      %v3761 = vpop.permute.xlu0 %3760
      %3762 = vrot.lane.b32.xlu0 %v2558, 52
      %v3763 = vpop.permute.xlu0 %3762
      %3764 = vrot.lane.b32.xlu0 %v2557, 52
      %v3765 = vpop.permute.xlu0 %3764
      %3766 = vrot.lane.b32.xlu0 %v2561, 52
      %v3767 = vpop.permute.xlu0 %3766
      %3768 = vrot.lane.b32.xlu0 %v2563, 52
      %v3769 = vpop.permute.xlu0 %3768
      %3770 = vrot.lane.b32.xlu0 %v2562, 52
      %v3771 = vpop.permute.xlu0 %3770
      %3772 = vrot.lane.b32.xlu0 %v2566, 52
      %v3773 = vpop.permute.xlu0 %3772
      %3774 = vrot.lane.b32.xlu0 %v2568, 52
      %v3775 = vpop.permute.xlu0 %3774
      %3776 = vrot.lane.b32.xlu0 %v2567, 52
      %v3777 = vpop.permute.xlu0 %3776
      %3778 = vrot.lane.b32.xlu0 %v2571, 52
      %v3779 = vpop.permute.xlu0 %3778
      %3780 = vrot.lane.b32.xlu0 %v2573, 52
      %v3781 = vpop.permute.xlu0 %3780
      %3782 = vrot.lane.b32.xlu0 %v2572, 52
      %v3783 = vpop.permute.xlu0 %3782
      %3784 = vrot.lane.b32.xlu0 %v2576, 52
      %v3785 = vpop.permute.xlu0 %3784
      %3786 = vrot.lane.b32.xlu0 %v2578, 52
      %v3787 = vpop.permute.xlu0 %3786
      %3788 = vrot.lane.b32.xlu0 %v2577, 52
      %v3789 = vpop.permute.xlu0 %3788
      %3790 = vrot.lane.b32.xlu0 %v2581, 52
      %v3791 = vpop.permute.xlu0 %3790
      %3792 = vrot.lane.b32.xlu0 %v2583, 52
      %v3793 = vpop.permute.xlu0 %3792
      %3794 = vrot.lane.b32.xlu0 %v2582, 52
      %v3795 = vpop.permute.xlu0 %3794
      %3796 = vrot.lane.b32.xlu0 %v2586, 52
      %v3797 = vpop.permute.xlu0 %3796
      %3798 = vrot.lane.b32.xlu0 %v2588, 52
      %v3799 = vpop.permute.xlu0 %3798
      %3800 = vrot.lane.b32.xlu0 %v2587, 52
      %v3801 = vpop.permute.xlu0 %3800
      %3802 = vrot.lane.b32.xlu0 %v2591, 52
      %v3803 = vpop.permute.xlu0 %3802
      %3804 = vrot.lane.b32.xlu0 %v2593, 52
      %v3805 = vpop.permute.xlu0 %3804
      %3806 = vrot.lane.b32.xlu0 %v2592, 52
      %v3807 = vpop.permute.xlu0 %3806
      %3808 = vrot.lane.b32.xlu0 %v2596, 52
      %v3809 = vpop.permute.xlu0 %3808
      %3810 = vrot.lane.b32.xlu0 %v2598, 52
      %v3811 = vpop.permute.xlu0 %3810
      %3812 = vrot.lane.b32.xlu0 %v2597, 52
      %v3813 = vpop.permute.xlu0 %3812
      %3814 = vrot.lane.b32.xlu0 %v2601, 52
      %v3815 = vpop.permute.xlu0 %3814
      %3816 = vrot.lane.b32.xlu0 %v2603, 52
      %v3817 = vpop.permute.xlu0 %3816
      %3818 = vrot.lane.b32.xlu0 %v2602, 52
      %v3819 = vpop.permute.xlu0 %3818
      %3820 = vrot.lane.b32.xlu0 %v3207, 52
      %v3821 = vpop.permute.xlu0 %3820
      %3822 = vrot.lane.b32.xlu0 %v3209, 52
      %v3823 = vpop.permute.xlu0 %3822
      %3824 = vrot.lane.b32.xlu0 %v3208, 52
      %v3825 = vpop.permute.xlu0 %3824
      %3826 = vrot.lane.b32.xlu0 %v3757, 52
      %v3827 = vpop.permute.xlu0 %3826
      %3828 = vrot.lane.b32.xlu0 %v3759, 52
      %v3829 = vpop.permute.xlu0 %3828
      %3830 = vrot.lane.b32.xlu0 %v3758, 52
      %v3831 = vpop.permute.xlu0 %3830
      %v3868 = vrot.slane %v467, 4
      %v3869 = vrot.slane %v468, 4
      %v3870 = vsel %vm2712, %v3868, %v3869
      %v3871 = vrot.slane %v469, 4
      %v3872 = vsel %vm2712, %v3869, %v3871
      %3873 = vrot.lane.b32.xlu0 %v2725, 56
      %v3874 = vpop.permute.xlu0 %3873
      %3875 = vrot.lane.b32.xlu0 %v2727, 56
      %v3876 = vpop.permute.xlu0 %3875
      %3877 = vrot.lane.b32.xlu0 %v2726, 56
      %v3878 = vpop.permute.xlu0 %3877
      %3879 = vrot.lane.b32.xlu0 %v2730, 56
      %v3880 = vpop.permute.xlu0 %3879
      %3881 = vrot.lane.b32.xlu0 %v2732, 56
      %v3882 = vpop.permute.xlu0 %3881
      %3883 = vrot.lane.b32.xlu0 %v2731, 56
      %v3884 = vpop.permute.xlu0 %3883
      %3885 = vrot.lane.b32.xlu0 %v2735, 56
      %v3886 = vpop.permute.xlu0 %3885
      %3887 = vrot.lane.b32.xlu0 %v2737, 56
      %v3888 = vpop.permute.xlu0 %3887
      %3889 = vrot.lane.b32.xlu0 %v2736, 56
      %v3890 = vpop.permute.xlu0 %3889
      %3891 = vrot.lane.b32.xlu0 %v2740, 56
      %v3892 = vpop.permute.xlu0 %3891
      %3893 = vrot.lane.b32.xlu0 %v2742, 56
      %v3894 = vpop.permute.xlu0 %3893
      %3895 = vrot.lane.b32.xlu0 %v2741, 56
      %v3896 = vpop.permute.xlu0 %3895
      %3897 = vrot.lane.b32.xlu0 %v2745, 56
      %v3898 = vpop.permute.xlu0 %3897
      %3899 = vrot.lane.b32.xlu0 %v2747, 56
      %v3900 = vpop.permute.xlu0 %3899
      %3901 = vrot.lane.b32.xlu0 %v2746, 56
      %v3902 = vpop.permute.xlu0 %3901
      %3903 = vrot.lane.b32.xlu0 %v2750, 56
      %v3904 = vpop.permute.xlu0 %3903
      %3905 = vrot.lane.b32.xlu0 %v2752, 56
      %v3906 = vpop.permute.xlu0 %3905
      %3907 = vrot.lane.b32.xlu0 %v2751, 56
      %v3908 = vpop.permute.xlu0 %3907
      %3909 = vrot.lane.b32.xlu0 %v2755, 56
      %v3910 = vpop.permute.xlu0 %3909
      %3911 = vrot.lane.b32.xlu0 %v2757, 56
      %v3912 = vpop.permute.xlu0 %3911
      %3913 = vrot.lane.b32.xlu0 %v2756, 56
      %v3914 = vpop.permute.xlu0 %3913
      %3915 = vrot.lane.b32.xlu0 %v2760, 56
      %v3916 = vpop.permute.xlu0 %3915
      %3917 = vrot.lane.b32.xlu0 %v2762, 56
      %v3918 = vpop.permute.xlu0 %3917
      %3919 = vrot.lane.b32.xlu0 %v2761, 56
      %v3920 = vpop.permute.xlu0 %3919
      %3921 = vrot.lane.b32.xlu0 %v2765, 56
      %v3922 = vpop.permute.xlu0 %3921
      %3923 = vrot.lane.b32.xlu0 %v2767, 56
      %v3924 = vpop.permute.xlu0 %3923
      %3925 = vrot.lane.b32.xlu0 %v2766, 56
      %v3926 = vpop.permute.xlu0 %3925
      %3927 = vrot.lane.b32.xlu0 %v2770, 56
      %v3928 = vpop.permute.xlu0 %3927
      %3929 = vrot.lane.b32.xlu0 %v2772, 56
      %v3930 = vpop.permute.xlu0 %3929
      %3931 = vrot.lane.b32.xlu0 %v2771, 56
      %v3932 = vpop.permute.xlu0 %3931
      %3933 = vrot.lane.b32.xlu0 %v3320, 56
      %v3934 = vpop.permute.xlu0 %3933
      %3935 = vrot.lane.b32.xlu0 %v3322, 56
      %v3936 = vpop.permute.xlu0 %3935
      %3937 = vrot.lane.b32.xlu0 %v3321, 56
      %v3938 = vpop.permute.xlu0 %3937
      %3939 = vrot.lane.b32.xlu0 %v3870, 56
      %v3940 = vpop.permute.xlu0 %3939
      %3941 = vrot.lane.b32.xlu0 %v3872, 56
      %v3942 = vpop.permute.xlu0 %3941
      %3943 = vrot.lane.b32.xlu0 %v3871, 56
      %v3944 = vpop.permute.xlu0 %3943
      %3981 = vrot.lane.b32.xlu0 %v437, 60
      %v3982 = vpop.permute.xlu0 %3981
      %3983 = vrot.lane.b32.xlu0 %v438, 60
      %v3984 = vpop.permute.xlu0 %3983
      %3985 = vrot.lane.b32.xlu0 %v439, 60
      %v3986 = vpop.permute.xlu0 %3985
      %3987 = vrot.lane.b32.xlu0 %v440, 60
      %v3988 = vpop.permute.xlu0 %3987
      %3989 = vrot.lane.b32.xlu0 %v441, 60
      %v3990 = vpop.permute.xlu0 %3989
      %3991 = vrot.lane.b32.xlu0 %v442, 60
      %v3992 = vpop.permute.xlu0 %3991
      %3993 = vrot.lane.b32.xlu0 %v443, 60
      %v3994 = vpop.permute.xlu0 %3993
      %3995 = vrot.lane.b32.xlu0 %v444, 60
      %v3996 = vpop.permute.xlu0 %3995
      %3997 = vrot.lane.b32.xlu0 %v445, 60
      %v3998 = vpop.permute.xlu0 %3997
      %3999 = vrot.lane.b32.xlu0 %v446, 60
      %v4000 = vpop.permute.xlu0 %3999
      %4001 = vrot.lane.b32.xlu0 %v447, 60
      %v4002 = vpop.permute.xlu0 %4001
      %4003 = vrot.lane.b32.xlu0 %v448, 60
      %v4004 = vpop.permute.xlu0 %4003
      %4005 = vrot.lane.b32.xlu0 %v449, 60
      %v4006 = vpop.permute.xlu0 %4005
      %4007 = vrot.lane.b32.xlu0 %v450, 60
      %v4008 = vpop.permute.xlu0 %4007
      %4009 = vrot.lane.b32.xlu0 %v451, 60
      %v4010 = vpop.permute.xlu0 %4009
      %4011 = vrot.lane.b32.xlu0 %v452, 60
      %v4012 = vpop.permute.xlu0 %4011
      %4013 = vrot.lane.b32.xlu0 %v453, 60
      %v4014 = vpop.permute.xlu0 %4013
      %4015 = vrot.lane.b32.xlu0 %v454, 60
      %v4016 = vpop.permute.xlu0 %4015
      %4017 = vrot.lane.b32.xlu0 %v455, 60
      %v4018 = vpop.permute.xlu0 %4017
      %4019 = vrot.lane.b32.xlu0 %v456, 60
      %v4020 = vpop.permute.xlu0 %4019
      %4021 = vrot.lane.b32.xlu0 %v457, 60
      %v4022 = vpop.permute.xlu0 %4021
      %4023 = vrot.lane.b32.xlu0 %v458, 60
      %v4024 = vpop.permute.xlu0 %4023
      %4025 = vrot.lane.b32.xlu0 %v459, 60
      %v4026 = vpop.permute.xlu0 %4025
      %4027 = vrot.lane.b32.xlu0 %v460, 60
      %v4028 = vpop.permute.xlu0 %4027
      %4029 = vrot.lane.b32.xlu0 %v461, 60
      %v4030 = vpop.permute.xlu0 %4029
      %4031 = vrot.lane.b32.xlu0 %v462, 60
      %v4032 = vpop.permute.xlu0 %4031
      %4033 = vrot.lane.b32.xlu0 %v463, 60
      %v4034 = vpop.permute.xlu0 %4033
      %4035 = vrot.lane.b32.xlu0 %v464, 60
      %v4036 = vpop.permute.xlu0 %4035
      %4037 = vrot.lane.b32.xlu0 %v465, 60
      %v4038 = vpop.permute.xlu0 %4037
      %4039 = vrot.lane.b32.xlu0 %v466, 60
      %v4040 = vpop.permute.xlu0 %4039
      %4041 = vrot.lane.b32.xlu0 %v467, 60
      %v4042 = vpop.permute.xlu0 %4041
      %4043 = vrot.lane.b32.xlu0 %v468, 60
      %v4044 = vpop.permute.xlu0 %4043
      %4045 = vrot.lane.b32.xlu0 %v469, 60
      %v4046 = vpop.permute.xlu0 %4045
      %4047 = vrot.lane.b32.xlu0 %v470, 60
      %v4048 = vpop.permute.xlu0 %4047
      %4049 = vrot.lane.b32.xlu0 %v471, 60
      %v4050 = vpop.permute.xlu0 %4049
      %4051 = vrot.lane.b32.xlu0 %v472, 60
      %v4052 = vpop.permute.xlu0 %4051
      %v4089 = vsel %vm1524, %v428, %v2521
      %v4090 = vsel %vm1524, %v429, %v2523
      %v4091 = vsel %vm1524, %v430, %v2525
      %v4092 = vsel %vm1561, %v4089, %v2535
      %v4093 = vsel %vm1561, %v4090, %v2537
      %v4094 = vsel %vm1561, %v4091, %v2539
      %v4095 = vsel %vm1598, %v4092, %v2605
      %v4096 = vsel %vm1598, %v4093, %v2607
      %v4097 = vsel %vm1598, %v4094, %v2609
      %v4098 = vsel %vm1598, %v1562, %v2611
      %v4099 = vsel %vm1598, %v1563, %v2613
      %v4100 = vsel %vm1598, %v1564, %v2615
      %v4101 = vsel %vm1598, %v1565, %v2617
      %v4102 = vsel %vm1598, %v1566, %v2619
      %v4103 = vsel %vm1598, %v1567, %v2621
      %v4104 = vsel %vm1598, %v1568, %v2623
      %v4105 = vsel %vm1598, %v1569, %v2625
      %v4106 = vsel %vm1598, %v1570, %v2627
      %v4107 = vsel %vm1598, %v1571, %v2629
      %v4108 = vsel %vm1598, %v1572, %v2631
      %v4109 = vsel %vm1598, %v1573, %v2633
      %v4110 = vsel %vm1598, %v1574, %v2635
      %v4111 = vsel %vm1598, %v1575, %v2637
      %v4112 = vsel %vm1598, %v1576, %v2639
      %v4113 = vsel %vm1598, %v1577, %v2641
      %v4114 = vsel %vm1598, %v1578, %v2643
      %v4115 = vsel %vm1598, %v1579, %v2645
      %v4116 = vsel %vm1598, %v1580, %v2647
      %v4117 = vsel %vm1598, %v1581, %v2649
      %v4118 = vsel %vm1598, %v1582, %v2651
      %v4119 = vsel %vm1598, %v1583, %v2653
      %v4120 = vsel %vm1598, %v1584, %v2655
      %v4121 = vsel %vm1598, %v1585, %v2657
      %v4122 = vsel %vm1598, %v1586, %v2659
      %v4123 = vsel %vm1598, %v1587, %v2661
      %v4124 = vsel %vm1598, %v1588, %v2663
      %v4125 = vsel %vm1598, %v1589, %v2665
      %v4126 = vsel %vm1598, %v1590, %v2667
      %v4127 = vsel %vm1598, %v1591, %v2669
      %v4128 = vsel %vm1598, %v1592, %v2671
      %v4129 = vsel %vm1598, %v1593, %v2673
      %v4130 = vsel %vm1598, %v1594, %v2675
      %v4131 = vsel %vm1635, %v4095, %v2774
      %v4132 = vsel %vm1635, %v4096, %v2776
      %v4133 = vsel %vm1635, %v4097, %v2778
      %v4134 = vsel %vm1635, %v4098, %v2780
      %v4135 = vsel %vm1635, %v4099, %v2782
      %v4136 = vsel %vm1635, %v4100, %v2784
      %v4137 = vsel %vm1635, %v4101, %v2786
      %v4138 = vsel %vm1635, %v4102, %v2788
      %v4139 = vsel %vm1635, %v4103, %v2790
      %v4140 = vsel %vm1635, %v4104, %v2792
      %v4141 = vsel %vm1635, %v4105, %v2794
      %v4142 = vsel %vm1635, %v4106, %v2796
      %v4143 = vsel %vm1635, %v4107, %v2798
      %v4144 = vsel %vm1635, %v4108, %v2800
      %v4145 = vsel %vm1635, %v4109, %v2802
      %v4146 = vsel %vm1635, %v4110, %v2804
      %v4147 = vsel %vm1635, %v4111, %v2806
      %v4148 = vsel %vm1635, %v4112, %v2808
      %v4149 = vsel %vm1635, %v4113, %v2810
      %v4150 = vsel %vm1635, %v4114, %v2812
      %v4151 = vsel %vm1635, %v4115, %v2814
      %v4152 = vsel %vm1635, %v4116, %v2816
      %v4153 = vsel %vm1635, %v4117, %v2818
      %v4154 = vsel %vm1635, %v4118, %v2820
      %v4155 = vsel %vm1635, %v4119, %v2822
      %v4156 = vsel %vm1635, %v4120, %v2824
      %v4157 = vsel %vm1635, %v4121, %v2826
      %v4158 = vsel %vm1635, %v4122, %v2828
      %v4159 = vsel %vm1635, %v4123, %v2830
      %v4160 = vsel %vm1635, %v4124, %v2832
      %v4161 = vsel %vm1635, %v4125, %v2834
      %v4162 = vsel %vm1635, %v4126, %v2836
      %v4163 = vsel %vm1635, %v4127, %v2838
      %v4164 = vsel %vm1635, %v4128, %v2840
      %v4165 = vsel %vm1635, %v4129, %v2842
      %v4166 = vsel %vm1635, %v4130, %v2844
      %v4167 = vsel %vm1672, %v4131, %v2882
      %v4168 = vsel %vm1672, %v4132, %v2884
      %v4169 = vsel %vm1672, %v4133, %v2886
      %v4170 = vsel %vm1672, %v4134, %v2888
      %v4171 = vsel %vm1672, %v4135, %v2890
      %v4172 = vsel %vm1672, %v4136, %v2892
      %v4173 = vsel %vm1672, %v4137, %v2894
      %v4174 = vsel %vm1672, %v4138, %v2896
      %v4175 = vsel %vm1672, %v4139, %v2898
      %v4176 = vsel %vm1672, %v4140, %v2900
      %v4177 = vsel %vm1672, %v4141, %v2902
      %v4178 = vsel %vm1672, %v4142, %v2904
      %v4179 = vsel %vm1672, %v4143, %v2906
      %v4180 = vsel %vm1672, %v4144, %v2908
      %v4181 = vsel %vm1672, %v4145, %v2910
      %v4182 = vsel %vm1672, %v4146, %v2912
      %v4183 = vsel %vm1672, %v4147, %v2914
      %v4184 = vsel %vm1672, %v4148, %v2916
      %v4185 = vsel %vm1672, %v4149, %v2918
      %v4186 = vsel %vm1672, %v4150, %v2920
      %v4187 = vsel %vm1672, %v4151, %v2922
      %v4188 = vsel %vm1672, %v4152, %v2924
      %v4189 = vsel %vm1672, %v4153, %v2926
      %v4190 = vsel %vm1672, %v4154, %v2928
      %v4191 = vsel %vm1672, %v4155, %v2930
      %v4192 = vsel %vm1672, %v4156, %v2932
      %v4193 = vsel %vm1672, %v4157, %v2934
      %v4194 = vsel %vm1672, %v4158, %v2936
      %v4195 = vsel %vm1672, %v4159, %v2938
      %v4196 = vsel %vm1672, %v4160, %v2940
      %v4197 = vsel %vm1672, %v4161, %v2942
      %v4198 = vsel %vm1672, %v4162, %v2944
      %v4199 = vsel %vm1672, %v4163, %v2946
      %v4200 = vsel %vm1672, %v4164, %v2948
      %v4201 = vsel %vm1672, %v4165, %v2950
      %v4202 = vsel %vm1672, %v4166, %v2952
      %v4203 = vsel %vm1709, %v4167, %v2990
      %v4204 = vsel %vm1709, %v4168, %v2992
      %v4205 = vsel %vm1709, %v4169, %v2994
      %v4206 = vsel %vm1709, %v4170, %v2996
      %v4207 = vsel %vm1709, %v4171, %v2998
      %v4208 = vsel %vm1709, %v4172, %v3000
      %v4209 = vsel %vm1709, %v4173, %v3002
      %v4210 = vsel %vm1709, %v4174, %v3004
      %v4211 = vsel %vm1709, %v4175, %v3006
      %v4212 = vsel %vm1709, %v4176, %v3008
      %v4213 = vsel %vm1709, %v4177, %v3010
      %v4214 = vsel %vm1709, %v4178, %v3012
      %v4215 = vsel %vm1709, %v4179, %v3014
      %v4216 = vsel %vm1709, %v4180, %v3016
      %v4217 = vsel %vm1709, %v4181, %v3018
      %v4218 = vsel %vm1709, %v4182, %v3020
      %v4219 = vsel %vm1709, %v4183, %v3022
      %v4220 = vsel %vm1709, %v4184, %v3024
      %v4221 = vsel %vm1709, %v4185, %v3026
      %v4222 = vsel %vm1709, %v4186, %v3028
      %v4223 = vsel %vm1709, %v4187, %v3030
      %v4224 = vsel %vm1709, %v4188, %v3032
      %v4225 = vsel %vm1709, %v4189, %v3034
      %v4226 = vsel %vm1709, %v4190, %v3036
      %v4227 = vsel %vm1709, %v4191, %v3038
      %v4228 = vsel %vm1709, %v4192, %v3040
      %v4229 = vsel %vm1709, %v4193, %v3042
      %v4230 = vsel %vm1709, %v4194, %v3044
      %v4231 = vsel %vm1709, %v4195, %v3046
      %v4232 = vsel %vm1709, %v4196, %v3048
      %v4233 = vsel %vm1709, %v4197, %v3050
      %v4234 = vsel %vm1709, %v4198, %v3052
      %v4235 = vsel %vm1709, %v4199, %v3054
      %v4236 = vsel %vm1709, %v4200, %v3056
      %v4237 = vsel %vm1709, %v4201, %v3058
      %v4238 = vsel %vm1709, %v4202, %v3060
      %v4239 = vsel %vm1746, %v4203, %v3098
      %v4240 = vsel %vm1746, %v4204, %v3100
      %v4241 = vsel %vm1746, %v4205, %v3102
      %v4242 = vsel %vm1746, %v4206, %v3104
      %v4243 = vsel %vm1746, %v4207, %v3106
      %v4244 = vsel %vm1746, %v4208, %v3108
      %v4245 = vsel %vm1746, %v4209, %v3110
      %v4246 = vsel %vm1746, %v4210, %v3112
      %v4247 = vsel %vm1746, %v4211, %v3114
      %v4248 = vsel %vm1746, %v4212, %v3116
      %v4249 = vsel %vm1746, %v4213, %v3118
      %v4250 = vsel %vm1746, %v4214, %v3120
      %v4251 = vsel %vm1746, %v4215, %v3122
      %v4252 = vsel %vm1746, %v4216, %v3124
      %v4253 = vsel %vm1746, %v4217, %v3126
      %v4254 = vsel %vm1746, %v4218, %v3128
      %v4255 = vsel %vm1746, %v4219, %v3130
      %v4256 = vsel %vm1746, %v4220, %v3132
      %v4257 = vsel %vm1746, %v4221, %v3134
      %v4258 = vsel %vm1746, %v4222, %v3136
      %v4259 = vsel %vm1746, %v4223, %v3138
      %v4260 = vsel %vm1746, %v4224, %v3140
      %v4261 = vsel %vm1746, %v4225, %v3142
      %v4262 = vsel %vm1746, %v4226, %v3144
      %v4263 = vsel %vm1746, %v4227, %v3146
      %v4264 = vsel %vm1746, %v4228, %v3148
      %v4265 = vsel %vm1746, %v4229, %v3150
      %v4266 = vsel %vm1746, %v4230, %v3152
      %v4267 = vsel %vm1746, %v4231, %v3154
      %v4268 = vsel %vm1746, %v4232, %v3156
      %v4269 = vsel %vm1746, %v4233, %v3158
      %v4270 = vsel %vm1746, %v4234, %v3160
      %v4271 = vsel %vm1746, %v4235, %v3162
      %v4272 = vsel %vm1746, %v4236, %v3164
      %v4273 = vsel %vm1746, %v4237, %v3166
      %v4274 = vsel %vm1746, %v4238, %v3168
      %v4275 = vsel %vm1783, %v4239, %v3211
      %v4276 = vsel %vm1783, %v4240, %v3213
      %v4277 = vsel %vm1783, %v4241, %v3215
      %v4278 = vsel %vm1783, %v4242, %v3217
      %v4279 = vsel %vm1783, %v4243, %v3219
      %v4280 = vsel %vm1783, %v4244, %v3221
      %v4281 = vsel %vm1783, %v4245, %v3223
      %v4282 = vsel %vm1783, %v4246, %v3225
      %v4283 = vsel %vm1783, %v4247, %v3227
      %v4284 = vsel %vm1783, %v4248, %v3229
      %v4285 = vsel %vm1783, %v4249, %v3231
      %v4286 = vsel %vm1783, %v4250, %v3233
      %v4287 = vsel %vm1783, %v4251, %v3235
      %v4288 = vsel %vm1783, %v4252, %v3237
      %v4289 = vsel %vm1783, %v4253, %v3239
      %v4290 = vsel %vm1783, %v4254, %v3241
      %v4291 = vsel %vm1783, %v4255, %v3243
      %v4292 = vsel %vm1783, %v4256, %v3245
      %v4293 = vsel %vm1783, %v4257, %v3247
      %v4294 = vsel %vm1783, %v4258, %v3249
      %v4295 = vsel %vm1783, %v4259, %v3251
      %v4296 = vsel %vm1783, %v4260, %v3253
      %v4297 = vsel %vm1783, %v4261, %v3255
      %v4298 = vsel %vm1783, %v4262, %v3257
      %v4299 = vsel %vm1783, %v4263, %v3259
      %v4300 = vsel %vm1783, %v4264, %v3261
      %v4301 = vsel %vm1783, %v4265, %v3263
      %v4302 = vsel %vm1783, %v4266, %v3265
      %v4303 = vsel %vm1783, %v4267, %v3267
      %v4304 = vsel %vm1783, %v4268, %v3269
      %v4305 = vsel %vm1783, %v4269, %v3271
      %v4306 = vsel %vm1783, %v4270, %v3273
      %v4307 = vsel %vm1783, %v4271, %v3275
      %v4308 = vsel %vm1783, %v4272, %v3277
      %v4309 = vsel %vm1783, %v4273, %v3279
      %v4310 = vsel %vm1783, %v4274, %v3281
      %v4311 = vsel %vm2189, %v4275, %v3324
      %v4312 = vsel %vm2189, %v4276, %v3326
      %v4313 = vsel %vm2189, %v4277, %v3328
      %v4314 = vsel %vm2189, %v4278, %v3330
      %v4315 = vsel %vm2189, %v4279, %v3332
      %v4316 = vsel %vm2189, %v4280, %v3334
      %v4317 = vsel %vm2189, %v4281, %v3336
      %v4318 = vsel %vm2189, %v4282, %v3338
      %v4319 = vsel %vm2189, %v4283, %v3340
      %v4320 = vsel %vm2189, %v4284, %v3342
      %v4321 = vsel %vm2189, %v4285, %v3344
      %v4322 = vsel %vm2189, %v4286, %v3346
      %v4323 = vsel %vm2189, %v4287, %v3348
      %v4324 = vsel %vm2189, %v4288, %v3350
      %v4325 = vsel %vm2189, %v4289, %v3352
      %v4326 = vsel %vm2189, %v4290, %v3354
      %v4327 = vsel %vm2189, %v4291, %v3356
      %v4328 = vsel %vm2189, %v4292, %v3358
      %v4329 = vsel %vm2189, %v4293, %v3360
      %v4330 = vsel %vm2189, %v4294, %v3362
      %v4331 = vsel %vm2189, %v4295, %v3364
      %v4332 = vsel %vm2189, %v4296, %v3366
      %v4333 = vsel %vm2189, %v4297, %v3368
      %v4334 = vsel %vm2189, %v4298, %v3370
      %v4335 = vsel %vm2189, %v4299, %v3372
      %v4336 = vsel %vm2189, %v4300, %v3374
      %v4337 = vsel %vm2189, %v4301, %v3376
      %v4338 = vsel %vm2189, %v4302, %v3378
      %v4339 = vsel %vm2189, %v4303, %v3380
      %v4340 = vsel %vm2189, %v4304, %v3382
      %v4341 = vsel %vm2189, %v4305, %v3384
      %v4342 = vsel %vm2189, %v4306, %v3386
      %v4343 = vsel %vm2189, %v4307, %v3388
      %v4344 = vsel %vm2189, %v4308, %v3390
      %v4345 = vsel %vm2189, %v4309, %v3392
      %v4346 = vsel %vm2189, %v4310, %v3394
      %vm4347 = vcmask 326656
      %v4348 = vsel %vm4347, %v4311, %v3432
      %v4349 = vsel %vm4347, %v4312, %v3434
      %v4350 = vsel %vm4347, %v4313, %v3436
      %v4351 = vsel %vm4347, %v4314, %v3438
      %v4352 = vsel %vm4347, %v4315, %v3440
      %v4353 = vsel %vm4347, %v4316, %v3442
      %v4354 = vsel %vm4347, %v4317, %v3444
      %v4355 = vsel %vm4347, %v4318, %v3446
      %v4356 = vsel %vm4347, %v4319, %v3448
      %v4357 = vsel %vm4347, %v4320, %v3450
      %v4358 = vsel %vm4347, %v4321, %v3452
      %v4359 = vsel %vm4347, %v4322, %v3454
      %v4360 = vsel %vm4347, %v4323, %v3456
      %v4361 = vsel %vm4347, %v4324, %v3458
      %v4362 = vsel %vm4347, %v4325, %v3460
      %v4363 = vsel %vm4347, %v4326, %v3462
      %v4364 = vsel %vm4347, %v4327, %v3464
      %v4365 = vsel %vm4347, %v4328, %v3466
      %v4366 = vsel %vm4347, %v4329, %v3468
      %v4367 = vsel %vm4347, %v4330, %v3470
      %v4368 = vsel %vm4347, %v4331, %v3472
      %v4369 = vsel %vm4347, %v4332, %v3474
      %v4370 = vsel %vm4347, %v4333, %v3476
      %v4371 = vsel %vm4347, %v4334, %v3478
      %v4372 = vsel %vm4347, %v4335, %v3480
      %v4373 = vsel %vm4347, %v4336, %v3482
      %v4374 = vsel %vm4347, %v4337, %v3484
      %v4375 = vsel %vm4347, %v4338, %v3486
      %v4376 = vsel %vm4347, %v4339, %v3488
      %v4377 = vsel %vm4347, %v4340, %v3490
      %v4378 = vsel %vm4347, %v4341, %v3492
      %v4379 = vsel %vm4347, %v4342, %v3494
      %v4380 = vsel %vm4347, %v4343, %v3496
      %v4381 = vsel %vm4347, %v4344, %v3498
      %v4382 = vsel %vm4347, %v4345, %v3500
      %v4383 = vsel %vm4347, %v4346, %v3502
      %vm4384 = vcmask 359424
      %v4385 = vsel %vm4384, %v4348, %v3540
      %v4386 = vsel %vm4384, %v4349, %v3542
      %v4387 = vsel %vm4384, %v4350, %v3544
      %v4388 = vsel %vm4384, %v4351, %v3546
      %v4389 = vsel %vm4384, %v4352, %v3548
      %v4390 = vsel %vm4384, %v4353, %v3550
      %v4391 = vsel %vm4384, %v4354, %v3552
      %v4392 = vsel %vm4384, %v4355, %v3554
      %v4393 = vsel %vm4384, %v4356, %v3556
      %v4394 = vsel %vm4384, %v4357, %v3558
      %v4395 = vsel %vm4384, %v4358, %v3560
      %v4396 = vsel %vm4384, %v4359, %v3562
      %v4397 = vsel %vm4384, %v4360, %v3564
      %v4398 = vsel %vm4384, %v4361, %v3566
      %v4399 = vsel %vm4384, %v4362, %v3568
      %v4400 = vsel %vm4384, %v4363, %v3570
      %v4401 = vsel %vm4384, %v4364, %v3572
      %v4402 = vsel %vm4384, %v4365, %v3574
      %v4403 = vsel %vm4384, %v4366, %v3576
      %v4404 = vsel %vm4384, %v4367, %v3578
      %v4405 = vsel %vm4384, %v4368, %v3580
      %v4406 = vsel %vm4384, %v4369, %v3582
      %v4407 = vsel %vm4384, %v4370, %v3584
      %v4408 = vsel %vm4384, %v4371, %v3586
      %v4409 = vsel %vm4384, %v4372, %v3588
      %v4410 = vsel %vm4384, %v4373, %v3590
      %v4411 = vsel %vm4384, %v4374, %v3592
      %v4412 = vsel %vm4384, %v4375, %v3594
      %v4413 = vsel %vm4384, %v4376, %v3596
      %v4414 = vsel %vm4384, %v4377, %v3598
      %v4415 = vsel %vm4384, %v4378, %v3600
      %v4416 = vsel %vm4384, %v4379, %v3602
      %v4417 = vsel %vm4384, %v4380, %v3604
      %v4418 = vsel %vm4384, %v4381, %v3606
      %v4419 = vsel %vm4384, %v4382, %v3608
      %v4420 = vsel %vm4384, %v4383, %v3610
      %vm4421 = vcmask 392192
      %v4422 = vsel %vm4421, %v4385, %v3648
      %v4423 = vsel %vm4421, %v4386, %v3650
      %v4424 = vsel %vm4421, %v4387, %v3652
      %v4425 = vsel %vm4421, %v4388, %v3654
      %v4426 = vsel %vm4421, %v4389, %v3656
      %v4427 = vsel %vm4421, %v4390, %v3658
      %v4428 = vsel %vm4421, %v4391, %v3660
      %v4429 = vsel %vm4421, %v4392, %v3662
      %v4430 = vsel %vm4421, %v4393, %v3664
      %v4431 = vsel %vm4421, %v4394, %v3666
      %v4432 = vsel %vm4421, %v4395, %v3668
      %v4433 = vsel %vm4421, %v4396, %v3670
      %v4434 = vsel %vm4421, %v4397, %v3672
      %v4435 = vsel %vm4421, %v4398, %v3674
      %v4436 = vsel %vm4421, %v4399, %v3676
      %v4437 = vsel %vm4421, %v4400, %v3678
      %v4438 = vsel %vm4421, %v4401, %v3680
      %v4439 = vsel %vm4421, %v4402, %v3682
      %v4440 = vsel %vm4421, %v4403, %v3684
      %v4441 = vsel %vm4421, %v4404, %v3686
      %v4442 = vsel %vm4421, %v4405, %v3688
      %v4443 = vsel %vm4421, %v4406, %v3690
      %v4444 = vsel %vm4421, %v4407, %v3692
      %v4445 = vsel %vm4421, %v4408, %v3694
      %v4446 = vsel %vm4421, %v4409, %v3696
      %v4447 = vsel %vm4421, %v4410, %v3698
      %v4448 = vsel %vm4421, %v4411, %v3700
      %v4449 = vsel %vm4421, %v4412, %v3702
      %v4450 = vsel %vm4421, %v4413, %v3704
      %v4451 = vsel %vm4421, %v4414, %v3706
      %v4452 = vsel %vm4421, %v4415, %v3708
      %v4453 = vsel %vm4421, %v4416, %v3710
      %v4454 = vsel %vm4421, %v4417, %v3712
      %v4455 = vsel %vm4421, %v4418, %v3714
      %v4456 = vsel %vm4421, %v4419, %v3716
      %v4457 = vsel %vm4421, %v4420, %v3718
      %vm4458 = vcmask 424960
      %v4459 = vsel %vm4458, %v4422, %v3761
      %v4460 = vsel %vm4458, %v4423, %v3763
      %v4461 = vsel %vm4458, %v4424, %v3765
      %v4462 = vsel %vm4458, %v4425, %v3767
      %v4463 = vsel %vm4458, %v4426, %v3769
      %v4464 = vsel %vm4458, %v4427, %v3771
      %v4465 = vsel %vm4458, %v4428, %v3773
      %v4466 = vsel %vm4458, %v4429, %v3775
      %v4467 = vsel %vm4458, %v4430, %v3777
      %v4468 = vsel %vm4458, %v4431, %v3779
      %v4469 = vsel %vm4458, %v4432, %v3781
      %v4470 = vsel %vm4458, %v4433, %v3783
      %v4471 = vsel %vm4458, %v4434, %v3785
      %v4472 = vsel %vm4458, %v4435, %v3787
      %v4473 = vsel %vm4458, %v4436, %v3789
      %v4474 = vsel %vm4458, %v4437, %v3791
      %v4475 = vsel %vm4458, %v4438, %v3793
      %v4476 = vsel %vm4458, %v4439, %v3795
      %v4477 = vsel %vm4458, %v4440, %v3797
      %v4478 = vsel %vm4458, %v4441, %v3799
      %v4479 = vsel %vm4458, %v4442, %v3801
      %v4480 = vsel %vm4458, %v4443, %v3803
      %v4481 = vsel %vm4458, %v4444, %v3805
      %v4482 = vsel %vm4458, %v4445, %v3807
      %v4483 = vsel %vm4458, %v4446, %v3809
      %v4484 = vsel %vm4458, %v4447, %v3811
      %v4485 = vsel %vm4458, %v4448, %v3813
      %v4486 = vsel %vm4458, %v4449, %v3815
      %v4487 = vsel %vm4458, %v4450, %v3817
      %v4488 = vsel %vm4458, %v4451, %v3819
      %v4489 = vsel %vm4458, %v4452, %v3821
      %v4490 = vsel %vm4458, %v4453, %v3823
      %v4491 = vsel %vm4458, %v4454, %v3825
      %v4492 = vsel %vm4458, %v4455, %v3827
      %v4493 = vsel %vm4458, %v4456, %v3829
      %v4494 = vsel %vm4458, %v4457, %v3831
      %vm4495 = vcmask 457728
      %v4496 = vsel %vm4495, %v4459, %v3874
      %v4497 = vsel %vm4495, %v4460, %v3876
      %v4498 = vsel %vm4495, %v4461, %v3878
      %v4499 = vsel %vm4495, %v4462, %v3880
      %v4500 = vsel %vm4495, %v4463, %v3882
      %v4501 = vsel %vm4495, %v4464, %v3884
      %v4502 = vsel %vm4495, %v4465, %v3886
      %v4503 = vsel %vm4495, %v4466, %v3888
      %v4504 = vsel %vm4495, %v4467, %v3890
      %v4505 = vsel %vm4495, %v4468, %v3892
      %v4506 = vsel %vm4495, %v4469, %v3894
      %v4507 = vsel %vm4495, %v4470, %v3896
      %v4508 = vsel %vm4495, %v4471, %v3898
      %v4509 = vsel %vm4495, %v4472, %v3900
      %v4510 = vsel %vm4495, %v4473, %v3902
      %v4511 = vsel %vm4495, %v4474, %v3904
      %v4512 = vsel %vm4495, %v4475, %v3906
      %v4513 = vsel %vm4495, %v4476, %v3908
      %v4514 = vsel %vm4495, %v4477, %v3910
      %v4515 = vsel %vm4495, %v4478, %v3912
      %v4516 = vsel %vm4495, %v4479, %v3914
      %v4517 = vsel %vm4495, %v4480, %v3916
      %v4518 = vsel %vm4495, %v4481, %v3918
      %v4519 = vsel %vm4495, %v4482, %v3920
      %v4520 = vsel %vm4495, %v4483, %v3922
      %v4521 = vsel %vm4495, %v4484, %v3924
      %v4522 = vsel %vm4495, %v4485, %v3926
      %v4523 = vsel %vm4495, %v4486, %v3928
      %v4524 = vsel %vm4495, %v4487, %v3930
      %v4525 = vsel %vm4495, %v4488, %v3932
      %v4526 = vsel %vm4495, %v4489, %v3934
      %v4527 = vsel %vm4495, %v4490, %v3936
      %v4528 = vsel %vm4495, %v4491, %v3938
      %v4529 = vsel %vm4495, %v4492, %v3940
      %v4530 = vsel %vm4495, %v4493, %v3942
      %v4531 = vsel %vm4495, %v4494, %v3944
      %vm4532 = vcmask 490496
      %v4533 = vsel %vm4532, %v4496, %v3982
      %v4534 = vsel %vm4532, %v4497, %v3984
      %v4535 = vsel %vm4532, %v4498, %v3986
      %v4536 = vsel %vm4532, %v4499, %v3988
      %v4537 = vsel %vm4532, %v4500, %v3990
      %v4538 = vsel %vm4532, %v4501, %v3992
      %v4539 = vsel %vm4532, %v4502, %v3994
      %v4540 = vsel %vm4532, %v4503, %v3996
      %v4541 = vsel %vm4532, %v4504, %v3998
      %v4542 = vsel %vm4532, %v4505, %v4000
      %v4543 = vsel %vm4532, %v4506, %v4002
      %v4544 = vsel %vm4532, %v4507, %v4004
      %v4545 = vsel %vm4532, %v4508, %v4006
      %v4546 = vsel %vm4532, %v4509, %v4008
      %v4547 = vsel %vm4532, %v4510, %v4010
      %v4548 = vsel %vm4532, %v4511, %v4012
      %v4549 = vsel %vm4532, %v4512, %v4014
      %v4550 = vsel %vm4532, %v4513, %v4016
      %v4551 = vsel %vm4532, %v4514, %v4018
      %v4552 = vsel %vm4532, %v4515, %v4020
      %v4553 = vsel %vm4532, %v4516, %v4022
      %v4554 = vsel %vm4532, %v4517, %v4024
      %v4555 = vsel %vm4532, %v4518, %v4026
      %v4556 = vsel %vm4532, %v4519, %v4028
      %v4557 = vsel %vm4532, %v4520, %v4030
      %v4558 = vsel %vm4532, %v4521, %v4032
      %v4559 = vsel %vm4532, %v4522, %v4034
      %v4560 = vsel %vm4532, %v4523, %v4036
      %v4561 = vsel %vm4532, %v4524, %v4038
      %v4562 = vsel %vm4532, %v4525, %v4040
      %v4563 = vsel %vm4532, %v4526, %v4042
      %v4564 = vsel %vm4532, %v4527, %v4044
      %v4565 = vsel %vm4532, %v4528, %v4046
      %v4566 = vsel %vm4532, %v4529, %v4048
      %v4567 = vsel %vm4532, %v4530, %v4050
      %v4568 = vsel %vm4532, %v4531, %v4052
      %4569 = vrot.lane.b32.xlu0 %v963, 4
      %v4570 = vpop.permute.xlu0 %4569
      %4571 = vrot.lane.b32.xlu0 %v965, 4
      %v4572 = vpop.permute.xlu0 %4571
      %4573 = vrot.lane.b32.xlu0 %v964, 4
      %v4574 = vpop.permute.xlu0 %4573
      %4575 = vrot.lane.b32.xlu0 %v1300, 4
      %v4576 = vpop.permute.xlu0 %4575
      %4577 = vrot.lane.b32.xlu0 %v1302, 4
      %v4578 = vpop.permute.xlu0 %4577
      %4579 = vrot.lane.b32.xlu0 %v1301, 4
      %v4580 = vpop.permute.xlu0 %4579
      %4587 = vrot.lane.b32.xlu0 %v1076, 8
      %v4588 = vpop.permute.xlu0 %4587
      %4589 = vrot.lane.b32.xlu0 %v1078, 8
      %v4590 = vpop.permute.xlu0 %4589
      %4591 = vrot.lane.b32.xlu0 %v1077, 8
      %v4592 = vpop.permute.xlu0 %4591
      %4593 = vrot.lane.b32.xlu0 %v1413, 8
      %v4594 = vpop.permute.xlu0 %4593
      %4595 = vrot.lane.b32.xlu0 %v1415, 8
      %v4596 = vpop.permute.xlu0 %4595
      %4597 = vrot.lane.b32.xlu0 %v1414, 8
      %v4598 = vpop.permute.xlu0 %4597
      %v4605 = vrot.slane %v470, 3
      %v4606 = vrot.slane %v471, 3
      %v4607 = vsel %vm2543, %v4605, %v4606
      %v4608 = vrot.slane %v472, 3
      %v4609 = vsel %vm2543, %v4606, %v4608
      %4610 = vrot.lane.b32.xlu0 %v3207, 12
      %v4611 = vpop.permute.xlu0 %4610
      %4612 = vrot.lane.b32.xlu0 %v3209, 12
      %v4613 = vpop.permute.xlu0 %4612
      %4614 = vrot.lane.b32.xlu0 %v3208, 12
      %v4615 = vpop.permute.xlu0 %4614
      %4616 = vrot.lane.b32.xlu0 %v3757, 12
      %v4617 = vpop.permute.xlu0 %4616
      %4618 = vrot.lane.b32.xlu0 %v3759, 12
      %v4619 = vpop.permute.xlu0 %4618
      %4620 = vrot.lane.b32.xlu0 %v3758, 12
      %v4621 = vpop.permute.xlu0 %4620
      %4622 = vrot.lane.b32.xlu0 %v4607, 12
      %v4623 = vpop.permute.xlu0 %4622
      %4624 = vrot.lane.b32.xlu0 %v4609, 12
      %v4625 = vpop.permute.xlu0 %4624
      %4626 = vrot.lane.b32.xlu0 %v4608, 12
      %v4627 = vpop.permute.xlu0 %4626
      %vm4640 = vcmask 1040384
      %v4641 = vrot.slane %v440, 7
      %v4642 = vrot.slane %v441, 7
      %v4643 = vsel %vm4640, %v4641, %v4642
      %v4644 = vrot.slane %v442, 7
      %v4645 = vsel %vm4640, %v4642, %v4644
      %v4646 = vrot.slane %v443, 7
      %v4647 = vrot.slane %v444, 7
      %v4648 = vsel %vm4640, %v4646, %v4647
      %v4649 = vrot.slane %v445, 7
      %v4650 = vsel %vm4640, %v4647, %v4649
      %v4651 = vrot.slane %v446, 7
      %v4652 = vrot.slane %v447, 7
      %v4653 = vsel %vm4640, %v4651, %v4652
      %v4654 = vrot.slane %v448, 7
      %v4655 = vsel %vm4640, %v4652, %v4654
      %v4656 = vrot.slane %v449, 7
      %v4657 = vrot.slane %v450, 7
      %v4658 = vsel %vm4640, %v4656, %v4657
      %v4659 = vrot.slane %v451, 7
      %v4660 = vsel %vm4640, %v4657, %v4659
      %v4661 = vrot.slane %v452, 7
      %v4662 = vrot.slane %v453, 7
      %v4663 = vsel %vm4640, %v4661, %v4662
      %v4664 = vrot.slane %v454, 7
      %v4665 = vsel %vm4640, %v4662, %v4664
      %v4666 = vrot.slane %v455, 7
      %v4667 = vrot.slane %v456, 7
      %v4668 = vsel %vm4640, %v4666, %v4667
      %v4669 = vrot.slane %v457, 7
      %v4670 = vsel %vm4640, %v4667, %v4669
      %v4671 = vrot.slane %v458, 7
      %v4672 = vrot.slane %v459, 7
      %v4673 = vsel %vm4640, %v4671, %v4672
      %v4674 = vrot.slane %v460, 7
      %v4675 = vsel %vm4640, %v4672, %v4674
      %v4676 = vrot.slane %v461, 7
      %v4677 = vrot.slane %v462, 7
      %v4678 = vsel %vm4640, %v4676, %v4677
      %v4679 = vrot.slane %v463, 7
      %v4680 = vsel %vm4640, %v4677, %v4679
      %v4681 = vrot.slane %v464, 7
      %v4682 = vrot.slane %v465, 7
      %v4683 = vsel %vm4640, %v4681, %v4682
      %v4684 = vrot.slane %v466, 7
      %v4685 = vsel %vm4640, %v4682, %v4684
      %v4686 = vrot.slane %v467, 7
      %v4687 = vrot.slane %v468, 7
      %v4688 = vsel %vm4640, %v4686, %v4687
      %v4689 = vrot.slane %v469, 7
      %v4690 = vsel %vm4640, %v4687, %v4689
      %v4691 = vrot.slane %v470, 7
      %v4692 = vrot.slane %v471, 7
      %v4693 = vsel %vm4640, %v4691, %v4692
      %v4694 = vrot.slane %v472, 7
      %v4695 = vsel %vm4640, %v4692, %v4694
      %v4696 = vrot.slane %v473, 7
      %v4697 = vrot.slane %v474, 7
      %v4698 = vsel %vm4640, %v4696, %v4697
      %v4699 = vrot.slane %v475, 7
      %v4700 = vsel %vm4640, %v4697, %v4699
      %4701 = vrot.lane.b32.xlu0 %v4641, 16
      %v4702 = vpop.permute.xlu0 %4701
      %4703 = vrot.lane.b32.xlu0 %v4643, 16
      %v4704 = vpop.permute.xlu0 %4703
      %4705 = vrot.lane.b32.xlu0 %v4645, 16
      %v4706 = vpop.permute.xlu0 %4705
      %4707 = vrot.lane.b32.xlu0 %v4646, 16
      %v4708 = vpop.permute.xlu0 %4707
      %4709 = vrot.lane.b32.xlu0 %v4648, 16
      %v4710 = vpop.permute.xlu0 %4709
      %4711 = vrot.lane.b32.xlu0 %v4650, 16
      %v4712 = vpop.permute.xlu0 %4711
      %4713 = vrot.lane.b32.xlu0 %v4651, 16
      %v4714 = vpop.permute.xlu0 %4713
      %4715 = vrot.lane.b32.xlu0 %v4653, 16
      %v4716 = vpop.permute.xlu0 %4715
      %4717 = vrot.lane.b32.xlu0 %v4655, 16
      %v4718 = vpop.permute.xlu0 %4717
      %4719 = vrot.lane.b32.xlu0 %v4656, 16
      %v4720 = vpop.permute.xlu0 %4719
      %4721 = vrot.lane.b32.xlu0 %v4658, 16
      %v4722 = vpop.permute.xlu0 %4721
      %4723 = vrot.lane.b32.xlu0 %v4660, 16
      %v4724 = vpop.permute.xlu0 %4723
      %4725 = vrot.lane.b32.xlu0 %v4661, 16
      %v4726 = vpop.permute.xlu0 %4725
      %4727 = vrot.lane.b32.xlu0 %v4663, 16
      %v4728 = vpop.permute.xlu0 %4727
      %4729 = vrot.lane.b32.xlu0 %v4665, 16
      %v4730 = vpop.permute.xlu0 %4729
      %4731 = vrot.lane.b32.xlu0 %v4666, 16
      %v4732 = vpop.permute.xlu0 %4731
      %4733 = vrot.lane.b32.xlu0 %v4668, 16
      %v4734 = vpop.permute.xlu0 %4733
      %4735 = vrot.lane.b32.xlu0 %v4670, 16
      %v4736 = vpop.permute.xlu0 %4735
      %4737 = vrot.lane.b32.xlu0 %v4671, 16
      %v4738 = vpop.permute.xlu0 %4737
      %4739 = vrot.lane.b32.xlu0 %v4673, 16
      %v4740 = vpop.permute.xlu0 %4739
      %4741 = vrot.lane.b32.xlu0 %v4675, 16
      %v4742 = vpop.permute.xlu0 %4741
      %4743 = vrot.lane.b32.xlu0 %v4676, 16
      %v4744 = vpop.permute.xlu0 %4743
      %4745 = vrot.lane.b32.xlu0 %v4678, 16
      %v4746 = vpop.permute.xlu0 %4745
      %4747 = vrot.lane.b32.xlu0 %v4680, 16
      %v4748 = vpop.permute.xlu0 %4747
      %4749 = vrot.lane.b32.xlu0 %v4681, 16
      %v4750 = vpop.permute.xlu0 %4749
      %4751 = vrot.lane.b32.xlu0 %v4683, 16
      %v4752 = vpop.permute.xlu0 %4751
      %4753 = vrot.lane.b32.xlu0 %v4685, 16
      %v4754 = vpop.permute.xlu0 %4753
      %4755 = vrot.lane.b32.xlu0 %v4686, 16
      %v4756 = vpop.permute.xlu0 %4755
      %4757 = vrot.lane.b32.xlu0 %v4688, 16
      %v4758 = vpop.permute.xlu0 %4757
      %4759 = vrot.lane.b32.xlu0 %v4690, 16
      %v4760 = vpop.permute.xlu0 %4759
      %4761 = vrot.lane.b32.xlu0 %v4691, 16
      %v4762 = vpop.permute.xlu0 %4761
      %4763 = vrot.lane.b32.xlu0 %v4693, 16
      %v4764 = vpop.permute.xlu0 %4763
      %4765 = vrot.lane.b32.xlu0 %v4695, 16
      %v4766 = vpop.permute.xlu0 %4765
      %4767 = vrot.lane.b32.xlu0 %v4696, 16
      %v4768 = vpop.permute.xlu0 %4767
      %4769 = vrot.lane.b32.xlu0 %v4698, 16
      %v4770 = vpop.permute.xlu0 %4769
      %4771 = vrot.lane.b32.xlu0 %v4700, 16
      %v4772 = vpop.permute.xlu0 %4771
      %4809 = vrot.lane.b32.xlu0 %v467, 20
      %v4810 = vpop.permute.xlu0 %4809
      %4811 = vrot.lane.b32.xlu0 %v468, 20
      %v4812 = vpop.permute.xlu0 %4811
      %4813 = vrot.lane.b32.xlu0 %v469, 20
      %v4814 = vpop.permute.xlu0 %4813
      %4815 = vrot.lane.b32.xlu0 %v470, 20
      %v4816 = vpop.permute.xlu0 %4815
      %4817 = vrot.lane.b32.xlu0 %v471, 20
      %v4818 = vpop.permute.xlu0 %4817
      %4819 = vrot.lane.b32.xlu0 %v472, 20
      %v4820 = vpop.permute.xlu0 %4819
      %4821 = vrot.lane.b32.xlu0 %v473, 20
      %v4822 = vpop.permute.xlu0 %4821
      %4823 = vrot.lane.b32.xlu0 %v474, 20
      %v4824 = vpop.permute.xlu0 %4823
      %4825 = vrot.lane.b32.xlu0 %v475, 20
      %v4826 = vpop.permute.xlu0 %4825
      %v4836 = vrot.slane %v473, 1
      %v4837 = vrot.slane %v474, 1
      %v4838 = vsel %vm512, %v4836, %v4837
      %v4839 = vrot.slane %v475, 1
      %v4840 = vsel %vm512, %v4837, %v4839
      %4841 = vrot.lane.b32.xlu0 %v963, 24
      %v4842 = vpop.permute.xlu0 %4841
      %4843 = vrot.lane.b32.xlu0 %v965, 24
      %v4844 = vpop.permute.xlu0 %4843
      %4845 = vrot.lane.b32.xlu0 %v964, 24
      %v4846 = vpop.permute.xlu0 %4845
      %4847 = vrot.lane.b32.xlu0 %v1300, 24
      %v4848 = vpop.permute.xlu0 %4847
      %4849 = vrot.lane.b32.xlu0 %v1302, 24
      %v4850 = vpop.permute.xlu0 %4849
      %4851 = vrot.lane.b32.xlu0 %v1301, 24
      %v4852 = vpop.permute.xlu0 %4851
      %4853 = vrot.lane.b32.xlu0 %v4838, 24
      %v4854 = vpop.permute.xlu0 %4853
      %4855 = vrot.lane.b32.xlu0 %v4840, 24
      %v4856 = vpop.permute.xlu0 %4855
      %4857 = vrot.lane.b32.xlu0 %v4839, 24
      %v4858 = vpop.permute.xlu0 %4857
      %v4868 = vrot.slane %v473, 2
      %v4869 = vrot.slane %v474, 2
      %v4870 = vsel %vm681, %v4868, %v4869
      %v4871 = vrot.slane %v475, 2
      %v4872 = vsel %vm681, %v4869, %v4871
      %4873 = vrot.lane.b32.xlu0 %v1076, 28
      %v4874 = vpop.permute.xlu0 %4873
      %4875 = vrot.lane.b32.xlu0 %v1078, 28
      %v4876 = vpop.permute.xlu0 %4875
      %4877 = vrot.lane.b32.xlu0 %v1077, 28
      %v4878 = vpop.permute.xlu0 %4877
      %4879 = vrot.lane.b32.xlu0 %v1413, 28
      %v4880 = vpop.permute.xlu0 %4879
      %4881 = vrot.lane.b32.xlu0 %v1415, 28
      %v4882 = vpop.permute.xlu0 %4881
      %4883 = vrot.lane.b32.xlu0 %v1414, 28
      %v4884 = vpop.permute.xlu0 %4883
      %4885 = vrot.lane.b32.xlu0 %v4870, 28
      %v4886 = vpop.permute.xlu0 %4885
      %4887 = vrot.lane.b32.xlu0 %v4872, 28
      %v4888 = vpop.permute.xlu0 %4887
      %4889 = vrot.lane.b32.xlu0 %v4871, 28
      %v4890 = vpop.permute.xlu0 %4889
      %v4900 = vrot.slane %v473, 3
      %v4901 = vrot.slane %v474, 3
      %v4902 = vsel %vm2543, %v4900, %v4901
      %v4903 = vrot.slane %v475, 3
      %v4904 = vsel %vm2543, %v4901, %v4903
      %4905 = vrot.lane.b32.xlu0 %v3757, 32
      %v4906 = vpop.permute.xlu0 %4905
      %4907 = vrot.lane.b32.xlu0 %v3759, 32
      %v4908 = vpop.permute.xlu0 %4907
      %4909 = vrot.lane.b32.xlu0 %v3758, 32
      %v4910 = vpop.permute.xlu0 %4909
      %4911 = vrot.lane.b32.xlu0 %v4607, 32
      %v4912 = vpop.permute.xlu0 %4911
      %4913 = vrot.lane.b32.xlu0 %v4609, 32
      %v4914 = vpop.permute.xlu0 %4913
      %4915 = vrot.lane.b32.xlu0 %v4608, 32
      %v4916 = vpop.permute.xlu0 %4915
      %4917 = vrot.lane.b32.xlu0 %v4902, 32
      %v4918 = vpop.permute.xlu0 %4917
      %4919 = vrot.lane.b32.xlu0 %v4904, 32
      %v4920 = vpop.permute.xlu0 %4919
      %4921 = vrot.lane.b32.xlu0 %v4903, 32
      %v4922 = vpop.permute.xlu0 %4921
      %v4932 = vsel %vm1524, %v467, %v4570
      %v4933 = vsel %vm1524, %v468, %v4572
      %v4934 = vsel %vm1524, %v469, %v4574
      %v4935 = vsel %vm1524, %v470, %v4576
      %v4936 = vsel %vm1524, %v471, %v4578
      %v4937 = vsel %vm1524, %v472, %v4580
      %v4938 = vsel %vm1561, %v4932, %v4588
      %v4939 = vsel %vm1561, %v4933, %v4590
      %v4940 = vsel %vm1561, %v4934, %v4592
      %v4941 = vsel %vm1561, %v4935, %v4594
      %v4942 = vsel %vm1561, %v4936, %v4596
      %v4943 = vsel %vm1561, %v4937, %v4598
      %v4944 = vsel %vm1598, %v1595, %v4611
      %v4945 = vsel %vm1598, %v1596, %v4613
      %v4946 = vsel %vm1598, %v1597, %v4615
      %v4947 = vsel %vm1598, %v4938, %v4617
      %v4948 = vsel %vm1598, %v4939, %v4619
      %v4949 = vsel %vm1598, %v4940, %v4621
      %v4950 = vsel %vm1598, %v4941, %v4623
      %v4951 = vsel %vm1598, %v4942, %v4625
      %v4952 = vsel %vm1598, %v4943, %v4627
      %v4953 = vsel %vm1635, %v4104, %v4702
      %v4954 = vsel %vm1635, %v4105, %v4704
      %v4955 = vsel %vm1635, %v4106, %v4706
      %v4956 = vsel %vm1635, %v4107, %v4708
      %v4957 = vsel %vm1635, %v4108, %v4710
      %v4958 = vsel %vm1635, %v4109, %v4712
      %v4959 = vsel %vm1635, %v4110, %v4714
      %v4960 = vsel %vm1635, %v4111, %v4716
      %v4961 = vsel %vm1635, %v4112, %v4718
      %v4962 = vsel %vm1635, %v4113, %v4720
      %v4963 = vsel %vm1635, %v4114, %v4722
      %v4964 = vsel %vm1635, %v4115, %v4724
      %v4965 = vsel %vm1635, %v4116, %v4726
      %v4966 = vsel %vm1635, %v4117, %v4728
      %v4967 = vsel %vm1635, %v4118, %v4730
      %v4968 = vsel %vm1635, %v4119, %v4732
      %v4969 = vsel %vm1635, %v4120, %v4734
      %v4970 = vsel %vm1635, %v4121, %v4736
      %v4971 = vsel %vm1635, %v4122, %v4738
      %v4972 = vsel %vm1635, %v4123, %v4740
      %v4973 = vsel %vm1635, %v4124, %v4742
      %v4974 = vsel %vm1635, %v4125, %v4744
      %v4975 = vsel %vm1635, %v4126, %v4746
      %v4976 = vsel %vm1635, %v4127, %v4748
      %v4977 = vsel %vm1635, %v4128, %v4750
      %v4978 = vsel %vm1635, %v4129, %v4752
      %v4979 = vsel %vm1635, %v4130, %v4754
      %v4980 = vsel %vm1635, %v4944, %v4756
      %v4981 = vsel %vm1635, %v4945, %v4758
      %v4982 = vsel %vm1635, %v4946, %v4760
      %v4983 = vsel %vm1635, %v4947, %v4762
      %v4984 = vsel %vm1635, %v4948, %v4764
      %v4985 = vsel %vm1635, %v4949, %v4766
      %v4986 = vsel %vm1635, %v4950, %v4768
      %v4987 = vsel %vm1635, %v4951, %v4770
      %v4988 = vsel %vm1635, %v4952, %v4772
      %v4989 = vsel %vm1672, %v4953, %v2900
      %v4990 = vsel %vm1672, %v4954, %v2902
      %v4991 = vsel %vm1672, %v4955, %v2904
      %v4992 = vsel %vm1672, %v4956, %v2906
      %v4993 = vsel %vm1672, %v4957, %v2908
      %v4994 = vsel %vm1672, %v4958, %v2910
      %v4995 = vsel %vm1672, %v4959, %v2912
      %v4996 = vsel %vm1672, %v4960, %v2914
      %v4997 = vsel %vm1672, %v4961, %v2916
      %v4998 = vsel %vm1672, %v4962, %v2918
      %v4999 = vsel %vm1672, %v4963, %v2920
      %v5000 = vsel %vm1672, %v4964, %v2922
      %v5001 = vsel %vm1672, %v4965, %v2924
      %v5002 = vsel %vm1672, %v4966, %v2926
      %v5003 = vsel %vm1672, %v4967, %v2928
      %v5004 = vsel %vm1672, %v4968, %v2930
      %v5005 = vsel %vm1672, %v4969, %v2932
      %v5006 = vsel %vm1672, %v4970, %v2934
      %v5007 = vsel %vm1672, %v4971, %v2936
      %v5008 = vsel %vm1672, %v4972, %v2938
      %v5009 = vsel %vm1672, %v4973, %v2940
      %v5010 = vsel %vm1672, %v4974, %v2942
      %v5011 = vsel %vm1672, %v4975, %v2944
      %v5012 = vsel %vm1672, %v4976, %v2946
      %v5013 = vsel %vm1672, %v4977, %v2948
      %v5014 = vsel %vm1672, %v4978, %v2950
      %v5015 = vsel %vm1672, %v4979, %v2952
      %v5016 = vsel %vm1672, %v4980, %v4810
      %v5017 = vsel %vm1672, %v4981, %v4812
      %v5018 = vsel %vm1672, %v4982, %v4814
      %v5019 = vsel %vm1672, %v4983, %v4816
      %v5020 = vsel %vm1672, %v4984, %v4818
      %v5021 = vsel %vm1672, %v4985, %v4820
      %v5022 = vsel %vm1672, %v4986, %v4822
      %v5023 = vsel %vm1672, %v4987, %v4824
      %v5024 = vsel %vm1672, %v4988, %v4826
      %v5025 = vsel %vm1709, %v4989, %v3008
      %v5026 = vsel %vm1709, %v4990, %v3010
      %v5027 = vsel %vm1709, %v4991, %v3012
      %v5028 = vsel %vm1709, %v4992, %v3014
      %v5029 = vsel %vm1709, %v4993, %v3016
      %v5030 = vsel %vm1709, %v4994, %v3018
      %v5031 = vsel %vm1709, %v4995, %v3020
      %v5032 = vsel %vm1709, %v4996, %v3022
      %v5033 = vsel %vm1709, %v4997, %v3024
      %v5034 = vsel %vm1709, %v4998, %v3026
      %v5035 = vsel %vm1709, %v4999, %v3028
      %v5036 = vsel %vm1709, %v5000, %v3030
      %v5037 = vsel %vm1709, %v5001, %v3032
      %v5038 = vsel %vm1709, %v5002, %v3034
      %v5039 = vsel %vm1709, %v5003, %v3036
      %v5040 = vsel %vm1709, %v5004, %v3038
      %v5041 = vsel %vm1709, %v5005, %v3040
      %v5042 = vsel %vm1709, %v5006, %v3042
      %v5043 = vsel %vm1709, %v5007, %v3044
      %v5044 = vsel %vm1709, %v5008, %v3046
      %v5045 = vsel %vm1709, %v5009, %v3048
      %v5046 = vsel %vm1709, %v5010, %v3050
      %v5047 = vsel %vm1709, %v5011, %v3052
      %v5048 = vsel %vm1709, %v5012, %v3054
      %v5049 = vsel %vm1709, %v5013, %v3056
      %v5050 = vsel %vm1709, %v5014, %v3058
      %v5051 = vsel %vm1709, %v5015, %v3060
      %v5052 = vsel %vm1709, %v5016, %v4842
      %v5053 = vsel %vm1709, %v5017, %v4844
      %v5054 = vsel %vm1709, %v5018, %v4846
      %v5055 = vsel %vm1709, %v5019, %v4848
      %v5056 = vsel %vm1709, %v5020, %v4850
      %v5057 = vsel %vm1709, %v5021, %v4852
      %v5058 = vsel %vm1709, %v5022, %v4854
      %v5059 = vsel %vm1709, %v5023, %v4856
      %v5060 = vsel %vm1709, %v5024, %v4858
      %v5061 = vsel %vm1746, %v5025, %v3116
      %v5062 = vsel %vm1746, %v5026, %v3118
      %v5063 = vsel %vm1746, %v5027, %v3120
      %v5064 = vsel %vm1746, %v5028, %v3122
      %v5065 = vsel %vm1746, %v5029, %v3124
      %v5066 = vsel %vm1746, %v5030, %v3126
      %v5067 = vsel %vm1746, %v5031, %v3128
      %v5068 = vsel %vm1746, %v5032, %v3130
      %v5069 = vsel %vm1746, %v5033, %v3132
      %v5070 = vsel %vm1746, %v5034, %v3134
      %v5071 = vsel %vm1746, %v5035, %v3136
      %v5072 = vsel %vm1746, %v5036, %v3138
      %v5073 = vsel %vm1746, %v5037, %v3140
      %v5074 = vsel %vm1746, %v5038, %v3142
      %v5075 = vsel %vm1746, %v5039, %v3144
      %v5076 = vsel %vm1746, %v5040, %v3146
      %v5077 = vsel %vm1746, %v5041, %v3148
      %v5078 = vsel %vm1746, %v5042, %v3150
      %v5079 = vsel %vm1746, %v5043, %v3152
      %v5080 = vsel %vm1746, %v5044, %v3154
      %v5081 = vsel %vm1746, %v5045, %v3156
      %v5082 = vsel %vm1746, %v5046, %v3158
      %v5083 = vsel %vm1746, %v5047, %v3160
      %v5084 = vsel %vm1746, %v5048, %v3162
      %v5085 = vsel %vm1746, %v5049, %v3164
      %v5086 = vsel %vm1746, %v5050, %v3166
      %v5087 = vsel %vm1746, %v5051, %v3168
      %v5088 = vsel %vm1746, %v5052, %v4874
      %v5089 = vsel %vm1746, %v5053, %v4876
      %v5090 = vsel %vm1746, %v5054, %v4878
      %v5091 = vsel %vm1746, %v5055, %v4880
      %v5092 = vsel %vm1746, %v5056, %v4882
      %v5093 = vsel %vm1746, %v5057, %v4884
      %v5094 = vsel %vm1746, %v5058, %v4886
      %v5095 = vsel %vm1746, %v5059, %v4888
      %v5096 = vsel %vm1746, %v5060, %v4890
      %v5097 = vsel %vm1783, %v5061, %v3229
      %v5098 = vsel %vm1783, %v5062, %v3231
      %v5099 = vsel %vm1783, %v5063, %v3233
      %v5100 = vsel %vm1783, %v5064, %v3235
      %v5101 = vsel %vm1783, %v5065, %v3237
      %v5102 = vsel %vm1783, %v5066, %v3239
      %v5103 = vsel %vm1783, %v5067, %v3241
      %v5104 = vsel %vm1783, %v5068, %v3243
      %v5105 = vsel %vm1783, %v5069, %v3245
      %v5106 = vsel %vm1783, %v5070, %v3247
      %v5107 = vsel %vm1783, %v5071, %v3249
      %v5108 = vsel %vm1783, %v5072, %v3251
      %v5109 = vsel %vm1783, %v5073, %v3253
      %v5110 = vsel %vm1783, %v5074, %v3255
      %v5111 = vsel %vm1783, %v5075, %v3257
      %v5112 = vsel %vm1783, %v5076, %v3259
      %v5113 = vsel %vm1783, %v5077, %v3261
      %v5114 = vsel %vm1783, %v5078, %v3263
      %v5115 = vsel %vm1783, %v5079, %v3265
      %v5116 = vsel %vm1783, %v5080, %v3267
      %v5117 = vsel %vm1783, %v5081, %v3269
      %v5118 = vsel %vm1783, %v5082, %v3271
      %v5119 = vsel %vm1783, %v5083, %v3273
      %v5120 = vsel %vm1783, %v5084, %v3275
      %v5121 = vsel %vm1783, %v5085, %v3277
      %v5122 = vsel %vm1783, %v5086, %v3279
      %v5123 = vsel %vm1783, %v5087, %v3281
      %v5124 = vsel %vm1783, %v5088, %v4906
      %v5125 = vsel %vm1783, %v5089, %v4908
      %v5126 = vsel %vm1783, %v5090, %v4910
      %v5127 = vsel %vm1783, %v5091, %v4912
      %v5128 = vsel %vm1783, %v5092, %v4914
      %v5129 = vsel %vm1783, %v5093, %v4916
      %v5130 = vsel %vm1783, %v5094, %v4918
      %v5131 = vsel %vm1783, %v5095, %v4920
      %v5132 = vsel %vm1783, %v5096, %v4922
      %v5169 = vrot.slane %v5097, 1
      %v5170 = vrot.slane %v5098, 1
      %v5171 = vsel %vm512, %v5169, %v5170
      %v5172 = vrot.slane %v5099, 1
      %v5173 = vsel %vm512, %v5170, %v5172
      %v5174 = vrot.slane %v5100, 1
      %v5175 = vrot.slane %v5101, 1
      %v5176 = vsel %vm512, %v5174, %v5175
      %v5177 = vrot.slane %v5102, 1
      %v5178 = vsel %vm512, %v5175, %v5177
      %v5179 = vrot.slane %v5103, 1
      %v5180 = vrot.slane %v5104, 1
      %v5181 = vsel %vm512, %v5179, %v5180
      %v5182 = vrot.slane %v5105, 1
      %v5183 = vsel %vm512, %v5180, %v5182
      %v5184 = vrot.slane %v5106, 1
      %v5185 = vrot.slane %v5107, 1
      %v5186 = vsel %vm512, %v5184, %v5185
      %v5187 = vrot.slane %v5108, 1
      %v5188 = vsel %vm512, %v5185, %v5187
      %v5189 = vrot.slane %v5109, 1
      %v5190 = vrot.slane %v5110, 1
      %v5191 = vsel %vm512, %v5189, %v5190
      %v5192 = vrot.slane %v5111, 1
      %v5193 = vsel %vm512, %v5190, %v5192
      %v5194 = vrot.slane %v5112, 1
      %v5195 = vrot.slane %v5113, 1
      %v5196 = vsel %vm512, %v5194, %v5195
      %v5197 = vrot.slane %v5114, 1
      %v5198 = vsel %vm512, %v5195, %v5197
      %v5199 = vrot.slane %v5115, 1
      %v5200 = vrot.slane %v5116, 1
      %v5201 = vsel %vm512, %v5199, %v5200
      %v5202 = vrot.slane %v5117, 1
      %v5203 = vsel %vm512, %v5200, %v5202
      %v5204 = vrot.slane %v5118, 1
      %v5205 = vrot.slane %v5119, 1
      %v5206 = vsel %vm512, %v5204, %v5205
      %v5207 = vrot.slane %v5120, 1
      %v5208 = vsel %vm512, %v5205, %v5207
      %v5209 = vrot.slane %v5121, 1
      %v5210 = vrot.slane %v5122, 1
      %v5211 = vsel %vm512, %v5209, %v5210
      %v5212 = vrot.slane %v5123, 1
      %v5213 = vsel %vm512, %v5210, %v5212
      %v5214 = vrot.slane %v5124, 1
      %v5215 = vrot.slane %v5125, 1
      %v5216 = vsel %vm512, %v5214, %v5215
      %v5217 = vrot.slane %v5126, 1
      %v5218 = vsel %vm512, %v5215, %v5217
      %v5219 = vrot.slane %v5127, 1
      %v5220 = vrot.slane %v5128, 1
      %v5221 = vsel %vm512, %v5219, %v5220
      %v5222 = vrot.slane %v5129, 1
      %v5223 = vsel %vm512, %v5220, %v5222
      %v5224 = vrot.slane %v5130, 1
      %v5225 = vrot.slane %v5131, 1
      %v5226 = vsel %vm512, %v5224, %v5225
      %v5227 = vrot.slane %v5132, 1
      %v5228 = vsel %vm512, %v5225, %v5227
      %5229 = vrot.lane.b32.xlu0 %v5171, 64
      %v5230 = vpop.permute.xlu0 %5229
      %5231 = vrot.lane.b32.xlu0 %v5173, 64
      %v5232 = vpop.permute.xlu0 %5231
      %5233 = vrot.lane.b32.xlu0 %v5172, 64
      %v5234 = vpop.permute.xlu0 %5233
      %5235 = vrot.lane.b32.xlu0 %v5176, 64
      %v5236 = vpop.permute.xlu0 %5235
      %5237 = vrot.lane.b32.xlu0 %v5178, 64
      %v5238 = vpop.permute.xlu0 %5237
      %5239 = vrot.lane.b32.xlu0 %v5177, 64
      %v5240 = vpop.permute.xlu0 %5239
      %5241 = vrot.lane.b32.xlu0 %v5181, 64
      %v5242 = vpop.permute.xlu0 %5241
      %5243 = vrot.lane.b32.xlu0 %v5183, 64
      %v5244 = vpop.permute.xlu0 %5243
      %5245 = vrot.lane.b32.xlu0 %v5182, 64
      %v5246 = vpop.permute.xlu0 %5245
      %5247 = vrot.lane.b32.xlu0 %v5186, 64
      %v5248 = vpop.permute.xlu0 %5247
      %5249 = vrot.lane.b32.xlu0 %v5188, 64
      %v5250 = vpop.permute.xlu0 %5249
      %5251 = vrot.lane.b32.xlu0 %v5187, 64
      %v5252 = vpop.permute.xlu0 %5251
      %5253 = vrot.lane.b32.xlu0 %v5191, 64
      %v5254 = vpop.permute.xlu0 %5253
      %5255 = vrot.lane.b32.xlu0 %v5193, 64
      %v5256 = vpop.permute.xlu0 %5255
      %5257 = vrot.lane.b32.xlu0 %v5192, 64
      %v5258 = vpop.permute.xlu0 %5257
      %5259 = vrot.lane.b32.xlu0 %v5196, 64
      %v5260 = vpop.permute.xlu0 %5259
      %5261 = vrot.lane.b32.xlu0 %v5198, 64
      %v5262 = vpop.permute.xlu0 %5261
      %5263 = vrot.lane.b32.xlu0 %v5197, 64
      %v5264 = vpop.permute.xlu0 %5263
      %5265 = vrot.lane.b32.xlu0 %v5201, 64
      %v5266 = vpop.permute.xlu0 %5265
      %5267 = vrot.lane.b32.xlu0 %v5203, 64
      %v5268 = vpop.permute.xlu0 %5267
      %5269 = vrot.lane.b32.xlu0 %v5202, 64
      %v5270 = vpop.permute.xlu0 %5269
      %5271 = vrot.lane.b32.xlu0 %v5206, 64
      %v5272 = vpop.permute.xlu0 %5271
      %5273 = vrot.lane.b32.xlu0 %v5208, 64
      %v5274 = vpop.permute.xlu0 %5273
      %5275 = vrot.lane.b32.xlu0 %v5207, 64
      %v5276 = vpop.permute.xlu0 %5275
      %5277 = vrot.lane.b32.xlu0 %v5211, 64
      %v5278 = vpop.permute.xlu0 %5277
      %5279 = vrot.lane.b32.xlu0 %v5213, 64
      %v5280 = vpop.permute.xlu0 %5279
      %5281 = vrot.lane.b32.xlu0 %v5212, 64
      %v5282 = vpop.permute.xlu0 %5281
      %5283 = vrot.lane.b32.xlu0 %v5216, 64
      %v5284 = vpop.permute.xlu0 %5283
      %5285 = vrot.lane.b32.xlu0 %v5218, 64
      %v5286 = vpop.permute.xlu0 %5285
      %5287 = vrot.lane.b32.xlu0 %v5217, 64
      %v5288 = vpop.permute.xlu0 %5287
      %5289 = vrot.lane.b32.xlu0 %v5221, 64
      %v5290 = vpop.permute.xlu0 %5289
      %5291 = vrot.lane.b32.xlu0 %v5223, 64
      %v5292 = vpop.permute.xlu0 %5291
      %5293 = vrot.lane.b32.xlu0 %v5222, 64
      %v5294 = vpop.permute.xlu0 %5293
      %5295 = vrot.lane.b32.xlu0 %v5226, 64
      %v5296 = vpop.permute.xlu0 %5295
      %5297 = vrot.lane.b32.xlu0 %v5228, 64
      %v5298 = vpop.permute.xlu0 %5297
      %5299 = vrot.lane.b32.xlu0 %v5227, 64
      %v5300 = vpop.permute.xlu0 %5299
      %vm5337 = vcmask 523264
      %v5338 = vsel %vm5337, %v4533, %v5230
      %v5339 = vsel %vm5337, %v4534, %v5232
      %v5340 = vsel %vm5337, %v4535, %v5234
      %v5341 = vsel %vm5337, %v4536, %v5236
      %v5342 = vsel %vm5337, %v4537, %v5238
      %v5343 = vsel %vm5337, %v4538, %v5240
      %v5344 = vsel %vm5337, %v4539, %v5242
      %v5345 = vsel %vm5337, %v4540, %v5244
      %v5346 = vsel %vm5337, %v4541, %v5246
      %v5347 = vsel %vm5337, %v4542, %v5248
      %v5348 = vsel %vm5337, %v4543, %v5250
      %v5349 = vsel %vm5337, %v4544, %v5252
      %v5350 = vsel %vm5337, %v4545, %v5254
      %v5351 = vsel %vm5337, %v4546, %v5256
      %v5352 = vsel %vm5337, %v4547, %v5258
      %v5353 = vsel %vm5337, %v4548, %v5260
      %v5354 = vsel %vm5337, %v4549, %v5262
      %v5355 = vsel %vm5337, %v4550, %v5264
      %v5356 = vsel %vm5337, %v4551, %v5266
      %v5357 = vsel %vm5337, %v4552, %v5268
      %v5358 = vsel %vm5337, %v4553, %v5270
      %v5359 = vsel %vm5337, %v4554, %v5272
      %v5360 = vsel %vm5337, %v4555, %v5274
      %v5361 = vsel %vm5337, %v4556, %v5276
      %v5362 = vsel %vm5337, %v4557, %v5278
      %v5363 = vsel %vm5337, %v4558, %v5280
      %v5364 = vsel %vm5337, %v4559, %v5282
      %v5365 = vsel %vm5337, %v4560, %v5284
      %v5366 = vsel %vm5337, %v4561, %v5286
      %v5367 = vsel %vm5337, %v4562, %v5288
      %v5368 = vsel %vm5337, %v4563, %v5290
      %v5369 = vsel %vm5337, %v4564, %v5292
      %v5370 = vsel %vm5337, %v4565, %v5294
      %v5371 = vsel %vm5337, %v4566, %v5296
      %v5372 = vsel %vm5337, %v4567, %v5298
      %v5373 = vsel %vm5337, %v4568, %v5300
      %v5410 = vcombine.high %v5338, %v5338
      %v5411 = vcombine.high %v5339, %v5339
      %v5412 = vcombine.high %v5341, %v5341
      %v5413 = vcombine.high %v5342, %v5342
      %v5414 = vcombine.high %v5344, %v5344
      %v5415 = vcombine.high %v5345, %v5345
      %v5416 = vcombine.high %v5347, %v5347
      %v5417 = vcombine.high %v5348, %v5348
      %v5418 = vcombine.high %v5350, %v5350
      %v5419 = vcombine.high %v5351, %v5351
      %v5420 = vcombine.high %v5353, %v5353
      %v5421 = vcombine.high %v5354, %v5354
      %v5422 = vcombine.high %v5356, %v5356
      %v5423 = vcombine.high %v5357, %v5357
      %v5424 = vcombine.high %v5359, %v5359
      %v5425 = vcombine.high %v5360, %v5360
      %v5426 = vcombine.high %v5362, %v5362
      %v5427 = vcombine.high %v5363, %v5363
      %v5428 = vcombine.high %v5365, %v5365
      %v5429 = vcombine.high %v5366, %v5366
      %v5430 = vcombine.high %v5368, %v5368
      %v5431 = vcombine.high %v5369, %v5369
      %v5432 = vcombine.high %v5371, %v5371
      %v5433 = vcombine.high %v5372, %v5372
      %v5434 = vcombine.low %v5338, %v5410
      %v5435 = vcombine.low %v5339, %v5411
      %v5436 = vcombine.low %v5340, %v5341
      %v5437 = vcombine.low %v5412, %v5342
      %v5438 = vcombine.low %v5413, %v5343
      %v5439 = vcombine.low %v5344, %v5414
      %v5440 = vcombine.low %v5345, %v5415
      %v5441 = vcombine.low %v5346, %v5347
      %v5442 = vcombine.low %v5416, %v5348
      %v5443 = vcombine.low %v5417, %v5349
      %v5444 = vcombine.low %v5350, %v5418
      %v5445 = vcombine.low %v5351, %v5419
      %v5446 = vcombine.low %v5352, %v5353
      %v5447 = vcombine.low %v5420, %v5354
      %v5448 = vcombine.low %v5421, %v5355
      %v5449 = vcombine.low %v5356, %v5422
      %v5450 = vcombine.low %v5357, %v5423
      %v5451 = vcombine.low %v5358, %v5359
      %v5452 = vcombine.low %v5424, %v5360
      %v5453 = vcombine.low %v5425, %v5361
      %v5454 = vcombine.low %v5362, %v5426
      %v5455 = vcombine.low %v5363, %v5427
      %v5456 = vcombine.low %v5364, %v5365
      %v5457 = vcombine.low %v5428, %v5366
      %v5458 = vcombine.low %v5429, %v5367
      %v5459 = vcombine.low %v5368, %v5430
      %v5460 = vcombine.low %v5369, %v5431
      %v5461 = vcombine.low %v5370, %v5371
      %v5462 = vcombine.low %v5432, %v5372
      %v5463 = vcombine.low %v5433, %v5373
      %v5494 = vpack.c.bf16 %v5435, %v5434
      %v5495 = vpack.c.bf16 %v5437, %v5436
      %v5496 = vpack.c.bf16 %v5439, %v5438
      %v5497 = vpack.c.bf16 %v5441, %v5440
      %v5498 = vpack.c.bf16 %v5443, %v5442
      %v5499 = vpack.c.bf16 %v5445, %v5444
      %v5500 = vpack.c.bf16 %v5447, %v5446
      %v5501 = vpack.c.bf16 %v5449, %v5448
      %v5502 = vpack.c.bf16 %v5451, %v5450
      %v5503 = vpack.c.bf16 %v5453, %v5452
      %v5504 = vpack.c.bf16 %v5455, %v5454
      %v5505 = vpack.c.bf16 %v5457, %v5456
      %v5506 = vpack.c.bf16 %v5459, %v5458
      %v5507 = vpack.c.bf16 %v5461, %v5460
      %v5508 = vpack.c.bf16 %v5463, %v5462
      %v5509 = vld [vmem:[%s4] sm:$0xf]
      %v5510 = vld [vmem:[%s4 + $0x4] sm:$0xf]
      %v5511 = vld [vmem:[%s4 + $0x8] sm:$0xf]
      %v5512 = vld [vmem:[%s4 + $0xc] sm:$0xf]
      %v5513 = vld [vmem:[%s4 + $0x10] sm:$0xf]
      %v5514 = vld [vmem:[%s4 + $0x14] sm:$0xf]
      %v5515 = vld [vmem:[%s4 + $0x18] sm:$0xf]
      %v5516 = vld [vmem:[%s4 + $0x1c] sm:$0xf]
      %v5517 = vld [vmem:[%s4 + $0x20] sm:$0xf]
      %v5518 = vld [vmem:[%s4 + $0x24] sm:$0xf]
      %v5519 = vld [vmem:[%s4 + $0x28] sm:$0xf]
      %v5520 = vld [vmem:[%s4 + $0x2c] sm:$0xf]
      %v5521 = vld [vmem:[%s4 + $0x30] sm:$0x3]
      %v5522 = vld [vmem:[%s5] sm:$0x1]
      %v5524 = vlaneseq
      %v5525 = vshrl.u32 %v5524, 7
      %v5526 = vsub.s32 0, %v5525
      %v5527 = vrot.slane %v5522, %v5526
      %v5542 = vunpack.c.l.b16 %v5509
      %v5543 = vunpack.c.l.b16 %v5510
      %v5544 = vunpack.c.l.b16 %v5511
      %v5545 = vunpack.c.l.b16 %v5512
      %v5546 = vunpack.c.l.b16 %v5513
      %v5547 = vunpack.c.l.b16 %v5514
      %v5548 = vunpack.c.l.b16 %v5515
      %v5549 = vunpack.c.l.b16 %v5516
      %v5550 = vunpack.c.l.b16 %v5517
      %v5551 = vunpack.c.l.b16 %v5518
      %v5552 = vunpack.c.l.b16 %v5519
      %v5553 = vunpack.c.l.b16 %v5520
      %v5554 = vunpack.c.l.b16 %v5521
      %v5555 = vpack.c.b16 %v5543, %v5542
      %v5556 = vpack.c.b16 %v5545, %v5544
      %v5557 = vpack.c.b16 %v5547, %v5546
      %v5558 = vpack.c.b16 %v5549, %v5548
      %v5559 = vpack.c.b16 %v5551, %v5550
      %v5560 = vpack.c.b16 %v5553, %v5552
      %v5561 = vpack.c.b16 %v5554, %v5554
      %vm5568 = vcmask 818176
      %v5570 = vsel %vm5568, %v5494, 0
      %v5573 = vsel %vm5568, %v5495, 0
      %v5576 = vsel %vm5568, %v5496, 0
      %v5579 = vsel %vm5568, %v5497, 0
      %v5582 = vsel %vm5568, %v5498, 0
      %v5585 = vsel %vm5568, %v5499, 0
      %v5588 = vsel %vm5568, %v5500, 0
      %v5591 = vsel %vm5568, %v5501, 0
      %v5594 = vsel %vm5568, %v5502, 0
      %v5597 = vsel %vm5568, %v5503, 0
      %v5600 = vsel %vm5568, %v5504, 0
      %v5603 = vsel %vm5568, %v5505, 0
      %v5606 = vsel %vm5568, %v5506, 0
      %v5609 = vsel %vm5568, %v5507, 0
      %v5612 = vsel %vm5568, %v5508, 0
      %v5615 = vsel %vm2235, %v5561, 0
      %5617 = vmatprep.subr.bf16.mxu0 0
      %5618 = vmatpush1.bf16.msra.mxu0 %v5555
      %5619 = vmatprep.subr.bf16.mxu0 0
      %5620 = vmatpush1.bf16.msra.mxu0 %v5556
      %5621 = vmatprep.subr.bf16.mxu0 0
      %5622 = vmatpush1.bf16.msra.mxu0 %v5557
      %5623 = vmatprep.subr.bf16.mxu0 0
      %5624 = vmatpush1.bf16.msra.mxu0 %v5558
      %5625 = vmatprep.subr.bf16.mxu0 0
      %5626 = vmatpush1.bf16.msra.mxu0 %v5559
      %5627 = vmatprep.subr.bf16.mxu0 0
      %5628 = vmatpush1.bf16.msra.mxu0 %v5560
      %5629 = vmatprep.subr.bf16.mxu0 0
      %5630 = vmatpush1.bf16.msra.mxu0 %v5615
      %5631 = vmatprep.subr.bf16.mxu0 0
      %5632 = vmatpush1.bf16.msra.mxu0 0
      %5633 = vmatprep.subr.bf16.mxu0 0
      %5634 = vmatpush1.bf16.msra.mxu0 0
      %5635 = vmatprep.subr.bf16.mxu0 0
      %5636 = vmatpush1.bf16.msra.mxu0 0
      %5637 = vmatprep.subr.bf16.mxu0 0
      %5638 = vmatpush1.bf16.msra.mxu0 0
      %5639 = vmatprep.subr.bf16.mxu0 0
      %5640 = vmatpush1.bf16.msra.mxu0 0
      %5641 = vmatprep.subr.bf16.mxu0 0
      %5642 = vmatpush1.bf16.msra.mxu0 0
      %5643 = vmatprep.subr.bf16.mxu0 0
      %5644 = vmatpush1.bf16.msra.mxu0 0
      %5645 = vmatprep.subr.bf16.mxu0 0
      %5646 = vmatpush1.bf16.msra.mxu0 0
      %5647 = vmatprep.subr.bf16.mxu0 0
      %5648 = vmatpush1.bf16.msra.mxu0 0
      %5649 = vmatprep.mubr.bf16.mxu0 0
      %5650 = vmatmul.mubr.bf16.gmra.mrb[0].mxu0 %v5570
      %v5651 = vpop.f32.mrb[0].mxu0
      %v5652 = vadd.f32 %v5527, %v5651
      %v5653 = vpop.f32.mrb[0].mxu0
      %v5654 = vpop.f32.mrb[0].mxu0
      %v5655 = vadd.f32 %v5527, %v5654
      %v5656 = vpop.f32.mrb[0].mxu0
      %5657 = vmatprep.mubr.bf16.mxu0 0
      %5658 = vmatmul.mubr.bf16.gmra.mrb[0].mxu0 %v5573
      %v5659 = vpop.f32.mrb[0].mxu0
      %v5660 = vadd.f32 %v5527, %v5659
      %v5661 = vpop.f32.mrb[0].mxu0
      %v5662 = vpop.f32.mrb[0].mxu0
      %v5663 = vadd.f32 %v5527, %v5662
      %v5664 = vpop.f32.mrb[0].mxu0
      %5665 = vmatprep.mubr.bf16.mxu0 0
      %5666 = vmatmul.mubr.bf16.gmra.mrb[0].mxu0 %v5576
      %v5667 = vpop.f32.mrb[0].mxu0
      %v5668 = vadd.f32 %v5527, %v5667
      %v5669 = vpop.f32.mrb[0].mxu0
      %v5670 = vpop.f32.mrb[0].mxu0
      %v5671 = vadd.f32 %v5527, %v5670
      %v5672 = vpop.f32.mrb[0].mxu0
      %5673 = vmatprep.mubr.bf16.mxu0 0
      %5674 = vmatmul.mubr.bf16.gmra.mrb[0].mxu0 %v5579
      %v5675 = vpop.f32.mrb[0].mxu0
      %v5676 = vadd.f32 %v5527, %v5675
      %v5677 = vpop.f32.mrb[0].mxu0
      %v5678 = vpop.f32.mrb[0].mxu0
      %v5679 = vadd.f32 %v5527, %v5678
      %v5680 = vpop.f32.mrb[0].mxu0
      %5681 = vmatprep.mubr.bf16.mxu0 0
      %5682 = vmatmul.mubr.bf16.gmra.mrb[0].mxu0 %v5582
      %v5683 = vpop.f32.mrb[0].mxu0
      %v5684 = vadd.f32 %v5527, %v5683
      %v5685 = vpop.f32.mrb[0].mxu0
      %v5686 = vpop.f32.mrb[0].mxu0
      %v5687 = vadd.f32 %v5527, %v5686
      %v5688 = vpop.f32.mrb[0].mxu0
      %5689 = vmatprep.mubr.bf16.mxu0 0
      %5690 = vmatmul.mubr.bf16.gmra.mrb[0].mxu0 %v5585
      %v5691 = vpop.f32.mrb[0].mxu0
      %v5692 = vadd.f32 %v5527, %v5691
      %v5693 = vpop.f32.mrb[0].mxu0
      %v5694 = vpop.f32.mrb[0].mxu0
      %v5695 = vadd.f32 %v5527, %v5694
      %v5696 = vpop.f32.mrb[0].mxu0
      %5697 = vmatprep.mubr.bf16.mxu0 0
      %5698 = vmatmul.mubr.bf16.gmra.mrb[0].mxu0 %v5588
      %v5699 = vpop.f32.mrb[0].mxu0
      %v5700 = vadd.f32 %v5527, %v5699
      %v5701 = vpop.f32.mrb[0].mxu0
      %v5702 = vpop.f32.mrb[0].mxu0
      %v5703 = vadd.f32 %v5527, %v5702
      %v5704 = vpop.f32.mrb[0].mxu0
      %5705 = vmatprep.mubr.bf16.mxu0 0
      %5706 = vmatmul.mubr.bf16.gmra.mrb[0].mxu0 %v5591
      %v5707 = vpop.f32.mrb[0].mxu0
      %v5708 = vadd.f32 %v5527, %v5707
      %v5709 = vpop.f32.mrb[0].mxu0
      %v5710 = vpop.f32.mrb[0].mxu0
      %v5711 = vadd.f32 %v5527, %v5710
      %v5712 = vpop.f32.mrb[0].mxu0
      %5713 = vmatprep.mubr.bf16.mxu0 0
      %5714 = vmatmul.mubr.bf16.gmra.mrb[0].mxu0 %v5594
      %v5715 = vpop.f32.mrb[0].mxu0
      %v5716 = vadd.f32 %v5527, %v5715
      %v5717 = vpop.f32.mrb[0].mxu0
      %v5718 = vpop.f32.mrb[0].mxu0
      %v5719 = vadd.f32 %v5527, %v5718
      %v5720 = vpop.f32.mrb[0].mxu0
      %5721 = vmatprep.mubr.bf16.mxu0 0
      %5722 = vmatmul.mubr.bf16.gmra.mrb[0].mxu0 %v5597
      %v5723 = vpop.f32.mrb[0].mxu0
      %v5724 = vadd.f32 %v5527, %v5723
      %v5725 = vpop.f32.mrb[0].mxu0
      %v5726 = vpop.f32.mrb[0].mxu0
      %v5727 = vadd.f32 %v5527, %v5726
      %v5728 = vpop.f32.mrb[0].mxu0
      %5729 = vmatprep.mubr.bf16.mxu0 0
      %5730 = vmatmul.mubr.bf16.gmra.mrb[0].mxu0 %v5600
      %v5731 = vpop.f32.mrb[0].mxu0
      %v5732 = vadd.f32 %v5527, %v5731
      %v5733 = vpop.f32.mrb[0].mxu0
      %v5734 = vpop.f32.mrb[0].mxu0
      %v5735 = vadd.f32 %v5527, %v5734
      %v5736 = vpop.f32.mrb[0].mxu0
      %5737 = vmatprep.mubr.bf16.mxu0 0
      %5738 = vmatmul.mubr.bf16.gmra.mrb[0].mxu0 %v5603
      %v5739 = vpop.f32.mrb[0].mxu0
      %v5740 = vadd.f32 %v5527, %v5739
      %v5741 = vpop.f32.mrb[0].mxu0
      %v5742 = vpop.f32.mrb[0].mxu0
      %v5743 = vadd.f32 %v5527, %v5742
      %v5744 = vpop.f32.mrb[0].mxu0
      %5745 = vmatprep.mubr.bf16.mxu0 0
      %5746 = vmatmul.mubr.bf16.gmra.mrb[0].mxu0 %v5606
      %v5747 = vpop.f32.mrb[0].mxu0
      %v5748 = vadd.f32 %v5527, %v5747
      %v5749 = vpop.f32.mrb[0].mxu0
      %v5750 = vpop.f32.mrb[0].mxu0
      %v5751 = vadd.f32 %v5527, %v5750
      %v5752 = vpop.f32.mrb[0].mxu0
      %5753 = vmatprep.mubr.bf16.mxu0 0
      %5754 = vmatmul.mubr.bf16.gmra.mrb[0].mxu0 %v5609
      %v5755 = vpop.f32.mrb[0].mxu0
      %v5756 = vadd.f32 %v5527, %v5755
      %v5757 = vpop.f32.mrb[0].mxu0
      %v5758 = vpop.f32.mrb[0].mxu0
      %v5759 = vadd.f32 %v5527, %v5758
      %v5760 = vpop.f32.mrb[0].mxu0
      %5761 = vmatprep.mubr.bf16.mxu0 0
      %5762 = vmatmul.mubr.bf16.gmra.mrb[0].mxu0 %v5612
      %v5763 = vpop.f32.mrb[0].mxu0
      %v5764 = vadd.f32 %v5527, %v5763
      %v5765 = vpop.f32.mrb[0].mxu0
      %v5766 = vpop.f32.mrb[0].mxu0
      %v5767 = vadd.f32 %v5527, %v5766
      %v5768 = vpop.f32.mrb[0].mxu0
      %5769 = vdwg.mxu0
      %v5770 = vmax.f32 %v5652, 0.0
      %v5771 = vmax.f32 %v5655, 0.0
      %v5772 = vmax.f32 %v5660, 0.0
      %v5773 = vmax.f32 %v5663, 0.0
      %v5774 = vmax.f32 %v5668, 0.0
      %v5775 = vmax.f32 %v5671, 0.0
      %v5776 = vmax.f32 %v5676, 0.0
      %v5777 = vmax.f32 %v5679, 0.0
      %v5778 = vmax.f32 %v5684, 0.0
      %v5779 = vmax.f32 %v5687, 0.0
      %v5780 = vmax.f32 %v5692, 0.0
      %v5781 = vmax.f32 %v5695, 0.0
      %v5782 = vmax.f32 %v5700, 0.0
      %v5783 = vmax.f32 %v5703, 0.0
      %v5784 = vmax.f32 %v5708, 0.0
      %v5785 = vmax.f32 %v5711, 0.0
      %v5786 = vmax.f32 %v5716, 0.0
      %v5787 = vmax.f32 %v5719, 0.0
      %v5788 = vmax.f32 %v5724, 0.0
      %v5789 = vmax.f32 %v5727, 0.0
      %v5790 = vmax.f32 %v5732, 0.0
      %v5791 = vmax.f32 %v5735, 0.0
      %v5792 = vmax.f32 %v5740, 0.0
      %v5793 = vmax.f32 %v5743, 0.0
      %v5794 = vmax.f32 %v5748, 0.0
      %v5795 = vmax.f32 %v5751, 0.0
      %v5796 = vmax.f32 %v5756, 0.0
      %v5797 = vmax.f32 %v5759, 0.0
      %v5798 = vmax.f32 %v5764, 0.0
      %v5799 = vmax.f32 %v5767, 0.0
      %v5830 = vcombine.high %v5770, %v5770
      %v5831 = vcombine.high %v5771, %v5771
      %v5832 = vcombine.high %v5772, %v5772
      %v5833 = vcombine.high %v5773, %v5773
      %v5834 = vcombine.high %v5774, %v5774
      %v5835 = vcombine.high %v5775, %v5775
      %v5836 = vcombine.high %v5776, %v5776
      %v5837 = vcombine.high %v5777, %v5777
      %v5838 = vcombine.high %v5778, %v5778
      %v5839 = vcombine.high %v5779, %v5779
      %v5840 = vcombine.high %v5780, %v5780
      %v5841 = vcombine.high %v5781, %v5781
      %v5842 = vcombine.high %v5782, %v5782
      %v5843 = vcombine.high %v5783, %v5783
      %v5844 = vcombine.high %v5784, %v5784
      %v5845 = vcombine.high %v5785, %v5785
      %v5846 = vcombine.high %v5786, %v5786
      %v5847 = vcombine.high %v5787, %v5787
      %v5848 = vcombine.high %v5788, %v5788
      %v5849 = vcombine.high %v5789, %v5789
      %v5850 = vcombine.high %v5790, %v5790
      %v5851 = vcombine.high %v5791, %v5791
      %v5852 = vcombine.high %v5792, %v5792
      %v5853 = vcombine.high %v5793, %v5793
      %v5854 = vcombine.high %v5794, %v5794
      %v5855 = vcombine.high %v5795, %v5795
      %v5856 = vcombine.high %v5796, %v5796
      %v5857 = vcombine.high %v5797, %v5797
      %v5858 = vcombine.high %v5798, %v5798
      %v5859 = vcombine.high %v5799, %v5799
      %s5890 = ssub.s32 %s425, 2
      %v5891 = vstv %s5890
      %v5892 = vadd.s32 %v5891, 1
      %v5893 = vadd.s32 %v5891, 2
      %v5894 = vadd.s32 %v5891, 3
      %v5895 = vadd.s32 %v5891, 4
      %v5896 = vadd.s32 %v5891, 5
      %v5897 = vadd.s32 %v5891, 6
      %v5898 = vadd.s32 %v5891, 7
      %v5899 = vadd.s32 %v5891, 8
      %v5900 = vadd.s32 %v5891, 9
      %v5901 = vadd.s32 %v5891, 10
      %v5902 = vadd.s32 %v5891, 11
      %v5903 = vlaneseq
      %v5904 = vshrl.u32 %v5903, 7
      %v5905 = vadd.s32 %v5904, 8
      %v5906 = vadd.s32 %v5904, 16
      %v5907 = vsub.s32 %v5904, 2
      %v5908 = vsub.s32 %v5905, 2
      %v5909 = vsub.s32 %v5906, 2
      %vm5910 = vcmp.ge.s32.totalorder %v5891, 0
      %vm5911 = vcmp.ge.s32.totalorder %v5892, 0
      %vm5912 = vcmp.ge.s32.totalorder %v5893, 0
      %vm5913 = vcmp.ge.s32.totalorder %v5894, 0
      %vm5914 = vcmp.ge.s32.totalorder %v5895, 0
      %vm5915 = vcmp.ge.s32.totalorder %v5896, 0
      %vm5916 = vcmp.ge.s32.totalorder %v5897, 0
      %vm5917 = vcmp.ge.s32.totalorder %v5898, 0
      %vm5918 = vcmp.ge.s32.totalorder %v5899, 0
      %vm5919 = vcmp.ge.s32.totalorder %v5900, 0
      %vm5920 = vcmp.ge.s32.totalorder %v5901, 0
      %vm5921 = vcmp.ge.s32.totalorder %v5902, 0
      %vm5922 = vcmp.lt.s32.totalorder %v5891, 16
      %vm5923 = vcmp.lt.s32.totalorder %v5892, 16
      %vm5924 = vcmp.lt.s32.totalorder %v5893, 16
      %vm5925 = vcmp.lt.s32.totalorder %v5894, 16
      %vm5926 = vcmp.lt.s32.totalorder %v5895, 16
      %vm5927 = vcmp.lt.s32.totalorder %v5896, 16
      %vm5928 = vcmp.lt.s32.totalorder %v5897, 16
      %vm5929 = vcmp.lt.s32.totalorder %v5898, 16
      %vm5930 = vcmp.lt.s32.totalorder %v5899, 16
      %vm5931 = vcmp.lt.s32.totalorder %v5900, 16
      %vm5932 = vcmp.lt.s32.totalorder %v5901, 16
      %vm5933 = vcmp.lt.s32.totalorder %v5902, 16
      %vm5934 = vmand %vm5910, %vm5922
      %vm5935 = vmand %vm5911, %vm5923
      %vm5936 = vmand %vm5912, %vm5924
      %vm5937 = vmand %vm5913, %vm5925
      %vm5938 = vmand %vm5914, %vm5926
      %vm5939 = vmand %vm5915, %vm5927
      %vm5940 = vmand %vm5916, %vm5928
      %vm5941 = vmand %vm5917, %vm5929
      %vm5942 = vmand %vm5918, %vm5930
      %vm5943 = vmand %vm5919, %vm5931
      %vm5944 = vmand %vm5920, %vm5932
      %vm5945 = vmand %vm5921, %vm5933
      %vm5946 = vcmp.ge.s32.totalorder %v5907, 0
      %vm5947 = vcmp.ge.s32.totalorder %v5908, 0
      %vm5948 = vcmp.ge.s32.totalorder %v5909, 0
      %vm5949 = vmand %vm5934, %vm5946
      %vm5950 = vmand %vm5934, %vm5947
      %vm5951 = vmand %vm5934, %vm5948
      %vm5952 = vmand %vm5935, %vm5946
      %vm5953 = vmand %vm5935, %vm5947
      %vm5954 = vmand %vm5935, %vm5948
      %vm5955 = vmand %vm5936, %vm5946
      %vm5956 = vmand %vm5936, %vm5947
      %vm5957 = vmand %vm5936, %vm5948
      %vm5958 = vmand %vm5937, %vm5946
      %vm5959 = vmand %vm5937, %vm5947
      %vm5960 = vmand %vm5937, %vm5948
      %vm5961 = vmand %vm5938, %vm5946
      %vm5962 = vmand %vm5938, %vm5947
      %vm5963 = vmand %vm5938, %vm5948
      %vm5964 = vmand %vm5939, %vm5946
      %vm5965 = vmand %vm5939, %vm5947
      %vm5966 = vmand %vm5939, %vm5948
      %vm5967 = vmand %vm5940, %vm5946
      %vm5968 = vmand %vm5940, %vm5947
      %vm5969 = vmand %vm5940, %vm5948
      %vm5970 = vmand %vm5941, %vm5946
      %vm5971 = vmand %vm5941, %vm5947
      %vm5972 = vmand %vm5941, %vm5948
      %vm5973 = vmand %vm5942, %vm5946
      %vm5974 = vmand %vm5942, %vm5947
      %vm5975 = vmand %vm5942, %vm5948
      %vm5976 = vmand %vm5943, %vm5946
      %vm5977 = vmand %vm5943, %vm5947
      %vm5978 = vmand %vm5943, %vm5948
      %vm5979 = vmand %vm5944, %vm5946
      %vm5980 = vmand %vm5944, %vm5947
      %vm5981 = vmand %vm5944, %vm5948
      %vm5982 = vmand %vm5945, %vm5946
      %vm5983 = vmand %vm5945, %vm5947
      %vm5984 = vmand %vm5945, %vm5948
      %vm5985 = vcmp.lt.s32.totalorder %v5907, 16
      %vm5986 = vcmp.lt.s32.totalorder %v5908, 16
      %vm5987 = vcmp.lt.s32.totalorder %v5909, 16
      %vm5988 = vmand %vm5949, %vm5985
      %vm5989 = vmand %vm5950, %vm5986
      %vm5990 = vmand %vm5951, %vm5987
      %vm5991 = vmand %vm5952, %vm5985
      %vm5992 = vmand %vm5953, %vm5986
      %vm5993 = vmand %vm5954, %vm5987
      %vm5994 = vmand %vm5955, %vm5985
      %vm5995 = vmand %vm5956, %vm5986
      %vm5996 = vmand %vm5957, %vm5987
      %vm5997 = vmand %vm5958, %vm5985
      %vm5998 = vmand %vm5959, %vm5986
      %vm5999 = vmand %vm5960, %vm5987
      %vm6000 = vmand %vm5961, %vm5985
      %vm6001 = vmand %vm5962, %vm5986
      %vm6002 = vmand %vm5963, %vm5987
      %vm6003 = vmand %vm5964, %vm5985
      %vm6004 = vmand %vm5965, %vm5986
      %vm6005 = vmand %vm5966, %vm5987
      %vm6006 = vmand %vm5967, %vm5985
      %vm6007 = vmand %vm5968, %vm5986
      %vm6008 = vmand %vm5969, %vm5987
      %vm6009 = vmand %vm5970, %vm5985
      %vm6010 = vmand %vm5971, %vm5986
      %vm6011 = vmand %vm5972, %vm5987
      %vm6012 = vmand %vm5973, %vm5985
      %vm6013 = vmand %vm5974, %vm5986
      %vm6014 = vmand %vm5975, %vm5987
      %vm6015 = vmand %vm5976, %vm5985
      %vm6016 = vmand %vm5977, %vm5986
      %vm6017 = vmand %vm5978, %vm5987
      %vm6018 = vmand %vm5979, %vm5985
      %vm6019 = vmand %vm5980, %vm5986
      %vm6020 = vmand %vm5981, %vm5987
      %vm6021 = vmand %vm5982, %vm5985
      %vm6022 = vmand %vm5983, %vm5986
      %vm6023 = vmand %vm5984, %vm5987
      %v6024 = vsel %vm5988, 1, 0
      %v6025 = vsel %vm5989, 1, 0
      %v6026 = vsel %vm5990, 1, 0
      %v6027 = vsel %vm5991, 1, 0
      %v6028 = vsel %vm5992, 1, 0
      %v6029 = vsel %vm5993, 1, 0
      %v6030 = vsel %vm5994, 1, 0
      %v6031 = vsel %vm5995, 1, 0
      %v6032 = vsel %vm5996, 1, 0
      %v6033 = vsel %vm5997, 1, 0
      %v6034 = vsel %vm5998, 1, 0
      %v6035 = vsel %vm5999, 1, 0
      %v6036 = vsel %vm6000, 1, 0
      %v6037 = vsel %vm6001, 1, 0
      %v6038 = vsel %vm6002, 1, 0
      %v6039 = vsel %vm6003, 1, 0
      %v6040 = vsel %vm6004, 1, 0
      %v6041 = vsel %vm6005, 1, 0
      %v6042 = vsel %vm6006, 1, 0
      %v6043 = vsel %vm6007, 1, 0
      %v6044 = vsel %vm6008, 1, 0
      %v6045 = vsel %vm6009, 1, 0
      %v6046 = vsel %vm6010, 1, 0
      %v6047 = vsel %vm6011, 1, 0
      %v6048 = vsel %vm6012, 1, 0
      %v6049 = vsel %vm6013, 1, 0
      %v6050 = vsel %vm6014, 1, 0
      %v6051 = vsel %vm6015, 1, 0
      %v6052 = vsel %vm6016, 1, 0
      %v6053 = vsel %vm6017, 1, 0
      %v6054 = vsel %vm6018, 1, 0
      %v6055 = vsel %vm6019, 1, 0
      %v6056 = vsel %vm6020, 1, 0
      %v6057 = vsel %vm6021, 1, 0
      %v6058 = vsel %vm6022, 1, 0
      %v6059 = vsel %vm6023, 1, 0
      %v6060 = vcvt.s32.f32 %v6024
      %v6061 = vcvt.s32.f32 %v6025
      %v6062 = vcvt.s32.f32 %v6026
      %v6063 = vcvt.s32.f32 %v6027
      %v6064 = vcvt.s32.f32 %v6028
      %v6065 = vcvt.s32.f32 %v6029
      %v6066 = vcvt.s32.f32 %v6030
      %v6067 = vcvt.s32.f32 %v6031
      %v6068 = vcvt.s32.f32 %v6032
      %v6069 = vcvt.s32.f32 %v6033
      %v6070 = vcvt.s32.f32 %v6034
      %v6071 = vcvt.s32.f32 %v6035
      %v6072 = vcvt.s32.f32 %v6036
      %v6073 = vcvt.s32.f32 %v6037
      %v6074 = vcvt.s32.f32 %v6038
      %v6075 = vcvt.s32.f32 %v6039
      %v6076 = vcvt.s32.f32 %v6040
      %v6077 = vcvt.s32.f32 %v6041
      %v6078 = vcvt.s32.f32 %v6042
      %v6079 = vcvt.s32.f32 %v6043
      %v6080 = vcvt.s32.f32 %v6044
      %v6081 = vcvt.s32.f32 %v6045
      %v6082 = vcvt.s32.f32 %v6046
      %v6083 = vcvt.s32.f32 %v6047
      %v6084 = vcvt.s32.f32 %v6048
      %v6085 = vcvt.s32.f32 %v6049
      %v6086 = vcvt.s32.f32 %v6050
      %v6087 = vcvt.s32.f32 %v6051
      %v6088 = vcvt.s32.f32 %v6052
      %v6089 = vcvt.s32.f32 %v6053
      %v6090 = vcvt.s32.f32 %v6054
      %v6091 = vcvt.s32.f32 %v6055
      %v6092 = vcvt.s32.f32 %v6056
      %v6093 = vcvt.s32.f32 %v6057
      %v6094 = vcvt.s32.f32 %v6058
      %v6095 = vcvt.s32.f32 %v6059
      %v6133 = vunpack.c.l.s4 839922192
      %v6134 = vunpack.c.0.s8 %v6133
      %v6135 = vlaneseq
      %v6136 = vshrl.u32 %v6135, 7
      %v6137 = vsub.s32 %v6134, %v6136
      %v6138 = vrot.slane %v6060, %v6137
      %v6140 = vunpack.c.l.s4 1985246804
      %v6141 = vunpack.c.0.s8 %v6140
      %v6142 = vlaneseq
      %v6143 = vshrl.u32 %v6142, 7
      %v6144 = vsub.s32 %v6141, %v6143
      %v6145 = vrot.slane %v6060, %v6144
      %v6147 = vunpack.c.l.s4 839922192
      %v6148 = vunpack.c.0.s8 %v6147
      %v6149 = vlaneseq
      %v6150 = vshrl.u32 %v6149, 7
      %v6151 = vsub.s32 %v6148, %v6150
      %v6152 = vrot.slane %v6061, %v6151
      %v6154 = vunpack.c.l.s4 1985246804
      %v6155 = vunpack.c.0.s8 %v6154
      %v6156 = vlaneseq
      %v6157 = vshrl.u32 %v6156, 7
      %v6158 = vsub.s32 %v6155, %v6157
      %v6159 = vrot.slane %v6061, %v6158
      %v6161 = vunpack.c.l.s4 839922192
      %v6162 = vunpack.c.0.s8 %v6161
      %v6163 = vlaneseq
      %v6164 = vshrl.u32 %v6163, 7
      %v6165 = vsub.s32 %v6162, %v6164
      %v6166 = vrot.slane %v6062, %v6165
      %v6168 = vunpack.c.l.s4 839922192
      %v6169 = vunpack.c.0.s8 %v6168
      %v6170 = vlaneseq
      %v6171 = vshrl.u32 %v6170, 7
      %v6172 = vsub.s32 %v6169, %v6171
      %v6173 = vrot.slane %v6063, %v6172
      %v6175 = vunpack.c.l.s4 1985246804
      %v6176 = vunpack.c.0.s8 %v6175
      %v6177 = vlaneseq
      %v6178 = vshrl.u32 %v6177, 7
      %v6179 = vsub.s32 %v6176, %v6178
      %v6180 = vrot.slane %v6063, %v6179
      %v6182 = vunpack.c.l.s4 839922192
      %v6183 = vunpack.c.0.s8 %v6182
      %v6184 = vlaneseq
      %v6185 = vshrl.u32 %v6184, 7
      %v6186 = vsub.s32 %v6183, %v6185
      %v6187 = vrot.slane %v6064, %v6186
      %v6189 = vunpack.c.l.s4 1985246804
      %v6190 = vunpack.c.0.s8 %v6189
      %v6191 = vlaneseq
      %v6192 = vshrl.u32 %v6191, 7
      %v6193 = vsub.s32 %v6190, %v6192
      %v6194 = vrot.slane %v6064, %v6193
      %v6196 = vunpack.c.l.s4 839922192
      %v6197 = vunpack.c.0.s8 %v6196
      %v6198 = vlaneseq
      %v6199 = vshrl.u32 %v6198, 7
      %v6200 = vsub.s32 %v6197, %v6199
      %v6201 = vrot.slane %v6065, %v6200
      %v6203 = vunpack.c.l.s4 839922192
      %v6204 = vunpack.c.0.s8 %v6203
      %v6205 = vlaneseq
      %v6206 = vshrl.u32 %v6205, 7
      %v6207 = vsub.s32 %v6204, %v6206
      %v6208 = vrot.slane %v6066, %v6207
      %v6210 = vunpack.c.l.s4 1985246804
      %v6211 = vunpack.c.0.s8 %v6210
      %v6212 = vlaneseq
      %v6213 = vshrl.u32 %v6212, 7
      %v6214 = vsub.s32 %v6211, %v6213
      %v6215 = vrot.slane %v6066, %v6214
      %v6217 = vunpack.c.l.s4 839922192
      %v6218 = vunpack.c.0.s8 %v6217
      %v6219 = vlaneseq
      %v6220 = vshrl.u32 %v6219, 7
      %v6221 = vsub.s32 %v6218, %v6220
      %v6222 = vrot.slane %v6067, %v6221
      %v6224 = vunpack.c.l.s4 1985246804
      %v6225 = vunpack.c.0.s8 %v6224
      %v6226 = vlaneseq
      %v6227 = vshrl.u32 %v6226, 7
      %v6228 = vsub.s32 %v6225, %v6227
      %v6229 = vrot.slane %v6067, %v6228
      %v6231 = vunpack.c.l.s4 839922192
      %v6232 = vunpack.c.0.s8 %v6231
      %v6233 = vlaneseq
      %v6234 = vshrl.u32 %v6233, 7
      %v6235 = vsub.s32 %v6232, %v6234
      %v6236 = vrot.slane %v6068, %v6235
      %v6238 = vunpack.c.l.s4 839922192
      %v6239 = vunpack.c.0.s8 %v6238
      %v6240 = vlaneseq
      %v6241 = vshrl.u32 %v6240, 7
      %v6242 = vsub.s32 %v6239, %v6241
      %v6243 = vrot.slane %v6069, %v6242
      %v6245 = vunpack.c.l.s4 1985246804
      %v6246 = vunpack.c.0.s8 %v6245
      %v6247 = vlaneseq
      %v6248 = vshrl.u32 %v6247, 7
      %v6249 = vsub.s32 %v6246, %v6248
      %v6250 = vrot.slane %v6069, %v6249
      %v6252 = vunpack.c.l.s4 839922192
      %v6253 = vunpack.c.0.s8 %v6252
      %v6254 = vlaneseq
      %v6255 = vshrl.u32 %v6254, 7
      %v6256 = vsub.s32 %v6253, %v6255
      %v6257 = vrot.slane %v6070, %v6256
      %v6259 = vunpack.c.l.s4 1985246804
      %v6260 = vunpack.c.0.s8 %v6259
      %v6261 = vlaneseq
      %v6262 = vshrl.u32 %v6261, 7
      %v6263 = vsub.s32 %v6260, %v6262
      %v6264 = vrot.slane %v6070, %v6263
      %v6266 = vunpack.c.l.s4 839922192
      %v6267 = vunpack.c.0.s8 %v6266
      %v6268 = vlaneseq
      %v6269 = vshrl.u32 %v6268, 7
      %v6270 = vsub.s32 %v6267, %v6269
      %v6271 = vrot.slane %v6071, %v6270
      %v6273 = vunpack.c.l.s4 839922192
      %v6274 = vunpack.c.0.s8 %v6273
      %v6275 = vlaneseq
      %v6276 = vshrl.u32 %v6275, 7
      %v6277 = vsub.s32 %v6274, %v6276
      %v6278 = vrot.slane %v6072, %v6277
      %v6280 = vunpack.c.l.s4 1985246804
      %v6281 = vunpack.c.0.s8 %v6280
      %v6282 = vlaneseq
      %v6283 = vshrl.u32 %v6282, 7
      %v6284 = vsub.s32 %v6281, %v6283
      %v6285 = vrot.slane %v6072, %v6284
      %v6287 = vunpack.c.l.s4 839922192
      %v6288 = vunpack.c.0.s8 %v6287
      %v6289 = vlaneseq
      %v6290 = vshrl.u32 %v6289, 7
      %v6291 = vsub.s32 %v6288, %v6290
      %v6292 = vrot.slane %v6073, %v6291
      %v6294 = vunpack.c.l.s4 1985246804
      %v6295 = vunpack.c.0.s8 %v6294
      %v6296 = vlaneseq
      %v6297 = vshrl.u32 %v6296, 7
      %v6298 = vsub.s32 %v6295, %v6297
      %v6299 = vrot.slane %v6073, %v6298
      %v6301 = vunpack.c.l.s4 839922192
      %v6302 = vunpack.c.0.s8 %v6301
      %v6303 = vlaneseq
      %v6304 = vshrl.u32 %v6303, 7
      %v6305 = vsub.s32 %v6302, %v6304
      %v6306 = vrot.slane %v6074, %v6305
      %v6308 = vunpack.c.l.s4 839922192
      %v6309 = vunpack.c.0.s8 %v6308
      %v6310 = vlaneseq
      %v6311 = vshrl.u32 %v6310, 7
      %v6312 = vsub.s32 %v6309, %v6311
      %v6313 = vrot.slane %v6075, %v6312
      %v6315 = vunpack.c.l.s4 1985246804
      %v6316 = vunpack.c.0.s8 %v6315
      %v6317 = vlaneseq
      %v6318 = vshrl.u32 %v6317, 7
      %v6319 = vsub.s32 %v6316, %v6318
      %v6320 = vrot.slane %v6075, %v6319
      %v6322 = vunpack.c.l.s4 839922192
      %v6323 = vunpack.c.0.s8 %v6322
      %v6324 = vlaneseq
      %v6325 = vshrl.u32 %v6324, 7
      %v6326 = vsub.s32 %v6323, %v6325
      %v6327 = vrot.slane %v6076, %v6326
      %v6329 = vunpack.c.l.s4 1985246804
      %v6330 = vunpack.c.0.s8 %v6329
      %v6331 = vlaneseq
      %v6332 = vshrl.u32 %v6331, 7
      %v6333 = vsub.s32 %v6330, %v6332
      %v6334 = vrot.slane %v6076, %v6333
      %v6336 = vunpack.c.l.s4 839922192
      %v6337 = vunpack.c.0.s8 %v6336
      %v6338 = vlaneseq
      %v6339 = vshrl.u32 %v6338, 7
      %v6340 = vsub.s32 %v6337, %v6339
      %v6341 = vrot.slane %v6077, %v6340
      %v6343 = vunpack.c.l.s4 839922192
      %v6344 = vunpack.c.0.s8 %v6343
      %v6345 = vlaneseq
      %v6346 = vshrl.u32 %v6345, 7
      %v6347 = vsub.s32 %v6344, %v6346
      %v6348 = vrot.slane %v6078, %v6347
      %v6350 = vunpack.c.l.s4 1985246804
      %v6351 = vunpack.c.0.s8 %v6350
      %v6352 = vlaneseq
      %v6353 = vshrl.u32 %v6352, 7
      %v6354 = vsub.s32 %v6351, %v6353
      %v6355 = vrot.slane %v6078, %v6354
      %v6357 = vunpack.c.l.s4 839922192
      %v6358 = vunpack.c.0.s8 %v6357
      %v6359 = vlaneseq
      %v6360 = vshrl.u32 %v6359, 7
      %v6361 = vsub.s32 %v6358, %v6360
      %v6362 = vrot.slane %v6079, %v6361
      %v6364 = vunpack.c.l.s4 1985246804
      %v6365 = vunpack.c.0.s8 %v6364
      %v6366 = vlaneseq
      %v6367 = vshrl.u32 %v6366, 7
      %v6368 = vsub.s32 %v6365, %v6367
      %v6369 = vrot.slane %v6079, %v6368
      %v6371 = vunpack.c.l.s4 839922192
      %v6372 = vunpack.c.0.s8 %v6371
      %v6373 = vlaneseq
      %v6374 = vshrl.u32 %v6373, 7
      %v6375 = vsub.s32 %v6372, %v6374
      %v6376 = vrot.slane %v6080, %v6375
      %v6378 = vunpack.c.l.s4 839922192
      %v6379 = vunpack.c.0.s8 %v6378
      %v6380 = vlaneseq
      %v6381 = vshrl.u32 %v6380, 7
      %v6382 = vsub.s32 %v6379, %v6381
      %v6383 = vrot.slane %v6081, %v6382
      %v6385 = vunpack.c.l.s4 1985246804
      %v6386 = vunpack.c.0.s8 %v6385
      %v6387 = vlaneseq
      %v6388 = vshrl.u32 %v6387, 7
      %v6389 = vsub.s32 %v6386, %v6388
      %v6390 = vrot.slane %v6081, %v6389
      %v6392 = vunpack.c.l.s4 839922192
      %v6393 = vunpack.c.0.s8 %v6392
      %v6394 = vlaneseq
      %v6395 = vshrl.u32 %v6394, 7
      %v6396 = vsub.s32 %v6393, %v6395
      %v6397 = vrot.slane %v6082, %v6396
      %v6399 = vunpack.c.l.s4 1985246804
      %v6400 = vunpack.c.0.s8 %v6399
      %v6401 = vlaneseq
      %v6402 = vshrl.u32 %v6401, 7
      %v6403 = vsub.s32 %v6400, %v6402
      %v6404 = vrot.slane %v6082, %v6403
      %v6406 = vunpack.c.l.s4 839922192
      %v6407 = vunpack.c.0.s8 %v6406
      %v6408 = vlaneseq
      %v6409 = vshrl.u32 %v6408, 7
      %v6410 = vsub.s32 %v6407, %v6409
      %v6411 = vrot.slane %v6083, %v6410
      %v6413 = vunpack.c.l.s4 839922192
      %v6414 = vunpack.c.0.s8 %v6413
      %v6415 = vlaneseq
      %v6416 = vshrl.u32 %v6415, 7
      %v6417 = vsub.s32 %v6414, %v6416
      %v6418 = vrot.slane %v6084, %v6417
      %v6420 = vunpack.c.l.s4 1985246804
      %v6421 = vunpack.c.0.s8 %v6420
      %v6422 = vlaneseq
      %v6423 = vshrl.u32 %v6422, 7
      %v6424 = vsub.s32 %v6421, %v6423
      %v6425 = vrot.slane %v6084, %v6424
      %v6427 = vunpack.c.l.s4 839922192
      %v6428 = vunpack.c.0.s8 %v6427
      %v6429 = vlaneseq
      %v6430 = vshrl.u32 %v6429, 7
      %v6431 = vsub.s32 %v6428, %v6430
      %v6432 = vrot.slane %v6085, %v6431
      %v6434 = vunpack.c.l.s4 1985246804
      %v6435 = vunpack.c.0.s8 %v6434
      %v6436 = vlaneseq
      %v6437 = vshrl.u32 %v6436, 7
      %v6438 = vsub.s32 %v6435, %v6437
      %v6439 = vrot.slane %v6085, %v6438
      %v6441 = vunpack.c.l.s4 839922192
      %v6442 = vunpack.c.0.s8 %v6441
      %v6443 = vlaneseq
      %v6444 = vshrl.u32 %v6443, 7
      %v6445 = vsub.s32 %v6442, %v6444
      %v6446 = vrot.slane %v6086, %v6445
      %v6448 = vunpack.c.l.s4 839922192
      %v6449 = vunpack.c.0.s8 %v6448
      %v6450 = vlaneseq
      %v6451 = vshrl.u32 %v6450, 7
      %v6452 = vsub.s32 %v6449, %v6451
      %v6453 = vrot.slane %v6087, %v6452
      %v6455 = vunpack.c.l.s4 1985246804
      %v6456 = vunpack.c.0.s8 %v6455
      %v6457 = vlaneseq
      %v6458 = vshrl.u32 %v6457, 7
      %v6459 = vsub.s32 %v6456, %v6458
      %v6460 = vrot.slane %v6087, %v6459
      %v6462 = vunpack.c.l.s4 839922192
      %v6463 = vunpack.c.0.s8 %v6462
      %v6464 = vlaneseq
      %v6465 = vshrl.u32 %v6464, 7
      %v6466 = vsub.s32 %v6463, %v6465
      %v6467 = vrot.slane %v6088, %v6466
      %v6469 = vunpack.c.l.s4 1985246804
      %v6470 = vunpack.c.0.s8 %v6469
      %v6471 = vlaneseq
      %v6472 = vshrl.u32 %v6471, 7
      %v6473 = vsub.s32 %v6470, %v6472
      %v6474 = vrot.slane %v6088, %v6473
      %v6476 = vunpack.c.l.s4 839922192
      %v6477 = vunpack.c.0.s8 %v6476
      %v6478 = vlaneseq
      %v6479 = vshrl.u32 %v6478, 7
      %v6480 = vsub.s32 %v6477, %v6479
      %v6481 = vrot.slane %v6089, %v6480
      %v6483 = vunpack.c.l.s4 839922192
      %v6484 = vunpack.c.0.s8 %v6483
      %v6485 = vlaneseq
      %v6486 = vshrl.u32 %v6485, 7
      %v6487 = vsub.s32 %v6484, %v6486
      %v6488 = vrot.slane %v6090, %v6487
      %v6490 = vunpack.c.l.s4 1985246804
      %v6491 = vunpack.c.0.s8 %v6490
      %v6492 = vlaneseq
      %v6493 = vshrl.u32 %v6492, 7
      %v6494 = vsub.s32 %v6491, %v6493
      %v6495 = vrot.slane %v6090, %v6494
      %v6497 = vunpack.c.l.s4 839922192
      %v6498 = vunpack.c.0.s8 %v6497
      %v6499 = vlaneseq
      %v6500 = vshrl.u32 %v6499, 7
      %v6501 = vsub.s32 %v6498, %v6500
      %v6502 = vrot.slane %v6091, %v6501
      %v6504 = vunpack.c.l.s4 1985246804
      %v6505 = vunpack.c.0.s8 %v6504
      %v6506 = vlaneseq
      %v6507 = vshrl.u32 %v6506, 7
      %v6508 = vsub.s32 %v6505, %v6507
      %v6509 = vrot.slane %v6091, %v6508
      %v6511 = vunpack.c.l.s4 839922192
      %v6512 = vunpack.c.0.s8 %v6511
      %v6513 = vlaneseq
      %v6514 = vshrl.u32 %v6513, 7
      %v6515 = vsub.s32 %v6512, %v6514
      %v6516 = vrot.slane %v6092, %v6515
      %v6518 = vunpack.c.l.s4 839922192
      %v6519 = vunpack.c.0.s8 %v6518
      %v6520 = vlaneseq
      %v6521 = vshrl.u32 %v6520, 7
      %v6522 = vsub.s32 %v6519, %v6521
      %v6523 = vrot.slane %v6093, %v6522
      %v6525 = vunpack.c.l.s4 1985246804
      %v6526 = vunpack.c.0.s8 %v6525
      %v6527 = vlaneseq
      %v6528 = vshrl.u32 %v6527, 7
      %v6529 = vsub.s32 %v6526, %v6528
      %v6530 = vrot.slane %v6093, %v6529
      %v6532 = vunpack.c.l.s4 839922192
      %v6533 = vunpack.c.0.s8 %v6532
      %v6534 = vlaneseq
      %v6535 = vshrl.u32 %v6534, 7
      %v6536 = vsub.s32 %v6533, %v6535
      %v6537 = vrot.slane %v6094, %v6536
      %v6539 = vunpack.c.l.s4 1985246804
      %v6540 = vunpack.c.0.s8 %v6539
      %v6541 = vlaneseq
      %v6542 = vshrl.u32 %v6541, 7
      %v6543 = vsub.s32 %v6540, %v6542
      %v6544 = vrot.slane %v6094, %v6543
      %v6546 = vunpack.c.l.s4 839922192
      %v6547 = vunpack.c.0.s8 %v6546
      %v6548 = vlaneseq
      %v6549 = vshrl.u32 %v6548, 7
      %v6550 = vsub.s32 %v6547, %v6549
      %v6551 = vrot.slane %v6095, %v6550
      %v6612 = vmul.f32 %v2392, %v6138
      %v6613 = vmul.f32 %v2452, %v6145
      %v6614 = vmul.f32 %v2393, %v6152
      %v6615 = vmul.f32 %v2453, %v6159
      %v6616 = vmul.f32 %v2394, %v6166
      %v6617 = vmul.f32 %v2454, %v6173
      %v6618 = vmul.f32 %v2395, %v6180
      %v6619 = vmul.f32 %v2455, %v6187
      %v6620 = vmul.f32 %v2396, %v6194
      %v6621 = vmul.f32 %v2456, %v6201
      %v6622 = vmul.f32 %v2397, %v6208
      %v6623 = vmul.f32 %v2457, %v6215
      %v6624 = vmul.f32 %v2398, %v6222
      %v6625 = vmul.f32 %v2458, %v6229
      %v6626 = vmul.f32 %v2399, %v6236
      %v6627 = vmul.f32 %v2459, %v6243
      %v6628 = vmul.f32 %v2400, %v6250
      %v6629 = vmul.f32 %v2460, %v6257
      %v6630 = vmul.f32 %v2401, %v6264
      %v6631 = vmul.f32 %v2461, %v6271
      %v6632 = vmul.f32 %v2402, %v6278
      %v6633 = vmul.f32 %v2462, %v6285
      %v6634 = vmul.f32 %v2403, %v6292
      %v6635 = vmul.f32 %v2463, %v6299
      %v6636 = vmul.f32 %v2404, %v6306
      %v6637 = vmul.f32 %v2464, %v6313
      %v6638 = vmul.f32 %v2405, %v6320
      %v6639 = vmul.f32 %v2465, %v6327
      %v6640 = vmul.f32 %v2406, %v6334
      %v6641 = vmul.f32 %v2466, %v6341
      %v6642 = vmul.f32 %v2407, %v6348
      %v6643 = vmul.f32 %v2467, %v6355
      %v6644 = vmul.f32 %v2408, %v6362
      %v6645 = vmul.f32 %v2468, %v6369
      %v6646 = vmul.f32 %v2409, %v6376
      %v6647 = vmul.f32 %v2469, %v6383
      %v6648 = vmul.f32 %v2410, %v6390
      %v6649 = vmul.f32 %v2470, %v6397
      %v6650 = vmul.f32 %v2411, %v6404
      %v6651 = vmul.f32 %v2471, %v6411
      %v6652 = vmul.f32 %v2412, %v6418
      %v6653 = vmul.f32 %v2472, %v6425
      %v6654 = vmul.f32 %v2413, %v6432
      %v6655 = vmul.f32 %v2473, %v6439
      %v6656 = vmul.f32 %v2414, %v6446
      %v6657 = vmul.f32 %v2474, %v6453
      %v6658 = vmul.f32 %v2415, %v6460
      %v6659 = vmul.f32 %v2475, %v6467
      %v6660 = vmul.f32 %v2416, %v6474
      %v6661 = vmul.f32 %v2476, %v6481
      %v6662 = vmul.f32 %v2417, %v6488
      %v6663 = vmul.f32 %v2477, %v6495
      %v6664 = vmul.f32 %v2418, %v6502
      %v6665 = vmul.f32 %v2478, %v6509
      %v6666 = vmul.f32 %v2419, %v6516
      %v6667 = vmul.f32 %v2479, %v6523
      %v6668 = vmul.f32 %v2420, %v6530
      %v6669 = vmul.f32 %v2480, %v6537
      %v6670 = vmul.f32 %v2421, %v6544
      %v6671 = vmul.f32 %v2481, %v6551
      %v6672 = vmul.f32 %v5770, %v6138
      %v6673 = vmul.f32 %v5830, %v6145
      %v6674 = vmul.f32 %v5771, %v6152
      %v6675 = vmul.f32 %v5831, %v6159
      %v6676 = vmul.f32 %v5772, %v6166
      %v6677 = vmul.f32 %v5832, %v6173
      %v6678 = vmul.f32 %v5773, %v6180
      %v6679 = vmul.f32 %v5833, %v6187
      %v6680 = vmul.f32 %v5774, %v6194
      %v6681 = vmul.f32 %v5834, %v6201
      %v6682 = vmul.f32 %v5775, %v6208
      %v6683 = vmul.f32 %v5835, %v6215
      %v6684 = vmul.f32 %v5776, %v6222
      %v6685 = vmul.f32 %v5836, %v6229
      %v6686 = vmul.f32 %v5777, %v6236
      %v6687 = vmul.f32 %v5837, %v6243
      %v6688 = vmul.f32 %v5778, %v6250
      %v6689 = vmul.f32 %v5838, %v6257
      %v6690 = vmul.f32 %v5779, %v6264
      %v6691 = vmul.f32 %v5839, %v6271
      %v6692 = vmul.f32 %v5780, %v6278
      %v6693 = vmul.f32 %v5840, %v6285
      %v6694 = vmul.f32 %v5781, %v6292
      %v6695 = vmul.f32 %v5841, %v6299
      %v6696 = vmul.f32 %v5782, %v6306
      %v6697 = vmul.f32 %v5842, %v6313
      %v6698 = vmul.f32 %v5783, %v6320
      %v6699 = vmul.f32 %v5843, %v6327
      %v6700 = vmul.f32 %v5784, %v6334
      %v6701 = vmul.f32 %v5844, %v6341
      %v6702 = vmul.f32 %v5785, %v6348
      %v6703 = vmul.f32 %v5845, %v6355
      %v6704 = vmul.f32 %v5786, %v6362
      %v6705 = vmul.f32 %v5846, %v6369
      %v6706 = vmul.f32 %v5787, %v6376
      %v6707 = vmul.f32 %v5847, %v6383
      %v6708 = vmul.f32 %v5788, %v6390
      %v6709 = vmul.f32 %v5848, %v6397
      %v6710 = vmul.f32 %v5789, %v6404
      %v6711 = vmul.f32 %v5849, %v6411
      %v6712 = vmul.f32 %v5790, %v6418
      %v6713 = vmul.f32 %v5850, %v6425
      %v6714 = vmul.f32 %v5791, %v6432
      %v6715 = vmul.f32 %v5851, %v6439
      %v6716 = vmul.f32 %v5792, %v6446
      %v6717 = vmul.f32 %v5852, %v6453
      %v6718 = vmul.f32 %v5793, %v6460
      %v6719 = vmul.f32 %v5853, %v6467
      %v6720 = vmul.f32 %v5794, %v6474
      %v6721 = vmul.f32 %v5854, %v6481
      %v6722 = vmul.f32 %v5795, %v6488
      %v6723 = vmul.f32 %v5855, %v6495
      %v6724 = vmul.f32 %v5796, %v6502
      %v6725 = vmul.f32 %v5856, %v6509
      %v6726 = vmul.f32 %v5797, %v6516
      %v6727 = vmul.f32 %v5857, %v6523
      %v6728 = vmul.f32 %v5798, %v6530
      %v6729 = vmul.f32 %v5858, %v6537
      %v6730 = vmul.f32 %v5799, %v6544
      %v6731 = vmul.f32 %v5859, %v6551
      %v6780 = vcombine.low %v6612, %v6613
      %v6781 = vcombine.low %v6614, %v6615
      %v6782 = vcombine.low %v6617, %v6618
      %v6783 = vcombine.low %v6619, %v6620
      %v6784 = vcombine.low %v6622, %v6623
      %v6785 = vcombine.low %v6624, %v6625
      %v6786 = vcombine.low %v6627, %v6628
      %v6787 = vcombine.low %v6629, %v6630
      %v6788 = vcombine.low %v6632, %v6633
      %v6789 = vcombine.low %v6634, %v6635
      %v6790 = vcombine.low %v6637, %v6638
      %v6791 = vcombine.low %v6639, %v6640
      %v6792 = vcombine.low %v6642, %v6643
      %v6793 = vcombine.low %v6644, %v6645
      %v6794 = vcombine.low %v6647, %v6648
      %v6795 = vcombine.low %v6649, %v6650
      %v6796 = vcombine.low %v6652, %v6653
      %v6797 = vcombine.low %v6654, %v6655
      %v6798 = vcombine.low %v6657, %v6658
      %v6799 = vcombine.low %v6659, %v6660
      %v6800 = vcombine.low %v6662, %v6663
      %v6801 = vcombine.low %v6664, %v6665
      %v6802 = vcombine.low %v6667, %v6668
      %v6803 = vcombine.low %v6669, %v6670
      %v6888 = vcombine.low %v6672, %v6673
      %v6889 = vcombine.low %v6674, %v6675
      %v6890 = vcombine.low %v6677, %v6678
      %v6891 = vcombine.low %v6679, %v6680
      %v6892 = vcombine.low %v6682, %v6683
      %v6893 = vcombine.low %v6684, %v6685
      %v6894 = vcombine.low %v6687, %v6688
      %v6895 = vcombine.low %v6689, %v6690
      %v6896 = vcombine.low %v6692, %v6693
      %v6897 = vcombine.low %v6694, %v6695
      %v6898 = vcombine.low %v6697, %v6698
      %v6899 = vcombine.low %v6699, %v6700
      %v6900 = vcombine.low %v6702, %v6703
      %v6901 = vcombine.low %v6704, %v6705
      %v6902 = vcombine.low %v6707, %v6708
      %v6903 = vcombine.low %v6709, %v6710
      %v6904 = vcombine.low %v6712, %v6713
      %v6905 = vcombine.low %v6714, %v6715
      %v6906 = vcombine.low %v6717, %v6718
      %v6907 = vcombine.low %v6719, %v6720
      %v6908 = vcombine.low %v6722, %v6723
      %v6909 = vcombine.low %v6724, %v6725
      %v6910 = vcombine.low %v6727, %v6728
      %v6911 = vcombine.low %v6729, %v6730
      %6912 = vrot.lane.b32.xlu0 %v6888, 4
      %v6913 = vpop.permute.xlu0 %6912
      %6914 = vrot.lane.b32.xlu0 %v6889, 4
      %v6915 = vpop.permute.xlu0 %6914
      %6916 = vrot.lane.b32.xlu0 %v6676, 4
      %v6917 = vpop.permute.xlu0 %6916
      %6918 = vrot.lane.b32.xlu0 %v6890, 4
      %v6919 = vpop.permute.xlu0 %6918
      %6920 = vrot.lane.b32.xlu0 %v6891, 4
      %v6921 = vpop.permute.xlu0 %6920
      %6922 = vrot.lane.b32.xlu0 %v6681, 4
      %v6923 = vpop.permute.xlu0 %6922
      %6924 = vrot.lane.b32.xlu0 %v6892, 4
      %v6925 = vpop.permute.xlu0 %6924
      %6926 = vrot.lane.b32.xlu0 %v6893, 4
      %v6927 = vpop.permute.xlu0 %6926
      %6928 = vrot.lane.b32.xlu0 %v6686, 4
      %v6929 = vpop.permute.xlu0 %6928
      %6930 = vrot.lane.b32.xlu0 %v6894, 4
      %v6931 = vpop.permute.xlu0 %6930
      %6932 = vrot.lane.b32.xlu0 %v6895, 4
      %v6933 = vpop.permute.xlu0 %6932
      %6934 = vrot.lane.b32.xlu0 %v6691, 4
      %v6935 = vpop.permute.xlu0 %6934
      %6936 = vrot.lane.b32.xlu0 %v6896, 4
      %v6937 = vpop.permute.xlu0 %6936
      %6938 = vrot.lane.b32.xlu0 %v6897, 4
      %v6939 = vpop.permute.xlu0 %6938
      %6940 = vrot.lane.b32.xlu0 %v6696, 4
      %v6941 = vpop.permute.xlu0 %6940
      %6942 = vrot.lane.b32.xlu0 %v6898, 4
      %v6943 = vpop.permute.xlu0 %6942
      %6944 = vrot.lane.b32.xlu0 %v6899, 4
      %v6945 = vpop.permute.xlu0 %6944
      %6946 = vrot.lane.b32.xlu0 %v6701, 4
      %v6947 = vpop.permute.xlu0 %6946
      %6948 = vrot.lane.b32.xlu0 %v6900, 4
      %v6949 = vpop.permute.xlu0 %6948
      %6950 = vrot.lane.b32.xlu0 %v6901, 4
      %v6951 = vpop.permute.xlu0 %6950
      %6952 = vrot.lane.b32.xlu0 %v6706, 4
      %v6953 = vpop.permute.xlu0 %6952
      %6954 = vrot.lane.b32.xlu0 %v6902, 4
      %v6955 = vpop.permute.xlu0 %6954
      %6956 = vrot.lane.b32.xlu0 %v6903, 4
      %v6957 = vpop.permute.xlu0 %6956
      %6958 = vrot.lane.b32.xlu0 %v6711, 4
      %v6959 = vpop.permute.xlu0 %6958
      %6960 = vrot.lane.b32.xlu0 %v6904, 4
      %v6961 = vpop.permute.xlu0 %6960
      %6962 = vrot.lane.b32.xlu0 %v6905, 4
      %v6963 = vpop.permute.xlu0 %6962
      %6964 = vrot.lane.b32.xlu0 %v6716, 4
      %v6965 = vpop.permute.xlu0 %6964
      %6966 = vrot.lane.b32.xlu0 %v6906, 4
      %v6967 = vpop.permute.xlu0 %6966
      %6968 = vrot.lane.b32.xlu0 %v6907, 4
      %v6969 = vpop.permute.xlu0 %6968
      %6970 = vrot.lane.b32.xlu0 %v6721, 4
      %v6971 = vpop.permute.xlu0 %6970
      %6972 = vrot.lane.b32.xlu0 %v6908, 4
      %v6973 = vpop.permute.xlu0 %6972
      %6974 = vrot.lane.b32.xlu0 %v6909, 4
      %v6975 = vpop.permute.xlu0 %6974
      %6976 = vrot.lane.b32.xlu0 %v6726, 4
      %v6977 = vpop.permute.xlu0 %6976
      %6978 = vrot.lane.b32.xlu0 %v6910, 4
      %v6979 = vpop.permute.xlu0 %6978
      %6980 = vrot.lane.b32.xlu0 %v6911, 4
      %v6981 = vpop.permute.xlu0 %6980
      %6982 = vrot.lane.b32.xlu0 %v6731, 4
      %v6983 = vpop.permute.xlu0 %6982
      %v7020 = vsel %vm1524, %v6780, %v6913
      %v7021 = vsel %vm1524, %v6781, %v6915
      %v7022 = vsel %vm1524, %v6616, %v6917
      %v7023 = vsel %vm1524, %v6782, %v6919
      %v7024 = vsel %vm1524, %v6783, %v6921
      %v7025 = vsel %vm1524, %v6621, %v6923
      %v7026 = vsel %vm1524, %v6784, %v6925
      %v7027 = vsel %vm1524, %v6785, %v6927
      %v7028 = vsel %vm1524, %v6626, %v6929
      %v7029 = vsel %vm1524, %v6786, %v6931
      %v7030 = vsel %vm1524, %v6787, %v6933
      %v7031 = vsel %vm1524, %v6631, %v6935
      %v7032 = vsel %vm1524, %v6788, %v6937
      %v7033 = vsel %vm1524, %v6789, %v6939
      %v7034 = vsel %vm1524, %v6636, %v6941
      %v7035 = vsel %vm1524, %v6790, %v6943
      %v7036 = vsel %vm1524, %v6791, %v6945
      %v7037 = vsel %vm1524, %v6641, %v6947
      %v7038 = vsel %vm1524, %v6792, %v6949
      %v7039 = vsel %vm1524, %v6793, %v6951
      %v7040 = vsel %vm1524, %v6646, %v6953
      %v7041 = vsel %vm1524, %v6794, %v6955
      %v7042 = vsel %vm1524, %v6795, %v6957
      %v7043 = vsel %vm1524, %v6651, %v6959
      %v7044 = vsel %vm1524, %v6796, %v6961
      %v7045 = vsel %vm1524, %v6797, %v6963
      %v7046 = vsel %vm1524, %v6656, %v6965
      %v7047 = vsel %vm1524, %v6798, %v6967
      %v7048 = vsel %vm1524, %v6799, %v6969
      %v7049 = vsel %vm1524, %v6661, %v6971
      %v7050 = vsel %vm1524, %v6800, %v6973
      %v7051 = vsel %vm1524, %v6801, %v6975
      %v7052 = vsel %vm1524, %v6666, %v6977
      %v7053 = vsel %vm1524, %v6802, %v6979
      %v7054 = vsel %vm1524, %v6803, %v6981
      %v7055 = vsel %vm1524, %v6671, %v6983
      %v7080 = vrot.slane %v7020, 1
      %v7081 = vrot.slane %v7021, 1
      %v7082 = vsel %vm512, %v7080, %v7081
      %v7083 = vrot.slane %v7022, 1
      %v7084 = vsel %vm512, %v7081, %v7083
      %v7085 = vrot.slane %v7023, 1
      %v7086 = vrot.slane %v7024, 1
      %v7087 = vsel %vm512, %v7085, %v7086
      %v7088 = vrot.slane %v7025, 1
      %v7089 = vsel %vm512, %v7086, %v7088
      %v7090 = vrot.slane %v7026, 1
      %v7091 = vrot.slane %v7027, 1
      %v7092 = vsel %vm512, %v7090, %v7091
      %v7093 = vrot.slane %v7028, 1
      %v7094 = vsel %vm512, %v7091, %v7093
      %v7095 = vrot.slane %v7029, 1
      %v7096 = vrot.slane %v7030, 1
      %v7097 = vsel %vm512, %v7095, %v7096
      %v7098 = vrot.slane %v7031, 1
      %v7099 = vsel %vm512, %v7096, %v7098
      %v7100 = vrot.slane %v7032, 1
      %v7101 = vrot.slane %v7033, 1
      %v7102 = vsel %vm512, %v7100, %v7101
      %v7103 = vrot.slane %v7034, 1
      %v7104 = vsel %vm512, %v7101, %v7103
      %v7105 = vrot.slane %v7035, 1
      %v7106 = vrot.slane %v7036, 1
      %v7107 = vsel %vm512, %v7105, %v7106
      %v7108 = vrot.slane %v7037, 1
      %v7109 = vsel %vm512, %v7106, %v7108
      %v7110 = vrot.slane %v7038, 1
      %v7111 = vrot.slane %v7039, 1
      %v7112 = vsel %vm512, %v7110, %v7111
      %v7113 = vrot.slane %v7040, 1
      %v7114 = vsel %vm512, %v7111, %v7113
      %v7115 = vrot.slane %v7041, 1
      %v7116 = vrot.slane %v7042, 1
      %v7117 = vsel %vm512, %v7115, %v7116
      %v7118 = vrot.slane %v7043, 1
      %v7119 = vsel %vm512, %v7116, %v7118
      %7120 = vrot.lane.b32.xlu0 %v7082, 8
      %v7121 = vpop.permute.xlu0 %7120
      %7122 = vrot.lane.b32.xlu0 %v7084, 8
      %v7123 = vpop.permute.xlu0 %7122
      %7124 = vrot.lane.b32.xlu0 %v7087, 8
      %v7125 = vpop.permute.xlu0 %7124
      %7126 = vrot.lane.b32.xlu0 %v7089, 8
      %v7127 = vpop.permute.xlu0 %7126
      %7128 = vrot.lane.b32.xlu0 %v7092, 8
      %v7129 = vpop.permute.xlu0 %7128
      %7130 = vrot.lane.b32.xlu0 %v7094, 8
      %v7131 = vpop.permute.xlu0 %7130
      %7132 = vrot.lane.b32.xlu0 %v7097, 8
      %v7133 = vpop.permute.xlu0 %7132
      %7134 = vrot.lane.b32.xlu0 %v7099, 8
      %v7135 = vpop.permute.xlu0 %7134
      %7136 = vrot.lane.b32.xlu0 %v7102, 8
      %v7137 = vpop.permute.xlu0 %7136
      %7138 = vrot.lane.b32.xlu0 %v7104, 8
      %v7139 = vpop.permute.xlu0 %7138
      %7140 = vrot.lane.b32.xlu0 %v7107, 8
      %v7141 = vpop.permute.xlu0 %7140
      %7142 = vrot.lane.b32.xlu0 %v7109, 8
      %v7143 = vpop.permute.xlu0 %7142
      %7144 = vrot.lane.b32.xlu0 %v7112, 8
      %v7145 = vpop.permute.xlu0 %7144
      %7146 = vrot.lane.b32.xlu0 %v7114, 8
      %v7147 = vpop.permute.xlu0 %7146
      %7148 = vrot.lane.b32.xlu0 %v7117, 8
      %v7149 = vpop.permute.xlu0 %7148
      %7150 = vrot.lane.b32.xlu0 %v7119, 8
      %v7151 = vpop.permute.xlu0 %7150
      %v7168 = vrot.slane %v7020, 2
      %v7169 = vrot.slane %v7021, 2
      %v7170 = vsel %vm681, %v7168, %v7169
      %v7171 = vrot.slane %v7022, 2
      %v7172 = vsel %vm681, %v7169, %v7171
      %v7173 = vrot.slane %v7023, 2
      %v7174 = vrot.slane %v7024, 2
      %v7175 = vsel %vm681, %v7173, %v7174
      %v7176 = vrot.slane %v7025, 2
      %v7177 = vsel %vm681, %v7174, %v7176
      %v7178 = vrot.slane %v7026, 2
      %v7179 = vrot.slane %v7027, 2
      %v7180 = vsel %vm681, %v7178, %v7179
      %v7181 = vrot.slane %v7028, 2
      %v7182 = vsel %vm681, %v7179, %v7181
      %v7183 = vrot.slane %v7029, 2
      %v7184 = vrot.slane %v7030, 2
      %v7185 = vsel %vm681, %v7183, %v7184
      %v7186 = vrot.slane %v7031, 2
      %v7187 = vsel %vm681, %v7184, %v7186
      %v7188 = vrot.slane %v7032, 2
      %v7189 = vrot.slane %v7033, 2
      %v7190 = vsel %vm681, %v7188, %v7189
      %v7191 = vrot.slane %v7034, 2
      %v7192 = vsel %vm681, %v7189, %v7191
      %v7193 = vrot.slane %v7035, 2
      %v7194 = vrot.slane %v7036, 2
      %v7195 = vsel %vm681, %v7193, %v7194
      %v7196 = vrot.slane %v7037, 2
      %v7197 = vsel %vm681, %v7194, %v7196
      %v7198 = vrot.slane %v7038, 2
      %v7199 = vrot.slane %v7039, 2
      %v7200 = vsel %vm681, %v7198, %v7199
      %v7201 = vrot.slane %v7040, 2
      %v7202 = vsel %vm681, %v7199, %v7201
      %v7203 = vrot.slane %v7041, 2
      %v7204 = vrot.slane %v7042, 2
      %v7205 = vsel %vm681, %v7203, %v7204
      %v7206 = vrot.slane %v7043, 2
      %v7207 = vsel %vm681, %v7204, %v7206
      %7208 = vrot.lane.b32.xlu0 %v7170, 16
      %v7209 = vpop.permute.xlu0 %7208
      %7210 = vrot.lane.b32.xlu0 %v7172, 16
      %v7211 = vpop.permute.xlu0 %7210
      %7212 = vrot.lane.b32.xlu0 %v7175, 16
      %v7213 = vpop.permute.xlu0 %7212
      %7214 = vrot.lane.b32.xlu0 %v7177, 16
      %v7215 = vpop.permute.xlu0 %7214
      %7216 = vrot.lane.b32.xlu0 %v7180, 16
      %v7217 = vpop.permute.xlu0 %7216
      %7218 = vrot.lane.b32.xlu0 %v7182, 16
      %v7219 = vpop.permute.xlu0 %7218
      %7220 = vrot.lane.b32.xlu0 %v7185, 16
      %v7221 = vpop.permute.xlu0 %7220
      %7222 = vrot.lane.b32.xlu0 %v7187, 16
      %v7223 = vpop.permute.xlu0 %7222
      %7224 = vrot.lane.b32.xlu0 %v7190, 16
      %v7225 = vpop.permute.xlu0 %7224
      %7226 = vrot.lane.b32.xlu0 %v7192, 16
      %v7227 = vpop.permute.xlu0 %7226
      %7228 = vrot.lane.b32.xlu0 %v7195, 16
      %v7229 = vpop.permute.xlu0 %7228
      %7230 = vrot.lane.b32.xlu0 %v7197, 16
      %v7231 = vpop.permute.xlu0 %7230
      %7232 = vrot.lane.b32.xlu0 %v7200, 16
      %v7233 = vpop.permute.xlu0 %7232
      %7234 = vrot.lane.b32.xlu0 %v7202, 16
      %v7235 = vpop.permute.xlu0 %7234
      %7236 = vrot.lane.b32.xlu0 %v7205, 16
      %v7237 = vpop.permute.xlu0 %7236
      %7238 = vrot.lane.b32.xlu0 %v7207, 16
      %v7239 = vpop.permute.xlu0 %7238
      %v7256 = vrot.slane %v7020, 3
      %v7257 = vrot.slane %v7021, 3
      %v7258 = vsel %vm2543, %v7256, %v7257
      %v7259 = vrot.slane %v7022, 3
      %v7260 = vsel %vm2543, %v7257, %v7259
      %v7261 = vrot.slane %v7023, 3
      %v7262 = vrot.slane %v7024, 3
      %v7263 = vsel %vm2543, %v7261, %v7262
      %v7264 = vrot.slane %v7025, 3
      %v7265 = vsel %vm2543, %v7262, %v7264
      %v7266 = vrot.slane %v7026, 3
      %v7267 = vrot.slane %v7027, 3
      %v7268 = vsel %vm2543, %v7266, %v7267
      %v7269 = vrot.slane %v7028, 3
      %v7270 = vsel %vm2543, %v7267, %v7269
      %v7271 = vrot.slane %v7029, 3
      %v7272 = vrot.slane %v7030, 3
      %v7273 = vsel %vm2543, %v7271, %v7272
      %v7274 = vrot.slane %v7031, 3
      %v7275 = vsel %vm2543, %v7272, %v7274
      %v7276 = vrot.slane %v7032, 3
      %v7277 = vrot.slane %v7033, 3
      %v7278 = vsel %vm2543, %v7276, %v7277
      %v7279 = vrot.slane %v7034, 3
      %v7280 = vsel %vm2543, %v7277, %v7279
      %v7281 = vrot.slane %v7035, 3
      %v7282 = vrot.slane %v7036, 3
      %v7283 = vsel %vm2543, %v7281, %v7282
      %v7284 = vrot.slane %v7037, 3
      %v7285 = vsel %vm2543, %v7282, %v7284
      %v7286 = vrot.slane %v7038, 3
      %v7287 = vrot.slane %v7039, 3
      %v7288 = vsel %vm2543, %v7286, %v7287
      %v7289 = vrot.slane %v7040, 3
      %v7290 = vsel %vm2543, %v7287, %v7289
      %v7291 = vrot.slane %v7041, 3
      %v7292 = vrot.slane %v7042, 3
      %v7293 = vsel %vm2543, %v7291, %v7292
      %v7294 = vrot.slane %v7043, 3
      %v7295 = vsel %vm2543, %v7292, %v7294
      %7296 = vrot.lane.b32.xlu0 %v7258, 24
      %v7297 = vpop.permute.xlu0 %7296
      %7298 = vrot.lane.b32.xlu0 %v7260, 24
      %v7299 = vpop.permute.xlu0 %7298
      %7300 = vrot.lane.b32.xlu0 %v7263, 24
      %v7301 = vpop.permute.xlu0 %7300
      %7302 = vrot.lane.b32.xlu0 %v7265, 24
      %v7303 = vpop.permute.xlu0 %7302
      %7304 = vrot.lane.b32.xlu0 %v7268, 24
      %v7305 = vpop.permute.xlu0 %7304
      %7306 = vrot.lane.b32.xlu0 %v7270, 24
      %v7307 = vpop.permute.xlu0 %7306
      %7308 = vrot.lane.b32.xlu0 %v7273, 24
      %v7309 = vpop.permute.xlu0 %7308
      %7310 = vrot.lane.b32.xlu0 %v7275, 24
      %v7311 = vpop.permute.xlu0 %7310
      %7312 = vrot.lane.b32.xlu0 %v7278, 24
      %v7313 = vpop.permute.xlu0 %7312
      %7314 = vrot.lane.b32.xlu0 %v7280, 24
      %v7315 = vpop.permute.xlu0 %7314
      %7316 = vrot.lane.b32.xlu0 %v7283, 24
      %v7317 = vpop.permute.xlu0 %7316
      %7318 = vrot.lane.b32.xlu0 %v7285, 24
      %v7319 = vpop.permute.xlu0 %7318
      %7320 = vrot.lane.b32.xlu0 %v7288, 24
      %v7321 = vpop.permute.xlu0 %7320
      %7322 = vrot.lane.b32.xlu0 %v7290, 24
      %v7323 = vpop.permute.xlu0 %7322
      %7324 = vrot.lane.b32.xlu0 %v7293, 24
      %v7325 = vpop.permute.xlu0 %7324
      %7326 = vrot.lane.b32.xlu0 %v7295, 24
      %v7327 = vpop.permute.xlu0 %7326
      %v7344 = vrot.slane %v7020, 4
      %v7345 = vrot.slane %v7021, 4
      %v7346 = vsel %vm2712, %v7344, %v7345
      %v7347 = vrot.slane %v7022, 4
      %v7348 = vsel %vm2712, %v7345, %v7347
      %v7349 = vrot.slane %v7023, 4
      %v7350 = vrot.slane %v7024, 4
      %v7351 = vsel %vm2712, %v7349, %v7350
      %v7352 = vrot.slane %v7025, 4
      %v7353 = vsel %vm2712, %v7350, %v7352
      %v7354 = vrot.slane %v7026, 4
      %v7355 = vrot.slane %v7027, 4
      %v7356 = vsel %vm2712, %v7354, %v7355
      %v7357 = vrot.slane %v7028, 4
      %v7358 = vsel %vm2712, %v7355, %v7357
      %v7359 = vrot.slane %v7029, 4
      %v7360 = vrot.slane %v7030, 4
      %v7361 = vsel %vm2712, %v7359, %v7360
      %v7362 = vrot.slane %v7031, 4
      %v7363 = vsel %vm2712, %v7360, %v7362
      %v7364 = vrot.slane %v7032, 4
      %v7365 = vrot.slane %v7033, 4
      %v7366 = vsel %vm2712, %v7364, %v7365
      %v7367 = vrot.slane %v7034, 4
      %v7368 = vsel %vm2712, %v7365, %v7367
      %v7369 = vrot.slane %v7035, 4
      %v7370 = vrot.slane %v7036, 4
      %v7371 = vsel %vm2712, %v7369, %v7370
      %v7372 = vrot.slane %v7037, 4
      %v7373 = vsel %vm2712, %v7370, %v7372
      %v7374 = vrot.slane %v7038, 4
      %v7375 = vrot.slane %v7039, 4
      %v7376 = vsel %vm2712, %v7374, %v7375
      %v7377 = vrot.slane %v7040, 4
      %v7378 = vsel %vm2712, %v7375, %v7377
      %v7379 = vrot.slane %v7041, 4
      %v7380 = vrot.slane %v7042, 4
      %v7381 = vsel %vm2712, %v7379, %v7380
      %v7382 = vrot.slane %v7043, 4
      %v7383 = vsel %vm2712, %v7380, %v7382
      %7384 = vrot.lane.b32.xlu0 %v7346, 32
      %v7385 = vpop.permute.xlu0 %7384
      %7386 = vrot.lane.b32.xlu0 %v7348, 32
      %v7387 = vpop.permute.xlu0 %7386
      %7388 = vrot.lane.b32.xlu0 %v7351, 32
      %v7389 = vpop.permute.xlu0 %7388
      %7390 = vrot.lane.b32.xlu0 %v7353, 32
      %v7391 = vpop.permute.xlu0 %7390
      %7392 = vrot.lane.b32.xlu0 %v7356, 32
      %v7393 = vpop.permute.xlu0 %7392
      %7394 = vrot.lane.b32.xlu0 %v7358, 32
      %v7395 = vpop.permute.xlu0 %7394
      %7396 = vrot.lane.b32.xlu0 %v7361, 32
      %v7397 = vpop.permute.xlu0 %7396
      %7398 = vrot.lane.b32.xlu0 %v7363, 32
      %v7399 = vpop.permute.xlu0 %7398
      %7400 = vrot.lane.b32.xlu0 %v7366, 32
      %v7401 = vpop.permute.xlu0 %7400
      %7402 = vrot.lane.b32.xlu0 %v7368, 32
      %v7403 = vpop.permute.xlu0 %7402
      %7404 = vrot.lane.b32.xlu0 %v7371, 32
      %v7405 = vpop.permute.xlu0 %7404
      %7406 = vrot.lane.b32.xlu0 %v7373, 32
      %v7407 = vpop.permute.xlu0 %7406
      %7408 = vrot.lane.b32.xlu0 %v7376, 32
      %v7409 = vpop.permute.xlu0 %7408
      %7410 = vrot.lane.b32.xlu0 %v7378, 32
      %v7411 = vpop.permute.xlu0 %7410
      %7412 = vrot.lane.b32.xlu0 %v7381, 32
      %v7413 = vpop.permute.xlu0 %7412
      %7414 = vrot.lane.b32.xlu0 %v7383, 32
      %v7415 = vpop.permute.xlu0 %7414
      %7434 = vrot.lane.b32.xlu0 %v7023, 40
      %v7435 = vpop.permute.xlu0 %7434
      %7436 = vrot.lane.b32.xlu0 %v7024, 40
      %v7437 = vpop.permute.xlu0 %7436
      %7438 = vrot.lane.b32.xlu0 %v7026, 40
      %v7439 = vpop.permute.xlu0 %7438
      %7440 = vrot.lane.b32.xlu0 %v7027, 40
      %v7441 = vpop.permute.xlu0 %7440
      %7442 = vrot.lane.b32.xlu0 %v7029, 40
      %v7443 = vpop.permute.xlu0 %7442
      %7444 = vrot.lane.b32.xlu0 %v7030, 40
      %v7445 = vpop.permute.xlu0 %7444
      %7446 = vrot.lane.b32.xlu0 %v7032, 40
      %v7447 = vpop.permute.xlu0 %7446
      %7448 = vrot.lane.b32.xlu0 %v7033, 40
      %v7449 = vpop.permute.xlu0 %7448
      %7450 = vrot.lane.b32.xlu0 %v7035, 40
      %v7451 = vpop.permute.xlu0 %7450
      %7452 = vrot.lane.b32.xlu0 %v7036, 40
      %v7453 = vpop.permute.xlu0 %7452
      %7454 = vrot.lane.b32.xlu0 %v7038, 40
      %v7455 = vpop.permute.xlu0 %7454
      %7456 = vrot.lane.b32.xlu0 %v7039, 40
      %v7457 = vpop.permute.xlu0 %7456
      %7458 = vrot.lane.b32.xlu0 %v7041, 40
      %v7459 = vpop.permute.xlu0 %7458
      %7460 = vrot.lane.b32.xlu0 %v7042, 40
      %v7461 = vpop.permute.xlu0 %7460
      %7462 = vrot.lane.b32.xlu0 %v7044, 40
      %v7463 = vpop.permute.xlu0 %7462
      %7464 = vrot.lane.b32.xlu0 %v7045, 40
      %v7465 = vpop.permute.xlu0 %7464
      %v7483 = vrot.slane %v7044, 1
      %v7484 = vrot.slane %v7045, 1
      %v7485 = vsel %vm512, %v7483, %v7484
      %v7486 = vrot.slane %v7046, 1
      %v7487 = vsel %vm512, %v7484, %v7486
      %7488 = vrot.lane.b32.xlu0 %v7087, 48
      %v7489 = vpop.permute.xlu0 %7488
      %7490 = vrot.lane.b32.xlu0 %v7089, 48
      %v7491 = vpop.permute.xlu0 %7490
      %7492 = vrot.lane.b32.xlu0 %v7092, 48
      %v7493 = vpop.permute.xlu0 %7492
      %7494 = vrot.lane.b32.xlu0 %v7094, 48
      %v7495 = vpop.permute.xlu0 %7494
      %7496 = vrot.lane.b32.xlu0 %v7097, 48
      %v7497 = vpop.permute.xlu0 %7496
      %7498 = vrot.lane.b32.xlu0 %v7099, 48
      %v7499 = vpop.permute.xlu0 %7498
      %7500 = vrot.lane.b32.xlu0 %v7102, 48
      %v7501 = vpop.permute.xlu0 %7500
      %7502 = vrot.lane.b32.xlu0 %v7104, 48
      %v7503 = vpop.permute.xlu0 %7502
      %7504 = vrot.lane.b32.xlu0 %v7107, 48
      %v7505 = vpop.permute.xlu0 %7504
      %7506 = vrot.lane.b32.xlu0 %v7109, 48
      %v7507 = vpop.permute.xlu0 %7506
      %7508 = vrot.lane.b32.xlu0 %v7112, 48
      %v7509 = vpop.permute.xlu0 %7508
      %7510 = vrot.lane.b32.xlu0 %v7114, 48
      %v7511 = vpop.permute.xlu0 %7510
      %7512 = vrot.lane.b32.xlu0 %v7117, 48
      %v7513 = vpop.permute.xlu0 %7512
      %7514 = vrot.lane.b32.xlu0 %v7119, 48
      %v7515 = vpop.permute.xlu0 %7514
      %7516 = vrot.lane.b32.xlu0 %v7485, 48
      %v7517 = vpop.permute.xlu0 %7516
      %7518 = vrot.lane.b32.xlu0 %v7487, 48
      %v7519 = vpop.permute.xlu0 %7518
      %v7536 = vrot.slane %v7044, 2
      %v7537 = vrot.slane %v7045, 2
      %v7538 = vsel %vm681, %v7536, %v7537
      %v7539 = vrot.slane %v7046, 2
      %v7540 = vsel %vm681, %v7537, %v7539
      %7541 = vrot.lane.b32.xlu0 %v7175, 56
      %v7542 = vpop.permute.xlu0 %7541
      %7543 = vrot.lane.b32.xlu0 %v7177, 56
      %v7544 = vpop.permute.xlu0 %7543
      %7545 = vrot.lane.b32.xlu0 %v7180, 56
      %v7546 = vpop.permute.xlu0 %7545
      %7547 = vrot.lane.b32.xlu0 %v7182, 56
      %v7548 = vpop.permute.xlu0 %7547
      %7549 = vrot.lane.b32.xlu0 %v7185, 56
      %v7550 = vpop.permute.xlu0 %7549
      %7551 = vrot.lane.b32.xlu0 %v7187, 56
      %v7552 = vpop.permute.xlu0 %7551
      %7553 = vrot.lane.b32.xlu0 %v7190, 56
      %v7554 = vpop.permute.xlu0 %7553
      %7555 = vrot.lane.b32.xlu0 %v7192, 56
      %v7556 = vpop.permute.xlu0 %7555
      %7557 = vrot.lane.b32.xlu0 %v7195, 56
      %v7558 = vpop.permute.xlu0 %7557
      %7559 = vrot.lane.b32.xlu0 %v7197, 56
      %v7560 = vpop.permute.xlu0 %7559
      %7561 = vrot.lane.b32.xlu0 %v7200, 56
      %v7562 = vpop.permute.xlu0 %7561
      %7563 = vrot.lane.b32.xlu0 %v7202, 56
      %v7564 = vpop.permute.xlu0 %7563
      %7565 = vrot.lane.b32.xlu0 %v7205, 56
      %v7566 = vpop.permute.xlu0 %7565
      %7567 = vrot.lane.b32.xlu0 %v7207, 56
      %v7568 = vpop.permute.xlu0 %7567
      %7569 = vrot.lane.b32.xlu0 %v7538, 56
      %v7570 = vpop.permute.xlu0 %7569
      %7571 = vrot.lane.b32.xlu0 %v7540, 56
      %v7572 = vpop.permute.xlu0 %7571
      %v7589 = vrot.slane %v7044, 3
      %v7590 = vrot.slane %v7045, 3
      %v7591 = vsel %vm2543, %v7589, %v7590
      %v7592 = vrot.slane %v7046, 3
      %v7593 = vsel %vm2543, %v7590, %v7592
      %7594 = vrot.lane.b32.xlu0 %v7263, 64
      %v7595 = vpop.permute.xlu0 %7594
      %7596 = vrot.lane.b32.xlu0 %v7265, 64
      %v7597 = vpop.permute.xlu0 %7596
      %7598 = vrot.lane.b32.xlu0 %v7268, 64
      %v7599 = vpop.permute.xlu0 %7598
      %7600 = vrot.lane.b32.xlu0 %v7270, 64
      %v7601 = vpop.permute.xlu0 %7600
      %7602 = vrot.lane.b32.xlu0 %v7273, 64
      %v7603 = vpop.permute.xlu0 %7602
      %7604 = vrot.lane.b32.xlu0 %v7275, 64
      %v7605 = vpop.permute.xlu0 %7604
      %7606 = vrot.lane.b32.xlu0 %v7278, 64
      %v7607 = vpop.permute.xlu0 %7606
      %7608 = vrot.lane.b32.xlu0 %v7280, 64
      %v7609 = vpop.permute.xlu0 %7608
      %7610 = vrot.lane.b32.xlu0 %v7283, 64
      %v7611 = vpop.permute.xlu0 %7610
      %7612 = vrot.lane.b32.xlu0 %v7285, 64
      %v7613 = vpop.permute.xlu0 %7612
      %7614 = vrot.lane.b32.xlu0 %v7288, 64
      %v7615 = vpop.permute.xlu0 %7614
      %7616 = vrot.lane.b32.xlu0 %v7290, 64
      %v7617 = vpop.permute.xlu0 %7616
      %7618 = vrot.lane.b32.xlu0 %v7293, 64
      %v7619 = vpop.permute.xlu0 %7618
      %7620 = vrot.lane.b32.xlu0 %v7295, 64
      %v7621 = vpop.permute.xlu0 %7620
      %7622 = vrot.lane.b32.xlu0 %v7591, 64
      %v7623 = vpop.permute.xlu0 %7622
      %7624 = vrot.lane.b32.xlu0 %v7593, 64
      %v7625 = vpop.permute.xlu0 %7624
      %v7642 = vrot.slane %v7044, 4
      %v7643 = vrot.slane %v7045, 4
      %v7644 = vsel %vm2712, %v7642, %v7643
      %v7645 = vrot.slane %v7046, 4
      %v7646 = vsel %vm2712, %v7643, %v7645
      %7647 = vrot.lane.b32.xlu0 %v7351, 72
      %v7648 = vpop.permute.xlu0 %7647
      %7649 = vrot.lane.b32.xlu0 %v7353, 72
      %v7650 = vpop.permute.xlu0 %7649
      %7651 = vrot.lane.b32.xlu0 %v7356, 72
      %v7652 = vpop.permute.xlu0 %7651
      %7653 = vrot.lane.b32.xlu0 %v7358, 72
      %v7654 = vpop.permute.xlu0 %7653
      %7655 = vrot.lane.b32.xlu0 %v7361, 72
      %v7656 = vpop.permute.xlu0 %7655
      %7657 = vrot.lane.b32.xlu0 %v7363, 72
      %v7658 = vpop.permute.xlu0 %7657
      %7659 = vrot.lane.b32.xlu0 %v7366, 72
      %v7660 = vpop.permute.xlu0 %7659
      %7661 = vrot.lane.b32.xlu0 %v7368, 72
      %v7662 = vpop.permute.xlu0 %7661
      %7663 = vrot.lane.b32.xlu0 %v7371, 72
      %v7664 = vpop.permute.xlu0 %7663
      %7665 = vrot.lane.b32.xlu0 %v7373, 72
      %v7666 = vpop.permute.xlu0 %7665
      %7667 = vrot.lane.b32.xlu0 %v7376, 72
      %v7668 = vpop.permute.xlu0 %7667
      %7669 = vrot.lane.b32.xlu0 %v7378, 72
      %v7670 = vpop.permute.xlu0 %7669
      %7671 = vrot.lane.b32.xlu0 %v7381, 72
      %v7672 = vpop.permute.xlu0 %7671
      %7673 = vrot.lane.b32.xlu0 %v7383, 72
      %v7674 = vpop.permute.xlu0 %7673
      %7675 = vrot.lane.b32.xlu0 %v7644, 72
      %v7676 = vpop.permute.xlu0 %7675
      %7677 = vrot.lane.b32.xlu0 %v7646, 72
      %v7678 = vpop.permute.xlu0 %7677
      %7697 = vrot.lane.b32.xlu0 %v7026, 80
      %v7698 = vpop.permute.xlu0 %7697
      %7699 = vrot.lane.b32.xlu0 %v7027, 80
      %v7700 = vpop.permute.xlu0 %7699
      %7701 = vrot.lane.b32.xlu0 %v7029, 80
      %v7702 = vpop.permute.xlu0 %7701
      %7703 = vrot.lane.b32.xlu0 %v7030, 80
      %v7704 = vpop.permute.xlu0 %7703
      %7705 = vrot.lane.b32.xlu0 %v7032, 80
      %v7706 = vpop.permute.xlu0 %7705
      %7707 = vrot.lane.b32.xlu0 %v7033, 80
      %v7708 = vpop.permute.xlu0 %7707
      %7709 = vrot.lane.b32.xlu0 %v7035, 80
      %v7710 = vpop.permute.xlu0 %7709
      %7711 = vrot.lane.b32.xlu0 %v7036, 80
      %v7712 = vpop.permute.xlu0 %7711
      %7713 = vrot.lane.b32.xlu0 %v7038, 80
      %v7714 = vpop.permute.xlu0 %7713
      %7715 = vrot.lane.b32.xlu0 %v7039, 80
      %v7716 = vpop.permute.xlu0 %7715
      %7717 = vrot.lane.b32.xlu0 %v7041, 80
      %v7718 = vpop.permute.xlu0 %7717
      %7719 = vrot.lane.b32.xlu0 %v7042, 80
      %v7720 = vpop.permute.xlu0 %7719
      %7721 = vrot.lane.b32.xlu0 %v7044, 80
      %v7722 = vpop.permute.xlu0 %7721
      %7723 = vrot.lane.b32.xlu0 %v7045, 80
      %v7724 = vpop.permute.xlu0 %7723
      %7725 = vrot.lane.b32.xlu0 %v7047, 80
      %v7726 = vpop.permute.xlu0 %7725
      %7727 = vrot.lane.b32.xlu0 %v7048, 80
      %v7728 = vpop.permute.xlu0 %7727
      %v7746 = vrot.slane %v7047, 1
      %v7747 = vrot.slane %v7048, 1
      %v7748 = vsel %vm512, %v7746, %v7747
      %v7749 = vrot.slane %v7049, 1
      %v7750 = vsel %vm512, %v7747, %v7749
      %7751 = vrot.lane.b32.xlu0 %v7092, 88
      %v7752 = vpop.permute.xlu0 %7751
      %7753 = vrot.lane.b32.xlu0 %v7094, 88
      %v7754 = vpop.permute.xlu0 %7753
      %7755 = vrot.lane.b32.xlu0 %v7097, 88
      %v7756 = vpop.permute.xlu0 %7755
      %7757 = vrot.lane.b32.xlu0 %v7099, 88
      %v7758 = vpop.permute.xlu0 %7757
      %7759 = vrot.lane.b32.xlu0 %v7102, 88
      %v7760 = vpop.permute.xlu0 %7759
      %7761 = vrot.lane.b32.xlu0 %v7104, 88
      %v7762 = vpop.permute.xlu0 %7761
      %7763 = vrot.lane.b32.xlu0 %v7107, 88
      %v7764 = vpop.permute.xlu0 %7763
      %7765 = vrot.lane.b32.xlu0 %v7109, 88
      %v7766 = vpop.permute.xlu0 %7765
      %7767 = vrot.lane.b32.xlu0 %v7112, 88
      %v7768 = vpop.permute.xlu0 %7767
      %7769 = vrot.lane.b32.xlu0 %v7114, 88
      %v7770 = vpop.permute.xlu0 %7769
      %7771 = vrot.lane.b32.xlu0 %v7117, 88
      %v7772 = vpop.permute.xlu0 %7771
      %7773 = vrot.lane.b32.xlu0 %v7119, 88
      %v7774 = vpop.permute.xlu0 %7773
      %7775 = vrot.lane.b32.xlu0 %v7485, 88
      %v7776 = vpop.permute.xlu0 %7775
      %7777 = vrot.lane.b32.xlu0 %v7487, 88
      %v7778 = vpop.permute.xlu0 %7777
      %7779 = vrot.lane.b32.xlu0 %v7748, 88
      %v7780 = vpop.permute.xlu0 %7779
      %7781 = vrot.lane.b32.xlu0 %v7750, 88
      %v7782 = vpop.permute.xlu0 %7781
      %v7799 = vrot.slane %v7047, 2
      %v7800 = vrot.slane %v7048, 2
      %v7801 = vsel %vm681, %v7799, %v7800
      %v7802 = vrot.slane %v7049, 2
      %v7803 = vsel %vm681, %v7800, %v7802
      %7804 = vrot.lane.b32.xlu0 %v7180, 96
      %v7805 = vpop.permute.xlu0 %7804
      %7806 = vrot.lane.b32.xlu0 %v7182, 96
      %v7807 = vpop.permute.xlu0 %7806
      %7808 = vrot.lane.b32.xlu0 %v7185, 96
      %v7809 = vpop.permute.xlu0 %7808
      %7810 = vrot.lane.b32.xlu0 %v7187, 96
      %v7811 = vpop.permute.xlu0 %7810
      %7812 = vrot.lane.b32.xlu0 %v7190, 96
      %v7813 = vpop.permute.xlu0 %7812
      %7814 = vrot.lane.b32.xlu0 %v7192, 96
      %v7815 = vpop.permute.xlu0 %7814
      %7816 = vrot.lane.b32.xlu0 %v7195, 96
      %v7817 = vpop.permute.xlu0 %7816
      %7818 = vrot.lane.b32.xlu0 %v7197, 96
      %v7819 = vpop.permute.xlu0 %7818
      %7820 = vrot.lane.b32.xlu0 %v7200, 96
      %v7821 = vpop.permute.xlu0 %7820
      %7822 = vrot.lane.b32.xlu0 %v7202, 96
      %v7823 = vpop.permute.xlu0 %7822
      %7824 = vrot.lane.b32.xlu0 %v7205, 96
      %v7825 = vpop.permute.xlu0 %7824
      %7826 = vrot.lane.b32.xlu0 %v7207, 96
      %v7827 = vpop.permute.xlu0 %7826
      %7828 = vrot.lane.b32.xlu0 %v7538, 96
      %v7829 = vpop.permute.xlu0 %7828
      %7830 = vrot.lane.b32.xlu0 %v7540, 96
      %v7831 = vpop.permute.xlu0 %7830
      %7832 = vrot.lane.b32.xlu0 %v7801, 96
      %v7833 = vpop.permute.xlu0 %7832
      %7834 = vrot.lane.b32.xlu0 %v7803, 96
      %v7835 = vpop.permute.xlu0 %7834
      %v7852 = vrot.slane %v7047, 3
      %v7853 = vrot.slane %v7048, 3
      %v7854 = vsel %vm2543, %v7852, %v7853
      %v7855 = vrot.slane %v7049, 3
      %v7856 = vsel %vm2543, %v7853, %v7855
      %7857 = vrot.lane.b32.xlu0 %v7268, 104
      %v7858 = vpop.permute.xlu0 %7857
      %7859 = vrot.lane.b32.xlu0 %v7270, 104
      %v7860 = vpop.permute.xlu0 %7859
      %7861 = vrot.lane.b32.xlu0 %v7273, 104
      %v7862 = vpop.permute.xlu0 %7861
      %7863 = vrot.lane.b32.xlu0 %v7275, 104
      %v7864 = vpop.permute.xlu0 %7863
      %7865 = vrot.lane.b32.xlu0 %v7278, 104
      %v7866 = vpop.permute.xlu0 %7865
      %7867 = vrot.lane.b32.xlu0 %v7280, 104
      %v7868 = vpop.permute.xlu0 %7867
      %7869 = vrot.lane.b32.xlu0 %v7283, 104
      %v7870 = vpop.permute.xlu0 %7869
      %7871 = vrot.lane.b32.xlu0 %v7285, 104
      %v7872 = vpop.permute.xlu0 %7871
      %7873 = vrot.lane.b32.xlu0 %v7288, 104
      %v7874 = vpop.permute.xlu0 %7873
      %7875 = vrot.lane.b32.xlu0 %v7290, 104
      %v7876 = vpop.permute.xlu0 %7875
      %7877 = vrot.lane.b32.xlu0 %v7293, 104
      %v7878 = vpop.permute.xlu0 %7877
      %7879 = vrot.lane.b32.xlu0 %v7295, 104
      %v7880 = vpop.permute.xlu0 %7879
      %7881 = vrot.lane.b32.xlu0 %v7591, 104
      %v7882 = vpop.permute.xlu0 %7881
      %7883 = vrot.lane.b32.xlu0 %v7593, 104
      %v7884 = vpop.permute.xlu0 %7883
      %7885 = vrot.lane.b32.xlu0 %v7854, 104
      %v7886 = vpop.permute.xlu0 %7885
      %7887 = vrot.lane.b32.xlu0 %v7856, 104
      %v7888 = vpop.permute.xlu0 %7887
      %v7905 = vrot.slane %v7047, 4
      %v7906 = vrot.slane %v7048, 4
      %v7907 = vsel %vm2712, %v7905, %v7906
      %v7908 = vrot.slane %v7049, 4
      %v7909 = vsel %vm2712, %v7906, %v7908
      %7910 = vrot.lane.b32.xlu0 %v7356, 112
      %v7911 = vpop.permute.xlu0 %7910
      %7912 = vrot.lane.b32.xlu0 %v7358, 112
      %v7913 = vpop.permute.xlu0 %7912
      %7914 = vrot.lane.b32.xlu0 %v7361, 112
      %v7915 = vpop.permute.xlu0 %7914
      %7916 = vrot.lane.b32.xlu0 %v7363, 112
      %v7917 = vpop.permute.xlu0 %7916
      %7918 = vrot.lane.b32.xlu0 %v7366, 112
      %v7919 = vpop.permute.xlu0 %7918
      %7920 = vrot.lane.b32.xlu0 %v7368, 112
      %v7921 = vpop.permute.xlu0 %7920
      %7922 = vrot.lane.b32.xlu0 %v7371, 112
      %v7923 = vpop.permute.xlu0 %7922
      %7924 = vrot.lane.b32.xlu0 %v7373, 112
      %v7925 = vpop.permute.xlu0 %7924
      %7926 = vrot.lane.b32.xlu0 %v7376, 112
      %v7927 = vpop.permute.xlu0 %7926
      %7928 = vrot.lane.b32.xlu0 %v7378, 112
      %v7929 = vpop.permute.xlu0 %7928
      %7930 = vrot.lane.b32.xlu0 %v7381, 112
      %v7931 = vpop.permute.xlu0 %7930
      %7932 = vrot.lane.b32.xlu0 %v7383, 112
      %v7933 = vpop.permute.xlu0 %7932
      %7934 = vrot.lane.b32.xlu0 %v7644, 112
      %v7935 = vpop.permute.xlu0 %7934
      %7936 = vrot.lane.b32.xlu0 %v7646, 112
      %v7937 = vpop.permute.xlu0 %7936
      %7938 = vrot.lane.b32.xlu0 %v7907, 112
      %v7939 = vpop.permute.xlu0 %7938
      %7940 = vrot.lane.b32.xlu0 %v7909, 112
      %v7941 = vpop.permute.xlu0 %7940
      %7960 = vrot.lane.b32.xlu0 %v7029, 120
      %v7961 = vpop.permute.xlu0 %7960
      %7962 = vrot.lane.b32.xlu0 %v7030, 120
      %v7963 = vpop.permute.xlu0 %7962
      %7964 = vrot.lane.b32.xlu0 %v7032, 120
      %v7965 = vpop.permute.xlu0 %7964
      %7966 = vrot.lane.b32.xlu0 %v7033, 120
      %v7967 = vpop.permute.xlu0 %7966
      %7968 = vrot.lane.b32.xlu0 %v7035, 120
      %v7969 = vpop.permute.xlu0 %7968
      %7970 = vrot.lane.b32.xlu0 %v7036, 120
      %v7971 = vpop.permute.xlu0 %7970
      %7972 = vrot.lane.b32.xlu0 %v7038, 120
      %v7973 = vpop.permute.xlu0 %7972
      %7974 = vrot.lane.b32.xlu0 %v7039, 120
      %v7975 = vpop.permute.xlu0 %7974
      %7976 = vrot.lane.b32.xlu0 %v7041, 120
      %v7977 = vpop.permute.xlu0 %7976
      %7978 = vrot.lane.b32.xlu0 %v7042, 120
      %v7979 = vpop.permute.xlu0 %7978
      %7980 = vrot.lane.b32.xlu0 %v7044, 120
      %v7981 = vpop.permute.xlu0 %7980
      %7982 = vrot.lane.b32.xlu0 %v7045, 120
      %v7983 = vpop.permute.xlu0 %7982
      %7984 = vrot.lane.b32.xlu0 %v7047, 120
      %v7985 = vpop.permute.xlu0 %7984
      %7986 = vrot.lane.b32.xlu0 %v7048, 120
      %v7987 = vpop.permute.xlu0 %7986
      %7988 = vrot.lane.b32.xlu0 %v7050, 120
      %v7989 = vpop.permute.xlu0 %7988
      %7990 = vrot.lane.b32.xlu0 %v7051, 120
      %v7991 = vpop.permute.xlu0 %7990
      %v8008 = vsel %vm1561, %v7020, %v7121
      %v8009 = vsel %vm1561, %v7021, %v7123
      %v8010 = vsel %vm1561, %v7023, %v7125
      %v8011 = vsel %vm1561, %v7024, %v7127
      %v8012 = vsel %vm1561, %v7026, %v7129
      %v8013 = vsel %vm1561, %v7027, %v7131
      %v8014 = vsel %vm1561, %v7029, %v7133
      %v8015 = vsel %vm1561, %v7030, %v7135
      %v8016 = vsel %vm1561, %v7032, %v7137
      %v8017 = vsel %vm1561, %v7033, %v7139
      %v8018 = vsel %vm1561, %v7035, %v7141
      %v8019 = vsel %vm1561, %v7036, %v7143
      %v8020 = vsel %vm1561, %v7038, %v7145
      %v8021 = vsel %vm1561, %v7039, %v7147
      %v8022 = vsel %vm1561, %v7041, %v7149
      %v8023 = vsel %vm1561, %v7042, %v7151
      %v8024 = vsel %vm1635, %v8008, %v7209
      %v8025 = vsel %vm1635, %v8009, %v7211
      %v8026 = vsel %vm1635, %v8010, %v7213
      %v8027 = vsel %vm1635, %v8011, %v7215
      %v8028 = vsel %vm1635, %v8012, %v7217
      %v8029 = vsel %vm1635, %v8013, %v7219
      %v8030 = vsel %vm1635, %v8014, %v7221
      %v8031 = vsel %vm1635, %v8015, %v7223
      %v8032 = vsel %vm1635, %v8016, %v7225
      %v8033 = vsel %vm1635, %v8017, %v7227
      %v8034 = vsel %vm1635, %v8018, %v7229
      %v8035 = vsel %vm1635, %v8019, %v7231
      %v8036 = vsel %vm1635, %v8020, %v7233
      %v8037 = vsel %vm1635, %v8021, %v7235
      %v8038 = vsel %vm1635, %v8022, %v7237
      %v8039 = vsel %vm1635, %v8023, %v7239
      %v8040 = vsel %vm1709, %v8024, %v7297
      %v8041 = vsel %vm1709, %v8025, %v7299
      %v8042 = vsel %vm1709, %v8026, %v7301
      %v8043 = vsel %vm1709, %v8027, %v7303
      %v8044 = vsel %vm1709, %v8028, %v7305
      %v8045 = vsel %vm1709, %v8029, %v7307
      %v8046 = vsel %vm1709, %v8030, %v7309
      %v8047 = vsel %vm1709, %v8031, %v7311
      %v8048 = vsel %vm1709, %v8032, %v7313
      %v8049 = vsel %vm1709, %v8033, %v7315
      %v8050 = vsel %vm1709, %v8034, %v7317
      %v8051 = vsel %vm1709, %v8035, %v7319
      %v8052 = vsel %vm1709, %v8036, %v7321
      %v8053 = vsel %vm1709, %v8037, %v7323
      %v8054 = vsel %vm1709, %v8038, %v7325
      %v8055 = vsel %vm1709, %v8039, %v7327
      %v8056 = vsel %vm1783, %v8040, %v7385
      %v8057 = vsel %vm1783, %v8041, %v7387
      %v8058 = vsel %vm1783, %v8042, %v7389
      %v8059 = vsel %vm1783, %v8043, %v7391
      %v8060 = vsel %vm1783, %v8044, %v7393
      %v8061 = vsel %vm1783, %v8045, %v7395
      %v8062 = vsel %vm1783, %v8046, %v7397
      %v8063 = vsel %vm1783, %v8047, %v7399
      %v8064 = vsel %vm1783, %v8048, %v7401
      %v8065 = vsel %vm1783, %v8049, %v7403
      %v8066 = vsel %vm1783, %v8050, %v7405
      %v8067 = vsel %vm1783, %v8051, %v7407
      %v8068 = vsel %vm1783, %v8052, %v7409
      %v8069 = vsel %vm1783, %v8053, %v7411
      %v8070 = vsel %vm1783, %v8054, %v7413
      %v8071 = vsel %vm1783, %v8055, %v7415
      %v8072 = vsel %vm4347, %v8056, %v7435
      %v8073 = vsel %vm4347, %v8057, %v7437
      %v8074 = vsel %vm4347, %v8058, %v7439
      %v8075 = vsel %vm4347, %v8059, %v7441
      %v8076 = vsel %vm4347, %v8060, %v7443
      %v8077 = vsel %vm4347, %v8061, %v7445
      %v8078 = vsel %vm4347, %v8062, %v7447
      %v8079 = vsel %vm4347, %v8063, %v7449
      %v8080 = vsel %vm4347, %v8064, %v7451
      %v8081 = vsel %vm4347, %v8065, %v7453
      %v8082 = vsel %vm4347, %v8066, %v7455
      %v8083 = vsel %vm4347, %v8067, %v7457
      %v8084 = vsel %vm4347, %v8068, %v7459
      %v8085 = vsel %vm4347, %v8069, %v7461
      %v8086 = vsel %vm4347, %v8070, %v7463
      %v8087 = vsel %vm4347, %v8071, %v7465
      %v8088 = vsel %vm4421, %v8072, %v7489
      %v8089 = vsel %vm4421, %v8073, %v7491
      %v8090 = vsel %vm4421, %v8074, %v7493
      %v8091 = vsel %vm4421, %v8075, %v7495
      %v8092 = vsel %vm4421, %v8076, %v7497
      %v8093 = vsel %vm4421, %v8077, %v7499
      %v8094 = vsel %vm4421, %v8078, %v7501
      %v8095 = vsel %vm4421, %v8079, %v7503
      %v8096 = vsel %vm4421, %v8080, %v7505
      %v8097 = vsel %vm4421, %v8081, %v7507
      %v8098 = vsel %vm4421, %v8082, %v7509
      %v8099 = vsel %vm4421, %v8083, %v7511
      %v8100 = vsel %vm4421, %v8084, %v7513
      %v8101 = vsel %vm4421, %v8085, %v7515
      %v8102 = vsel %vm4421, %v8086, %v7517
      %v8103 = vsel %vm4421, %v8087, %v7519
      %v8104 = vsel %vm4495, %v8088, %v7542
      %v8105 = vsel %vm4495, %v8089, %v7544
      %v8106 = vsel %vm4495, %v8090, %v7546
      %v8107 = vsel %vm4495, %v8091, %v7548
      %v8108 = vsel %vm4495, %v8092, %v7550
      %v8109 = vsel %vm4495, %v8093, %v7552
      %v8110 = vsel %vm4495, %v8094, %v7554
      %v8111 = vsel %vm4495, %v8095, %v7556
      %v8112 = vsel %vm4495, %v8096, %v7558
      %v8113 = vsel %vm4495, %v8097, %v7560
      %v8114 = vsel %vm4495, %v8098, %v7562
      %v8115 = vsel %vm4495, %v8099, %v7564
      %v8116 = vsel %vm4495, %v8100, %v7566
      %v8117 = vsel %vm4495, %v8101, %v7568
      %v8118 = vsel %vm4495, %v8102, %v7570
      %v8119 = vsel %vm4495, %v8103, %v7572
      %v8120 = vsel %vm5337, %v8104, %v7595
      %v8121 = vsel %vm5337, %v8105, %v7597
      %v8122 = vsel %vm5337, %v8106, %v7599
      %v8123 = vsel %vm5337, %v8107, %v7601
      %v8124 = vsel %vm5337, %v8108, %v7603
      %v8125 = vsel %vm5337, %v8109, %v7605
      %v8126 = vsel %vm5337, %v8110, %v7607
      %v8127 = vsel %vm5337, %v8111, %v7609
      %v8128 = vsel %vm5337, %v8112, %v7611
      %v8129 = vsel %vm5337, %v8113, %v7613
      %v8130 = vsel %vm5337, %v8114, %v7615
      %v8131 = vsel %vm5337, %v8115, %v7617
      %v8132 = vsel %vm5337, %v8116, %v7619
      %v8133 = vsel %vm5337, %v8117, %v7621
      %v8134 = vsel %vm5337, %v8118, %v7623
      %v8135 = vsel %vm5337, %v8119, %v7625
      %vm8136 = vcmask 588800
      %v8137 = vsel %vm8136, %v8120, %v7648
      %v8138 = vsel %vm8136, %v8121, %v7650
      %v8139 = vsel %vm8136, %v8122, %v7652
      %v8140 = vsel %vm8136, %v8123, %v7654
      %v8141 = vsel %vm8136, %v8124, %v7656
      %v8142 = vsel %vm8136, %v8125, %v7658
      %v8143 = vsel %vm8136, %v8126, %v7660
      %v8144 = vsel %vm8136, %v8127, %v7662
      %v8145 = vsel %vm8136, %v8128, %v7664
      %v8146 = vsel %vm8136, %v8129, %v7666
      %v8147 = vsel %vm8136, %v8130, %v7668
      %v8148 = vsel %vm8136, %v8131, %v7670
      %v8149 = vsel %vm8136, %v8132, %v7672
      %v8150 = vsel %vm8136, %v8133, %v7674
      %v8151 = vsel %vm8136, %v8134, %v7676
      %v8152 = vsel %vm8136, %v8135, %v7678
      %vm8153 = vcmask 654336
      %v8154 = vsel %vm8153, %v8137, %v7698
      %v8155 = vsel %vm8153, %v8138, %v7700
      %v8156 = vsel %vm8153, %v8139, %v7702
      %v8157 = vsel %vm8153, %v8140, %v7704
      %v8158 = vsel %vm8153, %v8141, %v7706
      %v8159 = vsel %vm8153, %v8142, %v7708
      %v8160 = vsel %vm8153, %v8143, %v7710
      %v8161 = vsel %vm8153, %v8144, %v7712
      %v8162 = vsel %vm8153, %v8145, %v7714
      %v8163 = vsel %vm8153, %v8146, %v7716
      %v8164 = vsel %vm8153, %v8147, %v7718
      %v8165 = vsel %vm8153, %v8148, %v7720
      %v8166 = vsel %vm8153, %v8149, %v7722
      %v8167 = vsel %vm8153, %v8150, %v7724
      %v8168 = vsel %vm8153, %v8151, %v7726
      %v8169 = vsel %vm8153, %v8152, %v7728
      %vm8170 = vcmask 719872
      %v8171 = vsel %vm8170, %v8154, %v7752
      %v8172 = vsel %vm8170, %v8155, %v7754
      %v8173 = vsel %vm8170, %v8156, %v7756
      %v8174 = vsel %vm8170, %v8157, %v7758
      %v8175 = vsel %vm8170, %v8158, %v7760
      %v8176 = vsel %vm8170, %v8159, %v7762
      %v8177 = vsel %vm8170, %v8160, %v7764
      %v8178 = vsel %vm8170, %v8161, %v7766
      %v8179 = vsel %vm8170, %v8162, %v7768
      %v8180 = vsel %vm8170, %v8163, %v7770
      %v8181 = vsel %vm8170, %v8164, %v7772
      %v8182 = vsel %vm8170, %v8165, %v7774
      %v8183 = vsel %vm8170, %v8166, %v7776
      %v8184 = vsel %vm8170, %v8167, %v7778
      %v8185 = vsel %vm8170, %v8168, %v7780
      %v8186 = vsel %vm8170, %v8169, %v7782
      %vm8187 = vcmask 785408
      %v8188 = vsel %vm8187, %v8171, %v7805
      %v8189 = vsel %vm8187, %v8172, %v7807
      %v8190 = vsel %vm8187, %v8173, %v7809
      %v8191 = vsel %vm8187, %v8174, %v7811
      %v8192 = vsel %vm8187, %v8175, %v7813
      %v8193 = vsel %vm8187, %v8176, %v7815
      %v8194 = vsel %vm8187, %v8177, %v7817
      %v8195 = vsel %vm8187, %v8178, %v7819
      %v8196 = vsel %vm8187, %v8179, %v7821
      %v8197 = vsel %vm8187, %v8180, %v7823
      %v8198 = vsel %vm8187, %v8181, %v7825
      %v8199 = vsel %vm8187, %v8182, %v7827
      %v8200 = vsel %vm8187, %v8183, %v7829
      %v8201 = vsel %vm8187, %v8184, %v7831
      %v8202 = vsel %vm8187, %v8185, %v7833
      %v8203 = vsel %vm8187, %v8186, %v7835
      %vm8204 = vcmask 850944
      %v8205 = vsel %vm8204, %v8188, %v7858
      %v8206 = vsel %vm8204, %v8189, %v7860
      %v8207 = vsel %vm8204, %v8190, %v7862
      %v8208 = vsel %vm8204, %v8191, %v7864
      %v8209 = vsel %vm8204, %v8192, %v7866
      %v8210 = vsel %vm8204, %v8193, %v7868
      %v8211 = vsel %vm8204, %v8194, %v7870
      %v8212 = vsel %vm8204, %v8195, %v7872
      %v8213 = vsel %vm8204, %v8196, %v7874
      %v8214 = vsel %vm8204, %v8197, %v7876
      %v8215 = vsel %vm8204, %v8198, %v7878
      %v8216 = vsel %vm8204, %v8199, %v7880
      %v8217 = vsel %vm8204, %v8200, %v7882
      %v8218 = vsel %vm8204, %v8201, %v7884
      %v8219 = vsel %vm8204, %v8202, %v7886
      %v8220 = vsel %vm8204, %v8203, %v7888
      %vm8221 = vcmask 916480
      %v8222 = vsel %vm8221, %v8205, %v7911
      %v8223 = vsel %vm8221, %v8206, %v7913
      %v8224 = vsel %vm8221, %v8207, %v7915
      %v8225 = vsel %vm8221, %v8208, %v7917
      %v8226 = vsel %vm8221, %v8209, %v7919
      %v8227 = vsel %vm8221, %v8210, %v7921
      %v8228 = vsel %vm8221, %v8211, %v7923
      %v8229 = vsel %vm8221, %v8212, %v7925
      %v8230 = vsel %vm8221, %v8213, %v7927
      %v8231 = vsel %vm8221, %v8214, %v7929
      %v8232 = vsel %vm8221, %v8215, %v7931
      %v8233 = vsel %vm8221, %v8216, %v7933
      %v8234 = vsel %vm8221, %v8217, %v7935
      %v8235 = vsel %vm8221, %v8218, %v7937
      %v8236 = vsel %vm8221, %v8219, %v7939
      %v8237 = vsel %vm8221, %v8220, %v7941
      %vm8238 = vcmask 982016
      %v8239 = vsel %vm8238, %v8222, %v7961
      %v8240 = vsel %vm8238, %v8223, %v7963
      %v8241 = vsel %vm8238, %v8224, %v7965
      %v8242 = vsel %vm8238, %v8225, %v7967
      %v8243 = vsel %vm8238, %v8226, %v7969
      %v8244 = vsel %vm8238, %v8227, %v7971
      %v8245 = vsel %vm8238, %v8228, %v7973
      %v8246 = vsel %vm8238, %v8229, %v7975
      %v8247 = vsel %vm8238, %v8230, %v7977
      %v8248 = vsel %vm8238, %v8231, %v7979
      %v8249 = vsel %vm8238, %v8232, %v7981
      %v8250 = vsel %vm8238, %v8233, %v7983
      %v8251 = vsel %vm8238, %v8234, %v7985
      %v8252 = vsel %vm8238, %v8235, %v7987
      %v8253 = vsel %vm8238, %v8236, %v7989
      %v8254 = vsel %vm8238, %v8237, %v7991
      %v8256 = vrot.slane %v7050, 1
      %v8257 = vrot.slane %v7051, 1
      %v8258 = vsel %vm512, %v8256, %v8257
      %v8259 = vrot.slane %v7052, 1
      %v8260 = vsel %vm512, %v8257, %v8259
      %8261 = vrot.lane.b32.xlu0 %v7098, 8
      %v8262 = vpop.permute.xlu0 %8261
      %8263 = vrot.lane.b32.xlu0 %v7103, 8
      %v8264 = vpop.permute.xlu0 %8263
      %8265 = vrot.lane.b32.xlu0 %v7108, 8
      %v8266 = vpop.permute.xlu0 %8265
      %8267 = vrot.lane.b32.xlu0 %v7113, 8
      %v8268 = vpop.permute.xlu0 %8267
      %8269 = vrot.lane.b32.xlu0 %v7118, 8
      %v8270 = vpop.permute.xlu0 %8269
      %8271 = vrot.lane.b32.xlu0 %v7485, 8
      %v8272 = vpop.permute.xlu0 %8271
      %8273 = vrot.lane.b32.xlu0 %v7487, 8
      %v8274 = vpop.permute.xlu0 %8273
      %8275 = vrot.lane.b32.xlu0 %v7486, 8
      %v8276 = vpop.permute.xlu0 %8275
      %8277 = vrot.lane.b32.xlu0 %v7748, 8
      %v8278 = vpop.permute.xlu0 %8277
      %8279 = vrot.lane.b32.xlu0 %v7750, 8
      %v8280 = vpop.permute.xlu0 %8279
      %8281 = vrot.lane.b32.xlu0 %v7749, 8
      %v8282 = vpop.permute.xlu0 %8281
      %8283 = vrot.lane.b32.xlu0 %v8258, 8
      %v8284 = vpop.permute.xlu0 %8283
      %8285 = vrot.lane.b32.xlu0 %v8260, 8
      %v8286 = vpop.permute.xlu0 %8285
      %8287 = vrot.lane.b32.xlu0 %v8259, 8
      %v8288 = vpop.permute.xlu0 %8287
      %v8303 = vrot.slane %v7050, 2
      %v8304 = vrot.slane %v7051, 2
      %v8305 = vsel %vm681, %v8303, %v8304
      %v8306 = vrot.slane %v7052, 2
      %v8307 = vsel %vm681, %v8304, %v8306
      %8308 = vrot.lane.b32.xlu0 %v7186, 16
      %v8309 = vpop.permute.xlu0 %8308
      %8310 = vrot.lane.b32.xlu0 %v7191, 16
      %v8311 = vpop.permute.xlu0 %8310
      %8312 = vrot.lane.b32.xlu0 %v7196, 16
      %v8313 = vpop.permute.xlu0 %8312
      %8314 = vrot.lane.b32.xlu0 %v7201, 16
      %v8315 = vpop.permute.xlu0 %8314
      %8316 = vrot.lane.b32.xlu0 %v7206, 16
      %v8317 = vpop.permute.xlu0 %8316
      %8318 = vrot.lane.b32.xlu0 %v7538, 16
      %v8319 = vpop.permute.xlu0 %8318
      %8320 = vrot.lane.b32.xlu0 %v7540, 16
      %v8321 = vpop.permute.xlu0 %8320
      %8322 = vrot.lane.b32.xlu0 %v7539, 16
      %v8323 = vpop.permute.xlu0 %8322
      %8324 = vrot.lane.b32.xlu0 %v7801, 16
      %v8325 = vpop.permute.xlu0 %8324
      %8326 = vrot.lane.b32.xlu0 %v7803, 16
      %v8327 = vpop.permute.xlu0 %8326
      %8328 = vrot.lane.b32.xlu0 %v7802, 16
      %v8329 = vpop.permute.xlu0 %8328
      %8330 = vrot.lane.b32.xlu0 %v8305, 16
      %v8331 = vpop.permute.xlu0 %8330
      %8332 = vrot.lane.b32.xlu0 %v8307, 16
      %v8333 = vpop.permute.xlu0 %8332
      %8334 = vrot.lane.b32.xlu0 %v8306, 16
      %v8335 = vpop.permute.xlu0 %8334
      %v8350 = vrot.slane %v7050, 3
      %v8351 = vrot.slane %v7051, 3
      %v8352 = vsel %vm2543, %v8350, %v8351
      %v8353 = vrot.slane %v7052, 3
      %v8354 = vsel %vm2543, %v8351, %v8353
      %8355 = vrot.lane.b32.xlu0 %v7274, 24
      %v8356 = vpop.permute.xlu0 %8355
      %8357 = vrot.lane.b32.xlu0 %v7279, 24
      %v8358 = vpop.permute.xlu0 %8357
      %8359 = vrot.lane.b32.xlu0 %v7284, 24
      %v8360 = vpop.permute.xlu0 %8359
      %8361 = vrot.lane.b32.xlu0 %v7289, 24
      %v8362 = vpop.permute.xlu0 %8361
      %8363 = vrot.lane.b32.xlu0 %v7294, 24
      %v8364 = vpop.permute.xlu0 %8363
      %8365 = vrot.lane.b32.xlu0 %v7591, 24
      %v8366 = vpop.permute.xlu0 %8365
      %8367 = vrot.lane.b32.xlu0 %v7593, 24
      %v8368 = vpop.permute.xlu0 %8367
      %8369 = vrot.lane.b32.xlu0 %v7592, 24
      %v8370 = vpop.permute.xlu0 %8369
      %8371 = vrot.lane.b32.xlu0 %v7854, 24
      %v8372 = vpop.permute.xlu0 %8371
      %8373 = vrot.lane.b32.xlu0 %v7856, 24
      %v8374 = vpop.permute.xlu0 %8373
      %8375 = vrot.lane.b32.xlu0 %v7855, 24
      %v8376 = vpop.permute.xlu0 %8375
      %8377 = vrot.lane.b32.xlu0 %v8352, 24
      %v8378 = vpop.permute.xlu0 %8377
      %8379 = vrot.lane.b32.xlu0 %v8354, 24
      %v8380 = vpop.permute.xlu0 %8379
      %8381 = vrot.lane.b32.xlu0 %v8353, 24
      %v8382 = vpop.permute.xlu0 %8381
      %v8399 = vrot.slane %v7032, 7
      %v8400 = vrot.slane %v7033, 7
      %v8401 = vsel %vm4640, %v8399, %v8400
      %v8402 = vrot.slane %v7035, 7
      %v8403 = vrot.slane %v7036, 7
      %v8404 = vsel %vm4640, %v8402, %v8403
      %v8405 = vrot.slane %v7038, 7
      %v8406 = vrot.slane %v7039, 7
      %v8407 = vsel %vm4640, %v8405, %v8406
      %v8408 = vrot.slane %v7041, 7
      %v8409 = vrot.slane %v7042, 7
      %v8410 = vsel %vm4640, %v8408, %v8409
      %v8411 = vrot.slane %v7044, 7
      %v8412 = vrot.slane %v7045, 7
      %v8413 = vsel %vm4640, %v8411, %v8412
      %v8414 = vrot.slane %v7047, 7
      %v8415 = vrot.slane %v7048, 7
      %v8416 = vsel %vm4640, %v8414, %v8415
      %v8417 = vrot.slane %v7050, 7
      %v8418 = vrot.slane %v7051, 7
      %v8419 = vsel %vm4640, %v8417, %v8418
      %v8420 = vrot.slane %v7053, 7
      %v8421 = vrot.slane %v7054, 7
      %v8422 = vsel %vm4640, %v8420, %v8421
      %8423 = vrot.lane.b32.xlu0 %v8399, 32
      %v8424 = vpop.permute.xlu0 %8423
      %8425 = vrot.lane.b32.xlu0 %v8401, 32
      %v8426 = vpop.permute.xlu0 %8425
      %8427 = vrot.lane.b32.xlu0 %v8400, 32
      %v8428 = vpop.permute.xlu0 %8427
      %8429 = vrot.lane.b32.xlu0 %v8402, 32
      %v8430 = vpop.permute.xlu0 %8429
      %8431 = vrot.lane.b32.xlu0 %v8404, 32
      %v8432 = vpop.permute.xlu0 %8431
      %8433 = vrot.lane.b32.xlu0 %v8403, 32
      %v8434 = vpop.permute.xlu0 %8433
      %8435 = vrot.lane.b32.xlu0 %v8405, 32
      %v8436 = vpop.permute.xlu0 %8435
      %8437 = vrot.lane.b32.xlu0 %v8407, 32
      %v8438 = vpop.permute.xlu0 %8437
      %8439 = vrot.lane.b32.xlu0 %v8406, 32
      %v8440 = vpop.permute.xlu0 %8439
      %8441 = vrot.lane.b32.xlu0 %v8408, 32
      %v8442 = vpop.permute.xlu0 %8441
      %8443 = vrot.lane.b32.xlu0 %v8410, 32
      %v8444 = vpop.permute.xlu0 %8443
      %8445 = vrot.lane.b32.xlu0 %v8409, 32
      %v8446 = vpop.permute.xlu0 %8445
      %8447 = vrot.lane.b32.xlu0 %v8411, 32
      %v8448 = vpop.permute.xlu0 %8447
      %8449 = vrot.lane.b32.xlu0 %v8413, 32
      %v8450 = vpop.permute.xlu0 %8449
      %8451 = vrot.lane.b32.xlu0 %v8412, 32
      %v8452 = vpop.permute.xlu0 %8451
      %8453 = vrot.lane.b32.xlu0 %v8414, 32
      %v8454 = vpop.permute.xlu0 %8453
      %8455 = vrot.lane.b32.xlu0 %v8416, 32
      %v8456 = vpop.permute.xlu0 %8455
      %8457 = vrot.lane.b32.xlu0 %v8415, 32
      %v8458 = vpop.permute.xlu0 %8457
      %8459 = vrot.lane.b32.xlu0 %v8417, 32
      %v8460 = vpop.permute.xlu0 %8459
      %8461 = vrot.lane.b32.xlu0 %v8419, 32
      %v8462 = vpop.permute.xlu0 %8461
      %8463 = vrot.lane.b32.xlu0 %v8418, 32
      %v8464 = vpop.permute.xlu0 %8463
      %8465 = vrot.lane.b32.xlu0 %v8420, 32
      %v8466 = vpop.permute.xlu0 %8465
      %8467 = vrot.lane.b32.xlu0 %v8422, 32
      %v8468 = vpop.permute.xlu0 %8467
      %8469 = vrot.lane.b32.xlu0 %v8421, 32
      %v8470 = vpop.permute.xlu0 %8469
      %8496 = vrot.lane.b32.xlu0 %v7034, 40
      %v8497 = vpop.permute.xlu0 %8496
      %8498 = vrot.lane.b32.xlu0 %v7037, 40
      %v8499 = vpop.permute.xlu0 %8498
      %8500 = vrot.lane.b32.xlu0 %v7040, 40
      %v8501 = vpop.permute.xlu0 %8500
      %8502 = vrot.lane.b32.xlu0 %v7043, 40
      %v8503 = vpop.permute.xlu0 %8502
      %8504 = vrot.lane.b32.xlu0 %v7046, 40
      %v8505 = vpop.permute.xlu0 %8504
      %8506 = vrot.lane.b32.xlu0 %v7047, 40
      %v8507 = vpop.permute.xlu0 %8506
      %8508 = vrot.lane.b32.xlu0 %v7048, 40
      %v8509 = vpop.permute.xlu0 %8508
      %8510 = vrot.lane.b32.xlu0 %v7049, 40
      %v8511 = vpop.permute.xlu0 %8510
      %8512 = vrot.lane.b32.xlu0 %v7050, 40
      %v8513 = vpop.permute.xlu0 %8512
      %8514 = vrot.lane.b32.xlu0 %v7051, 40
      %v8515 = vpop.permute.xlu0 %8514
      %8516 = vrot.lane.b32.xlu0 %v7052, 40
      %v8517 = vpop.permute.xlu0 %8516
      %8518 = vrot.lane.b32.xlu0 %v7053, 40
      %v8519 = vpop.permute.xlu0 %8518
      %8520 = vrot.lane.b32.xlu0 %v7054, 40
      %v8521 = vpop.permute.xlu0 %8520
      %8522 = vrot.lane.b32.xlu0 %v7055, 40
      %v8523 = vpop.permute.xlu0 %8522
      %v8538 = vrot.slane %v7053, 1
      %v8539 = vrot.slane %v7054, 1
      %v8540 = vsel %vm512, %v8538, %v8539
      %v8541 = vrot.slane %v7055, 1
      %v8542 = vsel %vm512, %v8539, %v8541
      %8543 = vrot.lane.b32.xlu0 %v7103, 48
      %v8544 = vpop.permute.xlu0 %8543
      %8545 = vrot.lane.b32.xlu0 %v7108, 48
      %v8546 = vpop.permute.xlu0 %8545
      %8547 = vrot.lane.b32.xlu0 %v7113, 48
      %v8548 = vpop.permute.xlu0 %8547
      %8549 = vrot.lane.b32.xlu0 %v7118, 48
      %v8550 = vpop.permute.xlu0 %8549
      %8551 = vrot.lane.b32.xlu0 %v7486, 48
      %v8552 = vpop.permute.xlu0 %8551
      %8553 = vrot.lane.b32.xlu0 %v7748, 48
      %v8554 = vpop.permute.xlu0 %8553
      %8555 = vrot.lane.b32.xlu0 %v7750, 48
      %v8556 = vpop.permute.xlu0 %8555
      %8557 = vrot.lane.b32.xlu0 %v7749, 48
      %v8558 = vpop.permute.xlu0 %8557
      %8559 = vrot.lane.b32.xlu0 %v8258, 48
      %v8560 = vpop.permute.xlu0 %8559
      %8561 = vrot.lane.b32.xlu0 %v8260, 48
      %v8562 = vpop.permute.xlu0 %8561
      %8563 = vrot.lane.b32.xlu0 %v8259, 48
      %v8564 = vpop.permute.xlu0 %8563
      %8565 = vrot.lane.b32.xlu0 %v8540, 48
      %v8566 = vpop.permute.xlu0 %8565
      %8567 = vrot.lane.b32.xlu0 %v8542, 48
      %v8568 = vpop.permute.xlu0 %8567
      %8569 = vrot.lane.b32.xlu0 %v8541, 48
      %v8570 = vpop.permute.xlu0 %8569
      %v8585 = vrot.slane %v7053, 2
      %v8586 = vrot.slane %v7054, 2
      %v8587 = vsel %vm681, %v8585, %v8586
      %v8588 = vrot.slane %v7055, 2
      %v8589 = vsel %vm681, %v8586, %v8588
      %8590 = vrot.lane.b32.xlu0 %v7191, 56
      %v8591 = vpop.permute.xlu0 %8590
      %8592 = vrot.lane.b32.xlu0 %v7196, 56
      %v8593 = vpop.permute.xlu0 %8592
      %8594 = vrot.lane.b32.xlu0 %v7201, 56
      %v8595 = vpop.permute.xlu0 %8594
      %8596 = vrot.lane.b32.xlu0 %v7206, 56
      %v8597 = vpop.permute.xlu0 %8596
      %8598 = vrot.lane.b32.xlu0 %v7539, 56
      %v8599 = vpop.permute.xlu0 %8598
      %8600 = vrot.lane.b32.xlu0 %v7801, 56
      %v8601 = vpop.permute.xlu0 %8600
      %8602 = vrot.lane.b32.xlu0 %v7803, 56
      %v8603 = vpop.permute.xlu0 %8602
      %8604 = vrot.lane.b32.xlu0 %v7802, 56
      %v8605 = vpop.permute.xlu0 %8604
      %8606 = vrot.lane.b32.xlu0 %v8305, 56
      %v8607 = vpop.permute.xlu0 %8606
      %8608 = vrot.lane.b32.xlu0 %v8307, 56
      %v8609 = vpop.permute.xlu0 %8608
      %8610 = vrot.lane.b32.xlu0 %v8306, 56
      %v8611 = vpop.permute.xlu0 %8610
      %8612 = vrot.lane.b32.xlu0 %v8587, 56
      %v8613 = vpop.permute.xlu0 %8612
      %8614 = vrot.lane.b32.xlu0 %v8589, 56
      %v8615 = vpop.permute.xlu0 %8614
      %8616 = vrot.lane.b32.xlu0 %v8588, 56
      %v8617 = vpop.permute.xlu0 %8616
      %v8632 = vrot.slane %v7053, 3
      %v8633 = vrot.slane %v7054, 3
      %v8634 = vsel %vm2543, %v8632, %v8633
      %v8635 = vrot.slane %v7055, 3
      %v8636 = vsel %vm2543, %v8633, %v8635
      %8637 = vrot.lane.b32.xlu0 %v7279, 64
      %v8638 = vpop.permute.xlu0 %8637
      %8639 = vrot.lane.b32.xlu0 %v7284, 64
      %v8640 = vpop.permute.xlu0 %8639
      %8641 = vrot.lane.b32.xlu0 %v7289, 64
      %v8642 = vpop.permute.xlu0 %8641
      %8643 = vrot.lane.b32.xlu0 %v7294, 64
      %v8644 = vpop.permute.xlu0 %8643
      %8645 = vrot.lane.b32.xlu0 %v7592, 64
      %v8646 = vpop.permute.xlu0 %8645
      %8647 = vrot.lane.b32.xlu0 %v7854, 64
      %v8648 = vpop.permute.xlu0 %8647
      %8649 = vrot.lane.b32.xlu0 %v7856, 64
      %v8650 = vpop.permute.xlu0 %8649
      %8651 = vrot.lane.b32.xlu0 %v7855, 64
      %v8652 = vpop.permute.xlu0 %8651
      %8653 = vrot.lane.b32.xlu0 %v8352, 64
      %v8654 = vpop.permute.xlu0 %8653
      %8655 = vrot.lane.b32.xlu0 %v8354, 64
      %v8656 = vpop.permute.xlu0 %8655
      %8657 = vrot.lane.b32.xlu0 %v8353, 64
      %v8658 = vpop.permute.xlu0 %8657
      %8659 = vrot.lane.b32.xlu0 %v8634, 64
      %v8660 = vpop.permute.xlu0 %8659
      %8661 = vrot.lane.b32.xlu0 %v8636, 64
      %v8662 = vpop.permute.xlu0 %8661
      %8663 = vrot.lane.b32.xlu0 %v8635, 64
      %v8664 = vpop.permute.xlu0 %8663
      %v8679 = vsel %vm1561, %v7031, %v8262
      %v8680 = vsel %vm1561, %v7034, %v8264
      %v8681 = vsel %vm1561, %v7037, %v8266
      %v8682 = vsel %vm1561, %v7040, %v8268
      %v8683 = vsel %vm1561, %v7043, %v8270
      %v8684 = vsel %vm1561, %v7044, %v8272
      %v8685 = vsel %vm1561, %v7045, %v8274
      %v8686 = vsel %vm1561, %v7046, %v8276
      %v8687 = vsel %vm1561, %v7047, %v8278
      %v8688 = vsel %vm1561, %v7048, %v8280
      %v8689 = vsel %vm1561, %v7049, %v8282
      %v8690 = vsel %vm1561, %v7050, %v8284
      %v8691 = vsel %vm1561, %v7051, %v8286
      %v8692 = vsel %vm1561, %v7052, %v8288
      %v8693 = vsel %vm1635, %v8679, %v8309
      %v8694 = vsel %vm1635, %v8680, %v8311
      %v8695 = vsel %vm1635, %v8681, %v8313
      %v8696 = vsel %vm1635, %v8682, %v8315
      %v8697 = vsel %vm1635, %v8683, %v8317
      %v8698 = vsel %vm1635, %v8684, %v8319
      %v8699 = vsel %vm1635, %v8685, %v8321
      %v8700 = vsel %vm1635, %v8686, %v8323
      %v8701 = vsel %vm1635, %v8687, %v8325
      %v8702 = vsel %vm1635, %v8688, %v8327
      %v8703 = vsel %vm1635, %v8689, %v8329
      %v8704 = vsel %vm1635, %v8690, %v8331
      %v8705 = vsel %vm1635, %v8691, %v8333
      %v8706 = vsel %vm1635, %v8692, %v8335
      %v8707 = vsel %vm1709, %v8693, %v8356
      %v8708 = vsel %vm1709, %v8694, %v8358
      %v8709 = vsel %vm1709, %v8695, %v8360
      %v8710 = vsel %vm1709, %v8696, %v8362
      %v8711 = vsel %vm1709, %v8697, %v8364
      %v8712 = vsel %vm1709, %v8698, %v8366
      %v8713 = vsel %vm1709, %v8699, %v8368
      %v8714 = vsel %vm1709, %v8700, %v8370
      %v8715 = vsel %vm1709, %v8701, %v8372
      %v8716 = vsel %vm1709, %v8702, %v8374
      %v8717 = vsel %vm1709, %v8703, %v8376
      %v8718 = vsel %vm1709, %v8704, %v8378
      %v8719 = vsel %vm1709, %v8705, %v8380
      %v8720 = vsel %vm1709, %v8706, %v8382
      %v8721 = vsel %vm1783, %v8046, %v8424
      %v8722 = vsel %vm1783, %v8047, %v8426
      %v8723 = vsel %vm1783, %v8707, %v8428
      %v8724 = vsel %vm1783, %v8048, %v8430
      %v8725 = vsel %vm1783, %v8049, %v8432
      %v8726 = vsel %vm1783, %v8708, %v8434
      %v8727 = vsel %vm1783, %v8050, %v8436
      %v8728 = vsel %vm1783, %v8051, %v8438
      %v8729 = vsel %vm1783, %v8709, %v8440
      %v8730 = vsel %vm1783, %v8052, %v8442
      %v8731 = vsel %vm1783, %v8053, %v8444
      %v8732 = vsel %vm1783, %v8710, %v8446
      %v8733 = vsel %vm1783, %v8054, %v8448
      %v8734 = vsel %vm1783, %v8055, %v8450
      %v8735 = vsel %vm1783, %v8711, %v8452
      %v8736 = vsel %vm1783, %v8712, %v8454
      %v8737 = vsel %vm1783, %v8713, %v8456
      %v8738 = vsel %vm1783, %v8714, %v8458
      %v8739 = vsel %vm1783, %v8715, %v8460
      %v8740 = vsel %vm1783, %v8716, %v8462
      %v8741 = vsel %vm1783, %v8717, %v8464
      %v8742 = vsel %vm1783, %v8718, %v8466
      %v8743 = vsel %vm1783, %v8719, %v8468
      %v8744 = vsel %vm1783, %v8720, %v8470
      %v8745 = vsel %vm4347, %v8721, %v7447
      %v8746 = vsel %vm4347, %v8722, %v7449
      %v8747 = vsel %vm4347, %v8723, %v8497
      %v8748 = vsel %vm4347, %v8724, %v7451
      %v8749 = vsel %vm4347, %v8725, %v7453
      %v8750 = vsel %vm4347, %v8726, %v8499
      %v8751 = vsel %vm4347, %v8727, %v7455
      %v8752 = vsel %vm4347, %v8728, %v7457
      %v8753 = vsel %vm4347, %v8729, %v8501
      %v8754 = vsel %vm4347, %v8730, %v7459
      %v8755 = vsel %vm4347, %v8731, %v7461
      %v8756 = vsel %vm4347, %v8732, %v8503
      %v8757 = vsel %vm4347, %v8733, %v7463
      %v8758 = vsel %vm4347, %v8734, %v7465
      %v8759 = vsel %vm4347, %v8735, %v8505
      %v8760 = vsel %vm4347, %v8736, %v8507
      %v8761 = vsel %vm4347, %v8737, %v8509
      %v8762 = vsel %vm4347, %v8738, %v8511
      %v8763 = vsel %vm4347, %v8739, %v8513
      %v8764 = vsel %vm4347, %v8740, %v8515
      %v8765 = vsel %vm4347, %v8741, %v8517
      %v8766 = vsel %vm4347, %v8742, %v8519
      %v8767 = vsel %vm4347, %v8743, %v8521
      %v8768 = vsel %vm4347, %v8744, %v8523
      %v8769 = vsel %vm4421, %v8745, %v7501
      %v8770 = vsel %vm4421, %v8746, %v7503
      %v8771 = vsel %vm4421, %v8747, %v8544
      %v8772 = vsel %vm4421, %v8748, %v7505
      %v8773 = vsel %vm4421, %v8749, %v7507
      %v8774 = vsel %vm4421, %v8750, %v8546
      %v8775 = vsel %vm4421, %v8751, %v7509
      %v8776 = vsel %vm4421, %v8752, %v7511
      %v8777 = vsel %vm4421, %v8753, %v8548
      %v8778 = vsel %vm4421, %v8754, %v7513
      %v8779 = vsel %vm4421, %v8755, %v7515
      %v8780 = vsel %vm4421, %v8756, %v8550
      %v8781 = vsel %vm4421, %v8757, %v7517
      %v8782 = vsel %vm4421, %v8758, %v7519
      %v8783 = vsel %vm4421, %v8759, %v8552
      %v8784 = vsel %vm4421, %v8760, %v8554
      %v8785 = vsel %vm4421, %v8761, %v8556
      %v8786 = vsel %vm4421, %v8762, %v8558
      %v8787 = vsel %vm4421, %v8763, %v8560
      %v8788 = vsel %vm4421, %v8764, %v8562
      %v8789 = vsel %vm4421, %v8765, %v8564
      %v8790 = vsel %vm4421, %v8766, %v8566
      %v8791 = vsel %vm4421, %v8767, %v8568
      %v8792 = vsel %vm4421, %v8768, %v8570
      %v8793 = vsel %vm4495, %v8769, %v7554
      %v8794 = vsel %vm4495, %v8770, %v7556
      %v8795 = vsel %vm4495, %v8771, %v8591
      %v8796 = vsel %vm4495, %v8772, %v7558
      %v8797 = vsel %vm4495, %v8773, %v7560
      %v8798 = vsel %vm4495, %v8774, %v8593
      %v8799 = vsel %vm4495, %v8775, %v7562
      %v8800 = vsel %vm4495, %v8776, %v7564
      %v8801 = vsel %vm4495, %v8777, %v8595
      %v8802 = vsel %vm4495, %v8778, %v7566
      %v8803 = vsel %vm4495, %v8779, %v7568
      %v8804 = vsel %vm4495, %v8780, %v8597
      %v8805 = vsel %vm4495, %v8781, %v7570
      %v8806 = vsel %vm4495, %v8782, %v7572
      %v8807 = vsel %vm4495, %v8783, %v8599
      %v8808 = vsel %vm4495, %v8784, %v8601
      %v8809 = vsel %vm4495, %v8785, %v8603
      %v8810 = vsel %vm4495, %v8786, %v8605
      %v8811 = vsel %vm4495, %v8787, %v8607
      %v8812 = vsel %vm4495, %v8788, %v8609
      %v8813 = vsel %vm4495, %v8789, %v8611
      %v8814 = vsel %vm4495, %v8790, %v8613
      %v8815 = vsel %vm4495, %v8791, %v8615
      %v8816 = vsel %vm4495, %v8792, %v8617
      %v8817 = vsel %vm5337, %v8793, %v7607
      %v8818 = vsel %vm5337, %v8794, %v7609
      %v8819 = vsel %vm5337, %v8795, %v8638
      %v8820 = vsel %vm5337, %v8796, %v7611
      %v8821 = vsel %vm5337, %v8797, %v7613
      %v8822 = vsel %vm5337, %v8798, %v8640
      %v8823 = vsel %vm5337, %v8799, %v7615
      %v8824 = vsel %vm5337, %v8800, %v7617
      %v8825 = vsel %vm5337, %v8801, %v8642
      %v8826 = vsel %vm5337, %v8802, %v7619
      %v8827 = vsel %vm5337, %v8803, %v7621
      %v8828 = vsel %vm5337, %v8804, %v8644
      %v8829 = vsel %vm5337, %v8805, %v7623
      %v8830 = vsel %vm5337, %v8806, %v7625
      %v8831 = vsel %vm5337, %v8807, %v8646
      %v8832 = vsel %vm5337, %v8808, %v8648
      %v8833 = vsel %vm5337, %v8809, %v8650
      %v8834 = vsel %vm5337, %v8810, %v8652
      %v8835 = vsel %vm5337, %v8811, %v8654
      %v8836 = vsel %vm5337, %v8812, %v8656
      %v8837 = vsel %vm5337, %v8813, %v8658
      %v8838 = vsel %vm5337, %v8814, %v8660
      %v8839 = vsel %vm5337, %v8815, %v8662
      %v8840 = vsel %vm5337, %v8816, %v8664
      %v8865 = vrot.slane %v8817, 1
      %v8866 = vrot.slane %v8818, 1
      %v8867 = vsel %vm512, %v8865, %v8866
      %v8868 = vrot.slane %v8819, 1
      %v8869 = vsel %vm512, %v8866, %v8868
      %v8870 = vrot.slane %v8820, 1
      %v8871 = vrot.slane %v8821, 1
      %v8872 = vsel %vm512, %v8870, %v8871
      %v8873 = vrot.slane %v8822, 1
      %v8874 = vsel %vm512, %v8871, %v8873
      %v8875 = vrot.slane %v8823, 1
      %v8876 = vrot.slane %v8824, 1
      %v8877 = vsel %vm512, %v8875, %v8876
      %v8878 = vrot.slane %v8825, 1
      %v8879 = vsel %vm512, %v8876, %v8878
      %v8880 = vrot.slane %v8826, 1
      %v8881 = vrot.slane %v8827, 1
      %v8882 = vsel %vm512, %v8880, %v8881
      %v8883 = vrot.slane %v8828, 1
      %v8884 = vsel %vm512, %v8881, %v8883
      %v8885 = vrot.slane %v8829, 1
      %v8886 = vrot.slane %v8830, 1
      %v8887 = vsel %vm512, %v8885, %v8886
      %v8888 = vrot.slane %v8831, 1
      %v8889 = vsel %vm512, %v8886, %v8888
      %v8890 = vrot.slane %v8832, 1
      %v8891 = vrot.slane %v8833, 1
      %v8892 = vsel %vm512, %v8890, %v8891
      %v8893 = vrot.slane %v8834, 1
      %v8894 = vsel %vm512, %v8891, %v8893
      %v8895 = vrot.slane %v8835, 1
      %v8896 = vrot.slane %v8836, 1
      %v8897 = vsel %vm512, %v8895, %v8896
      %v8898 = vrot.slane %v8837, 1
      %v8899 = vsel %vm512, %v8896, %v8898
      %v8900 = vrot.slane %v8838, 1
      %v8901 = vrot.slane %v8839, 1
      %v8902 = vsel %vm512, %v8900, %v8901
      %v8903 = vrot.slane %v8840, 1
      %v8904 = vsel %vm512, %v8901, %v8903
      %v8921 = vpack.c.bf16 %v8240, %v8239
      %v8922 = vpack.c.bf16 %v8869, %v8867
      %v8923 = vpack.c.bf16 %v8242, %v8241
      %v8924 = vpack.c.bf16 %v8874, %v8872
      %v8925 = vpack.c.bf16 %v8244, %v8243
      %v8926 = vpack.c.bf16 %v8879, %v8877
      %v8927 = vpack.c.bf16 %v8246, %v8245
      %v8928 = vpack.c.bf16 %v8884, %v8882
      %v8929 = vpack.c.bf16 %v8248, %v8247
      %v8930 = vpack.c.bf16 %v8889, %v8887
      %v8931 = vpack.c.bf16 %v8250, %v8249
      %v8932 = vpack.c.bf16 %v8894, %v8892
      %v8933 = vpack.c.bf16 %v8252, %v8251
      %v8934 = vpack.c.bf16 %v8899, %v8897
      %v8935 = vpack.c.bf16 %v8254, %v8253
      %v8936 = vpack.c.bf16 %v8904, %v8902
      %v8937 = vld [vmem:[%s6] sm:$0xf]
      %v8938 = vld [vmem:[%s6 + $0x4] sm:$0xf]
      %v8939 = vld [vmem:[%s6 + $0x8] sm:$0xf]
      %v8940 = vld [vmem:[%s6 + $0xc] sm:$0xf]
      %v8941 = vld [vmem:[%s6 + $0x10] sm:$0xf]
      %v8942 = vld [vmem:[%s6 + $0x14] sm:$0xf]
      %v8943 = vld [vmem:[%s6 + $0x18] sm:$0xf]
      %v8944 = vld [vmem:[%s6 + $0x1c] sm:$0xf]
      %v8945 = vld [vmem:[%s6 + $0x20] sm:$0xf]
      %v8946 = vld [vmem:[%s6 + $0x24] sm:$0xf]
      %v8947 = vld [vmem:[%s6 + $0x28] sm:$0xf]
      %v8948 = vld [vmem:[%s6 + $0x2c] sm:$0xf]
      %v8949 = vld [vmem:[%s6 + $0x30] sm:$0xf]
      %v8950 = vld [vmem:[%s6 + $0x34] sm:$0xf]
      %v8951 = vld [vmem:[%s6 + $0x38] sm:$0xf]
      %v8952 = vld [vmem:[%s6 + $0x3c] sm:$0xf]
      %v8953 = vld [vmem:[%s6 + $0x40] sm:$0xf]
      %v8954 = vld [vmem:[%s6 + $0x44] sm:$0xf]
      %v8955 = vld [vmem:[%s6 + $0x48] sm:$0xf]
      %v8956 = vld [vmem:[%s6 + $0x4c] sm:$0xf]
      %v8957 = vld [vmem:[%s6 + $0x50] sm:$0xf]
      %v8958 = vld [vmem:[%s6 + $0x54] sm:$0xf]
      %v8959 = vld [vmem:[%s6 + $0x58] sm:$0xf]
      %v8960 = vld [vmem:[%s6 + $0x5c] sm:$0xf]
      %v8961 = vld [vmem:[%s6 + $0x60] sm:$0xf]
      %v8962 = vld [vmem:[%s7] sm:$0x1]
      %v8964 = vlaneseq
      %v8965 = vshrl.u32 %v8964, 7
      %v8966 = vsub.s32 0, %v8965
      %v8967 = vrot.slane %v8962, %v8966
      %v8994 = vunpack.c.l.b16 %v8937
      %v8995 = vunpack.c.l.b16 %v8938
      %v8996 = vunpack.c.l.b16 %v8939
      %v8997 = vunpack.c.l.b16 %v8940
      %v8998 = vunpack.c.l.b16 %v8941
      %v8999 = vunpack.c.l.b16 %v8942
      %v9000 = vunpack.c.l.b16 %v8943
      %v9001 = vunpack.c.l.b16 %v8944
      %v9002 = vunpack.c.l.b16 %v8945
      %v9003 = vunpack.c.l.b16 %v8946
      %v9004 = vunpack.c.l.b16 %v8947
      %v9005 = vunpack.c.l.b16 %v8948
      %v9006 = vunpack.c.l.b16 %v8949
      %v9007 = vunpack.c.l.b16 %v8950
      %v9008 = vunpack.c.l.b16 %v8951
      %v9009 = vunpack.c.l.b16 %v8952
      %v9010 = vunpack.c.l.b16 %v8953
      %v9011 = vunpack.c.l.b16 %v8954
      %v9012 = vunpack.c.l.b16 %v8955
      %v9013 = vunpack.c.l.b16 %v8956
      %v9014 = vunpack.c.l.b16 %v8957
      %v9015 = vunpack.c.l.b16 %v8958
      %v9016 = vunpack.c.l.b16 %v8959
      %v9017 = vunpack.c.l.b16 %v8960
      %v9018 = vunpack.c.l.b16 %v8961
      %v9019 = vpack.c.b16 %v8995, %v8994
      %v9020 = vpack.c.b16 %v8997, %v8996
      %v9021 = vpack.c.b16 %v8999, %v8998
      %v9022 = vpack.c.b16 %v9001, %v9000
      %v9023 = vpack.c.b16 %v9003, %v9002
      %v9024 = vpack.c.b16 %v9005, %v9004
      %v9025 = vpack.c.b16 %v9007, %v9006
      %v9026 = vpack.c.b16 %v9009, %v9008
      %v9027 = vpack.c.b16 %v9011, %v9010
      %v9028 = vpack.c.b16 %v9013, %v9012
      %v9029 = vpack.c.b16 %v9015, %v9014
      %v9030 = vpack.c.b16 %v9017, %v9016
      %v9031 = vpack.c.b16 %v9018, %v9018
      %v9045 = vsel %vm8136, %v8922, 0
      %v9048 = vsel %vm8136, %v8924, 0
      %v9051 = vsel %vm8136, %v8926, 0
      %v9054 = vsel %vm8136, %v8928, 0
      %v9057 = vsel %vm8136, %v8930, 0
      %v9060 = vsel %vm8136, %v8932, 0
      %v9063 = vsel %vm8136, %v8934, 0
      %v9066 = vsel %vm8136, %v8936, 0
      %v9069 = vsel %vm2712, %v9031, 0
      %9071 = vmatprep.subr.bf16.mxu0 0
      %9072 = vmatpush1.bf16.msra.mxu0 %v9019
      %9073 = vmatprep.subr.bf16.mxu0 0
      %9074 = vmatpush1.bf16.msra.mxu0 %v9020
      %9075 = vmatprep.subr.bf16.mxu0 0
      %9076 = vmatpush1.bf16.msra.mxu0 %v9021
      %9077 = vmatprep.subr.bf16.mxu0 0
      %9078 = vmatpush1.bf16.msra.mxu0 %v9022
      %9079 = vmatprep.subr.bf16.mxu0 0
      %9080 = vmatpush1.bf16.msra.mxu0 %v9023
      %9081 = vmatprep.subr.bf16.mxu0 0
      %9082 = vmatpush1.bf16.msra.mxu0 %v9024
      %9083 = vmatprep.subr.bf16.mxu0 0
      %9084 = vmatpush1.bf16.msra.mxu0 %v9025
      %9085 = vmatprep.subr.bf16.mxu0 0
      %9086 = vmatpush1.bf16.msra.mxu0 %v9026
      %9087 = vmatprep.subr.bf16.mxu0 0
      %9088 = vmatpush1.bf16.msra.mxu0 %v9027
      %9089 = vmatprep.subr.bf16.mxu0 0
      %9090 = vmatpush1.bf16.msra.mxu0 %v9028
      %9091 = vmatprep.subr.bf16.mxu0 0
      %9092 = vmatpush1.bf16.msra.mxu0 %v9029
      %9093 = vmatprep.subr.bf16.mxu0 0
      %9094 = vmatpush1.bf16.msra.mxu0 %v9030
      %9095 = vmatprep.subr.bf16.mxu0 0
      %9096 = vmatpush1.bf16.msra.mxu0 %v9069
      %9097 = vmatprep.subr.bf16.mxu0 0
      %9098 = vmatpush1.bf16.msra.mxu0 0
      %9099 = vmatprep.subr.bf16.mxu0 0
      %9100 = vmatpush1.bf16.msra.mxu0 0
      %9101 = vmatprep.subr.bf16.mxu0 0
      %9102 = vmatpush1.bf16.msra.mxu0 0
      %9103 = vmatprep.mubr.bf16.mxu0 %v9045
      %9104 = vmatmul.mubr.bf16.gmra.mrb[0].mxu0 %v8921
      %v9105 = vpop.f32.mrb[0].mxu0
      %v9106 = vadd.f32 %v8967, %v9105
      %v9107 = vpop.f32.mrb[0].mxu0
      %v9108 = vpop.f32.mrb[0].mxu0
      %v9109 = vadd.f32 %v8967, %v9108
      %v9110 = vpop.f32.mrb[0].mxu0
      %9111 = vmatprep.mubr.bf16.mxu0 %v9048
      %9112 = vmatmul.mubr.bf16.gmra.mrb[0].mxu0 %v8923
      %v9113 = vpop.f32.mrb[0].mxu0
      %v9114 = vadd.f32 %v8967, %v9113
      %v9115 = vpop.f32.mrb[0].mxu0
      %v9116 = vpop.f32.mrb[0].mxu0
      %v9117 = vadd.f32 %v8967, %v9116
      %v9118 = vpop.f32.mrb[0].mxu0
      %9119 = vmatprep.mubr.bf16.mxu0 %v9051
      %9120 = vmatmul.mubr.bf16.gmra.mrb[0].mxu0 %v8925
      %v9121 = vpop.f32.mrb[0].mxu0
      %v9122 = vadd.f32 %v8967, %v9121
      %v9123 = vpop.f32.mrb[0].mxu0
      %v9124 = vpop.f32.mrb[0].mxu0
      %v9125 = vadd.f32 %v8967, %v9124
      %v9126 = vpop.f32.mrb[0].mxu0
      %9127 = vmatprep.mubr.bf16.mxu0 %v9054
      %9128 = vmatmul.mubr.bf16.gmra.mrb[0].mxu0 %v8927
      %v9129 = vpop.f32.mrb[0].mxu0
      %v9130 = vadd.f32 %v8967, %v9129
      %v9131 = vpop.f32.mrb[0].mxu0
      %v9132 = vpop.f32.mrb[0].mxu0
      %v9133 = vadd.f32 %v8967, %v9132
      %v9134 = vpop.f32.mrb[0].mxu0
      %9135 = vmatprep.mubr.bf16.mxu0 %v9057
      %9136 = vmatmul.mubr.bf16.gmra.mrb[0].mxu0 %v8929
      %v9137 = vpop.f32.mrb[0].mxu0
      %v9138 = vadd.f32 %v8967, %v9137
      %v9139 = vpop.f32.mrb[0].mxu0
      %v9140 = vpop.f32.mrb[0].mxu0
      %v9141 = vadd.f32 %v8967, %v9140
      %v9142 = vpop.f32.mrb[0].mxu0
      %9143 = vmatprep.mubr.bf16.mxu0 %v9060
      %9144 = vmatmul.mubr.bf16.gmra.mrb[0].mxu0 %v8931
      %v9145 = vpop.f32.mrb[0].mxu0
      %v9146 = vadd.f32 %v8967, %v9145
      %v9147 = vpop.f32.mrb[0].mxu0
      %v9148 = vpop.f32.mrb[0].mxu0
      %v9149 = vadd.f32 %v8967, %v9148
      %v9150 = vpop.f32.mrb[0].mxu0
      %9151 = vmatprep.mubr.bf16.mxu0 %v9063
      %9152 = vmatmul.mubr.bf16.gmra.mrb[0].mxu0 %v8933
      %v9153 = vpop.f32.mrb[0].mxu0
      %v9154 = vadd.f32 %v8967, %v9153
      %v9155 = vpop.f32.mrb[0].mxu0
      %v9156 = vpop.f32.mrb[0].mxu0
      %v9157 = vadd.f32 %v8967, %v9156
      %v9158 = vpop.f32.mrb[0].mxu0
      %9159 = vmatprep.mubr.bf16.mxu0 %v9066
      %9160 = vmatmul.mubr.bf16.gmra.mrb[0].mxu0 %v8935
      %v9161 = vpop.f32.mrb[0].mxu0
      %v9162 = vadd.f32 %v8967, %v9161
      %v9163 = vpop.f32.mrb[0].mxu0
      %v9164 = vpop.f32.mrb[0].mxu0
      %v9165 = vadd.f32 %v8967, %v9164
      %v9166 = vpop.f32.mrb[0].mxu0
      %9167 = vdwg.mxu0
      %v9168 = vpack.c.bf16 %v9109, %v9106
      %v9169 = vpack.c.bf16 %v9117, %v9114
      %v9170 = vpack.c.bf16 %v9125, %v9122
      %v9171 = vpack.c.bf16 %v9133, %v9130
      %v9172 = vpack.c.bf16 %v9141, %v9138
      %v9173 = vpack.c.bf16 %v9149, %v9146
      %v9174 = vpack.c.bf16 %v9157, %v9154
      %v9175 = vpack.c.bf16 %v9165, %v9162
      %v9176 = vld [vmem:[%s8] sm:$0xf]
      %v9177 = vld [vmem:[%s9] sm:$0x1]
      %v9179 = vlaneseq
      %v9180 = vshrl.u32 %v9179, 7
      %v9181 = vsub.s32 0, %v9180
      %v9182 = vrot.slane %v9177, %v9181
      %v9185 = vsel %vm1561, %v9168, 0
      %v9188 = vsel %vm1561, %v9169, 0
      %v9191 = vsel %vm1561, %v9170, 0
      %v9194 = vsel %vm1561, %v9171, 0
      %v9197 = vsel %vm1561, %v9172, 0
      %v9200 = vsel %vm1561, %v9173, 0
      %v9203 = vsel %vm1561, %v9174, 0
      %v9206 = vsel %vm1561, %v9175, 0
      %v9209 = vsel %vm2712, %v9176, 0
      %9211 = vmatprep.subr.bf16.mxu0 0
      %9212 = vmatpush1.bf16.msra.mxu0 %v9209
      %9213 = vmatprep.subr.bf16.mxu0 0
      %9214 = vmatpush1.bf16.msra.mxu0 0
      %9215 = vmatprep.subr.bf16.mxu0 0
      %9216 = vmatpush1.bf16.msra.mxu0 0
      %9217 = vmatprep.subr.bf16.mxu0 0
      %9218 = vmatpush1.bf16.msra.mxu0 0
      %9219 = vmatprep.subr.bf16.mxu0 0
      %9220 = vmatpush1.bf16.msra.mxu0 0
      %9221 = vmatprep.subr.bf16.mxu0 0
      %9222 = vmatpush1.bf16.msra.mxu0 0
      %9223 = vmatprep.subr.bf16.mxu0 0
      %9224 = vmatpush1.bf16.msra.mxu0 0
      %9225 = vmatprep.subr.bf16.mxu0 0
      %9226 = vmatpush1.bf16.msra.mxu0 0
      %9227 = vmatprep.subr.bf16.mxu0 0
      %9228 = vmatpush1.bf16.msra.mxu0 0
      %9229 = vmatprep.subr.bf16.mxu0 0
      %9230 = vmatpush1.bf16.msra.mxu0 0
      %9231 = vmatprep.subr.bf16.mxu0 0
      %9232 = vmatpush1.bf16.msra.mxu0 0
      %9233 = vmatprep.subr.bf16.mxu0 0
      %9234 = vmatpush1.bf16.msra.mxu0 0
      %9235 = vmatprep.subr.bf16.mxu0 0
      %9236 = vmatpush1.bf16.msra.mxu0 0
      %9237 = vmatprep.subr.bf16.mxu0 0
      %9238 = vmatpush1.bf16.msra.mxu0 0
      %9239 = vmatprep.subr.bf16.mxu0 0
      %9240 = vmatpush1.bf16.msra.mxu0 0
      %9241 = vmatprep.subr.bf16.mxu0 0
      %9242 = vmatpush1.bf16.msra.mxu0 0
      %9243 = vmatprep.mubr.bf16.mxu0 0
      %9244 = vmatmul.mubr.bf16.gmra.mrb[0].mxu0 %v9185
      %v9245 = vpop.f32.mrb[0].mxu0
      %v9246 = vadd.f32 %v9182, %v9245
      %v9247 = vpop.f32.mrb[0].mxu0
      %v9248 = vpop.f32.mrb[0].mxu0
      %v9249 = vadd.f32 %v9182, %v9248
      %v9250 = vpop.f32.mrb[0].mxu0
      %9251 = vmatprep.mubr.bf16.mxu0 0
      %9252 = vmatmul.mubr.bf16.gmra.mrb[0].mxu0 %v9188
      %v9253 = vpop.f32.mrb[0].mxu0
      %v9254 = vadd.f32 %v9182, %v9253
      %v9255 = vpop.f32.mrb[0].mxu0
      %v9256 = vpop.f32.mrb[0].mxu0
      %v9257 = vadd.f32 %v9182, %v9256
      %v9258 = vpop.f32.mrb[0].mxu0
      %9259 = vmatprep.mubr.bf16.mxu0 0
      %9260 = vmatmul.mubr.bf16.gmra.mrb[0].mxu0 %v9191
      %v9261 = vpop.f32.mrb[0].mxu0
      %v9262 = vadd.f32 %v9182, %v9261
      %v9263 = vpop.f32.mrb[0].mxu0
      %v9264 = vpop.f32.mrb[0].mxu0
      %v9265 = vadd.f32 %v9182, %v9264
      %v9266 = vpop.f32.mrb[0].mxu0
      %9267 = vmatprep.mubr.bf16.mxu0 0
      %9268 = vmatmul.mubr.bf16.gmra.mrb[0].mxu0 %v9194
      %v9269 = vpop.f32.mrb[0].mxu0
      %v9270 = vadd.f32 %v9182, %v9269
      %v9271 = vpop.f32.mrb[0].mxu0
      %v9272 = vpop.f32.mrb[0].mxu0
      %v9273 = vadd.f32 %v9182, %v9272
      %v9274 = vpop.f32.mrb[0].mxu0
      %9275 = vmatprep.mubr.bf16.mxu0 0
      %9276 = vmatmul.mubr.bf16.gmra.mrb[0].mxu0 %v9197
      %v9277 = vpop.f32.mrb[0].mxu0
      %v9278 = vadd.f32 %v9182, %v9277
      %v9279 = vpop.f32.mrb[0].mxu0
      %v9280 = vpop.f32.mrb[0].mxu0
      %v9281 = vadd.f32 %v9182, %v9280
      %v9282 = vpop.f32.mrb[0].mxu0
      %9283 = vmatprep.mubr.bf16.mxu0 0
      %9284 = vmatmul.mubr.bf16.gmra.mrb[0].mxu0 %v9200
      %v9285 = vpop.f32.mrb[0].mxu0
      %v9286 = vadd.f32 %v9182, %v9285
      %v9287 = vpop.f32.mrb[0].mxu0
      %v9288 = vpop.f32.mrb[0].mxu0
      %v9289 = vadd.f32 %v9182, %v9288
      %v9290 = vpop.f32.mrb[0].mxu0
      %9291 = vmatprep.mubr.bf16.mxu0 0
      %9292 = vmatmul.mubr.bf16.gmra.mrb[0].mxu0 %v9203
      %v9293 = vpop.f32.mrb[0].mxu0
      %v9294 = vadd.f32 %v9182, %v9293
      %v9295 = vpop.f32.mrb[0].mxu0
      %v9296 = vpop.f32.mrb[0].mxu0
      %v9297 = vadd.f32 %v9182, %v9296
      %v9298 = vpop.f32.mrb[0].mxu0
      %9299 = vmatprep.mubr.bf16.mxu0 0
      %9300 = vmatmul.mubr.bf16.gmra.mrb[0].mxu0 %v9206
      %v9301 = vpop.f32.mrb[0].mxu0
      %v9302 = vadd.f32 %v9182, %v9301
      %v9303 = vpop.f32.mrb[0].mxu0
      %v9304 = vpop.f32.mrb[0].mxu0
      %v9305 = vadd.f32 %v9182, %v9304
      %v9306 = vpop.f32.mrb[0].mxu0
      %9307 = vdwg.mxu0
      %v9308 = vld [vmem:[%s411] sm:$0xff]
      %v9309 = vld [vmem:[%s411 + $0x8] sm:$0xff]
      %v9310 = vld [vmem:[%s411 + $0x10] sm:$0xff]
      %v9311 = vld [vmem:[%s411 + $0x18] sm:$0xff]
      %v9312 = vld [vmem:[%s411 + $0x20] sm:$0xff]
      %v9313 = vld [vmem:[%s411 + $0x28] sm:$0xff]
      %v9314 = vld [vmem:[%s411 + $0x30] sm:$0xff]
      %v9315 = vld [vmem:[%s411 + $0x38] sm:$0xff]
      %v9316 = vld [vmem:[%s411 + $0x40] sm:$0xff]
      %v9317 = vld [vmem:[%s411 + $0x48] sm:$0xff]
      %v9318 = vld [vmem:[%s411 + $0x50] sm:$0xff]
      %v9319 = vld [vmem:[%s411 + $0x58] sm:$0xff]
      %v9320 = vld [vmem:[%s411 + $0x60] sm:$0xff]
      %v9321 = vld [vmem:[%s411 + $0x68] sm:$0xff]
      %v9322 = vld [vmem:[%s411 + $0x70] sm:$0xff]
      %v9323 = vld [vmem:[%s411 + $0x78] sm:$0xff]
      %v9324 = vadd.f32 %v9246, %v9308
      %v9325 = vadd.f32 %v9249, %v9309
      %v9326 = vadd.f32 %v9254, %v9310
      %v9327 = vadd.f32 %v9257, %v9311
      %v9328 = vadd.f32 %v9262, %v9312
      %v9329 = vadd.f32 %v9265, %v9313
      %v9330 = vadd.f32 %v9270, %v9314
      %v9331 = vadd.f32 %v9273, %v9315
      %v9332 = vadd.f32 %v9278, %v9316
      %v9333 = vadd.f32 %v9281, %v9317
      %v9334 = vadd.f32 %v9286, %v9318
      %v9335 = vadd.f32 %v9289, %v9319
      %v9336 = vadd.f32 %v9294, %v9320
      %v9337 = vadd.f32 %v9297, %v9321
      %v9338 = vadd.f32 %v9302, %v9322
      %v9339 = vadd.f32 %v9305, %v9323
      %9340 = vst.msk [vmem:[%s422] sm:$0xff] %vm1524, %v9324
      %9341 = vst.msk [vmem:[%s422 + $0x8] sm:$0xff] %vm1524, %v9325
      %9342 = vst.msk [vmem:[%s422 + $0x10] sm:$0xff] %vm1524, %v9326
      %9343 = vst.msk [vmem:[%s422 + $0x18] sm:$0xff] %vm1524, %v9327
      %9344 = vst.msk [vmem:[%s422 + $0x20] sm:$0xff] %vm1524, %v9328
      %9345 = vst.msk [vmem:[%s422 + $0x28] sm:$0xff] %vm1524, %v9329
      %9346 = vst.msk [vmem:[%s422 + $0x30] sm:$0xff] %vm1524, %v9330
      %9347 = vst.msk [vmem:[%s422 + $0x38] sm:$0xff] %vm1524, %v9331
      %9348 = vst.msk [vmem:[%s422 + $0x40] sm:$0xff] %vm1524, %v9332
      %9349 = vst.msk [vmem:[%s422 + $0x48] sm:$0xff] %vm1524, %v9333
      %9350 = vst.msk [vmem:[%s422 + $0x50] sm:$0xff] %vm1524, %v9334
      %9351 = vst.msk [vmem:[%s422 + $0x58] sm:$0xff] %vm1524, %v9335
      %9352 = vst.msk [vmem:[%s422 + $0x60] sm:$0xff] %vm1524, %v9336
      %9353 = vst.msk [vmem:[%s422 + $0x68] sm:$0xff] %vm1524, %v9337
      %9354 = vst.msk [vmem:[%s422 + $0x70] sm:$0xff] %vm1524, %v9338
      %9355 = vst.msk [vmem:[%s422 + $0x78] sm:$0xff] %vm1524, %v9339
      %s9356 = smul.u32 8, %s26
      %p9357 = scmp.lt.s32.totalorder %s25, 1
      %s9358 = scalar_select %p9357, %s25, 1
      %p9359 = scmp.lt.s32.totalorder %s9356, 15
      %s9360 = scalar_select %p9359, %s9356, 15
      %s9361 = smul.addr %s9360, 2
      %s9362 = smul.addr %s9358, 32
      %s9363 = sadd.s32 %s9361, %s9362
      %s9364 = smul.addr %s9363, 8
      %s9365 = scalar_lea.vmem %s10, %s9364
      // Predicated region
      $region61: #{rmc_forward.2} parent=59 // pred_check
        %p9366 = pneg %p275
      $region62: #{rmc_forward.2} parent=59 // pred_check_branch
        %9368 = sbr.rel (%p9366) target = $region64
      $region63: #{rmc_forward.2} parent=59 // pred_region
        %s9369 = smul.u32 8, %s26
      $region64: #{rmc_forward.2} parent=59 // pred_fallthru
        _
    $region60: #{rmc_forward.2} parent=5 // pred_fallthru
      _
    %p9370 = scmp.le.s32.totalorder 2, %s16
    // Predicated region
    $region65: #{rmc_forward.2} parent=5 // pred_check
      %p9371 = pneg %p9370
    $region66: #{rmc_forward.2} parent=5 // pred_check_branch
      %9373 = sbr.rel (%p9371) target = $region68
    $region67: #{rmc_forward.2} parent=5 // pred_region
      %s9374 = ssub.s32 %s16, 2
      // Predicated region
      $region69: #{rmc_forward.2} parent=67 // pred_check
        %p9375 = pneg %p281
      $region70: #{rmc_forward.2} parent=67 // pred_check_branch
        %9377 = sbr.rel (%p9375) target = $region72
      $region71: #{rmc_forward.2} parent=67 // pred_region
        %s9378 = smul.u32 8, %s28
        %p9379 = scmp.lt.s32.totalorder %s27, 1
        %s9380 = scalar_select %p9379, %s27, 1
        %p9381 = scmp.lt.s32.totalorder %s9378, 15
        %s9382 = scalar_select %p9381, %s9378, 15
        %s9383 = smul.addr %s9382, 2
        %s9384 = smul.addr %s9380, 32
        %s9385 = sadd.s32 %s9383, %s9384
        %s9386 = smul.addr %s9385, 8
        %s9387 = scalar_lea.vmem %s10, %s9386
      $region72: #{rmc_forward.2} parent=67 // pred_fallthru
        _
    $region68: #{rmc_forward.2} parent=5 // pred_fallthru
      _
  $region6: #{rmc_forward.2} parent=0 // loop_footer
    %s20 = sadd.s32 1, %s16
  $region7: #{rmc_forward.2} parent=0 // loop_footer_branch
    %15 = sbr.rel target = $region3
  $region8: #{rmc_forward.2} parent=0 // loop_exit
    _

</llo_original>
